<compile_context>
chip_gen: v7x
topology: tpu7x:2x2x1
jax: 0.10.0
libtpu: 0.0.40
codegen_flags: <defaults>
</compile_context>

<pallas_src>
import numpy as np
import jax
import jax.numpy as jnp
from jax.experimental import pallas as pl
from jax.experimental.pallas import tpu as pltpu

_LN_EPS = 1e-5
_VMEM_LIMIT = 64 * 1024 * 1024          # explicit scoped-VMEM budget (v5e default is 16 MiB)


# ----------------------------------------------------------------------------- kernels
def _ln_double_kernel(x_ref, g_ref, b_ref, xn_ref, x4_ref):
    """Fused norm1(x) and norm1(norm1(x)) (attn4 treated as identity)."""
    g = g_ref[...].astype(jnp.float32)
    b = b_ref[...].astype(jnp.float32)
    x = x_ref[...].astype(jnp.float32)
    mu = jnp.mean(x, axis=-1, keepdims=True)
    xc = x - mu
    var = jnp.mean(xc * xc, axis=-1, keepdims=True)
    y = xc * jax.lax.rsqrt(var + _LN_EPS) * g + b
    xn_ref[...] = y.astype(xn_ref.dtype)
    mu2 = jnp.mean(y, axis=-1, keepdims=True)
    yc = y - mu2
    var2 = jnp.mean(yc * yc, axis=-1, keepdims=True)
    x4_ref[...] = (yc * jax.lax.rsqrt(var2 + _LN_EPS) * g + b).astype(x4_ref.dtype)


def _make_window_mha_kernel(nhead, scale, g, Wn, has_bias):
    """Window MHA.  grid = (window_blocks, nhead); per-head weights, f32 accumulator."""

    def kernel(x_ref, wq_ref, wk_ref, wv_ref, bq_ref, bk_ref, bv_ref,
               wo_ref, bo_ref, *rest):
        if has_bias:
            bias_ref, o_ref, acc_ref = rest
        else:
            o_ref, acc_ref = rest
        h = pl.program_id(1)
        dt = x_ref.dtype
        C = x_ref.shape[-1]

        x2 = x_ref[...].reshape(g * Wn, C)          # tile-aligned leading-dim collapse
        # per-head projections: MXU matmuls, f32 accumulation, operands in input dtype
        q = (jnp.dot(x2, wq_ref[0], preferred_element_type=jnp.float32)
             + bq_ref[0].astype(jnp.float32))
        k = (jnp.dot(x2, wk_ref[0], preferred_element_type=jnp.float32)
             + bk_ref[0].astype(jnp.float32))
        v = (jnp.dot(x2, wv_ref[0], preferred_element_type=jnp.float32)
             + bv_ref[0].astype(jnp.float32)).astype(dt)
        q = (q * scale).astype(dt)                  # scale folded into q (g*Wn*hd work)
        k = k.astype(dt)
        hd = q.shape[-1]

        q3 = q.reshape(g, Wn, hd)
        k3 = k.reshape(g, Wn, hd)
        v3 = v.reshape(g, Wn, hd)

        s = jnp.einsum('gqd,gkd->gqk', q3, k3, preferred_element_type=jnp.float32)
        if has_bias:
            s = s + bias_ref[...].astype(jnp.float32)        # (1, Wn, Wn) broadcast
        s = s - jnp.max(s, axis=-1, keepdims=True)
        p = jnp.exp(s)
        p = p * pl.reciprocal(jnp.sum(p, axis=-1, keepdims=True), approx=True)

        att = jnp.einsum('gqk,gkd->gqd', p.astype(dt), v3,
                         preferred_element_type=jnp.float32).astype(dt)
        head_out = jnp.dot(att.reshape(g * Wn, hd), wo_ref[0],
                           preferred_element_type=jnp.float32)

        @pl.when(h == 0)
        def _():
            acc_ref[...] = jnp.zeros_like(acc_ref)

        acc_ref[...] += head_out

        @pl.when(h == nhead - 1)
        def _():
            o_ref[...] = (acc_ref[...] + bo_ref[...].astype(jnp.float32)
                          ).reshape(g, Wn, C).astype(o_ref.dtype)

    return kernel


def _fuse_mlp_kernel(sc_ref, x_ref, x1_ref, x2_ref, x3_ref, x4_ref,
                     ln2g_ref, ln2b_ref, w1_ref, b1_ref, w2_ref, b2_ref, o_ref):
    """Fused: 5-way fusion attention + shortcut residual + norm2 + MLP + residual."""
    dt = sc_ref.dtype
    xn = x_ref[...].astype(jnp.float32)
    ks = (xn,
          x1_ref[...].astype(jnp.float32),
          x2_ref[...].astype(jnp.float32),
          x3_ref[...].astype(jnp.float32),
          x4_ref[...].astype(jnp.float32))
    scores = [jnp.sum(xn * k, axis=-1, keepdims=True) for k in ks]   # 5 x (tm, 1)
    m = scores[0]
    for s in scores[1:]:
        m = jnp.maximum(m, s)
    es = [jnp.exp(s - m) for s in scores]
    denom = es[0] + es[1] + es[2] + es[3] + es[4]
    inv = 1.0 / denom          # 5-element softmax: exact divide, error lands on O(1) output
    y = sc_ref[...].astype(jnp.float32)
    for e, k in zip(es, ks):
        y = y + (e * inv) * k

    # norm2 + MLP + residual
    mu = jnp.mean(y, axis=-1, keepdims=True)
    yc = y - mu
    var = jnp.mean(yc * yc, axis=-1, keepdims=True)
    z = yc * jax.lax.rsqrt(var + _LN_EPS) * ln2g_ref[...] + ln2b_ref[...]
    hdn = jnp.dot(z.astype(dt), w1_ref[...], preferred_element_type=jnp.float32) + b1_ref[...]
    # nn.GELU() is exact-erf; tanh approximation used here (EUP-friendly, ~1e-3 max diff).
    hdn = jax.nn.gelu(hdn, approximate=True)
    o = jnp.dot(hdn.astype(dt), w2_ref[...], preferred_element_type=jnp.float32) + b2_ref[...]
    o_ref[...] = (y + o).astype(o_ref.dtype)


# ----------------------------------------------------------------- tiling helpers
def _row_tile(M, target):
    """Largest multiple-of-8 divisor of M that is <= target (prefers >=2 grid steps)."""
    if M <= 8:
        return M
    cap = min(M, target)
    if M >= 16:
        cap = min(cap, max(8, M // 2))
    tm = (cap // 8) * 8
    while tm >= 8:
        if M % tm == 0:
            return tm
        tm -= 8
    return M


def _window_group(num_windows, Wn, row_target=1024, score_budget=6 * 1024 * 1024):
    """Windows per grid step, capped by token rows AND per-head f32 score bytes."""
    by_rows = max(1, row_target // max(Wn, 1))
    by_scores = max(1, score_budget // max(1, 4 * Wn * Wn))
    g = max(1, min(num_windows, by_rows, by_scores))
    if num_windows >= 2:
        g = min(g, max(1, num_windows // 2))     # keep >= 2 parallel steps (megacore)
    while g > 1 and num_windows % g != 0:
        g -= 1
    return g


# ----------------------------------------------------------------- pallas wrappers
def _layernorm_double(x2d, gamma, beta):
    M, C = x2d.shape
    tm = _row_tile(M, 1024)
    data = pl.BlockSpec((tm, C), lambda i: (i, 0))
    const = pl.BlockSpec((1, C), lambda i: (0, 0))
    return pl.pallas_call(
        _ln_double_kernel,
        out_shape=(jax.ShapeDtypeStruct((M, C), x2d.dtype),
                   jax.ShapeDtypeStruct((M, C), x2d.dtype)),
        grid_spec=pltpu.PrefetchScalarGridSpec(
            num_scalar_prefetch=0, grid=(M // tm,),
            in_specs=[data, const, const],
            out_specs=(data, data)),
        compiler_params=pltpu.CompilerParams(
            dimension_semantics=("parallel",), vmem_limit_bytes=_VMEM_LIMIT),
    )(x2d, gamma.reshape(1, C), beta.reshape(1, C))


def _window_mha(x_wins, ap, nhead, bias=None):
    NW, Wn, C = x_wins.shape
    hd = C // nhead
    scale = hd ** -0.5
    g = _window_group(NW, Wn)
    has_bias = bias is not None
    kern = _make_window_mha_kernel(nhead, scale, g, Wn, has_bias)

    data = pl.BlockSpec((g, Wn, C), lambda i, h: (i, 0, 0))
    head3 = lambda i, h: (h, 0, 0)
    in_specs = [data,
                pl.BlockSpec((1, C, hd), head3),    # wq
                pl.BlockSpec((1, C, hd), head3),    # wk
                pl.BlockSpec((1, C, hd), head3),    # wv
                pl.BlockSpec((1, 1, hd), head3),    # bq
                pl.BlockSpec((1, 1, hd), head3),    # bk
                pl.BlockSpec((1, 1, hd), head3),    # bv
                pl.BlockSpec((1, hd, C), head3),    # wo (per-head rows of proj weight)
                pl.BlockSpec((1, C), lambda i, h: (0, 0))]   # proj bias (constant)
    args = [x_wins, ap['wq'], ap['wk'], ap['wv'], ap['bq'], ap['bk'], ap['bv'],
            ap['wo'], ap['bo']]
    if has_bias:
        in_specs.append(pl.BlockSpec((1, Wn, Wn), head3))
        args.append(bias)

    T = NW * Wn
    flops = 2 * T * C * 3 * C + 2 * T * C * C + 4 * NW * nhead * Wn * Wn * hd
    bytes_accessed = 4 * (2 * T * C) + (NW // g) * nhead * 4 * (4 * C * hd) \
        + (2 * (NW // g) * nhead * Wn * Wn if has_bias else 0)

    return pl.pallas_call(
        kern,
        out_shape=jax.ShapeDtypeStruct((NW, Wn, C), x_wins.dtype),
        grid_spec=pltpu.PrefetchScalarGridSpec(
            num_scalar_prefetch=0,
            grid=(NW // g, nhead),
            in_specs=in_specs,
            out_specs=pl.BlockSpec((g, Wn, C), lambda i, h: (i, 0, 0)),
            scratch_shapes=[pltpu.VMEM((g * Wn, C), jnp.float32)]),
        compiler_params=pltpu.CompilerParams(
            dimension_semantics=("parallel", "arbitrary"),
            vmem_limit_bytes=_VMEM_LIMIT),
        cost_estimate=pl.CostEstimate(flops=int(flops),
                                      transcendentals=int(NW * nhead * Wn * Wn),
                                      bytes_accessed=int(bytes_accessed)),
    )(*args)


def _fuse_mlp(sc2d, xn2d, x1, x2, x3, x4, ln2g, ln2b, mlp):
    M, C = xn2d.shape
    Ch = mlp['w1'].shape[1]
    tm = _row_tile(M, 512)                  # smaller tile: v7x 64 MiB VMEM budget
    data = pl.BlockSpec((tm, C), lambda i: (i, 0))
    cC = pl.BlockSpec((1, C), lambda i: (0, 0))
    cCh = pl.BlockSpec((1, Ch), lambda i: (0, 0))
    w1s = pl.BlockSpec((C, Ch), lambda i: (0, 0))
    w2s = pl.BlockSpec((Ch, C), lambda i: (0, 0))
    return pl.pallas_call(
        _fuse_mlp_kernel,
        out_shape=jax.ShapeDtypeStruct((M, C), sc2d.dtype),
        grid_spec=pltpu.PrefetchScalarGridSpec(
            num_scalar_prefetch=0, grid=(M // tm,),
            in_specs=[data] * 6 + [cC, cC, w1s, cCh, w2s, cC],
            out_specs=data),
        compiler_params=pltpu.CompilerParams(
            dimension_semantics=("parallel",), vmem_limit_bytes=_VMEM_LIMIT),
        cost_estimate=pl.CostEstimate(flops=int(4 * M * C * Ch + 12 * M * C),
                                      transcendentals=int(M * Ch),
                                      bytes_accessed=int(4 * (7 * M * C + 2 * C * Ch))),
    )(sc2d, xn2d, x1, x2, x3, x4, ln2g.reshape(1, C), ln2b.reshape(1, C),
      mlp['w1'], mlp['b1'], mlp['w2'], mlp['b2'])


# ------------------------------------------------------------------- layout glue (XLA)
def _window_partition(x, wh, ww):
    B, H, W, C = x.shape
    x = x.reshape(B, H // wh, wh, W // ww, ww, C)
    x = x.transpose(0, 1, 3, 2, 4, 5)
    return x.reshape(-1, wh, ww, C)


def _window_reverse(wins, wh, ww, H, W):
    nH, nW = H // wh, W // ww
    B = wins.shape[0] // (nH * nW)
    x = wins.reshape(B, nH, nW, wh, ww, -1)
    x = x.transpose(0, 1, 3, 2, 4, 5)
    return x.reshape(B, H, W, -1)


def _split_int(num):
    return num // 2, num - num // 2


def _seq_padding(x, dividable_size, resolution):
    H, W = resolution
    B, L, C = x.shape
    dh, dw = dividable_size
    rh, rw = H % dh, W % dw
    pt, pb = _split_int(dh - rh) if rh != 0 else (0, 0)
    pleft, pright = _split_int(dw - rw) if rw != 0 else (0, 0)
    img = x.transpose(0, 2, 1).reshape(B, C, H, W)
    img = jnp.pad(img, ((0, 0), (0, 0), (pt, pb), (pleft, pright)))
    Hp, Wp = H + pt + pb, W + pleft + pright
    return img.reshape(B, C, Hp * Wp).transpose(0, 2, 1), (Hp, Wp), (pleft, pright, pt, pb)


def _seq_unpad(x, resolution, pad):
    Hp, Wp = resolution
    B, L, C = x.shape
    pleft, pright, pt, pb = pad
    img = x.transpose(0, 2, 1).reshape(B, C, Hp, Wp)
    img = img[:, :, pt:Hp - pb, pleft:Wp - pright]
    H, W = img.shape[-2:]
    return img.reshape(B, C, H * W).transpose(0, 2, 1), (H, W)


def _relative_position_index(wh, ww):
    coords = np.stack(np.meshgrid(np.arange(wh), np.arange(ww), indexing='ij'))
    cf = coords.reshape(2, -1)
    rel = (cf[:, :, None] - cf[:, None, :]).transpose(1, 2, 0).astype(np.int64)
    rel[:, :, 0] += wh - 1
    rel[:, :, 1] += ww - 1
    rel[:, :, 0] *= 2 * ww - 1
    return jnp.asarray(rel.sum(-1), dtype=jnp.int32)


# ------------------------------------------------------------------------ sub-modules
def _strip_attention(xn, H, W, strip_width, is_vertical, ap, nhead):
    B, L, C = xn.shape
    wh, ww = (H, strip_width) if is_vertical else (strip_width, W)
    wins = _window_partition(xn.reshape(B, H, W, C), wh, ww).reshape(-1, wh * ww, C)
    out = _window_mha(wins, ap, nhead, bias=None)
    out = _window_reverse(out.reshape(-1, wh, ww, C), wh, ww, H, W)
    return out.reshape(B, L, C)


def _window_attention_kai(xn, H, W, window_size, ap, nhead):
    B, L, C = xn.shape
    wh, ww = window_size
    wins = _window_partition(xn.reshape(B, H, W, C), wh, ww).reshape(-1, wh * ww, C)
    out = _window_mha(wins, ap, nhead, bias=ap['bias'])
    out = _window_reverse(out.reshape(-1, wh, ww, C), wh, ww, H, W)
    return out.reshape(B, L, C)


def strip_attention_block_forward(x_tuple, params, input_resolution, nhead, strip_width):
    """Forward of StripAttentionBlock.  x_tuple = (x[B,L,C], arbitrary_input, (H, W))."""
    x, arbitrary_input, shape = x_tuple
    if arbitrary_input:
        H, W = shape
        x, (H, W), pad = _seq_padding(x, (2 * strip_width, 2 * strip_width), (H, W))
    else:
        H, W = input_resolution
    B, L, C = x.shape
    assert L == H * W, 'input feature has wrong size'
    M = B * L

    x2d = x.reshape(M, C)
    shortcut2d = x2d

    # fused norm1 + norm1(norm1(x))
    # TODO(synk): Fused_Fourier_Conv_Mixer (attn4) is not defined in the provided
    # source; treated as identity, so x4 = norm1(attn4(norm1(x))) = norm1(norm1(x)).
    xn2d, x4_2d = _layernorm_double(x2d, params['ln1_g'], params['ln1_b'])
    xn = xn2d.reshape(B, L, C)

    # three window attentions on the normed features
    x1 = _strip_attention(xn, H, W, strip_width, False, params['attn1'], nhead)
    x2 = _strip_attention(xn, H, W, strip_width, True, params['attn2'], nhead)
    x3 = _window_attention_kai(xn, H, W, (2 * strip_width, 2 * strip_width),
                               params['attn3'], nhead)

    # fused: 5-way fusion attention + shortcut residual + norm2 + MLP + residual
    out2d = _fuse_mlp(shortcut2d, xn2d, x1.reshape(M, C), x2.reshape(M, C),
                      x3.reshape(M, C), x4_2d,
                      params['ln2_g'], params['ln2_b'], params['mlp'])
    out = out2d.reshape(B, L, C)

    if arbitrary_input:
        out, (H, W) = _seq_unpad(out, (H, W), pad)
    return out, arbitrary_input, (H, W)


# ------------------------------------------------------------------------------ params
def _init_params(key, d_model, nhead, strip_width, mlp_ratio=4, qkv_bias=False):
    # NOTE: weights are stored in matmul layout (in, out) = PyTorch Linear weight^T.
    C = d_model
    Ch = int(C * mlp_ratio)
    ws = 2 * strip_width
    ks = jax.random.split(key, 17)
    n = lambda k, shape, s=0.02: jax.random.normal(k, shape, jnp.float32) * s

    def attn(k4):
        kw, kqb, kp, kb = k4
        return {'wqkv': n(kw, (C, 3 * C)),
                'bqkv': (n(kqb, (3 * C,)) if qkv_bias
                         else jnp.zeros((3 * C,), jnp.float32)),
                'wproj': n(kp, (C, C)),
                'bproj': n(kb, (C,))}

    params = {
        'ln1_g': jnp.ones((C,), jnp.float32), 'ln1_b': jnp.zeros((C,), jnp.float32),
        'ln2_g': jnp.ones((C,), jnp.float32), 'ln2_b': jnp.zeros((C,), jnp.float32),
        'attn1': attn(ks[0:4]), 'attn2': attn(ks[4:8]), 'attn3': attn(ks[8:12]),
        'mlp': {'w1': n(ks[12], (C, Ch)), 'b1': n(ks[13], (1, Ch)),
                'w2': n(ks[14], (Ch, C)), 'b2': n(ks[15], (1, C))},
    }
    params['attn3']['rpb_table'] = n(ks[16], ((2 * ws - 1) * (2 * ws - 1), nhead))
    params['attn3']['rp_index'] = _relative_position_index(ws, ws)
    return params


def _prepare_params(raw, nhead, strip_width):
    """Host-side, once: split packed QKV/proj weights per head; hoist attn3 bias gather."""
    C = raw['ln1_g'].shape[0]
    hd = C // nhead

    def prep_attn(p):
        wqkv, bqkv = p['wqkv'], p['bqkv']
        wq = wqkv[:, 0 * C:1 * C].reshape(C, nhead, hd).transpose(1, 0, 2)
        wk = wqkv[:, 1 * C:2 * C].reshape(C, nhead, hd).transpose(1, 0, 2)
        wv = wqkv[:, 2 * C:3 * C].reshape(C, nhead, hd).transpose(1, 0, 2)
        bq = bqkv[0 * C:1 * C].reshape(nhead, 1, hd)
        bk = bqkv[1 * C:2 * C].reshape(nhead, 1, hd)
        bv = bqkv[2 * C:3 * C].reshape(nhead, 1, hd)
        wo = p['wproj'].reshape(nhead, hd, C)
        bo = p['bproj'].reshape(1, C)
        return {'wq': wq, 'wk': wk, 'wv': wv, 'bq': bq, 'bk': bk, 'bv': bv,
                'wo': wo, 'bo': bo}

    prepared = {
        'ln1_g': raw['ln1_g'], 'ln1_b': raw['ln1_b'],
        'ln2_g': raw['ln2_g'], 'ln2_b': raw['ln2_b'],
        'attn1': prep_attn(raw['attn1']),
        'attn2': prep_attn(raw['attn2']),
        'attn3': prep_attn(raw['attn3']),
        'mlp': raw['mlp'],
    }
    ws = 2 * strip_width
    Wn = ws * ws
    bias = raw['attn3']['rpb_table'][raw['attn3']['rp_index'].reshape(-1)]
    bias = bias.reshape(Wn, Wn, nhead).transpose(2, 0, 1)
    prepared['attn3']['bias'] = bias.astype(jnp.bfloat16)   # precomputed once, bf16
    return prepared


# -------------------------------------------------------------------- pure-JAX reference
def _ref_layernorm(x, g, b):
    mu = jnp.mean(x, -1, keepdims=True)
    var = jnp.mean((x - mu) ** 2, -1, keepdims=True)
    return (x - mu) * jax.lax.rsqrt(var + _LN_EPS) * g + b


def _ref_mha(xw, p, nhead, bias):
    B_, Wn, C = xw.shape
    hd = C // nhead
    qkv = xw @ p['wqkv'] + p['bqkv']
    qkv = qkv.reshape(B_, Wn, 3, nhead, hd).transpose(2, 0, 3, 1, 4)
    q, k, v = qkv[0], qkv[1], qkv[2]
    att = jnp.einsum('bhqd,bhkd->bhqk', q, k) * (hd ** -0.5)
    if bias is not None:
        att = att + bias[None]
    att = jax.nn.softmax(att, axis=-1)
    out = jnp.einsum('bhqk,bhkd->bhqd', att, v).transpose(0, 2, 1, 3).reshape(B_, Wn, C)
    return out @ p['wproj'] + p['bproj']


def _ref_block(x, params, H, W, nhead, sw):
    B, L, C = x.shape
    shortcut = x
    xn = _ref_layernorm(x, params['ln1_g'], params['ln1_b'])
    x4 = _ref_layernorm(xn, params['ln1_g'], params['ln1_b'])

    def win_attn(wh, ww, p, bias):
        wins = _window_partition(xn.reshape(B, H, W, C), wh, ww).reshape(-1, wh * ww, C)
        o = _ref_mha(wins, p, nhead, bias).reshape(-1, wh, ww, C)
        return _window_reverse(o, wh, ww, H, W).reshape(B, L, C)

    x1 = win_attn(sw, W, params['attn1'], None)
    x2 = win_attn(H, sw, params['attn2'], None)
    ws = 2 * sw
    Wn = ws * ws
    bias3 = params['attn3']['rpb_table'][params['attn3']['rp_index'].reshape(-1)]
    bias3 = bias3.reshape(Wn, Wn, nhead).transpose(2, 0, 1)
    x3 = win_attn(ws, ws, params['attn3'], bias3)

    k = jnp.stack([xn, x1, x2, x3, x4], axis=2)
    s = jnp.einsum('blc,bljc->blj', xn, k)
    p = jax.nn.softmax(s, axis=-1)
    y = shortcut + jnp.einsum('blj,bljc->blc', p, k)

    z = _ref_layernorm(y, params['ln2_g'], params['ln2_b'])
    h = jax.nn.gelu(z @ params['mlp']['w1'] + params['mlp']['b1'], approximate=True)
    return y + h @ params['mlp']['w2'] + params['mlp']['b2']


# ----------------------------------------------------------------------------- demo
if __name__ == "__main__":
    key = jax.random.PRNGKey(0)
    k_par, k_x = jax.random.split(key)

    B, d_model, nhead, strip_width = 2, 32, 4, 2
    H = W = 8                       # divisible by strip_width and 2*strip_width
    L = H * W

    raw_params = _init_params(k_par, d_model, nhead, strip_width)
    params = _prepare_params(raw_params, nhead, strip_width)
    x = jax.random.normal(k_x, (B, L, d_model), dtype=jnp.float32)

    fwd = jax.jit(lambda xx: strip_attention_block_forward(
        (xx, False, (H, W)), params, (H, W), nhead, strip_width)[0])
    out = jax.block_until_ready(fwd(x))

    assert out.shape == (B, L, d_model)
    assert bool(jnp.isfinite(out).all())

    ref = _ref_block(x, raw_params, H, W, nhead, strip_width)
    max_err = float(jnp.max(jnp.abs(out - ref)))
    assert jnp.allclose(out, ref, atol=5e-3, rtol=5e-3), f"mismatch vs reference: {max_err}"

    print("KERNEL_OK")
</pallas_src>

<mosaic_0001>
module attributes {stable_mosaic.version = 11 : i64} {
  func.func @_ln_double_kernel(%arg0: i32, %arg1: memref<64x32xf32, #tpu.memory_space<vmem>>, %arg2: memref<1x32xf32, #tpu.memory_space<vmem>>, %arg3: memref<1x32xf32, #tpu.memory_space<vmem>>, %arg4: memref<64x32xf32, #tpu.memory_space<vmem>>, %arg5: memref<64x32xf32, #tpu.memory_space<vmem>>) attributes {dimension_semantics = [#tpu.dimension_semantics<parallel>], iteration_bounds = array<i64: 2>, scalar_prefetch = 0 : i64, scratch_operands = 0 : i64, tpu.core_type = #tpu.core_type<tc>, window_params = [{transform_indices = @transform_0, window_bounds = array<i64: 64, 32>}, {pipeline_mode = #tpu.pipeline_mode<synchronous>, transform_indices = @transform_1, window_bounds = array<i64: 1, 32>}, {pipeline_mode = #tpu.pipeline_mode<synchronous>, transform_indices = @transform_2, window_bounds = array<i64: 1, 32>}, {transform_indices = @transform_3, window_bounds = array<i64: 64, 32>}, {transform_indices = @transform_4, window_bounds = array<i64: 64, 32>}]} {
    %c0 = arith.constant 0 : index
    %c0_0 = arith.constant 0 : index
    %0 = vector.load %arg2[%c0, %c0_0] : memref<1x32xf32, #tpu.memory_space<vmem>>, vector<1x32xf32>
    %c0_1 = arith.constant 0 : index
    %c0_2 = arith.constant 0 : index
    %1 = vector.load %arg3[%c0_1, %c0_2] : memref<1x32xf32, #tpu.memory_space<vmem>>, vector<1x32xf32>
    %c0_3 = arith.constant 0 : index
    %c0_4 = arith.constant 0 : index
    %2 = vector.load %arg1[%c0_3, %c0_4] : memref<64x32xf32, #tpu.memory_space<vmem>>, vector<64x32xf32>
    %cst = arith.constant dense<0.000000e+00> : vector<64xf32>
    %3 = vector.multi_reduction <add>, %2, %cst [1] : vector<64x32xf32> to vector<64xf32>
    %4 = vector.shape_cast %3 : vector<64xf32> to vector<64x1xf32>
    %cst_5 = arith.constant 3.200000e+01 : f32
    %5 = vector.broadcast %cst_5 : f32 to vector<64x1xf32>
    %6 = arith.divf %4, %5 : vector<64x1xf32>
    %7 = vector.broadcast %6 : vector<64x1xf32> to vector<64x32xf32>
    %8 = arith.subf %2, %7 : vector<64x32xf32>
    %9 = arith.mulf %8, %8 : vector<64x32xf32>
    %cst_6 = arith.constant dense<0.000000e+00> : vector<64xf32>
    %10 = vector.multi_reduction <add>, %9, %cst_6 [1] : vector<64x32xf32> to vector<64xf32>
    %11 = vector.shape_cast %10 : vector<64xf32> to vector<64x1xf32>
    %cst_7 = arith.constant 3.200000e+01 : f32
    %12 = vector.broadcast %cst_7 : f32 to vector<64x1xf32>
    %13 = arith.divf %11, %12 : vector<64x1xf32>
    %cst_8 = arith.constant 9.99999974E-6 : f32
    %14 = vector.broadcast %cst_8 : f32 to vector<64x1xf32>
    %15 = arith.addf %13, %14 : vector<64x1xf32>
    %16 = math.rsqrt %15 : vector<64x1xf32>
    %17 = vector.broadcast %16 : vector<64x1xf32> to vector<64x32xf32>
    %18 = arith.mulf %8, %17 : vector<64x32xf32>
    %19 = vector.broadcast %0 : vector<1x32xf32> to vector<64x32xf32>
    %20 = arith.mulf %18, %19 : vector<64x32xf32>
    %21 = vector.broadcast %1 : vector<1x32xf32> to vector<64x32xf32>
    %22 = arith.addf %20, %21 : vector<64x32xf32>
    %c0_9 = arith.constant 0 : index
    %c0_10 = arith.constant 0 : index
    %23 = vector.load %arg4[%c0_9, %c0_10] : memref<64x32xf32, #tpu.memory_space<vmem>>, vector<64x32xf32>
    tpu.vector_store %arg4[%c0_9, %c0_10], %22 {strides = array<i32>} : memref<64x32xf32, #tpu.memory_space<vmem>>, vector<64x32xf32>,
    %cst_11 = arith.constant dense<0.000000e+00> : vector<64xf32>
    %24 = vector.multi_reduction <add>, %22, %cst_11 [1] : vector<64x32xf32> to vector<64xf32>
    %25 = vector.shape_cast %24 : vector<64xf32> to vector<64x1xf32>
    %cst_12 = arith.constant 3.200000e+01 : f32
    %26 = vector.broadcast %cst_12 : f32 to vector<64x1xf32>
    %27 = arith.divf %25, %26 : vector<64x1xf32>
    %28 = vector.broadcast %27 : vector<64x1xf32> to vector<64x32xf32>
    %29 = arith.subf %22, %28 : vector<64x32xf32>
    %30 = arith.mulf %29, %29 : vector<64x32xf32>
    %cst_13 = arith.constant dense<0.000000e+00> : vector<64xf32>
    %31 = vector.multi_reduction <add>, %30, %cst_13 [1] : vector<64x32xf32> to vector<64xf32>
    %32 = vector.shape_cast %31 : vector<64xf32> to vector<64x1xf32>
    %cst_14 = arith.constant 3.200000e+01 : f32
    %33 = vector.broadcast %cst_14 : f32 to vector<64x1xf32>
    %34 = arith.divf %32, %33 : vector<64x1xf32>
    %cst_15 = arith.constant 9.99999974E-6 : f32
    %35 = vector.broadcast %cst_15 : f32 to vector<64x1xf32>
    %36 = arith.addf %34, %35 : vector<64x1xf32>
    %37 = math.rsqrt %36 : vector<64x1xf32>
    %38 = vector.broadcast %37 : vector<64x1xf32> to vector<64x32xf32>
    %39 = arith.mulf %29, %38 : vector<64x32xf32>
    %40 = vector.broadcast %0 : vector<1x32xf32> to vector<64x32xf32>
    %41 = arith.mulf %39, %40 : vector<64x32xf32>
    %42 = vector.broadcast %1 : vector<1x32xf32> to vector<64x32xf32>
    %43 = arith.addf %41, %42 : vector<64x32xf32>
    %c0_16 = arith.constant 0 : index
    %c0_17 = arith.constant 0 : index
    %44 = vector.load %arg5[%c0_16, %c0_17] : memref<64x32xf32, #tpu.memory_space<vmem>>, vector<64x32xf32>
    tpu.vector_store %arg5[%c0_16, %c0_17], %43 {strides = array<i32>} : memref<64x32xf32, #tpu.memory_space<vmem>>, vector<64x32xf32>,
    return
  }
  func.func @transform_0(%arg0: i32) -> (i32, i32) {
    %c0_i32 = arith.constant 0 : i32
    %c0_i32_0 = arith.constant 0 : i32
    return %arg0, %c0_i32 : i32, i32
  }
  func.func @transform_1(%arg0: i32) -> (i32, i32) {
    %c0_i32 = arith.constant 0 : i32
    %c0_i32_0 = arith.constant 0 : i32
    %c0_i32_1 = arith.constant 0 : i32
    return %c0_i32, %c0_i32_0 : i32, i32
  }
  func.func @transform_2(%arg0: i32) -> (i32, i32) {
    %c0_i32 = arith.constant 0 : i32
    %c0_i32_0 = arith.constant 0 : i32
    %c0_i32_1 = arith.constant 0 : i32
    return %c0_i32, %c0_i32_0 : i32, i32
  }
  func.func @transform_3(%arg0: i32) -> (i32, i32) {
    %c0_i32 = arith.constant 0 : i32
    %c0_i32_0 = arith.constant 0 : i32
    return %arg0, %c0_i32 : i32, i32
  }
  func.func @transform_4(%arg0: i32) -> (i32, i32) {
    %c0_i32 = arith.constant 0 : i32
    %c0_i32_0 = arith.constant 0 : i32
    return %arg0, %c0_i32 : i32, i32
  }
}

module attributes {stable_mosaic.version = 11 : i64} {
  func.func @kernel(%arg0: i32, %arg1: i32, %arg2: memref<4x16x32xf32, #tpu.memory_space<vmem>>, %arg3: memref<1x32x8xf32, #tpu.memory_space<vmem>>, %arg4: memref<1x32x8xf32, #tpu.memory_space<vmem>>, %arg5: memref<1x32x8xf32, #tpu.memory_space<vmem>>, %arg6: memref<1x1x8xf32, #tpu.memory_space<vmem>>, %arg7: memref<1x1x8xf32, #tpu.memory_space<vmem>>, %arg8: memref<1x1x8xf32, #tpu.memory_space<vmem>>, %arg9: memref<1x8x32xf32, #tpu.memory_space<vmem>>, %arg10: memref<1x32xf32, #tpu.memory_space<vmem>>, %arg11: memref<1x16x16xbf16, #tpu.memory_space<vmem>>, %arg12: memref<4x16x32xf32, #tpu.memory_space<vmem>>, %arg13: memref<64x32xf32, #tpu.memory_space<vmem>>) attributes {dimension_semantics = [#tpu.dimension_semantics<parallel>, #tpu.dimension_semantics<arbitrary>], iteration_bounds = array<i64: 2, 4>, scalar_prefetch = 0 : i64, scratch_operands = 1 : i64, tpu.core_type = #tpu.core_type<tc>, window_params = [{transform_indices = @transform_0, window_bounds = array<i64: 4, 16, 32>}, {transform_indices = @transform_1, window_bounds = array<i64: 1, 32, 8>}, {transform_indices = @transform_2, window_bounds = array<i64: 1, 32, 8>}, {transform_indices = @transform_3, window_bounds = array<i64: 1, 32, 8>}, {transform_indices = @transform_4, window_bounds = array<i64: 1, 1, 8>}, {transform_indices = @transform_5, window_bounds = array<i64: 1, 1, 8>}, {transform_indices = @transform_6, window_bounds = array<i64: 1, 1, 8>}, {transform_indices = @transform_7, window_bounds = array<i64: 1, 8, 32>}, {pipeline_mode = #tpu.pipeline_mode<synchronous>, transform_indices = @transform_8, window_bounds = array<i64: 1, 32>}, {transform_indices = @transform_9, window_bounds = array<i64: 1, 16, 16>}, {transform_indices = @transform_10, window_bounds = array<i64: 4, 16, 32>}]} {
    %c0 = arith.constant 0 : index
    %c0_0 = arith.constant 0 : index
    %c0_1 = arith.constant 0 : index
    %0 = vector.load %arg2[%c0, %c0_0, %c0_1] : memref<4x16x32xf32, #tpu.memory_space<vmem>>, vector<4x16x32xf32>
    %1 = vector.shape_cast %0 : vector<4x16x32xf32> to vector<64x32xf32>
    %c0_2 = arith.constant 0 : index
    %c0_3 = arith.constant 0 : index
    %c0_4 = arith.constant 0 : index
    %2 = vector.load %arg3[%c0_2, %c0_3, %c0_4] : memref<1x32x8xf32, #tpu.memory_space<vmem>>, vector<1x32x8xf32>
    %3 = vector.shape_cast %2 : vector<1x32x8xf32> to vector<32x8xf32>
    %cst = arith.constant dense<0.000000e+00> : vector<64x8xf32>
    %4 = tpu.matmul %1, %3, %cst {dimension_numbers = #tpu.dot_dimension_numbers<[1], [0], [0], [1], [0, 0, 1, 1], [], []>} : vector<64x32xf32>, vector<32x8xf32>, vector<64x8xf32> -> vector<64x8xf32>
    %c0_5 = arith.constant 0 : index
    %c0_6 = arith.constant 0 : index
    %c0_7 = arith.constant 0 : index
    %5 = vector.load %arg6[%c0_5, %c0_6, %c0_7] : memref<1x1x8xf32, #tpu.memory_space<vmem>>, vector<1x1x8xf32>
    %6 = vector.shape_cast %5 : vector<1x1x8xf32> to vector<1x8xf32>
    %7 = vector.broadcast %6 : vector<1x8xf32> to vector<64x8xf32>
    %8 = arith.addf %4, %7 : vector<64x8xf32>
    %c0_8 = arith.constant 0 : index
    %c0_9 = arith.constant 0 : index
    %c0_10 = arith.constant 0 : index
    %9 = vector.load %arg4[%c0_8, %c0_9, %c0_10] : memref<1x32x8xf32, #tpu.memory_space<vmem>>, vector<1x32x8xf32>
    %10 = vector.shape_cast %9 : vector<1x32x8xf32> to vector<32x8xf32>
    %cst_11 = arith.constant dense<0.000000e+00> : vector<64x8xf32>
    %11 = tpu.matmul %1, %10, %cst_11 {dimension_numbers = #tpu.dot_dimension_numbers<[1], [0], [0], [1], [0, 0, 1, 1], [], []>} : vector<64x32xf32>, vector<32x8xf32>, vector<64x8xf32> -> vector<64x8xf32>
    %c0_12 = arith.constant 0 : index
    %c0_13 = arith.constant 0 : index
    %c0_14 = arith.constant 0 : index
    %12 = vector.load %arg7[%c0_12, %c0_13, %c0_14] : memref<1x1x8xf32, #tpu.memory_space<vmem>>, vector<1x1x8xf32>
    %13 = vector.shape_cast %12 : vector<1x1x8xf32> to vector<1x8xf32>
    %14 = vector.broadcast %13 : vector<1x8xf32> to vector<64x8xf32>
    %15 = arith.addf %11, %14 : vector<64x8xf32>
    %c0_15 = arith.constant 0 : index
    %c0_16 = arith.constant 0 : index
    %c0_17 = arith.constant 0 : index
    %16 = vector.load %arg5[%c0_15, %c0_16, %c0_17] : memref<1x32x8xf32, #tpu.memory_space<vmem>>, vector<1x32x8xf32>
    %17 = vector.shape_cast %16 : vector<1x32x8xf32> to vector<32x8xf32>
    %cst_18 = arith.constant dense<0.000000e+00> : vector<64x8xf32>
    %18 = tpu.matmul %1, %17, %cst_18 {dimension_numbers = #tpu.dot_dimension_numbers<[1], [0], [0], [1], [0, 0, 1, 1], [], []>} : vector<64x32xf32>, vector<32x8xf32>, vector<64x8xf32> -> vector<64x8xf32>
    %c0_19 = arith.constant 0 : index
    %c0_20 = arith.constant 0 : index
    %c0_21 = arith.constant 0 : index
    %19 = vector.load %arg8[%c0_19, %c0_20, %c0_21] : memref<1x1x8xf32, #tpu.memory_space<vmem>>, vector<1x1x8xf32>
    %20 = vector.shape_cast %19 : vector<1x1x8xf32> to vector<1x8xf32>
    %21 = vector.broadcast %20 : vector<1x8xf32> to vector<64x8xf32>
    %22 = arith.addf %18, %21 : vector<64x8xf32>
    %cst_22 = arith.constant 0.353553385 : f32
    %23 = vector.broadcast %cst_22 : f32 to vector<64x8xf32>
    %24 = arith.mulf %8, %23 : vector<64x8xf32>
    %25 = vector.shape_cast %24 : vector<64x8xf32> to vector<4x16x8xf32>
    %26 = vector.shape_cast %15 : vector<64x8xf32> to vector<4x16x8xf32>
    %27 = vector.shape_cast %22 : vector<64x8xf32> to vector<4x16x8xf32>
    "tpu.trace_start"() <{level = 10 : i32, message = "gqd,gkd->gqk"}> : () -> ()
    %cst_23 = arith.constant dense<0.000000e+00> : vector<4x16x16xf32>
    %28 = tpu.matmul %25, %26, %cst_23 {dimension_numbers = #tpu.dot_dimension_numbers<[2], [2], [1], [1], [0, 0, 0, 1, 1, 1], [0], [0]>} : vector<4x16x8xf32>, vector<4x16x8xf32>, vector<4x16x16xf32> -> vector<4x16x16xf32>
    "tpu.trace_stop"() : () -> ()
    %c0_24 = arith.constant 0 : index
    %c0_25 = arith.constant 0 : index
    %c0_26 = arith.constant 0 : index
    %29 = vector.load %arg11[%c0_24, %c0_25, %c0_26] : memref<1x16x16xbf16, #tpu.memory_space<vmem>>, vector<1x16x16xbf16>
    %30 = arith.extf %29 : vector<1x16x16xbf16> to vector<1x16x16xf32>
    %31 = vector.broadcast %30 : vector<1x16x16xf32> to vector<4x16x16xf32>
    %32 = arith.addf %28, %31 : vector<4x16x16xf32>
    %cst_27 = arith.constant dense<0xFF800000> : vector<4x16xf32>
    %33 = vector.multi_reduction <maximumf>, %32, %cst_27 [2] : vector<4x16x16xf32> to vector<4x16xf32>
    %34 = vector.shape_cast %33 : vector<4x16xf32> to vector<4x16x1xf32>
    %35 = vector.broadcast %34 : vector<4x16x1xf32> to vector<4x16x16xf32>
    %36 = arith.subf %32, %35 : vector<4x16x16xf32>
    %37 = math.exp %36 : vector<4x16x16xf32>
    %cst_28 = arith.constant dense<0.000000e+00> : vector<4x16xf32>
    %38 = vector.multi_reduction <add>, %37, %cst_28 [2] : vector<4x16x16xf32> to vector<4x16xf32>
    %39 = vector.shape_cast %38 : vector<4x16xf32> to vector<4x16x1xf32>
    %40 = tpu.reciprocal %39 {approx = true} : vector<4x16x1xf32> -> vector<4x16x1xf32>
    %41 = vector.broadcast %40 : vector<4x16x1xf32> to vector<4x16x16xf32>
    %42 = arith.mulf %37, %41 : vector<4x16x16xf32>
    "tpu.trace_start"() <{level = 10 : i32, message = "gqk,gkd->gqd"}> : () -> ()
    %cst_29 = arith.constant dense<0.000000e+00> : vector<4x16x8xf32>
    %43 = tpu.matmul %42, %27, %cst_29 {dimension_numbers = #tpu.dot_dimension_numbers<[2], [1], [1], [2], [0, 0, 0, 1, 1, 2], [0], [0]>} : vector<4x16x16xf32>, vector<4x16x8xf32>, vector<4x16x8xf32> -> vector<4x16x8xf32>
    "tpu.trace_stop"() : () -> ()
    %44 = vector.shape_cast %43 : vector<4x16x8xf32> to vector<64x8xf32>
    %c0_30 = arith.constant 0 : index
    %c0_31 = arith.constant 0 : index
    %c0_32 = arith.constant 0 : index
    %45 = vector.load %arg9[%c0_30, %c0_31, %c0_32] : memref<1x8x32xf32, #tpu.memory_space<vmem>>, vector<1x8x32xf32>
    %46 = vector.shape_cast %45 : vector<1x8x32xf32> to vector<8x32xf32>
    %cst_33 = arith.constant dense<0.000000e+00> : vector<64x32xf32>
    %47 = tpu.matmul %44, %46, %cst_33 {dimension_numbers = #tpu.dot_dimension_numbers<[1], [0], [0], [1], [0, 0, 1, 1], [], []>} : vector<64x8xf32>, vector<8x32xf32>, vector<64x32xf32> -> vector<64x32xf32>
    %c0_i32 = arith.constant 0 : i32
    %48 = arith.cmpi eq, %arg1, %c0_i32 : i32
    %49 = arith.extui %48 : i1 to i32
    %c0_i32_34 = arith.constant 0 : i32
    %50 = arith.cmpi ne, %49, %c0_i32_34 : i32
    scf.if %50 {
      %cst_40 = arith.constant 0.000000e+00 : f32
      %57 = vector.broadcast %cst_40 : f32 to vector<64x32xf32>
      %c0_41 = arith.constant 0 : index
      %c0_42 = arith.constant 0 : index
      %58 = vector.load %arg13[%c0_41, %c0_42] : memref<64x32xf32, #tpu.memory_space<vmem>>, vector<64x32xf32>
      tpu.vector_store %arg13[%c0_41, %c0_42], %57 {strides = array<i32>} : memref<64x32xf32, #tpu.memory_space<vmem>>, vector<64x32xf32>,
    } else {
    }
    %c0_35 = arith.constant 0 : index
    %c0_36 = arith.constant 0 : index
    %51 = vector.load %arg13[%c0_35, %c0_36] : memref<64x32xf32, #tpu.memory_space<vmem>>, vector<64x32xf32>
    %52 = arith.addf %51, %47 : vector<64x32xf32>
    %c0_37 = arith.constant 0 : index
    %c0_38 = arith.constant 0 : index
    %53 = vector.load %arg13[%c0_37, %c0_38] : memref<64x32xf32, #tpu.memory_space<vmem>>, vector<64x32xf32>
    tpu.vector_store %arg13[%c0_37, %c0_38], %52 {strides = array<i32>} : memref<64x32xf32, #tpu.memory_space<vmem>>, vector<64x32xf32>,
    %c3_i32 = arith.constant 3 : i32
    %54 = arith.cmpi eq, %arg1, %c3_i32 : i32
    %55 = arith.extui %54 : i1 to i32
    %c0_i32_39 = arith.constant 0 : i32
    %56 = arith.cmpi ne, %55, %c0_i32_39 : i32
    scf.if %56 {
      %c0_40 = arith.constant 0 : index
      %c0_41 = arith.constant 0 : index
      %57 = vector.load %arg13[%c0_40, %c0_41] : memref<64x32xf32, #tpu.memory_space<vmem>>, vector<64x32xf32>
      %c0_42 = arith.constant 0 : index
      %c0_43 = arith.constant 0 : index
      %58 = vector.load %arg10[%c0_42, %c0_43] : memref<1x32xf32, #tpu.memory_space<vmem>>, vector<1x32xf32>
      %59 = vector.broadcast %58 : vector<1x32xf32> to vector<64x32xf32>
      %60 = arith.addf %57, %59 : vector<64x32xf32>
      %61 = vector.shape_cast %60 : vector<64x32xf32> to vector<4x16x32xf32>
      %c0_44 = arith.constant 0 : index
      %c0_45 = arith.constant 0 : index
      %c0_46 = arith.constant 0 : index
      %62 = vector.load %arg12[%c0_44, %c0_45, %c0_46] : memref<4x16x32xf32, #tpu.memory_space<vmem>>, vector<4x16x32xf32>
      tpu.vector_store %arg12[%c0_44, %c0_45, %c0_46], %61 {strides = array<i32>} : memref<4x16x32xf32, #tpu.memory_space<vmem>>, vector<4x16x32xf32>,
    } else {
    }
    return
  }
  func.func @transform_0(%arg0: i32, %arg1: i32) -> (i32, i32, i32) {
    %c0_i32 = arith.constant 0 : i32
    %c0_i32_0 = arith.constant 0 : i32
    %c0_i32_1 = arith.constant 0 : i32
    return %arg0, %c0_i32, %c0_i32_0 : i32, i32, i32
  }
  func.func @transform_1(%arg0: i32, %arg1: i32) -> (i32, i32, i32) {
    %c0_i32 = arith.constant 0 : i32
    %c0_i32_0 = arith.constant 0 : i32
    %c0_i32_1 = arith.constant 0 : i32
    return %arg1, %c0_i32, %c0_i32_0 : i32, i32, i32
  }
  func.func @transform_2(%arg0: i32, %arg1: i32) -> (i32, i32, i32) {
    %c0_i32 = arith.constant 0 : i32
    %c0_i32_0 = arith.constant 0 : i32
    %c0_i32_1 = arith.constant 0 : i32
    return %arg1, %c0_i32, %c0_i32_0 : i32, i32, i32
  }
  func.func @transform_3(%arg0: i32, %arg1: i32) -> (i32, i32, i32) {
    %c0_i32 = arith.constant 0 : i32
    %c0_i32_0 = arith.constant 0 : i32
    %c0_i32_1 = arith.constant 0 : i32
    return %arg1, %c0_i32, %c0_i32_0 : i32, i32, i32
  }
  func.func @transform_4(%arg0: i32, %arg1: i32) -> (i32, i32, i32) {
    %c0_i32 = arith.constant 0 : i32
    %c0_i32_0 = arith.constant 0 : i32
    %c0_i32_1 = arith.constant 0 : i32
    return %arg1, %c0_i32, %c0_i32_0 : i32, i32, i32
  }
  func.func @transform_5(%arg0: i32, %arg1: i32) -> (i32, i32, i32) {
    %c0_i32 = arith.constant 0 : i32
    %c0_i32_0 = arith.constant 0 : i32
    %c0_i32_1 = arith.constant 0 : i32
    return %arg1, %c0_i32, %c0_i32_0 : i32, i32, i32
  }
  func.func @transform_6(%arg0: i32, %arg1: i32) -> (i32, i32, i32) {
    %c0_i32 = arith.constant 0 : i32
    %c0_i32_0 = arith.constant 0 : i32
    %c0_i32_1 = arith.constant 0 : i32
    return %arg1, %c0_i32, %c0_i32_0 : i32, i32, i32
  }
  func.func @transform_7(%arg0: i32, %arg1: i32) -> (i32, i32, i32) {
    %c0_i32 = arith.constant 0 : i32
    %c0_i32_0 = arith.constant 0 : i32
    %c0_i32_1 = arith.constant 0 : i32
    return %arg1, %c0_i32, %c0_i32_0 : i32, i32, i32
  }
  func.func @transform_8(%arg0: i32, %arg1: i32) -> (i32, i32) {
    %c0_i32 = arith.constant 0 : i32
    %c0_i32_0 = arith.constant 0 : i32
    %c0_i32_1 = arith.constant 0 : i32
    return %c0_i32, %c0_i32_0 : i32, i32
  }
  func.func @transform_9(%arg0: i32, %arg1: i32) -> (i32, i32, i32) {
    %c0_i32 = arith.constant 0 : i32
    %c0_i32_0 = arith.constant 0 : i32
    %c0_i32_1 = arith.constant 0 : i32
    return %arg1, %c0_i32, %c0_i32_0 : i32, i32, i32
  }
  func.func @transform_10(%arg0: i32, %arg1: i32) -> (i32, i32, i32) {
    %c0_i32 = arith.constant 0 : i32
    %c0_i32_0 = arith.constant 0 : i32
    %c0_i32_1 = arith.constant 0 : i32
    return %arg0, %c0_i32, %c0_i32_0 : i32, i32, i32
  }
}

module attributes {stable_mosaic.version = 11 : i64} {
  func.func @kernel(%arg0: i32, %arg1: i32, %arg2: memref<4x16x32xf32, #tpu.memory_space<vmem>>, %arg3: memref<1x32x8xf32, #tpu.memory_space<vmem>>, %arg4: memref<1x32x8xf32, #tpu.memory_space<vmem>>, %arg5: memref<1x32x8xf32, #tpu.memory_space<vmem>>, %arg6: memref<1x1x8xf32, #tpu.memory_space<vmem>>, %arg7: memref<1x1x8xf32, #tpu.memory_space<vmem>>, %arg8: memref<1x1x8xf32, #tpu.memory_space<vmem>>, %arg9: memref<1x8x32xf32, #tpu.memory_space<vmem>>, %arg10: memref<1x32xf32, #tpu.memory_space<vmem>>, %arg11: memref<4x16x32xf32, #tpu.memory_space<vmem>>, %arg12: memref<64x32xf32, #tpu.memory_space<vmem>>) attributes {dimension_semantics = [#tpu.dimension_semantics<parallel>, #tpu.dimension_semantics<arbitrary>], iteration_bounds = array<i64: 2, 4>, scalar_prefetch = 0 : i64, scratch_operands = 1 : i64, tpu.core_type = #tpu.core_type<tc>, window_params = [{transform_indices = @transform_0, window_bounds = array<i64: 4, 16, 32>}, {transform_indices = @transform_1, window_bounds = array<i64: 1, 32, 8>}, {transform_indices = @transform_2, window_bounds = array<i64: 1, 32, 8>}, {transform_indices = @transform_3, window_bounds = array<i64: 1, 32, 8>}, {transform_indices = @transform_4, window_bounds = array<i64: 1, 1, 8>}, {transform_indices = @transform_5, window_bounds = array<i64: 1, 1, 8>}, {transform_indices = @transform_6, window_bounds = array<i64: 1, 1, 8>}, {transform_indices = @transform_7, window_bounds = array<i64: 1, 8, 32>}, {pipeline_mode = #tpu.pipeline_mode<synchronous>, transform_indices = @transform_8, window_bounds = array<i64: 1, 32>}, {transform_indices = @transform_9, window_bounds = array<i64: 4, 16, 32>}]} {
    %c0 = arith.constant 0 : index
    %c0_0 = arith.constant 0 : index
    %c0_1 = arith.constant 0 : index
    %0 = vector.load %arg2[%c0, %c0_0, %c0_1] : memref<4x16x32xf32, #tpu.memory_space<vmem>>, vector<4x16x32xf32>
    %1 = vector.shape_cast %0 : vector<4x16x32xf32> to vector<64x32xf32>
    %c0_2 = arith.constant 0 : index
    %c0_3 = arith.constant 0 : index
    %c0_4 = arith.constant 0 : index
    %2 = vector.load %arg3[%c0_2, %c0_3, %c0_4] : memref<1x32x8xf32, #tpu.memory_space<vmem>>, vector<1x32x8xf32>
    %3 = vector.shape_cast %2 : vector<1x32x8xf32> to vector<32x8xf32>
    %cst = arith.constant dense<0.000000e+00> : vector<64x8xf32>
    %4 = tpu.matmul %1, %3, %cst {dimension_numbers = #tpu.dot_dimension_numbers<[1], [0], [0], [1], [0, 0, 1, 1], [], []>} : vector<64x32xf32>, vector<32x8xf32>, vector<64x8xf32> -> vector<64x8xf32>
    %c0_5 = arith.constant 0 : index
    %c0_6 = arith.constant 0 : index
    %c0_7 = arith.constant 0 : index
    %5 = vector.load %arg6[%c0_5, %c0_6, %c0_7] : memref<1x1x8xf32, #tpu.memory_space<vmem>>, vector<1x1x8xf32>
    %6 = vector.shape_cast %5 : vector<1x1x8xf32> to vector<1x8xf32>
    %7 = vector.broadcast %6 : vector<1x8xf32> to vector<64x8xf32>
    %8 = arith.addf %4, %7 : vector<64x8xf32>
    %c0_8 = arith.constant 0 : index
    %c0_9 = arith.constant 0 : index
    %c0_10 = arith.constant 0 : index
    %9 = vector.load %arg4[%c0_8, %c0_9, %c0_10] : memref<1x32x8xf32, #tpu.memory_space<vmem>>, vector<1x32x8xf32>
    %10 = vector.shape_cast %9 : vector<1x32x8xf32> to vector<32x8xf32>
    %cst_11 = arith.constant dense<0.000000e+00> : vector<64x8xf32>
    %11 = tpu.matmul %1, %10, %cst_11 {dimension_numbers = #tpu.dot_dimension_numbers<[1], [0], [0], [1], [0, 0, 1, 1], [], []>} : vector<64x32xf32>, vector<32x8xf32>, vector<64x8xf32> -> vector<64x8xf32>
    %c0_12 = arith.constant 0 : index
    %c0_13 = arith.constant 0 : index
    %c0_14 = arith.constant 0 : index
    %12 = vector.load %arg7[%c0_12, %c0_13, %c0_14] : memref<1x1x8xf32, #tpu.memory_space<vmem>>, vector<1x1x8xf32>
    %13 = vector.shape_cast %12 : vector<1x1x8xf32> to vector<1x8xf32>
    %14 = vector.broadcast %13 : vector<1x8xf32> to vector<64x8xf32>
    %15 = arith.addf %11, %14 : vector<64x8xf32>
    %c0_15 = arith.constant 0 : index
    %c0_16 = arith.constant 0 : index
    %c0_17 = arith.constant 0 : index
    %16 = vector.load %arg5[%c0_15, %c0_16, %c0_17] : memref<1x32x8xf32, #tpu.memory_space<vmem>>, vector<1x32x8xf32>
    %17 = vector.shape_cast %16 : vector<1x32x8xf32> to vector<32x8xf32>
    %cst_18 = arith.constant dense<0.000000e+00> : vector<64x8xf32>
    %18 = tpu.matmul %1, %17, %cst_18 {dimension_numbers = #tpu.dot_dimension_numbers<[1], [0], [0], [1], [0, 0, 1, 1], [], []>} : vector<64x32xf32>, vector<32x8xf32>, vector<64x8xf32> -> vector<64x8xf32>
    %c0_19 = arith.constant 0 : index
    %c0_20 = arith.constant 0 : index
    %c0_21 = arith.constant 0 : index
    %19 = vector.load %arg8[%c0_19, %c0_20, %c0_21] : memref<1x1x8xf32, #tpu.memory_space<vmem>>, vector<1x1x8xf32>
    %20 = vector.shape_cast %19 : vector<1x1x8xf32> to vector<1x8xf32>
    %21 = vector.broadcast %20 : vector<1x8xf32> to vector<64x8xf32>
    %22 = arith.addf %18, %21 : vector<64x8xf32>
    %cst_22 = arith.constant 0.353553385 : f32
    %23 = vector.broadcast %cst_22 : f32 to vector<64x8xf32>
    %24 = arith.mulf %8, %23 : vector<64x8xf32>
    %25 = vector.shape_cast %24 : vector<64x8xf32> to vector<4x16x8xf32>
    %26 = vector.shape_cast %15 : vector<64x8xf32> to vector<4x16x8xf32>
    %27 = vector.shape_cast %22 : vector<64x8xf32> to vector<4x16x8xf32>
    "tpu.trace_start"() <{level = 10 : i32, message = "gqd,gkd->gqk"}> : () -> ()
    %cst_23 = arith.constant dense<0.000000e+00> : vector<4x16x16xf32>
    %28 = tpu.matmul %25, %26, %cst_23 {dimension_numbers = #tpu.dot_dimension_numbers<[2], [2], [1], [1], [0, 0, 0, 1, 1, 1], [0], [0]>} : vector<4x16x8xf32>, vector<4x16x8xf32>, vector<4x16x16xf32> -> vector<4x16x16xf32>
    "tpu.trace_stop"() : () -> ()
    %cst_24 = arith.constant dense<0xFF800000> : vector<4x16xf32>
    %29 = vector.multi_reduction <maximumf>, %28, %cst_24 [2] : vector<4x16x16xf32> to vector<4x16xf32>
    %30 = vector.shape_cast %29 : vector<4x16xf32> to vector<4x16x1xf32>
    %31 = vector.broadcast %30 : vector<4x16x1xf32> to vector<4x16x16xf32>
    %32 = arith.subf %28, %31 : vector<4x16x16xf32>
    %33 = math.exp %32 : vector<4x16x16xf32>
    %cst_25 = arith.constant dense<0.000000e+00> : vector<4x16xf32>
    %34 = vector.multi_reduction <add>, %33, %cst_25 [2] : vector<4x16x16xf32> to vector<4x16xf32>
    %35 = vector.shape_cast %34 : vector<4x16xf32> to vector<4x16x1xf32>
    %36 = tpu.reciprocal %35 {approx = true} : vector<4x16x1xf32> -> vector<4x16x1xf32>
    %37 = vector.broadcast %36 : vector<4x16x1xf32> to vector<4x16x16xf32>
    %38 = arith.mulf %33, %37 : vector<4x16x16xf32>
    "tpu.trace_start"() <{level = 10 : i32, message = "gqk,gkd->gqd"}> : () -> ()
    %cst_26 = arith.constant dense<0.000000e+00> : vector<4x16x8xf32>
    %39 = tpu.matmul %38, %27, %cst_26 {dimension_numbers = #tpu.dot_dimension_numbers<[2], [1], [1], [2], [0, 0, 0, 1, 1, 2], [0], [0]>} : vector<4x16x16xf32>, vector<4x16x8xf32>, vector<4x16x8xf32> -> vector<4x16x8xf32>
    "tpu.trace_stop"() : () -> ()
    %40 = vector.shape_cast %39 : vector<4x16x8xf32> to vector<64x8xf32>
    %c0_27 = arith.constant 0 : index
    %c0_28 = arith.constant 0 : index
    %c0_29 = arith.constant 0 : index
    %41 = vector.load %arg9[%c0_27, %c0_28, %c0_29] : memref<1x8x32xf32, #tpu.memory_space<vmem>>, vector<1x8x32xf32>
    %42 = vector.shape_cast %41 : vector<1x8x32xf32> to vector<8x32xf32>
    %cst_30 = arith.constant dense<0.000000e+00> : vector<64x32xf32>
    %43 = tpu.matmul %40, %42, %cst_30 {dimension_numbers = #tpu.dot_dimension_numbers<[1], [0], [0], [1], [0, 0, 1, 1], [], []>} : vector<64x8xf32>, vector<8x32xf32>, vector<64x32xf32> -> vector<64x32xf32>
    %c0_i32 = arith.constant 0 : i32
    %44 = arith.cmpi eq, %arg1, %c0_i32 : i32
    %45 = arith.extui %44 : i1 to i32
    %c0_i32_31 = arith.constant 0 : i32
    %46 = arith.cmpi ne, %45, %c0_i32_31 : i32
    scf.if %46 {
      %cst_37 = arith.constant 0.000000e+00 : f32
      %53 = vector.broadcast %cst_37 : f32 to vector<64x32xf32>
      %c0_38 = arith.constant 0 : index
      %c0_39 = arith.constant 0 : index
      %54 = vector.load %arg12[%c0_38, %c0_39] : memref<64x32xf32, #tpu.memory_space<vmem>>, vector<64x32xf32>
      tpu.vector_store %arg12[%c0_38, %c0_39], %53 {strides = array<i32>} : memref<64x32xf32, #tpu.memory_space<vmem>>, vector<64x32xf32>,
    } else {
    }
    %c0_32 = arith.constant 0 : index
    %c0_33 = arith.constant 0 : index
    %47 = vector.load %arg12[%c0_32, %c0_33] : memref<64x32xf32, #tpu.memory_space<vmem>>, vector<64x32xf32>
    %48 = arith.addf %47, %43 : vector<64x32xf32>
    %c0_34 = arith.constant 0 : index
    %c0_35 = arith.constant 0 : index
    %49 = vector.load %arg12[%c0_34, %c0_35] : memref<64x32xf32, #tpu.memory_space<vmem>>, vector<64x32xf32>
    tpu.vector_store %arg12[%c0_34, %c0_35], %48 {strides = array<i32>} : memref<64x32xf32, #tpu.memory_space<vmem>>, vector<64x32xf32>,
    %c3_i32 = arith.constant 3 : i32
    %50 = arith.cmpi eq, %arg1, %c3_i32 : i32
    %51 = arith.extui %50 : i1 to i32
    %c0_i32_36 = arith.constant 0 : i32
    %52 = arith.cmpi ne, %51, %c0_i32_36 : i32
    scf.if %52 {
      %c0_37 = arith.constant 0 : index
      %c0_38 = arith.constant 0 : index
      %53 = vector.load %arg12[%c0_37, %c0_38] : memref<64x32xf32, #tpu.memory_space<vmem>>, vector<64x32xf32>
      %c0_39 = arith.constant 0 : index
      %c0_40 = arith.constant 0 : index
      %54 = vector.load %arg10[%c0_39, %c0_40] : memref<1x32xf32, #tpu.memory_space<vmem>>, vector<1x32xf32>
      %55 = vector.broadcast %54 : vector<1x32xf32> to vector<64x32xf32>
      %56 = arith.addf %53, %55 : vector<64x32xf32>
      %57 = vector.shape_cast %56 : vector<64x32xf32> to vector<4x16x32xf32>
      %c0_41 = arith.constant 0 : index
      %c0_42 = arith.constant 0 : index
      %c0_43 = arith.constant 0 : index
      %58 = vector.load %arg11[%c0_41, %c0_42, %c0_43] : memref<4x16x32xf32, #tpu.memory_space<vmem>>, vector<4x16x32xf32>
      tpu.vector_store %arg11[%c0_41, %c0_42, %c0_43], %57 {strides = array<i32>} : memref<4x16x32xf32, #tpu.memory_space<vmem>>, vector<4x16x32xf32>,
    } else {
    }
    return
  }
  func.func @transform_0(%arg0: i32, %arg1: i32) -> (i32, i32, i32) {
    %c0_i32 = arith.constant 0 : i32
    %c0_i32_0 = arith.constant 0 : i32
    %c0_i32_1 = arith.constant 0 : i32
    return %arg0, %c0_i32, %c0_i32_0 : i32, i32, i32
  }
  func.func @transform_1(%arg0: i32, %arg1: i32) -> (i32, i32, i32) {
    %c0_i32 = arith.constant 0 : i32
    %c0_i32_0 = arith.constant 0 : i32
    %c0_i32_1 = arith.constant 0 : i32
    return %arg1, %c0_i32, %c0_i32_0 : i32, i32, i32
  }
  func.func @transform_2(%arg0: i32, %arg1: i32) -> (i32, i32, i32) {
    %c0_i32 = arith.constant 0 : i32
    %c0_i32_0 = arith.constant 0 : i32
    %c0_i32_1 = arith.constant 0 : i32
    return %arg1, %c0_i32, %c0_i32_0 : i32, i32, i32
  }
  func.func @transform_3(%arg0: i32, %arg1: i32) -> (i32, i32, i32) {
    %c0_i32 = arith.constant 0 : i32
    %c0_i32_0 = arith.constant 0 : i32
    %c0_i32_1 = arith.constant 0 : i32
    return %arg1, %c0_i32, %c0_i32_0 : i32, i32, i32
  }
  func.func @transform_4(%arg0: i32, %arg1: i32) -> (i32, i32, i32) {
    %c0_i32 = arith.constant 0 : i32
    %c0_i32_0 = arith.constant 0 : i32
    %c0_i32_1 = arith.constant 0 : i32
    return %arg1, %c0_i32, %c0_i32_0 : i32, i32, i32
  }
  func.func @transform_5(%arg0: i32, %arg1: i32) -> (i32, i32, i32) {
    %c0_i32 = arith.constant 0 : i32
    %c0_i32_0 = arith.constant 0 : i32
    %c0_i32_1 = arith.constant 0 : i32
    return %arg1, %c0_i32, %c0_i32_0 : i32, i32, i32
  }
  func.func @transform_6(%arg0: i32, %arg1: i32) -> (i32, i32, i32) {
    %c0_i32 = arith.constant 0 : i32
    %c0_i32_0 = arith.constant 0 : i32
    %c0_i32_1 = arith.constant 0 : i32
    return %arg1, %c0_i32, %c0_i32_0 : i32, i32, i32
  }
  func.func @transform_7(%arg0: i32, %arg1: i32) -> (i32, i32, i32) {
    %c0_i32 = arith.constant 0 : i32
    %c0_i32_0 = arith.constant 0 : i32
    %c0_i32_1 = arith.constant 0 : i32
    return %arg1, %c0_i32, %c0_i32_0 : i32, i32, i32
  }
  func.func @transform_8(%arg0: i32, %arg1: i32) -> (i32, i32) {
    %c0_i32 = arith.constant 0 : i32
    %c0_i32_0 = arith.constant 0 : i32
    %c0_i32_1 = arith.constant 0 : i32
    return %c0_i32, %c0_i32_0 : i32, i32
  }
  func.func @transform_9(%arg0: i32, %arg1: i32) -> (i32, i32, i32) {
    %c0_i32 = arith.constant 0 : i32
    %c0_i32_0 = arith.constant 0 : i32
    %c0_i32_1 = arith.constant 0 : i32
    return %arg0, %c0_i32, %c0_i32_0 : i32, i32, i32
  }
}

module attributes {stable_mosaic.version = 11 : i64} {
  func.func @_fuse_mlp_kernel(%arg0: i32, %arg1: memref<64x32xf32, #tpu.memory_space<vmem>>, %arg2: memref<64x32xf32, #tpu.memory_space<vmem>>, %arg3: memref<64x32xf32, #tpu.memory_space<vmem>>, %arg4: memref<64x32xf32, #tpu.memory_space<vmem>>, %arg5: memref<64x32xf32, #tpu.memory_space<vmem>>, %arg6: memref<64x32xf32, #tpu.memory_space<vmem>>, %arg7: memref<1x32xf32, #tpu.memory_space<vmem>>, %arg8: memref<1x32xf32, #tpu.memory_space<vmem>>, %arg9: memref<32x128xf32, #tpu.memory_space<vmem>>, %arg10: memref<1x128xf32, #tpu.memory_space<vmem>>, %arg11: memref<128x32xf32, #tpu.memory_space<vmem>>, %arg12: memref<1x32xf32, #tpu.memory_space<vmem>>, %arg13: memref<64x32xf32, #tpu.memory_space<vmem>>) attributes {dimension_semantics = [#tpu.dimension_semantics<parallel>], iteration_bounds = array<i64: 2>, scalar_prefetch = 0 : i64, scratch_operands = 0 : i64, tpu.core_type = #tpu.core_type<tc>, window_params = [{transform_indices = @transform_0, window_bounds = array<i64: 64, 32>}, {transform_indices = @transform_1, window_bounds = array<i64: 64, 32>}, {transform_indices = @transform_2, window_bounds = array<i64: 64, 32>}, {transform_indices = @transform_3, window_bounds = array<i64: 64, 32>}, {transform_indices = @transform_4, window_bounds = array<i64: 64, 32>}, {transform_indices = @transform_5, window_bounds = array<i64: 64, 32>}, {pipeline_mode = #tpu.pipeline_mode<synchronous>, transform_indices = @transform_6, window_bounds = array<i64: 1, 32>}, {pipeline_mode = #tpu.pipeline_mode<synchronous>, transform_indices = @transform_7, window_bounds = array<i64: 1, 32>}, {pipeline_mode = #tpu.pipeline_mode<synchronous>, transform_indices = @transform_8, window_bounds = array<i64: 32, 128>}, {pipeline_mode = #tpu.pipeline_mode<synchronous>, transform_indices = @transform_9, window_bounds = array<i64: 1, 128>}, {pipeline_mode = #tpu.pipeline_mode<synchronous>, transform_indices = @transform_10, window_bounds = array<i64: 128, 32>}, {pipeline_mode = #tpu.pipeline_mode<synchronous>, transform_indices = @transform_11, window_bounds = array<i64: 1, 32>}, {transform_indices = @transform_12, window_bounds = array<i64: 64, 32>}]} {
    %c0 = arith.constant 0 : index
    %c0_0 = arith.constant 0 : index
    %0 = vector.load %arg2[%c0, %c0_0] : memref<64x32xf32, #tpu.memory_space<vmem>>, vector<64x32xf32>
    %c0_1 = arith.constant 0 : index
    %c0_2 = arith.constant 0 : index
    %1 = vector.load %arg3[%c0_1, %c0_2] : memref<64x32xf32, #tpu.memory_space<vmem>>, vector<64x32xf32>
    %c0_3 = arith.constant 0 : index
    %c0_4 = arith.constant 0 : index
    %2 = vector.load %arg4[%c0_3, %c0_4] : memref<64x32xf32, #tpu.memory_space<vmem>>, vector<64x32xf32>
    %c0_5 = arith.constant 0 : index
    %c0_6 = arith.constant 0 : index
    %3 = vector.load %arg5[%c0_5, %c0_6] : memref<64x32xf32, #tpu.memory_space<vmem>>, vector<64x32xf32>
    %c0_7 = arith.constant 0 : index
    %c0_8 = arith.constant 0 : index
    %4 = vector.load %arg6[%c0_7, %c0_8] : memref<64x32xf32, #tpu.memory_space<vmem>>, vector<64x32xf32>
    %5 = arith.mulf %0, %0 : vector<64x32xf32>
    %cst = arith.constant dense<0.000000e+00> : vector<64xf32>
    %6 = vector.multi_reduction <add>, %5, %cst [1] : vector<64x32xf32> to vector<64xf32>
    %7 = vector.shape_cast %6 : vector<64xf32> to vector<64x1xf32>
    %8 = arith.mulf %0, %1 : vector<64x32xf32>
    %cst_9 = arith.constant dense<0.000000e+00> : vector<64xf32>
    %9 = vector.multi_reduction <add>, %8, %cst_9 [1] : vector<64x32xf32> to vector<64xf32>
    %10 = vector.shape_cast %9 : vector<64xf32> to vector<64x1xf32>
    %11 = arith.mulf %0, %2 : vector<64x32xf32>
    %cst_10 = arith.constant dense<0.000000e+00> : vector<64xf32>
    %12 = vector.multi_reduction <add>, %11, %cst_10 [1] : vector<64x32xf32> to vector<64xf32>
    %13 = vector.shape_cast %12 : vector<64xf32> to vector<64x1xf32>
    %14 = arith.mulf %0, %3 : vector<64x32xf32>
    %cst_11 = arith.constant dense<0.000000e+00> : vector<64xf32>
    %15 = vector.multi_reduction <add>, %14, %cst_11 [1] : vector<64x32xf32> to vector<64xf32>
    %16 = vector.shape_cast %15 : vector<64xf32> to vector<64x1xf32>
    %17 = arith.mulf %0, %4 : vector<64x32xf32>
    %cst_12 = arith.constant dense<0.000000e+00> : vector<64xf32>
    %18 = vector.multi_reduction <add>, %17, %cst_12 [1] : vector<64x32xf32> to vector<64xf32>
    %19 = vector.shape_cast %18 : vector<64xf32> to vector<64x1xf32>
    %20 = arith.maximumf %7, %10 : vector<64x1xf32>
    %21 = arith.maximumf %20, %13 : vector<64x1xf32>
    %22 = arith.maximumf %21, %16 : vector<64x1xf32>
    %23 = arith.maximumf %22, %19 : vector<64x1xf32>
    %24 = arith.subf %7, %23 : vector<64x1xf32>
    %25 = math.exp %24 : vector<64x1xf32>
    %26 = arith.subf %10, %23 : vector<64x1xf32>
    %27 = math.exp %26 : vector<64x1xf32>
    %28 = arith.subf %13, %23 : vector<64x1xf32>
    %29 = math.exp %28 : vector<64x1xf32>
    %30 = arith.subf %16, %23 : vector<64x1xf32>
    %31 = math.exp %30 : vector<64x1xf32>
    %32 = arith.subf %19, %23 : vector<64x1xf32>
    %33 = math.exp %32 : vector<64x1xf32>
    %34 = arith.addf %25, %27 : vector<64x1xf32>
    %35 = arith.addf %34, %29 : vector<64x1xf32>
    %36 = arith.addf %35, %31 : vector<64x1xf32>
    %37 = arith.addf %36, %33 : vector<64x1xf32>
    %cst_13 = arith.constant 1.000000e+00 : f32
    %38 = vector.broadcast %cst_13 : f32 to vector<64x1xf32>
    %39 = arith.divf %38, %37 : vector<64x1xf32>
    %c0_14 = arith.constant 0 : index
    %c0_15 = arith.constant 0 : index
    %40 = vector.load %arg1[%c0_14, %c0_15] : memref<64x32xf32, #tpu.memory_space<vmem>>, vector<64x32xf32>
    %41 = arith.mulf %25, %39 : vector<64x1xf32>
    %42 = vector.broadcast %41 : vector<64x1xf32> to vector<64x32xf32>
    %43 = arith.mulf %42, %0 : vector<64x32xf32>
    %44 = arith.addf %40, %43 : vector<64x32xf32>
    %45 = arith.mulf %27, %39 : vector<64x1xf32>
    %46 = vector.broadcast %45 : vector<64x1xf32> to vector<64x32xf32>
    %47 = arith.mulf %46, %1 : vector<64x32xf32>
    %48 = arith.addf %44, %47 : vector<64x32xf32>
    %49 = arith.mulf %29, %39 : vector<64x1xf32>
    %50 = vector.broadcast %49 : vector<64x1xf32> to vector<64x32xf32>
    %51 = arith.mulf %50, %2 : vector<64x32xf32>
    %52 = arith.addf %48, %51 : vector<64x32xf32>
    %53 = arith.mulf %31, %39 : vector<64x1xf32>
    %54 = vector.broadcast %53 : vector<64x1xf32> to vector<64x32xf32>
    %55 = arith.mulf %54, %3 : vector<64x32xf32>
    %56 = arith.addf %52, %55 : vector<64x32xf32>
    %57 = arith.mulf %33, %39 : vector<64x1xf32>
    %58 = vector.broadcast %57 : vector<64x1xf32> to vector<64x32xf32>
    %59 = arith.mulf %58, %4 : vector<64x32xf32>
    %60 = arith.addf %56, %59 : vector<64x32xf32>
    %cst_16 = arith.constant dense<0.000000e+00> : vector<64xf32>
    %61 = vector.multi_reduction <add>, %60, %cst_16 [1] : vector<64x32xf32> to vector<64xf32>
    %62 = vector.shape_cast %61 : vector<64xf32> to vector<64x1xf32>
    %cst_17 = arith.constant 3.200000e+01 : f32
    %63 = vector.broadcast %cst_17 : f32 to vector<64x1xf32>
    %64 = arith.divf %62, %63 : vector<64x1xf32>
    %65 = vector.broadcast %64 : vector<64x1xf32> to vector<64x32xf32>
    %66 = arith.subf %60, %65 : vector<64x32xf32>
    %67 = arith.mulf %66, %66 : vector<64x32xf32>
    %cst_18 = arith.constant dense<0.000000e+00> : vector<64xf32>
    %68 = vector.multi_reduction <add>, %67, %cst_18 [1] : vector<64x32xf32> to vector<64xf32>
    %69 = vector.shape_cast %68 : vector<64xf32> to vector<64x1xf32>
    %cst_19 = arith.constant 3.200000e+01 : f32
    %70 = vector.broadcast %cst_19 : f32 to vector<64x1xf32>
    %71 = arith.divf %69, %70 : vector<64x1xf32>
    %cst_20 = arith.constant 9.99999974E-6 : f32
    %72 = vector.broadcast %cst_20 : f32 to vector<64x1xf32>
    %73 = arith.addf %71, %72 : vector<64x1xf32>
    %74 = math.rsqrt %73 : vector<64x1xf32>
    %75 = vector.broadcast %74 : vector<64x1xf32> to vector<64x32xf32>
    %76 = arith.mulf %66, %75 : vector<64x32xf32>
    %c0_21 = arith.constant 0 : index
    %c0_22 = arith.constant 0 : index
    %77 = vector.load %arg7[%c0_21, %c0_22] : memref<1x32xf32, #tpu.memory_space<vmem>>, vector<1x32xf32>
    %78 = vector.broadcast %77 : vector<1x32xf32> to vector<64x32xf32>
    %79 = arith.mulf %76, %78 : vector<64x32xf32>
    %c0_23 = arith.constant 0 : index
    %c0_24 = arith.constant 0 : index
    %80 = vector.load %arg8[%c0_23, %c0_24] : memref<1x32xf32, #tpu.memory_space<vmem>>, vector<1x32xf32>
    %81 = vector.broadcast %80 : vector<1x32xf32> to vector<64x32xf32>
    %82 = arith.addf %79, %81 : vector<64x32xf32>
    %c0_25 = arith.constant 0 : index
    %c0_26 = arith.constant 0 : index
    %83 = vector.load %arg9[%c0_25, %c0_26] : memref<32x128xf32, #tpu.memory_space<vmem>>, vector<32x128xf32>
    %cst_27 = arith.constant dense<0.000000e+00> : vector<64x128xf32>
    %84 = tpu.matmul %82, %83, %cst_27 {dimension_numbers = #tpu.dot_dimension_numbers<[1], [0], [0], [1], [0, 0, 1, 1], [], []>} : vector<64x32xf32>, vector<32x128xf32>, vector<64x128xf32> -> vector<64x128xf32>
    %c0_28 = arith.constant 0 : index
    %c0_29 = arith.constant 0 : index
    %85 = vector.load %arg10[%c0_28, %c0_29] : memref<1x128xf32, #tpu.memory_space<vmem>>, vector<1x128xf32>
    %86 = vector.broadcast %85 : vector<1x128xf32> to vector<64x128xf32>
    %87 = arith.addf %84, %86 : vector<64x128xf32>
    %88 = arith.mulf %87, %87 : vector<64x128xf32>
    %89 = arith.mulf %87, %88 : vector<64x128xf32>
    %cst_30 = arith.constant 4.471500e-02 : f32
    %90 = vector.broadcast %cst_30 : f32 to vector<64x128xf32>
    %91 = arith.mulf %90, %89 : vector<64x128xf32>
    %92 = arith.addf %87, %91 : vector<64x128xf32>
    %cst_31 = arith.constant 0.797884583 : f32
    %93 = vector.broadcast %cst_31 : f32 to vector<64x128xf32>
    %94 = arith.mulf %93, %92 : vector<64x128xf32>
    %95 = math.tanh %94 : vector<64x128xf32>
    %cst_32 = arith.constant 1.000000e+00 : f32
    %96 = vector.broadcast %cst_32 : f32 to vector<64x128xf32>
    %97 = arith.addf %96, %95 : vector<64x128xf32>
    %cst_33 = arith.constant 5.000000e-01 : f32
    %98 = vector.broadcast %cst_33 : f32 to vector<64x128xf32>
    %99 = arith.mulf %98, %97 : vector<64x128xf32>
    %100 = arith.mulf %87, %99 : vector<64x128xf32>
    %c0_34 = arith.constant 0 : index
    %c0_35 = arith.constant 0 : index
    %101 = vector.load %arg11[%c0_34, %c0_35] : memref<128x32xf32, #tpu.memory_space<vmem>>, vector<128x32xf32>
    %cst_36 = arith.constant dense<0.000000e+00> : vector<64x32xf32>
    %102 = tpu.matmul %100, %101, %cst_36 {dimension_numbers = #tpu.dot_dimension_numbers<[1], [0], [0], [1], [0, 0, 1, 1], [], []>} : vector<64x128xf32>, vector<128x32xf32>, vector<64x32xf32> -> vector<64x32xf32>
    %c0_37 = arith.constant 0 : index
    %c0_38 = arith.constant 0 : index
    %103 = vector.load %arg12[%c0_37, %c0_38] : memref<1x32xf32, #tpu.memory_space<vmem>>, vector<1x32xf32>
    %104 = vector.broadcast %103 : vector<1x32xf32> to vector<64x32xf32>
    %105 = arith.addf %102, %104 : vector<64x32xf32>
    %106 = arith.addf %60, %105 : vector<64x32xf32>
    %c0_39 = arith.constant 0 : index
    %c0_40 = arith.constant 0 : index
    %107 = vector.load %arg13[%c0_39, %c0_40] : memref<64x32xf32, #tpu.memory_space<vmem>>, vector<64x32xf32>
    tpu.vector_store %arg13[%c0_39, %c0_40], %106 {strides = array<i32>} : memref<64x32xf32, #tpu.memory_space<vmem>>, vector<64x32xf32>,
    return
  }
  func.func @transform_0(%arg0: i32) -> (i32, i32) {
    %c0_i32 = arith.constant 0 : i32
    %c0_i32_0 = arith.constant 0 : i32
    return %arg0, %c0_i32 : i32, i32
  }
  func.func @transform_1(%arg0: i32) -> (i32, i32) {
    %c0_i32 = arith.constant 0 : i32
    %c0_i32_0 = arith.constant 0 : i32
    return %arg0, %c0_i32 : i32, i32
  }
  func.func @transform_2(%arg0: i32) -> (i32, i32) {
    %c0_i32 = arith.constant 0 : i32
    %c0_i32_0 = arith.constant 0 : i32
    return %arg0, %c0_i32 : i32, i32
  }
  func.func @transform_3(%arg0: i32) -> (i32, i32) {
    %c0_i32 = arith.constant 0 : i32
    %c0_i32_0 = arith.constant 0 : i32
    return %arg0, %c0_i32 : i32, i32
  }
  func.func @transform_4(%arg0: i32) -> (i32, i32) {
    %c0_i32 = arith.constant 0 : i32
    %c0_i32_0 = arith.constant 0 : i32
    return %arg0, %c0_i32 : i32, i32
  }
  func.func @transform_5(%arg0: i32) -> (i32, i32) {
    %c0_i32 = arith.constant 0 : i32
    %c0_i32_0 = arith.constant 0 : i32
    return %arg0, %c0_i32 : i32, i32
  }
  func.func @transform_6(%arg0: i32) -> (i32, i32) {
    %c0_i32 = arith.constant 0 : i32
    %c0_i32_0 = arith.constant 0 : i32
    %c0_i32_1 = arith.constant 0 : i32
    return %c0_i32, %c0_i32_0 : i32, i32
  }
  func.func @transform_7(%arg0: i32) -> (i32, i32) {
    %c0_i32 = arith.constant 0 : i32
    %c0_i32_0 = arith.constant 0 : i32
    %c0_i32_1 = arith.constant 0 : i32
    return %c0_i32, %c0_i32_0 : i32, i32
  }
  func.func @transform_8(%arg0: i32) -> (i32, i32) {
    %c0_i32 = arith.constant 0 : i32
    %c0_i32_0 = arith.constant 0 : i32
    %c0_i32_1 = arith.constant 0 : i32
    return %c0_i32, %c0_i32_0 : i32, i32
  }
  func.func @transform_9(%arg0: i32) -> (i32, i32) {
    %c0_i32 = arith.constant 0 : i32
    %c0_i32_0 = arith.constant 0 : i32
    %c0_i32_1 = arith.constant 0 : i32
    return %c0_i32, %c0_i32_0 : i32, i32
  }
  func.func @transform_10(%arg0: i32) -> (i32, i32) {
    %c0_i32 = arith.constant 0 : i32
    %c0_i32_0 = arith.constant 0 : i32
    %c0_i32_1 = arith.constant 0 : i32
    return %c0_i32, %c0_i32_0 : i32, i32
  }
  func.func @transform_11(%arg0: i32) -> (i32, i32) {
    %c0_i32 = arith.constant 0 : i32
    %c0_i32_0 = arith.constant 0 : i32
    %c0_i32_1 = arith.constant 0 : i32
    return %c0_i32, %c0_i32_0 : i32, i32
  }
  func.func @transform_12(%arg0: i32) -> (i32, i32) {
    %c0_i32 = arith.constant 0 : i32
    %c0_i32_0 = arith.constant 0 : i32
    return %arg0, %c0_i32 : i32, i32
  }
}

</mosaic_0001>

<llo_original>
// kernel: _lambda_.5
$region0: #{_lambda_.5}
  #allocation0 [shape = 'u32[]', space=smem, size = 0x4, offset = 0x4, fixed_abs, tag = 'smem constant byte address 0x4 - core index']
  #allocation1 [shape = 'u32[144,128]{1,0:T(1,128)}', space=vmem, size = 0x12000, scoped, tag = 'internal scratch']
  %s0 = inlined_call_operand.hbm [shape: f32[128,32], index: 0, kind: input, shape index: {}]
  %s1 = inlined_call_operand.hbm [shape: f32[1,32], index: 1, kind: input, shape index: {}]
  %s2 = inlined_call_operand.hbm [shape: f32[1,32], index: 2, kind: input, shape index: {}]
  %s3 = inlined_call_operand.hbm [shape: f32[128,32], index: 3, kind: output, shape index: {0}]
  %s4 = inlined_call_operand.hbm [shape: f32[128,32], index: 4, kind: output, shape index: {1}]
  %5 = xla_tuple %s3, %s4
  %s6 = sld [smem:[#allocation0]]
  $region65: #{_lambda_.5} parent=0
    _
  %s8 = ssub.s32 1, %s6
  %s9 = scalar_select 0, %s8, %s6
  $region1: #{_lambda_.5} parent=0
    #allocation2 [shape = 'u8[65536]{0}', space=vmem, size = 0x10000, scoped, tag = 'input window, operand 0']
    #allocation3 [shape = 's32[2]{0}', space=sflag, size = 0x8, scoped, tag = 'scoped memory for _lambda_.5']
    #allocation4 [shape = 's32[2]{0}', space=sflag, size = 0x8, scoped, tag = 'scoped memory for _lambda_.5']
    #allocation5 [shape = 'u8[512]{0}', space=vmem, size = 0x400, scoped, tag = 'input window, operand 1, single buffered']
    #allocation6 [shape = 's32[1]{0}', space=sflag, size = 0x4, scoped, tag = 'scoped memory for _lambda_.5']
    #allocation7 [shape = 'u8[512]{0}', space=vmem, size = 0x400, scoped, tag = 'input window, operand 2, single buffered']
    #allocation8 [shape = 'u8[65536]{0}', space=vmem, size = 0x10000, scoped, tag = 'output window, operand 0']
    #allocation9 [shape = 'u8[65536]{0}', space=vmem, size = 0x10000, scoped, tag = 'output window, operand 1']
    #allocation10 [shape = 's32[2]{0}', space=sflag, size = 0x8, scoped, tag = 'scoped memory for _lambda_.5']
    %10 = vsyncpa [#allocation3], 0
    %s11 = scalar_lea.sflag [#allocation3], 1
    %12 = vsyncpa %s11, 0
    %13 = vsyncpa [#allocation6], 0
    %14 = vsyncpa [#allocation4], 0
    %s15 = scalar_lea.sflag [#allocation4], 1
    %16 = vsyncpa %s15, 0
    %17 = vsyncpa [#allocation10], 0
    %s18 = scalar_lea.sflag [#allocation10], 1
    %19 = vsyncpa %s18, 0
    loop: start=0, step=1, limit=4
    $region2: #{_lambda_.5} parent=1 // loop_pre_header
      _
    $region3: #{_lambda_.5} parent=1 // loop_header
      %s21 = sphi 0, %s25
      %p22 = scmp.ge.s32.totalorder %s21, 4
      %s31 = sphi 0, %s33
      %s34 = sphi 0, %s31
      %s35 = sphi 0, %s34
      %s51 = sphi 0, %s35
      %s55 = sphi 0, %s55
      %s57 = sphi 0, %s55
      %s58 = sphi 0, %s57
      %s72 = sphi 0, %s58
      %s76 = sphi 0, %s76
      %s78 = sphi 0, %s76
      %s79 = sphi 0, %s78
      %s93 = sphi 0, %s79
      %s99 = sphi 0, %s101
      %s102 = sphi 0, %s99
      %s103 = sphi 0, %s102
      %s119 = sphi 0, %s103
      %s125 = sphi 0, %s127
      %s128 = sphi 0, %s125
      %s129 = sphi 0, %s128
      %s145 = sphi 0, %s129
    $region4: #{_lambda_.5} parent=1 // loop_header_branch
      %24 = sbr.rel (%p22) target = $region8
    $region5: #{_lambda_.5} parent=1 // loop_body
      %s26 = ssub.s32 %s21, 1
      %s27 = ssub.s32 %s21, 2
      %s28 = sadd.s32 %s21, 1
      %s29 = ssub.s32 %s21, %s28
      %p30 = scmp.eq.s32.totalorder %s29, 0
      %s32 = sadd.s32 %s31, 1
      %s33 = scalar_select %p30, %s31, %s32
      %p36 = pneg %p30
      %p37 = scmp.eq.s32.totalorder %s21, 1
      %p38 = por %p36, %p37
      %p39 = scmp.ne.s32.totalorder %s31, %s34
      %p40 = scmp.eq.s32.totalorder %s21, 0
      %p41 = por %p39, %p40
      %p42 = scmp.ne.s32.totalorder %s31, %s34
      %p43 = scmp.eq.s32.totalorder %s26, 1
      %p44 = por %p42, %p43
      %p45 = scmp.ne.s32.totalorder %s34, %s35
      %p46 = scmp.eq.s32.totalorder %s26, 0
      %p47 = por %p45, %p46
      %p48 = scmp.ne.s32.totalorder %s34, %s35
      %p49 = scmp.eq.s32.totalorder %s27, 1
      %p50 = por %p48, %p49
      %p52 = scmp.ne.s32.totalorder %s35, %s51
      %p53 = scmp.eq.s32.totalorder %s27, 0
      %p54 = por %p52, %p53
      %s56 = sadd.s32 %s55, 1
      %p59 = scmp.eq.s32.totalorder %s21, 1
      %p60 = scmp.ne.s32.totalorder %s55, %s57
      %p61 = scmp.eq.s32.totalorder %s21, 0
      %p62 = por %p60, %p61
      %p63 = scmp.ne.s32.totalorder %s55, %s57
      %p64 = scmp.eq.s32.totalorder %s26, 1
      %p65 = por %p63, %p64
      %p66 = scmp.ne.s32.totalorder %s57, %s58
      %p67 = scmp.eq.s32.totalorder %s26, 0
      %p68 = por %p66, %p67
      %p69 = scmp.ne.s32.totalorder %s57, %s58
      %p70 = scmp.eq.s32.totalorder %s27, 1
      %p71 = por %p69, %p70
      %p73 = scmp.ne.s32.totalorder %s58, %s72
      %p74 = scmp.eq.s32.totalorder %s27, 0
      %p75 = por %p73, %p74
      %s77 = sadd.s32 %s76, 1
      %p80 = scmp.eq.s32.totalorder %s21, 1
      %p81 = scmp.ne.s32.totalorder %s76, %s78
      %p82 = scmp.eq.s32.totalorder %s21, 0
      %p83 = por %p81, %p82
      %p84 = scmp.ne.s32.totalorder %s76, %s78
      %p85 = scmp.eq.s32.totalorder %s26, 1
      %p86 = por %p84, %p85
      %p87 = scmp.ne.s32.totalorder %s78, %s79
      %p88 = scmp.eq.s32.totalorder %s26, 0
      %p89 = por %p87, %p88
      %p90 = scmp.ne.s32.totalorder %s78, %s79
      %p91 = scmp.eq.s32.totalorder %s27, 1
      %p92 = por %p90, %p91
      %p94 = scmp.ne.s32.totalorder %s79, %s93
      %p95 = scmp.eq.s32.totalorder %s27, 0
      %p96 = por %p94, %p95
      %s97 = ssub.s32 %s21, %s28
      %p98 = scmp.eq.s32.totalorder %s97, 0
      %s100 = sadd.s32 %s99, 1
      %s101 = scalar_select %p98, %s99, %s100
      %p104 = pneg %p98
      %p105 = scmp.eq.s32.totalorder %s21, 1
      %p106 = por %p104, %p105
      %p107 = scmp.ne.s32.totalorder %s99, %s102
      %p108 = scmp.eq.s32.totalorder %s21, 0
      %p109 = por %p107, %p108
      %p110 = scmp.ne.s32.totalorder %s99, %s102
      %p111 = scmp.eq.s32.totalorder %s26, 1
      %p112 = por %p110, %p111
      %p113 = scmp.ne.s32.totalorder %s102, %s103
      %p114 = scmp.eq.s32.totalorder %s26, 0
      %p115 = por %p113, %p114
      %p116 = scmp.ne.s32.totalorder %s102, %s103
      %p117 = scmp.eq.s32.totalorder %s27, 1
      %p118 = por %p116, %p117
      %p120 = scmp.ne.s32.totalorder %s103, %s119
      %p121 = scmp.eq.s32.totalorder %s27, 0
      %p122 = por %p120, %p121
      %s123 = ssub.s32 %s21, %s28
      %p124 = scmp.eq.s32.totalorder %s123, 0
      %s126 = sadd.s32 %s125, 1
      %s127 = scalar_select %p124, %s125, %s126
      %p130 = pneg %p124
      %p131 = scmp.eq.s32.totalorder %s21, 1
      %p132 = por %p130, %p131
      %p133 = scmp.ne.s32.totalorder %s125, %s128
      %p134 = scmp.eq.s32.totalorder %s21, 0
      %p135 = por %p133, %p134
      %p136 = scmp.ne.s32.totalorder %s125, %s128
      %p137 = scmp.eq.s32.totalorder %s26, 1
      %p138 = por %p136, %p137
      %p139 = scmp.ne.s32.totalorder %s128, %s129
      %p140 = scmp.eq.s32.totalorder %s26, 0
      %p141 = por %p139, %p140
      %p142 = scmp.ne.s32.totalorder %s128, %s129
      %p143 = scmp.eq.s32.totalorder %s27, 1
      %p144 = por %p142, %p143
      %p146 = scmp.ne.s32.totalorder %s129, %s145
      %p147 = scmp.eq.s32.totalorder %s27, 0
      %p148 = por %p146, %p147
      %p149 = scmp.le.s32.totalorder 1, %s21
      %p150 = scmp.lt.s32.totalorder %s21, 3
      %p151 = pnand %p149, %p150
      %p152 = pneg %p151
      // Predicated region
      $region9: #{_lambda_.5} parent=5 // pred_check
        _
      $region10: #{_lambda_.5} parent=5 // pred_check_branch
        %154 = sbr.rel (%p151) target = $region12
      $region11: #{_lambda_.5} parent=5 // pred_region
        %s155 = ssub.s32 %s21, 1
        // Predicated region
        $region13: #{_lambda_.5} parent=11 // pred_check
          %p156 = pneg %p68
        $region14: #{_lambda_.5} parent=11 // pred_check_branch
          %158 = sbr.rel (%p156) target = $region16
        $region15: #{_lambda_.5} parent=11 // pred_region
          %s160 = ssub.s32 16, 16
          %161 = vsyncadd [#allocation6], %s160
          %s163 = sshll.u32 [#allocation5], 4
          %s164 = int_to_ptr.vmem [resolvable:$true] %s163
          %166 = dma.hbm_to_vmem [thread:$0]  %s1, 16, %s164, [#allocation6]
        $region16: #{_lambda_.5} parent=11 // pred_fallthru
          _
        // Predicated region
        $region17: #{_lambda_.5} parent=11 // pred_check
          %p167 = pneg %p89
        $region18: #{_lambda_.5} parent=11 // pred_check_branch
          %169 = sbr.rel (%p167) target = $region20
        $region19: #{_lambda_.5} parent=11 // pred_region
          %s171 = ssub.s32 16, 16
          %172 = vsyncadd [#allocation6], %s171
          %s174 = sshll.u32 [#allocation7], 4
          %s175 = int_to_ptr.vmem [resolvable:$true] %s174
          %177 = dma.hbm_to_vmem [thread:$0]  %s2, 16, %s175, [#allocation6]
        $region20: #{_lambda_.5} parent=11 // pred_fallthru
          _
      $region12: #{_lambda_.5} parent=5 // pred_fallthru
        _
      %p178 = scmp.lt.s32.totalorder %s21, 2
      // Predicated region
      $region21: #{_lambda_.5} parent=5 // pred_check
        %p179 = pneg %p178
      $region22: #{_lambda_.5} parent=5 // pred_check_branch
        %181 = sbr.rel (%p179) target = $region24
      $region23: #{_lambda_.5} parent=5 // pred_region
        // Predicated region
        $region25: #{_lambda_.5} parent=23 // pred_check
          %p182 = pneg %p41
        $region26: #{_lambda_.5} parent=23 // pred_check_branch
          %184 = sbr.rel (%p182) target = $region28
        $region27: #{_lambda_.5} parent=23 // pred_region
          %s185 = sand.u32 %s31, 1
          %s186 = scalar_lea.sflag [#allocation3], %s185
          %s187 = sand.u32 %s31, 1
          %s188 = smul.addr %s187, 64
          %s189 = scalar_lea.vmem [#allocation2], %s188
          %s190 = smul.u32 8, %s21
          %s192 = ssub.s32 1024, 1024
          %193 = vsyncadd %s186, %s192
          %s194 = smul.addr %s190, 128
          %s195 = scalar_lea.hbm %s0, %s194
          %s196 = sshll.u32 %s189, 4
          %s197 = int_to_ptr.vmem [resolvable:$true] %s196
          %202 = dma.hbm_to_vmem [thread:$0]  %s195, 1024, %s197, %s186, 128, 128, 8
        $region28: #{_lambda_.5} parent=23 // pred_fallthru
          _
      $region24: #{_lambda_.5} parent=5 // pred_fallthru
        _
      %p203 = scmp.le.s32.totalorder 1, %s21
      %p204 = scmp.lt.s32.totalorder %s21, 3
      %p205 = pnand %p203, %p204
      %p206 = pneg %p205
      // Predicated region
      $region29: #{_lambda_.5} parent=5 // pred_check
        _
      $region30: #{_lambda_.5} parent=5 // pred_check_branch
        %208 = sbr.rel (%p205) target = $region32
      $region31: #{_lambda_.5} parent=5 // pred_region
        %s209 = ssub.s32 %s21, 1
        %s210 = sand.u32 %s34, 1
        %s211 = scalar_lea.sflag [#allocation3], %s210
        %s212 = sand.u32 %s34, 1
        %s213 = smul.addr %s212, 64
        %s214 = scalar_lea.vmem [#allocation2], %s213
        // Predicated region
        $region33: #{_lambda_.5} parent=31 // pred_check
          %p215 = pneg %p47
        $region34: #{_lambda_.5} parent=31 // pred_check_branch
          %217 = sbr.rel (%p215) target = $region36
        $region35: #{_lambda_.5} parent=31 // pred_region
          %218 = dma.done %s211, 1024
        $region36: #{_lambda_.5} parent=31 // pred_fallthru
          _
        // Predicated region
        $region37: #{_lambda_.5} parent=31 // pred_check
          %p219 = pneg %p68
        $region38: #{_lambda_.5} parent=31 // pred_check_branch
          %221 = sbr.rel (%p219) target = $region40
        $region39: #{_lambda_.5} parent=31 // pred_region
          %222 = dma.done [#allocation6], 16
        $region40: #{_lambda_.5} parent=31 // pred_fallthru
          _
        // Predicated region
        $region41: #{_lambda_.5} parent=31 // pred_check
          %p223 = pneg %p89
        $region42: #{_lambda_.5} parent=31 // pred_check_branch
          %225 = sbr.rel (%p223) target = $region44
        $region43: #{_lambda_.5} parent=31 // pred_region
          %226 = dma.done [#allocation6], 16
        $region44: #{_lambda_.5} parent=31 // pred_fallthru
          _
        %s227 = sand.u32 %s34, 1
        %s228 = scalar_lea.sflag [#allocation3], %s227
        %s229 = sand.u32 %s34, 1
        %s230 = smul.addr %s229, 64
        %s231 = scalar_lea.vmem [#allocation2], %s230
        %p232 = pneg %p47
        %p233 = pneg %p44
        %p234 = pneg %p68
        %p235 = pneg %p65
        %p236 = pneg %p89
        %p237 = pneg %p86
        %p238 = pneg %p115
        %p239 = pneg %p112
        %s240 = sand.u32 %s102, 1
        %s241 = scalar_lea.sflag [#allocation4], %s240
        %s242 = sand.u32 %s102, 1
        %s243 = smul.addr %s242, 64
        %s244 = scalar_lea.vmem [#allocation8], %s243
        %p245 = pneg %p141
        %p246 = pneg %p138
        %s247 = sand.u32 %s128, 1
        %s248 = scalar_lea.sflag [#allocation10], %s247
        %s249 = sand.u32 %s128, 1
        %s250 = smul.addr %s249, 64
        %s251 = scalar_lea.vmem [#allocation9], %s250
        %s252 = smul.u32 8, %s26
        %s253 = smul.u32 8, %s26
        %s254 = smul.u32 8, %s26
        %v255 = vld [vmem:[#allocation5] sm:$0x1]
        %v256 = vld [vmem:[#allocation7] sm:$0x1]
        %v257 = vld [vmem:[%s214] sm:$0xff]
        %v258 = vld [vmem:[%s214 + $0x8] sm:$0xff]
        %v259 = vld [vmem:[%s214 + $0x10] sm:$0xff]
        %v260 = vld [vmem:[%s214 + $0x18] sm:$0xff]
        %v261 = vld [vmem:[%s214 + $0x20] sm:$0xff]
        %v262 = vld [vmem:[%s214 + $0x28] sm:$0xff]
        %v263 = vld [vmem:[%s214 + $0x30] sm:$0xff]
        %v264 = vld [vmem:[%s214 + $0x38] sm:$0xff]
        %vm265 = vcmask 261120
        %v266 = vsel %vm265, %v257, 0.0
        %267 = vadd.xlane.f32.xlu0 %v266
        %v268 = vpop.xlane.xlu0 %267
        %v269 = vsel %vm265, %v258, 0.0
        %270 = vadd.xlane.f32.xlu0 %v269
        %v271 = vpop.xlane.xlu0 %270
        %v272 = vsel %vm265, %v259, 0.0
        %273 = vadd.xlane.f32.xlu0 %v272
        %v274 = vpop.xlane.xlu0 %273
        %v275 = vsel %vm265, %v260, 0.0
        %276 = vadd.xlane.f32.xlu0 %v275
        %v277 = vpop.xlane.xlu0 %276
        %v278 = vsel %vm265, %v261, 0.0
        %279 = vadd.xlane.f32.xlu0 %v278
        %v280 = vpop.xlane.xlu0 %279
        %v281 = vsel %vm265, %v262, 0.0
        %282 = vadd.xlane.f32.xlu0 %v281
        %v283 = vpop.xlane.xlu0 %282
        %v284 = vsel %vm265, %v263, 0.0
        %285 = vadd.xlane.f32.xlu0 %v284
        %v286 = vpop.xlane.xlu0 %285
        %v287 = vsel %vm265, %v264, 0.0
        %288 = vadd.xlane.f32.xlu0 %v287
        %v289 = vpop.xlane.xlu0 %288
        %v290 = vrcp.pop 32.0
        %v291 = vmul.f32 %v268, %v290
        %v292 = vmul.f32 %v271, %v290
        %v293 = vmul.f32 %v274, %v290
        %v294 = vmul.f32 %v277, %v290
        %v295 = vmul.f32 %v280, %v290
        %v296 = vmul.f32 %v283, %v290
        %v297 = vmul.f32 %v286, %v290
        %v298 = vmul.f32 %v289, %v290
        %v299 = vsub.f32 %v257, %v291
        %v300 = vsub.f32 %v258, %v292
        %v301 = vsub.f32 %v259, %v293
        %v302 = vsub.f32 %v260, %v294
        %v303 = vsub.f32 %v261, %v295
        %v304 = vsub.f32 %v262, %v296
        %v305 = vsub.f32 %v263, %v297
        %v306 = vsub.f32 %v264, %v298
        %v307 = vmul.f32 %v299, %v299
        %v308 = vmul.f32 %v300, %v300
        %v309 = vmul.f32 %v301, %v301
        %v310 = vmul.f32 %v302, %v302
        %v311 = vmul.f32 %v303, %v303
        %v312 = vmul.f32 %v304, %v304
        %v313 = vmul.f32 %v305, %v305
        %v314 = vmul.f32 %v306, %v306
        %v315 = vsel %vm265, %v307, 0.0
        %316 = vadd.xlane.f32.xlu0 %v315
        %v317 = vpop.xlane.xlu0 %316
        %v318 = vsel %vm265, %v308, 0.0
        %319 = vadd.xlane.f32.xlu0 %v318
        %v320 = vpop.xlane.xlu0 %319
        %v321 = vsel %vm265, %v309, 0.0
        %322 = vadd.xlane.f32.xlu0 %v321
        %v323 = vpop.xlane.xlu0 %322
        %v324 = vsel %vm265, %v310, 0.0
        %325 = vadd.xlane.f32.xlu0 %v324
        %v326 = vpop.xlane.xlu0 %325
        %v327 = vsel %vm265, %v311, 0.0
        %328 = vadd.xlane.f32.xlu0 %v327
        %v329 = vpop.xlane.xlu0 %328
        %v330 = vsel %vm265, %v312, 0.0
        %331 = vadd.xlane.f32.xlu0 %v330
        %v332 = vpop.xlane.xlu0 %331
        %v333 = vsel %vm265, %v313, 0.0
        %334 = vadd.xlane.f32.xlu0 %v333
        %v335 = vpop.xlane.xlu0 %334
        %v336 = vsel %vm265, %v314, 0.0
        %337 = vadd.xlane.f32.xlu0 %v336
        %v338 = vpop.xlane.xlu0 %337
        %v339 = vmul.f32 %v317, %v290
        %v340 = vmul.f32 %v320, %v290
        %v341 = vmul.f32 %v323, %v290
        %v342 = vmul.f32 %v326, %v290
        %v343 = vmul.f32 %v329, %v290
        %v344 = vmul.f32 %v332, %v290
        %v345 = vmul.f32 %v335, %v290
        %v346 = vmul.f32 %v338, %v290
        %v347 = vadd.f32 %v339, 1e-05
        %v348 = vadd.f32 %v340, 1e-05
        %v349 = vadd.f32 %v341, 1e-05
        %v350 = vadd.f32 %v342, 1e-05
        %v351 = vadd.f32 %v343, 1e-05
        %v352 = vadd.f32 %v344, 1e-05
        %v353 = vadd.f32 %v345, 1e-05
        %v354 = vadd.f32 %v346, 1e-05
        %v355 = vrsqrt.pop %v347
        %v356 = vrsqrt.pop %v348
        %v357 = vrsqrt.pop %v349
        %v358 = vrsqrt.pop %v350
        %v359 = vrsqrt.pop %v351
        %v360 = vrsqrt.pop %v352
        %v361 = vrsqrt.pop %v353
        %v362 = vrsqrt.pop %v354
        %v363 = vmul.f32 %v299, %v355
        %v364 = vmul.f32 %v300, %v356
        %v365 = vmul.f32 %v301, %v357
        %v366 = vmul.f32 %v302, %v358
        %v367 = vmul.f32 %v303, %v359
        %v368 = vmul.f32 %v304, %v360
        %v369 = vmul.f32 %v305, %v361
        %v370 = vmul.f32 %v306, %v362
        %v372 = vlaneseq
        %v373 = vshrl.u32 %v372, 7
        %v374 = vsub.s32 0, %v373
        %v375 = vrot.slane %v255, %v374
        %v377 = vmul.f32 %v363, %v375
        %v378 = vmul.f32 %v364, %v375
        %v379 = vmul.f32 %v365, %v375
        %v380 = vmul.f32 %v366, %v375
        %v381 = vmul.f32 %v367, %v375
        %v382 = vmul.f32 %v368, %v375
        %v383 = vmul.f32 %v369, %v375
        %v384 = vmul.f32 %v370, %v375
        %v386 = vlaneseq
        %v387 = vshrl.u32 %v386, 7
        %v388 = vsub.s32 0, %v387
        %v389 = vrot.slane %v256, %v388
        %v391 = vadd.f32 %v377, %v389
        %v392 = vadd.f32 %v378, %v389
        %v393 = vadd.f32 %v379, %v389
        %v394 = vadd.f32 %v380, %v389
        %v395 = vadd.f32 %v381, %v389
        %v396 = vadd.f32 %v382, %v389
        %v397 = vadd.f32 %v383, %v389
        %v398 = vadd.f32 %v384, %v389
        %399 = vst.msk [vmem:[%s244] sm:$0xff] %vm265, %v391
        %400 = vst.msk [vmem:[%s244 + $0x8] sm:$0xff] %vm265, %v392
        %401 = vst.msk [vmem:[%s244 + $0x10] sm:$0xff] %vm265, %v393
        %402 = vst.msk [vmem:[%s244 + $0x18] sm:$0xff] %vm265, %v394
        %403 = vst.msk [vmem:[%s244 + $0x20] sm:$0xff] %vm265, %v395
        %404 = vst.msk [vmem:[%s244 + $0x28] sm:$0xff] %vm265, %v396
        %405 = vst.msk [vmem:[%s244 + $0x30] sm:$0xff] %vm265, %v397
        %406 = vst.msk [vmem:[%s244 + $0x38] sm:$0xff] %vm265, %v398
        %v407 = vsel %vm265, %v391, 0.0
        %408 = vadd.xlane.f32.xlu0 %v407
        %v409 = vpop.xlane.xlu0 %408
        %v410 = vsel %vm265, %v392, 0.0
        %411 = vadd.xlane.f32.xlu0 %v410
        %v412 = vpop.xlane.xlu0 %411
        %v413 = vsel %vm265, %v393, 0.0
        %414 = vadd.xlane.f32.xlu0 %v413
        %v415 = vpop.xlane.xlu0 %414
        %v416 = vsel %vm265, %v394, 0.0
        %417 = vadd.xlane.f32.xlu0 %v416
        %v418 = vpop.xlane.xlu0 %417
        %v419 = vsel %vm265, %v395, 0.0
        %420 = vadd.xlane.f32.xlu0 %v419
        %v421 = vpop.xlane.xlu0 %420
        %v422 = vsel %vm265, %v396, 0.0
        %423 = vadd.xlane.f32.xlu0 %v422
        %v424 = vpop.xlane.xlu0 %423
        %v425 = vsel %vm265, %v397, 0.0
        %426 = vadd.xlane.f32.xlu0 %v425
        %v427 = vpop.xlane.xlu0 %426
        %v428 = vsel %vm265, %v398, 0.0
        %429 = vadd.xlane.f32.xlu0 %v428
        %v430 = vpop.xlane.xlu0 %429
        %v431 = vmul.f32 %v409, %v290
        %v432 = vmul.f32 %v412, %v290
        %v433 = vmul.f32 %v415, %v290
        %v434 = vmul.f32 %v418, %v290
        %v435 = vmul.f32 %v421, %v290
        %v436 = vmul.f32 %v424, %v290
        %v437 = vmul.f32 %v427, %v290
        %v438 = vmul.f32 %v430, %v290
        %v439 = vsub.f32 %v391, %v431
        %v440 = vsub.f32 %v392, %v432
        %v441 = vsub.f32 %v393, %v433
        %v442 = vsub.f32 %v394, %v434
        %v443 = vsub.f32 %v395, %v435
        %v444 = vsub.f32 %v396, %v436
        %v445 = vsub.f32 %v397, %v437
        %v446 = vsub.f32 %v398, %v438
        %v447 = vmul.f32 %v439, %v439
        %v448 = vmul.f32 %v440, %v440
        %v449 = vmul.f32 %v441, %v441
        %v450 = vmul.f32 %v442, %v442
        %v451 = vmul.f32 %v443, %v443
        %v452 = vmul.f32 %v444, %v444
        %v453 = vmul.f32 %v445, %v445
        %v454 = vmul.f32 %v446, %v446
        %v455 = vsel %vm265, %v447, 0.0
        %456 = vadd.xlane.f32.xlu0 %v455
        %v457 = vpop.xlane.xlu0 %456
        %v458 = vsel %vm265, %v448, 0.0
        %459 = vadd.xlane.f32.xlu0 %v458
        %v460 = vpop.xlane.xlu0 %459
        %v461 = vsel %vm265, %v449, 0.0
        %462 = vadd.xlane.f32.xlu0 %v461
        %v463 = vpop.xlane.xlu0 %462
        %v464 = vsel %vm265, %v450, 0.0
        %465 = vadd.xlane.f32.xlu0 %v464
        %v466 = vpop.xlane.xlu0 %465
        %v467 = vsel %vm265, %v451, 0.0
        %468 = vadd.xlane.f32.xlu0 %v467
        %v469 = vpop.xlane.xlu0 %468
        %v470 = vsel %vm265, %v452, 0.0
        %471 = vadd.xlane.f32.xlu0 %v470
        %v472 = vpop.xlane.xlu0 %471
        %v473 = vsel %vm265, %v453, 0.0
        %474 = vadd.xlane.f32.xlu0 %v473
        %v475 = vpop.xlane.xlu0 %474
        %v476 = vsel %vm265, %v454, 0.0
        %477 = vadd.xlane.f32.xlu0 %v476
        %v478 = vpop.xlane.xlu0 %477
        %v479 = vmul.f32 %v457, %v290
        %v480 = vmul.f32 %v460, %v290
        %v481 = vmul.f32 %v463, %v290
        %v482 = vmul.f32 %v466, %v290
        %v483 = vmul.f32 %v469, %v290
        %v484 = vmul.f32 %v472, %v290
        %v485 = vmul.f32 %v475, %v290
        %v486 = vmul.f32 %v478, %v290
        %v487 = vadd.f32 %v479, 1e-05
        %v488 = vadd.f32 %v480, 1e-05
        %v489 = vadd.f32 %v481, 1e-05
        %v490 = vadd.f32 %v482, 1e-05
        %v491 = vadd.f32 %v483, 1e-05
        %v492 = vadd.f32 %v484, 1e-05
        %v493 = vadd.f32 %v485, 1e-05
        %v494 = vadd.f32 %v486, 1e-05
        %v495 = vrsqrt.pop %v487
        %v496 = vrsqrt.pop %v488
        %v497 = vrsqrt.pop %v489
        %v498 = vrsqrt.pop %v490
        %v499 = vrsqrt.pop %v491
        %v500 = vrsqrt.pop %v492
        %v501 = vrsqrt.pop %v493
        %v502 = vrsqrt.pop %v494
        %v503 = vmul.f32 %v439, %v495
        %v504 = vmul.f32 %v440, %v496
        %v505 = vmul.f32 %v441, %v497
        %v506 = vmul.f32 %v442, %v498
        %v507 = vmul.f32 %v443, %v499
        %v508 = vmul.f32 %v444, %v500
        %v509 = vmul.f32 %v445, %v501
        %v510 = vmul.f32 %v446, %v502
        %v511 = vmul.f32 %v503, %v375
        %v512 = vmul.f32 %v504, %v375
        %v513 = vmul.f32 %v505, %v375
        %v514 = vmul.f32 %v506, %v375
        %v515 = vmul.f32 %v507, %v375
        %v516 = vmul.f32 %v508, %v375
        %v517 = vmul.f32 %v509, %v375
        %v518 = vmul.f32 %v510, %v375
        %v519 = vadd.f32 %v511, %v389
        %v520 = vadd.f32 %v512, %v389
        %v521 = vadd.f32 %v513, %v389
        %v522 = vadd.f32 %v514, %v389
        %v523 = vadd.f32 %v515, %v389
        %v524 = vadd.f32 %v516, %v389
        %v525 = vadd.f32 %v517, %v389
        %v526 = vadd.f32 %v518, %v389
        %527 = vst.msk [vmem:[%s251] sm:$0xff] %vm265, %v519
        %528 = vst.msk [vmem:[%s251 + $0x8] sm:$0xff] %vm265, %v520
        %529 = vst.msk [vmem:[%s251 + $0x10] sm:$0xff] %vm265, %v521
        %530 = vst.msk [vmem:[%s251 + $0x18] sm:$0xff] %vm265, %v522
        %531 = vst.msk [vmem:[%s251 + $0x20] sm:$0xff] %vm265, %v523
        %532 = vst.msk [vmem:[%s251 + $0x28] sm:$0xff] %vm265, %v524
        %533 = vst.msk [vmem:[%s251 + $0x30] sm:$0xff] %vm265, %v525
        %534 = vst.msk [vmem:[%s251 + $0x38] sm:$0xff] %vm265, %v526
        %s535 = sand.u32 %s102, 1
        %s536 = scalar_lea.sflag [#allocation4], %s535
        %s537 = sand.u32 %s102, 1
        %s538 = smul.addr %s537, 64
        %s539 = scalar_lea.vmem [#allocation8], %s538
        %s540 = sand.u32 %s128, 1
        %s541 = scalar_lea.sflag [#allocation10], %s540
        %s542 = sand.u32 %s128, 1
        %s543 = smul.addr %s542, 64
        %s544 = scalar_lea.vmem [#allocation9], %s543
        // Predicated region
        $region45: #{_lambda_.5} parent=31 // pred_check
          %p545 = pneg %p112
        $region46: #{_lambda_.5} parent=31 // pred_check_branch
          %547 = sbr.rel (%p545) target = $region48
        $region47: #{_lambda_.5} parent=31 // pred_region
          %s548 = smul.u32 8, %s26
          %s550 = ssub.s32 1024, 1024
          %551 = vsyncadd %s536, %s550
          %s552 = smul.addr %s548, 128
          %s553 = scalar_lea.hbm %s3, %s552
          %s554 = sshll.u32 %s539, 4
          %s555 = int_to_ptr.vmem [resolvable:$true] %s554
          %560 = dma.vmem_to_hbm [thread:$0]  %s555, 1024, %s553, %s536, 128, 128, 8
        $region48: #{_lambda_.5} parent=31 // pred_fallthru
          _
        // Predicated region
        $region49: #{_lambda_.5} parent=31 // pred_check
          %p561 = pneg %p138
        $region50: #{_lambda_.5} parent=31 // pred_check_branch
          %563 = sbr.rel (%p561) target = $region52
        $region51: #{_lambda_.5} parent=31 // pred_region
          %s564 = smul.u32 8, %s26
          %s566 = ssub.s32 1024, 1024
          %567 = vsyncadd %s541, %s566
          %s568 = smul.addr %s564, 128
          %s569 = scalar_lea.hbm %s4, %s568
          %s570 = sshll.u32 %s544, 4
          %s571 = int_to_ptr.vmem [resolvable:$true] %s570
          %576 = dma.vmem_to_hbm [thread:$0]  %s571, 1024, %s569, %s541, 128, 128, 8
        $region52: #{_lambda_.5} parent=31 // pred_fallthru
          _
      $region32: #{_lambda_.5} parent=5 // pred_fallthru
        _
      %p577 = scmp.le.s32.totalorder 2, %s21
      // Predicated region
      $region53: #{_lambda_.5} parent=5 // pred_check
        %p578 = pneg %p577
      $region54: #{_lambda_.5} parent=5 // pred_check_branch
        %580 = sbr.rel (%p578) target = $region56
      $region55: #{_lambda_.5} parent=5 // pred_region
        %s581 = ssub.s32 %s21, 2
        // Predicated region
        $region57: #{_lambda_.5} parent=55 // pred_check
          %p582 = pneg %p118
        $region58: #{_lambda_.5} parent=55 // pred_check_branch
          %584 = sbr.rel (%p582) target = $region60
        $region59: #{_lambda_.5} parent=55 // pred_region
          %s585 = sand.u32 %s103, 1
          %s586 = scalar_lea.sflag [#allocation4], %s585
          %s587 = sand.u32 %s103, 1
          %s588 = smul.addr %s587, 64
          %s589 = scalar_lea.vmem [#allocation8], %s588
          %590 = dma.done %s586, 1024
        $region60: #{_lambda_.5} parent=55 // pred_fallthru
          _
        // Predicated region
        $region61: #{_lambda_.5} parent=55 // pred_check
          %p591 = pneg %p144
        $region62: #{_lambda_.5} parent=55 // pred_check_branch
          %593 = sbr.rel (%p591) target = $region64
        $region63: #{_lambda_.5} parent=55 // pred_region
          %s594 = sand.u32 %s129, 1
          %s595 = scalar_lea.sflag [#allocation10], %s594
          %s596 = sand.u32 %s129, 1
          %s597 = smul.addr %s596, 64
          %s598 = scalar_lea.vmem [#allocation9], %s597
          %599 = dma.done %s595, 1024
        $region64: #{_lambda_.5} parent=55 // pred_fallthru
          _
      $region56: #{_lambda_.5} parent=5 // pred_fallthru
        _
    $region6: #{_lambda_.5} parent=1 // loop_footer
      %s25 = sadd.s32 1, %s21
    $region7: #{_lambda_.5} parent=1 // loop_footer_branch
      %20 = sbr.rel target = $region3
    $region8: #{_lambda_.5} parent=1 // loop_exit
      _
    %600 = vsyncpa [#allocation3], 1
    %s601 = scalar_lea.sflag [#allocation3], 1
    %602 = vsyncpa %s601, 1
    %603 = vsyncpa [#allocation6], 1
    %604 = vsyncpa [#allocation4], 1
    %s605 = scalar_lea.sflag [#allocation4], 1
    %606 = vsyncpa %s605, 1
    %607 = vsyncpa [#allocation10], 1
    %s608 = scalar_lea.sflag [#allocation10], 1
    %609 = vsyncpa %s608, 1

// kernel: _lambda_.9
$region0: #{_lambda_.9}
  #allocation0 [shape = 'u32[]', space=smem, size = 0x4, offset = 0x4, fixed_abs, tag = 'smem constant byte address 0x4 - core index']
  #allocation1 [shape = 'u32[144,128]{1,0:T(1,128)}', space=vmem, size = 0x12000, scoped, tag = 'internal scratch']
  %s0 = inlined_call_operand.hbm [shape: f32[128,32], index: 0, kind: input, shape index: {}]
  %s1 = inlined_call_operand.hbm [shape: f32[128,32], index: 1, kind: input, shape index: {}]
  %s2 = inlined_call_operand.hbm [shape: f32[128,32], index: 2, kind: input, shape index: {}]
  %s3 = inlined_call_operand.hbm [shape: f32[128,32], index: 3, kind: input, shape index: {}]
  %s4 = inlined_call_operand.hbm [shape: f32[128,32], index: 4, kind: input, shape index: {}]
  %s5 = inlined_call_operand.hbm [shape: f32[128,32], index: 5, kind: input, shape index: {}]
  %s6 = inlined_call_operand.hbm [shape: f32[1,32], index: 6, kind: input, shape index: {}]
  %s7 = inlined_call_operand.hbm [shape: f32[1,32], index: 7, kind: input, shape index: {}]
  %s8 = inlined_call_operand.hbm [shape: f32[32,128], index: 8, kind: input, shape index: {}]
  %s9 = inlined_call_operand.hbm [shape: f32[1,128], index: 9, kind: input, shape index: {}]
  %s10 = inlined_call_operand.hbm [shape: f32[128,32], index: 10, kind: input, shape index: {}]
  %s11 = inlined_call_operand.hbm [shape: f32[1,32], index: 11, kind: input, shape index: {}]
  %s12 = inlined_call_operand.hbm [shape: f32[128,32], index: 12, kind: output, shape index: {}]
  %s13 = sld [smem:[#allocation0]]
  $region129: #{_lambda_.9} parent=0
    _
  %s15 = ssub.s32 1, %s13
  %s16 = scalar_select 0, %s15, %s13
  $region1: #{_lambda_.9} parent=0
    #allocation2 [shape = 'u8[65536]{0}', space=vmem, size = 0x10000, scoped, tag = 'input window, operand 0']
    #allocation3 [shape = 's32[2]{0}', space=sflag, size = 0x8, scoped, tag = 'scoped memory for _lambda_.9']
    #allocation4 [shape = 's32[2]{0}', space=sflag, size = 0x8, scoped, tag = 'scoped memory for _lambda_.9']
    #allocation5 [shape = 'u8[65536]{0}', space=vmem, size = 0x10000, scoped, tag = 'input window, operand 1']
    #allocation6 [shape = 's32[2]{0}', space=sflag, size = 0x8, scoped, tag = 'scoped memory for _lambda_.9']
    #allocation7 [shape = 'u8[65536]{0}', space=vmem, size = 0x10000, scoped, tag = 'input window, operand 2']
    #allocation8 [shape = 'u8[65536]{0}', space=vmem, size = 0x10000, scoped, tag = 'input window, operand 3']
    #allocation9 [shape = 's32[2]{0}', space=sflag, size = 0x8, scoped, tag = 'scoped memory for _lambda_.9']
    #allocation10 [shape = 'u8[65536]{0}', space=vmem, size = 0x10000, scoped, tag = 'input window, operand 4']
    #allocation11 [shape = 'u8[65536]{0}', space=vmem, size = 0x10000, scoped, tag = 'input window, operand 5']
    #allocation12 [shape = 's32[2]{0}', space=sflag, size = 0x8, scoped, tag = 'scoped memory for _lambda_.9']
    #allocation13 [shape = 'u8[512]{0}', space=vmem, size = 0x400, scoped, tag = 'input window, operand 6, single buffered']
    #allocation14 [shape = 'u8[512]{0}', space=vmem, size = 0x400, scoped, tag = 'input window, operand 7, single buffered']
    #allocation15 [shape = 's32[1]{0}', space=sflag, size = 0x4, scoped, tag = 'scoped memory for _lambda_.9']
    #allocation16 [shape = 'u8[16384]{0}', space=vmem, size = 0x4000, scoped, tag = 'input window, operand 8, single buffered']
    #allocation17 [shape = 'u8[512]{0}', space=vmem, size = 0x400, scoped, tag = 'input window, operand 9, single buffered']
    #allocation18 [shape = 's32[1]{0}', space=sflag, size = 0x4, scoped, tag = 'scoped memory for _lambda_.9']
    #allocation19 [shape = 'u8[65536]{0}', space=vmem, size = 0x10000, scoped, tag = 'input window, operand 10, single buffered']
    #allocation20 [shape = 'u8[512]{0}', space=vmem, size = 0x400, scoped, tag = 'input window, operand 11, single buffered']
    #allocation21 [shape = 's32[1]{0}', space=sflag, size = 0x4, scoped, tag = 'scoped memory for _lambda_.9']
    #allocation22 [shape = 'u8[65536]{0}', space=vmem, size = 0x10000, scoped, tag = 'output window, operand 0']
    %17 = vsyncpa [#allocation3], 0
    %s18 = scalar_lea.sflag [#allocation3], 1
    %19 = vsyncpa %s18, 0
    %20 = vsyncpa [#allocation6], 0
    %s21 = scalar_lea.sflag [#allocation6], 1
    %22 = vsyncpa %s21, 0
    %23 = vsyncpa [#allocation9], 0
    %s24 = scalar_lea.sflag [#allocation9], 1
    %25 = vsyncpa %s24, 0
    %26 = vsyncpa [#allocation12], 0
    %s27 = scalar_lea.sflag [#allocation12], 1
    %28 = vsyncpa %s27, 0
    %29 = vsyncpa [#allocation15], 0
    %30 = vsyncpa [#allocation18], 0
    %31 = vsyncpa [#allocation21], 0
    %32 = vsyncpa [#allocation4], 0
    %s33 = scalar_lea.sflag [#allocation4], 1
    %34 = vsyncpa %s33, 0
    loop: start=0, step=1, limit=4
    $region2: #{_lambda_.9} parent=1 // loop_pre_header
      _
    $region3: #{_lambda_.9} parent=1 // loop_header
      %s36 = sphi 0, %s40
      %p37 = scmp.ge.s32.totalorder %s36, 4
      %s46 = sphi 0, %s48
      %s49 = sphi 0, %s46
      %s50 = sphi 0, %s49
      %s66 = sphi 0, %s50
      %s72 = sphi 0, %s74
      %s75 = sphi 0, %s72
      %s76 = sphi 0, %s75
      %s92 = sphi 0, %s76
      %s98 = sphi 0, %s100
      %s101 = sphi 0, %s98
      %s102 = sphi 0, %s101
      %s118 = sphi 0, %s102
      %s124 = sphi 0, %s126
      %s127 = sphi 0, %s124
      %s128 = sphi 0, %s127
      %s144 = sphi 0, %s128
      %s150 = sphi 0, %s152
      %s153 = sphi 0, %s150
      %s154 = sphi 0, %s153
      %s170 = sphi 0, %s154
      %s176 = sphi 0, %s178
      %s179 = sphi 0, %s176
      %s180 = sphi 0, %s179
      %s196 = sphi 0, %s180
      %s200 = sphi 0, %s200
      %s202 = sphi 0, %s200
      %s203 = sphi 0, %s202
      %s217 = sphi 0, %s203
      %s221 = sphi 0, %s221
      %s223 = sphi 0, %s221
      %s224 = sphi 0, %s223
      %s238 = sphi 0, %s224
      %s242 = sphi 0, %s242
      %s244 = sphi 0, %s242
      %s245 = sphi 0, %s244
      %s259 = sphi 0, %s245
      %s263 = sphi 0, %s263
      %s265 = sphi 0, %s263
      %s266 = sphi 0, %s265
      %s280 = sphi 0, %s266
      %s284 = sphi 0, %s284
      %s286 = sphi 0, %s284
      %s287 = sphi 0, %s286
      %s301 = sphi 0, %s287
      %s305 = sphi 0, %s305
      %s307 = sphi 0, %s305
      %s308 = sphi 0, %s307
      %s322 = sphi 0, %s308
      %s328 = sphi 0, %s330
      %s331 = sphi 0, %s328
      %s332 = sphi 0, %s331
      %s348 = sphi 0, %s332
    $region4: #{_lambda_.9} parent=1 // loop_header_branch
      %39 = sbr.rel (%p37) target = $region8
    $region5: #{_lambda_.9} parent=1 // loop_body
      %s41 = ssub.s32 %s36, 1
      %s42 = ssub.s32 %s36, 2
      %s43 = sadd.s32 %s36, 1
      %s44 = ssub.s32 %s36, %s43
      %p45 = scmp.eq.s32.totalorder %s44, 0
      %s47 = sadd.s32 %s46, 1
      %s48 = scalar_select %p45, %s46, %s47
      %p51 = pneg %p45
      %p52 = scmp.eq.s32.totalorder %s36, 1
      %p53 = por %p51, %p52
      %p54 = scmp.ne.s32.totalorder %s46, %s49
      %p55 = scmp.eq.s32.totalorder %s36, 0
      %p56 = por %p54, %p55
      %p57 = scmp.ne.s32.totalorder %s46, %s49
      %p58 = scmp.eq.s32.totalorder %s41, 1
      %p59 = por %p57, %p58
      %p60 = scmp.ne.s32.totalorder %s49, %s50
      %p61 = scmp.eq.s32.totalorder %s41, 0
      %p62 = por %p60, %p61
      %p63 = scmp.ne.s32.totalorder %s49, %s50
      %p64 = scmp.eq.s32.totalorder %s42, 1
      %p65 = por %p63, %p64
      %p67 = scmp.ne.s32.totalorder %s50, %s66
      %p68 = scmp.eq.s32.totalorder %s42, 0
      %p69 = por %p67, %p68
      %s70 = ssub.s32 %s36, %s43
      %p71 = scmp.eq.s32.totalorder %s70, 0
      %s73 = sadd.s32 %s72, 1
      %s74 = scalar_select %p71, %s72, %s73
      %p77 = pneg %p71
      %p78 = scmp.eq.s32.totalorder %s36, 1
      %p79 = por %p77, %p78
      %p80 = scmp.ne.s32.totalorder %s72, %s75
      %p81 = scmp.eq.s32.totalorder %s36, 0
      %p82 = por %p80, %p81
      %p83 = scmp.ne.s32.totalorder %s72, %s75
      %p84 = scmp.eq.s32.totalorder %s41, 1
      %p85 = por %p83, %p84
      %p86 = scmp.ne.s32.totalorder %s75, %s76
      %p87 = scmp.eq.s32.totalorder %s41, 0
      %p88 = por %p86, %p87
      %p89 = scmp.ne.s32.totalorder %s75, %s76
      %p90 = scmp.eq.s32.totalorder %s42, 1
      %p91 = por %p89, %p90
      %p93 = scmp.ne.s32.totalorder %s76, %s92
      %p94 = scmp.eq.s32.totalorder %s42, 0
      %p95 = por %p93, %p94
      %s96 = ssub.s32 %s36, %s43
      %p97 = scmp.eq.s32.totalorder %s96, 0
      %s99 = sadd.s32 %s98, 1
      %s100 = scalar_select %p97, %s98, %s99
      %p103 = pneg %p97
      %p104 = scmp.eq.s32.totalorder %s36, 1
      %p105 = por %p103, %p104
      %p106 = scmp.ne.s32.totalorder %s98, %s101
      %p107 = scmp.eq.s32.totalorder %s36, 0
      %p108 = por %p106, %p107
      %p109 = scmp.ne.s32.totalorder %s98, %s101
      %p110 = scmp.eq.s32.totalorder %s41, 1
      %p111 = por %p109, %p110
      %p112 = scmp.ne.s32.totalorder %s101, %s102
      %p113 = scmp.eq.s32.totalorder %s41, 0
      %p114 = por %p112, %p113
      %p115 = scmp.ne.s32.totalorder %s101, %s102
      %p116 = scmp.eq.s32.totalorder %s42, 1
      %p117 = por %p115, %p116
      %p119 = scmp.ne.s32.totalorder %s102, %s118
      %p120 = scmp.eq.s32.totalorder %s42, 0
      %p121 = por %p119, %p120
      %s122 = ssub.s32 %s36, %s43
      %p123 = scmp.eq.s32.totalorder %s122, 0
      %s125 = sadd.s32 %s124, 1
      %s126 = scalar_select %p123, %s124, %s125
      %p129 = pneg %p123
      %p130 = scmp.eq.s32.totalorder %s36, 1
      %p131 = por %p129, %p130
      %p132 = scmp.ne.s32.totalorder %s124, %s127
      %p133 = scmp.eq.s32.totalorder %s36, 0
      %p134 = por %p132, %p133
      %p135 = scmp.ne.s32.totalorder %s124, %s127
      %p136 = scmp.eq.s32.totalorder %s41, 1
      %p137 = por %p135, %p136
      %p138 = scmp.ne.s32.totalorder %s127, %s128
      %p139 = scmp.eq.s32.totalorder %s41, 0
      %p140 = por %p138, %p139
      %p141 = scmp.ne.s32.totalorder %s127, %s128
      %p142 = scmp.eq.s32.totalorder %s42, 1
      %p143 = por %p141, %p142
      %p145 = scmp.ne.s32.totalorder %s128, %s144
      %p146 = scmp.eq.s32.totalorder %s42, 0
      %p147 = por %p145, %p146
      %s148 = ssub.s32 %s36, %s43
      %p149 = scmp.eq.s32.totalorder %s148, 0
      %s151 = sadd.s32 %s150, 1
      %s152 = scalar_select %p149, %s150, %s151
      %p155 = pneg %p149
      %p156 = scmp.eq.s32.totalorder %s36, 1
      %p157 = por %p155, %p156
      %p158 = scmp.ne.s32.totalorder %s150, %s153
      %p159 = scmp.eq.s32.totalorder %s36, 0
      %p160 = por %p158, %p159
      %p161 = scmp.ne.s32.totalorder %s150, %s153
      %p162 = scmp.eq.s32.totalorder %s41, 1
      %p163 = por %p161, %p162
      %p164 = scmp.ne.s32.totalorder %s153, %s154
      %p165 = scmp.eq.s32.totalorder %s41, 0
      %p166 = por %p164, %p165
      %p167 = scmp.ne.s32.totalorder %s153, %s154
      %p168 = scmp.eq.s32.totalorder %s42, 1
      %p169 = por %p167, %p168
      %p171 = scmp.ne.s32.totalorder %s154, %s170
      %p172 = scmp.eq.s32.totalorder %s42, 0
      %p173 = por %p171, %p172
      %s174 = ssub.s32 %s36, %s43
      %p175 = scmp.eq.s32.totalorder %s174, 0
      %s177 = sadd.s32 %s176, 1
      %s178 = scalar_select %p175, %s176, %s177
      %p181 = pneg %p175
      %p182 = scmp.eq.s32.totalorder %s36, 1
      %p183 = por %p181, %p182
      %p184 = scmp.ne.s32.totalorder %s176, %s179
      %p185 = scmp.eq.s32.totalorder %s36, 0
      %p186 = por %p184, %p185
      %p187 = scmp.ne.s32.totalorder %s176, %s179
      %p188 = scmp.eq.s32.totalorder %s41, 1
      %p189 = por %p187, %p188
      %p190 = scmp.ne.s32.totalorder %s179, %s180
      %p191 = scmp.eq.s32.totalorder %s41, 0
      %p192 = por %p190, %p191
      %p193 = scmp.ne.s32.totalorder %s179, %s180
      %p194 = scmp.eq.s32.totalorder %s42, 1
      %p195 = por %p193, %p194
      %p197 = scmp.ne.s32.totalorder %s180, %s196
      %p198 = scmp.eq.s32.totalorder %s42, 0
      %p199 = por %p197, %p198
      %s201 = sadd.s32 %s200, 1
      %p204 = scmp.eq.s32.totalorder %s36, 1
      %p205 = scmp.ne.s32.totalorder %s200, %s202
      %p206 = scmp.eq.s32.totalorder %s36, 0
      %p207 = por %p205, %p206
      %p208 = scmp.ne.s32.totalorder %s200, %s202
      %p209 = scmp.eq.s32.totalorder %s41, 1
      %p210 = por %p208, %p209
      %p211 = scmp.ne.s32.totalorder %s202, %s203
      %p212 = scmp.eq.s32.totalorder %s41, 0
      %p213 = por %p211, %p212
      %p214 = scmp.ne.s32.totalorder %s202, %s203
      %p215 = scmp.eq.s32.totalorder %s42, 1
      %p216 = por %p214, %p215
      %p218 = scmp.ne.s32.totalorder %s203, %s217
      %p219 = scmp.eq.s32.totalorder %s42, 0
      %p220 = por %p218, %p219
      %s222 = sadd.s32 %s221, 1
      %p225 = scmp.eq.s32.totalorder %s36, 1
      %p226 = scmp.ne.s32.totalorder %s221, %s223
      %p227 = scmp.eq.s32.totalorder %s36, 0
      %p228 = por %p226, %p227
      %p229 = scmp.ne.s32.totalorder %s221, %s223
      %p230 = scmp.eq.s32.totalorder %s41, 1
      %p231 = por %p229, %p230
      %p232 = scmp.ne.s32.totalorder %s223, %s224
      %p233 = scmp.eq.s32.totalorder %s41, 0
      %p234 = por %p232, %p233
      %p235 = scmp.ne.s32.totalorder %s223, %s224
      %p236 = scmp.eq.s32.totalorder %s42, 1
      %p237 = por %p235, %p236
      %p239 = scmp.ne.s32.totalorder %s224, %s238
      %p240 = scmp.eq.s32.totalorder %s42, 0
      %p241 = por %p239, %p240
      %s243 = sadd.s32 %s242, 1
      %p246 = scmp.eq.s32.totalorder %s36, 1
      %p247 = scmp.ne.s32.totalorder %s242, %s244
      %p248 = scmp.eq.s32.totalorder %s36, 0
      %p249 = por %p247, %p248
      %p250 = scmp.ne.s32.totalorder %s242, %s244
      %p251 = scmp.eq.s32.totalorder %s41, 1
      %p252 = por %p250, %p251
      %p253 = scmp.ne.s32.totalorder %s244, %s245
      %p254 = scmp.eq.s32.totalorder %s41, 0
      %p255 = por %p253, %p254
      %p256 = scmp.ne.s32.totalorder %s244, %s245
      %p257 = scmp.eq.s32.totalorder %s42, 1
      %p258 = por %p256, %p257
      %p260 = scmp.ne.s32.totalorder %s245, %s259
      %p261 = scmp.eq.s32.totalorder %s42, 0
      %p262 = por %p260, %p261
      %s264 = sadd.s32 %s263, 1
      %p267 = scmp.eq.s32.totalorder %s36, 1
      %p268 = scmp.ne.s32.totalorder %s263, %s265
      %p269 = scmp.eq.s32.totalorder %s36, 0
      %p270 = por %p268, %p269
      %p271 = scmp.ne.s32.totalorder %s263, %s265
      %p272 = scmp.eq.s32.totalorder %s41, 1
      %p273 = por %p271, %p272
      %p274 = scmp.ne.s32.totalorder %s265, %s266
      %p275 = scmp.eq.s32.totalorder %s41, 0
      %p276 = por %p274, %p275
      %p277 = scmp.ne.s32.totalorder %s265, %s266
      %p278 = scmp.eq.s32.totalorder %s42, 1
      %p279 = por %p277, %p278
      %p281 = scmp.ne.s32.totalorder %s266, %s280
      %p282 = scmp.eq.s32.totalorder %s42, 0
      %p283 = por %p281, %p282
      %s285 = sadd.s32 %s284, 1
      %p288 = scmp.eq.s32.totalorder %s36, 1
      %p289 = scmp.ne.s32.totalorder %s284, %s286
      %p290 = scmp.eq.s32.totalorder %s36, 0
      %p291 = por %p289, %p290
      %p292 = scmp.ne.s32.totalorder %s284, %s286
      %p293 = scmp.eq.s32.totalorder %s41, 1
      %p294 = por %p292, %p293
      %p295 = scmp.ne.s32.totalorder %s286, %s287
      %p296 = scmp.eq.s32.totalorder %s41, 0
      %p297 = por %p295, %p296
      %p298 = scmp.ne.s32.totalorder %s286, %s287
      %p299 = scmp.eq.s32.totalorder %s42, 1
      %p300 = por %p298, %p299
      %p302 = scmp.ne.s32.totalorder %s287, %s301
      %p303 = scmp.eq.s32.totalorder %s42, 0
      %p304 = por %p302, %p303
      %s306 = sadd.s32 %s305, 1
      %p309 = scmp.eq.s32.totalorder %s36, 1
      %p310 = scmp.ne.s32.totalorder %s305, %s307
      %p311 = scmp.eq.s32.totalorder %s36, 0
      %p312 = por %p310, %p311
      %p313 = scmp.ne.s32.totalorder %s305, %s307
      %p314 = scmp.eq.s32.totalorder %s41, 1
      %p315 = por %p313, %p314
      %p316 = scmp.ne.s32.totalorder %s307, %s308
      %p317 = scmp.eq.s32.totalorder %s41, 0
      %p318 = por %p316, %p317
      %p319 = scmp.ne.s32.totalorder %s307, %s308
      %p320 = scmp.eq.s32.totalorder %s42, 1
      %p321 = por %p319, %p320
      %p323 = scmp.ne.s32.totalorder %s308, %s322
      %p324 = scmp.eq.s32.totalorder %s42, 0
      %p325 = por %p323, %p324
      %s326 = ssub.s32 %s36, %s43
      %p327 = scmp.eq.s32.totalorder %s326, 0
      %s329 = sadd.s32 %s328, 1
      %s330 = scalar_select %p327, %s328, %s329
      %p333 = pneg %p327
      %p334 = scmp.eq.s32.totalorder %s36, 1
      %p335 = por %p333, %p334
      %p336 = scmp.ne.s32.totalorder %s328, %s331
      %p337 = scmp.eq.s32.totalorder %s36, 0
      %p338 = por %p336, %p337
      %p339 = scmp.ne.s32.totalorder %s328, %s331
      %p340 = scmp.eq.s32.totalorder %s41, 1
      %p341 = por %p339, %p340
      %p342 = scmp.ne.s32.totalorder %s331, %s332
      %p343 = scmp.eq.s32.totalorder %s41, 0
      %p344 = por %p342, %p343
      %p345 = scmp.ne.s32.totalorder %s331, %s332
      %p346 = scmp.eq.s32.totalorder %s42, 1
      %p347 = por %p345, %p346
      %p349 = scmp.ne.s32.totalorder %s332, %s348
      %p350 = scmp.eq.s32.totalorder %s42, 0
      %p351 = por %p349, %p350
      %p352 = scmp.le.s32.totalorder 1, %s36
      %p353 = scmp.lt.s32.totalorder %s36, 3
      %p354 = pnand %p352, %p353
      %p355 = pneg %p354
      // Predicated region
      $region9: #{_lambda_.9} parent=5 // pred_check
        _
      $region10: #{_lambda_.9} parent=5 // pred_check_branch
        %357 = sbr.rel (%p354) target = $region12
      $region11: #{_lambda_.9} parent=5 // pred_region
        %s358 = ssub.s32 %s36, 1
        // Predicated region
        $region13: #{_lambda_.9} parent=11 // pred_check
          %p359 = pneg %p213
        $region14: #{_lambda_.9} parent=11 // pred_check_branch
          %361 = sbr.rel (%p359) target = $region16
        $region15: #{_lambda_.9} parent=11 // pred_region
          %s363 = ssub.s32 16, 16
          %364 = vsyncadd [#allocation12], %s363
          %s366 = sshll.u32 [#allocation13], 4
          %s367 = int_to_ptr.vmem [resolvable:$true] %s366
          %369 = dma.hbm_to_vmem [thread:$0]  %s6, 16, %s367, [#allocation12]
        $region16: #{_lambda_.9} parent=11 // pred_fallthru
          _
        // Predicated region
        $region17: #{_lambda_.9} parent=11 // pred_check
          %p370 = pneg %p234
        $region18: #{_lambda_.9} parent=11 // pred_check_branch
          %372 = sbr.rel (%p370) target = $region20
        $region19: #{_lambda_.9} parent=11 // pred_region
          %s374 = ssub.s32 16, 16
          %375 = vsyncadd [#allocation15], %s374
          %s377 = sshll.u32 [#allocation14], 4
          %s378 = int_to_ptr.vmem [resolvable:$true] %s377
          %380 = dma.hbm_to_vmem [thread:$0]  %s7, 16, %s378, [#allocation15]
        $region20: #{_lambda_.9} parent=11 // pred_fallthru
          _
        // Predicated region
        $region21: #{_lambda_.9} parent=11 // pred_check
          %p381 = pneg %p255
        $region22: #{_lambda_.9} parent=11 // pred_check_branch
          %383 = sbr.rel (%p381) target = $region24
        $region23: #{_lambda_.9} parent=11 // pred_region
          %s385 = ssub.s32 512, 512
          %386 = vsyncadd [#allocation15], %s385
          %s387 = sshll.u32 [#allocation16], 4
          %s388 = int_to_ptr.vmem [resolvable:$true] %s387
          %393 = dma.hbm_to_vmem [thread:$0]  %s8, 512, %s388, [#allocation15], 128, 128, 8
        $region24: #{_lambda_.9} parent=11 // pred_fallthru
          _
        // Predicated region
        $region25: #{_lambda_.9} parent=11 // pred_check
          %p394 = pneg %p276
        $region26: #{_lambda_.9} parent=11 // pred_check_branch
          %396 = sbr.rel (%p394) target = $region28
        $region27: #{_lambda_.9} parent=11 // pred_region
          %s398 = ssub.s32 16, 16
          %399 = vsyncadd [#allocation18], %s398
          %s401 = sshll.u32 [#allocation17], 4
          %s402 = int_to_ptr.vmem [resolvable:$true] %s401
          %404 = dma.hbm_to_vmem [thread:$0]  %s9, 16, %s402, [#allocation18]
        $region28: #{_lambda_.9} parent=11 // pred_fallthru
          _
        // Predicated region
        $region29: #{_lambda_.9} parent=11 // pred_check
          %p405 = pneg %p297
        $region30: #{_lambda_.9} parent=11 // pred_check_branch
          %407 = sbr.rel (%p405) target = $region32
        $region31: #{_lambda_.9} parent=11 // pred_region
          %s409 = ssub.s32 2048, 2048
          %410 = vsyncadd [#allocation18], %s409
          %s411 = sshll.u32 [#allocation19], 4
          %s412 = int_to_ptr.vmem [resolvable:$true] %s411
          %417 = dma.hbm_to_vmem [thread:$0]  %s10, 2048, %s412, [#allocation18], 128, 128, 8
        $region32: #{_lambda_.9} parent=11 // pred_fallthru
          _
        // Predicated region
        $region33: #{_lambda_.9} parent=11 // pred_check
          %p418 = pneg %p318
        $region34: #{_lambda_.9} parent=11 // pred_check_branch
          %420 = sbr.rel (%p418) target = $region36
        $region35: #{_lambda_.9} parent=11 // pred_region
          %s422 = ssub.s32 16, 16
          %423 = vsyncadd [#allocation21], %s422
          %s425 = sshll.u32 [#allocation20], 4
          %s426 = int_to_ptr.vmem [resolvable:$true] %s425
          %428 = dma.hbm_to_vmem [thread:$0]  %s11, 16, %s426, [#allocation21]
        $region36: #{_lambda_.9} parent=11 // pred_fallthru
          _
      $region12: #{_lambda_.9} parent=5 // pred_fallthru
        _
      %p429 = scmp.lt.s32.totalorder %s36, 2
      // Predicated region
      $region37: #{_lambda_.9} parent=5 // pred_check
        %p430 = pneg %p429
      $region38: #{_lambda_.9} parent=5 // pred_check_branch
        %432 = sbr.rel (%p430) target = $region40
      $region39: #{_lambda_.9} parent=5 // pred_region
        // Predicated region
        $region41: #{_lambda_.9} parent=39 // pred_check
          %p433 = pneg %p56
        $region42: #{_lambda_.9} parent=39 // pred_check_branch
          %435 = sbr.rel (%p433) target = $region44
        $region43: #{_lambda_.9} parent=39 // pred_region
          %s436 = sand.u32 %s46, 1
          %s437 = scalar_lea.sflag [#allocation3], %s436
          %s438 = sand.u32 %s46, 1
          %s439 = smul.addr %s438, 64
          %s440 = scalar_lea.vmem [#allocation2], %s439
          %s441 = smul.u32 8, %s36
          %s443 = ssub.s32 1024, 1024
          %444 = vsyncadd %s437, %s443
          %s445 = smul.addr %s441, 128
          %s446 = scalar_lea.hbm %s0, %s445
          %s447 = sshll.u32 %s440, 4
          %s448 = int_to_ptr.vmem [resolvable:$true] %s447
          %453 = dma.hbm_to_vmem [thread:$0]  %s446, 1024, %s448, %s437, 128, 128, 8
        $region44: #{_lambda_.9} parent=39 // pred_fallthru
          _
        // Predicated region
        $region45: #{_lambda_.9} parent=39 // pred_check
          %p454 = pneg %p82
        $region46: #{_lambda_.9} parent=39 // pred_check_branch
          %456 = sbr.rel (%p454) target = $region48
        $region47: #{_lambda_.9} parent=39 // pred_region
          %s457 = sand.u32 %s36, 1
          %s458 = scalar_lea.sflag [#allocation6], %s457
          %s459 = sand.u32 %s72, 1
          %s460 = smul.addr %s459, 64
          %s461 = scalar_lea.vmem [#allocation5], %s460
          %s462 = smul.u32 8, %s36
          %s464 = ssub.s32 1024, 1024
          %465 = vsyncadd %s458, %s464
          %s466 = smul.addr %s462, 128
          %s467 = scalar_lea.hbm %s1, %s466
          %s468 = sshll.u32 %s461, 4
          %s469 = int_to_ptr.vmem [resolvable:$true] %s468
          %474 = dma.hbm_to_vmem [thread:$0]  %s467, 1024, %s469, %s458, 128, 128, 8
        $region48: #{_lambda_.9} parent=39 // pred_fallthru
          _
        // Predicated region
        $region49: #{_lambda_.9} parent=39 // pred_check
          %p475 = pneg %p108
        $region50: #{_lambda_.9} parent=39 // pred_check_branch
          %477 = sbr.rel (%p475) target = $region52
        $region51: #{_lambda_.9} parent=39 // pred_region
          %s478 = sand.u32 %s36, 1
          %s479 = scalar_lea.sflag [#allocation6], %s478
          %s480 = sand.u32 %s98, 1
          %s481 = smul.addr %s480, 64
          %s482 = scalar_lea.vmem [#allocation7], %s481
          %s483 = smul.u32 8, %s36
          %s485 = ssub.s32 1024, 1024
          %486 = vsyncadd %s479, %s485
          %s487 = smul.addr %s483, 128
          %s488 = scalar_lea.hbm %s2, %s487
          %s489 = sshll.u32 %s482, 4
          %s490 = int_to_ptr.vmem [resolvable:$true] %s489
          %495 = dma.hbm_to_vmem [thread:$0]  %s488, 1024, %s490, %s479, 128, 128, 8
        $region52: #{_lambda_.9} parent=39 // pred_fallthru
          _
        // Predicated region
        $region53: #{_lambda_.9} parent=39 // pred_check
          %p496 = pneg %p134
        $region54: #{_lambda_.9} parent=39 // pred_check_branch
          %498 = sbr.rel (%p496) target = $region56
        $region55: #{_lambda_.9} parent=39 // pred_region
          %s499 = sand.u32 %s36, 1
          %s500 = scalar_lea.sflag [#allocation9], %s499
          %s501 = sand.u32 %s124, 1
          %s502 = smul.addr %s501, 64
          %s503 = scalar_lea.vmem [#allocation8], %s502
          %s504 = smul.u32 8, %s36
          %s506 = ssub.s32 1024, 1024
          %507 = vsyncadd %s500, %s506
          %s508 = smul.addr %s504, 128
          %s509 = scalar_lea.hbm %s3, %s508
          %s510 = sshll.u32 %s503, 4
          %s511 = int_to_ptr.vmem [resolvable:$true] %s510
          %516 = dma.hbm_to_vmem [thread:$0]  %s509, 1024, %s511, %s500, 128, 128, 8
        $region56: #{_lambda_.9} parent=39 // pred_fallthru
          _
        // Predicated region
        $region57: #{_lambda_.9} parent=39 // pred_check
          %p517 = pneg %p160
        $region58: #{_lambda_.9} parent=39 // pred_check_branch
          %519 = sbr.rel (%p517) target = $region60
        $region59: #{_lambda_.9} parent=39 // pred_region
          %s520 = sand.u32 %s36, 1
          %s521 = scalar_lea.sflag [#allocation9], %s520
          %s522 = sand.u32 %s150, 1
          %s523 = smul.addr %s522, 64
          %s524 = scalar_lea.vmem [#allocation10], %s523
          %s525 = smul.u32 8, %s36
          %s527 = ssub.s32 1024, 1024
          %528 = vsyncadd %s521, %s527
          %s529 = smul.addr %s525, 128
          %s530 = scalar_lea.hbm %s4, %s529
          %s531 = sshll.u32 %s524, 4
          %s532 = int_to_ptr.vmem [resolvable:$true] %s531
          %537 = dma.hbm_to_vmem [thread:$0]  %s530, 1024, %s532, %s521, 128, 128, 8
        $region60: #{_lambda_.9} parent=39 // pred_fallthru
          _
        // Predicated region
        $region61: #{_lambda_.9} parent=39 // pred_check
          %p538 = pneg %p186
        $region62: #{_lambda_.9} parent=39 // pred_check_branch
          %540 = sbr.rel (%p538) target = $region64
        $region63: #{_lambda_.9} parent=39 // pred_region
          %s541 = sand.u32 %s36, 1
          %s542 = scalar_lea.sflag [#allocation12], %s541
          %s543 = sand.u32 %s176, 1
          %s544 = smul.addr %s543, 64
          %s545 = scalar_lea.vmem [#allocation11], %s544
          %s546 = smul.u32 8, %s36
          %s548 = ssub.s32 1024, 1024
          %549 = vsyncadd %s542, %s548
          %s550 = smul.addr %s546, 128
          %s551 = scalar_lea.hbm %s5, %s550
          %s552 = sshll.u32 %s545, 4
          %s553 = int_to_ptr.vmem [resolvable:$true] %s552
          %558 = dma.hbm_to_vmem [thread:$0]  %s551, 1024, %s553, %s542, 128, 128, 8
        $region64: #{_lambda_.9} parent=39 // pred_fallthru
          _
      $region40: #{_lambda_.9} parent=5 // pred_fallthru
        _
      %p559 = scmp.le.s32.totalorder 1, %s36
      %p560 = scmp.lt.s32.totalorder %s36, 3
      %p561 = pnand %p559, %p560
      %p562 = pneg %p561
      // Predicated region
      $region65: #{_lambda_.9} parent=5 // pred_check
        _
      $region66: #{_lambda_.9} parent=5 // pred_check_branch
        %564 = sbr.rel (%p561) target = $region68
      $region67: #{_lambda_.9} parent=5 // pred_region
        %s565 = ssub.s32 %s36, 1
        %s566 = sand.u32 %s49, 1
        %s567 = scalar_lea.sflag [#allocation3], %s566
        %s568 = sand.u32 %s49, 1
        %s569 = smul.addr %s568, 64
        %s570 = scalar_lea.vmem [#allocation2], %s569
        // Predicated region
        $region69: #{_lambda_.9} parent=67 // pred_check
          %p571 = pneg %p62
        $region70: #{_lambda_.9} parent=67 // pred_check_branch
          %573 = sbr.rel (%p571) target = $region72
        $region71: #{_lambda_.9} parent=67 // pred_region
          %574 = dma.done %s567, 1024
        $region72: #{_lambda_.9} parent=67 // pred_fallthru
          _
        %s575 = sand.u32 %s41, 1
        %s576 = scalar_lea.sflag [#allocation6], %s575
        %s577 = sand.u32 %s75, 1
        %s578 = smul.addr %s577, 64
        %s579 = scalar_lea.vmem [#allocation5], %s578
        // Predicated region
        $region73: #{_lambda_.9} parent=67 // pred_check
          %p580 = pneg %p88
        $region74: #{_lambda_.9} parent=67 // pred_check_branch
          %582 = sbr.rel (%p580) target = $region76
        $region75: #{_lambda_.9} parent=67 // pred_region
          %583 = dma.done %s576, 1024
        $region76: #{_lambda_.9} parent=67 // pred_fallthru
          _
        %s584 = sand.u32 %s41, 1
        %s585 = scalar_lea.sflag [#allocation6], %s584
        %s586 = sand.u32 %s101, 1
        %s587 = smul.addr %s586, 64
        %s588 = scalar_lea.vmem [#allocation7], %s587
        // Predicated region
        $region77: #{_lambda_.9} parent=67 // pred_check
          %p589 = pneg %p114
        $region78: #{_lambda_.9} parent=67 // pred_check_branch
          %591 = sbr.rel (%p589) target = $region80
        $region79: #{_lambda_.9} parent=67 // pred_region
          %592 = dma.done %s585, 1024
        $region80: #{_lambda_.9} parent=67 // pred_fallthru
          _
        %s593 = sand.u32 %s41, 1
        %s594 = scalar_lea.sflag [#allocation9], %s593
        %s595 = sand.u32 %s127, 1
        %s596 = smul.addr %s595, 64
        %s597 = scalar_lea.vmem [#allocation8], %s596
        // Predicated region
        $region81: #{_lambda_.9} parent=67 // pred_check
          %p598 = pneg %p140
        $region82: #{_lambda_.9} parent=67 // pred_check_branch
          %600 = sbr.rel (%p598) target = $region84
        $region83: #{_lambda_.9} parent=67 // pred_region
          %601 = dma.done %s594, 1024
        $region84: #{_lambda_.9} parent=67 // pred_fallthru
          _
        %s602 = sand.u32 %s41, 1
        %s603 = scalar_lea.sflag [#allocation9], %s602
        %s604 = sand.u32 %s153, 1
        %s605 = smul.addr %s604, 64
        %s606 = scalar_lea.vmem [#allocation10], %s605
        // Predicated region
        $region85: #{_lambda_.9} parent=67 // pred_check
          %p607 = pneg %p166
        $region86: #{_lambda_.9} parent=67 // pred_check_branch
          %609 = sbr.rel (%p607) target = $region88
        $region87: #{_lambda_.9} parent=67 // pred_region
          %610 = dma.done %s603, 1024
        $region88: #{_lambda_.9} parent=67 // pred_fallthru
          _
        %s611 = sand.u32 %s41, 1
        %s612 = scalar_lea.sflag [#allocation12], %s611
        %s613 = sand.u32 %s179, 1
        %s614 = smul.addr %s613, 64
        %s615 = scalar_lea.vmem [#allocation11], %s614
        // Predicated region
        $region89: #{_lambda_.9} parent=67 // pred_check
          %p616 = pneg %p192
        $region90: #{_lambda_.9} parent=67 // pred_check_branch
          %618 = sbr.rel (%p616) target = $region92
        $region91: #{_lambda_.9} parent=67 // pred_region
          %619 = dma.done %s612, 1024
        $region92: #{_lambda_.9} parent=67 // pred_fallthru
          _
        // Predicated region
        $region93: #{_lambda_.9} parent=67 // pred_check
          %p620 = pneg %p213
        $region94: #{_lambda_.9} parent=67 // pred_check_branch
          %622 = sbr.rel (%p620) target = $region96
        $region95: #{_lambda_.9} parent=67 // pred_region
          %623 = dma.done [#allocation12], 16
        $region96: #{_lambda_.9} parent=67 // pred_fallthru
          _
        // Predicated region
        $region97: #{_lambda_.9} parent=67 // pred_check
          %p624 = pneg %p234
        $region98: #{_lambda_.9} parent=67 // pred_check_branch
          %626 = sbr.rel (%p624) target = $region100
        $region99: #{_lambda_.9} parent=67 // pred_region
          %627 = dma.done [#allocation15], 16
        $region100: #{_lambda_.9} parent=67 // pred_fallthru
          _
        // Predicated region
        $region101: #{_lambda_.9} parent=67 // pred_check
          %p628 = pneg %p255
        $region102: #{_lambda_.9} parent=67 // pred_check_branch
          %630 = sbr.rel (%p628) target = $region104
        $region103: #{_lambda_.9} parent=67 // pred_region
          %631 = dma.done [#allocation15], 512
        $region104: #{_lambda_.9} parent=67 // pred_fallthru
          _
        // Predicated region
        $region105: #{_lambda_.9} parent=67 // pred_check
          %p632 = pneg %p276
        $region106: #{_lambda_.9} parent=67 // pred_check_branch
          %634 = sbr.rel (%p632) target = $region108
        $region107: #{_lambda_.9} parent=67 // pred_region
          %635 = dma.done [#allocation18], 16
        $region108: #{_lambda_.9} parent=67 // pred_fallthru
          _
        // Predicated region
        $region109: #{_lambda_.9} parent=67 // pred_check
          %p636 = pneg %p297
        $region110: #{_lambda_.9} parent=67 // pred_check_branch
          %638 = sbr.rel (%p636) target = $region112
        $region111: #{_lambda_.9} parent=67 // pred_region
          %639 = dma.done [#allocation18], 2048
        $region112: #{_lambda_.9} parent=67 // pred_fallthru
          _
        // Predicated region
        $region113: #{_lambda_.9} parent=67 // pred_check
          %p640 = pneg %p318
        $region114: #{_lambda_.9} parent=67 // pred_check_branch
          %642 = sbr.rel (%p640) target = $region116
        $region115: #{_lambda_.9} parent=67 // pred_region
          %643 = dma.done [#allocation21], 16
        $region116: #{_lambda_.9} parent=67 // pred_fallthru
          _
        %s644 = sand.u32 %s49, 1
        %s645 = scalar_lea.sflag [#allocation3], %s644
        %s646 = sand.u32 %s49, 1
        %s647 = smul.addr %s646, 64
        %s648 = scalar_lea.vmem [#allocation2], %s647
        %p649 = pneg %p62
        %p650 = pneg %p59
        %s651 = sand.u32 %s41, 1
        %s652 = scalar_lea.sflag [#allocation6], %s651
        %s653 = sand.u32 %s75, 1
        %s654 = smul.addr %s653, 64
        %s655 = scalar_lea.vmem [#allocation5], %s654
        %p656 = pneg %p88
        %p657 = pneg %p85
        %s658 = sand.u32 %s41, 1
        %s659 = scalar_lea.sflag [#allocation6], %s658
        %s660 = sand.u32 %s101, 1
        %s661 = smul.addr %s660, 64
        %s662 = scalar_lea.vmem [#allocation7], %s661
        %p663 = pneg %p114
        %p664 = pneg %p111
        %s665 = sand.u32 %s41, 1
        %s666 = scalar_lea.sflag [#allocation9], %s665
        %s667 = sand.u32 %s127, 1
        %s668 = smul.addr %s667, 64
        %s669 = scalar_lea.vmem [#allocation8], %s668
        %p670 = pneg %p140
        %p671 = pneg %p137
        %s672 = sand.u32 %s41, 1
        %s673 = scalar_lea.sflag [#allocation9], %s672
        %s674 = sand.u32 %s153, 1
        %s675 = smul.addr %s674, 64
        %s676 = scalar_lea.vmem [#allocation10], %s675
        %p677 = pneg %p166
        %p678 = pneg %p163
        %s679 = sand.u32 %s41, 1
        %s680 = scalar_lea.sflag [#allocation12], %s679
        %s681 = sand.u32 %s179, 1
        %s682 = smul.addr %s681, 64
        %s683 = scalar_lea.vmem [#allocation11], %s682
        %p684 = pneg %p192
        %p685 = pneg %p189
        %p686 = pneg %p213
        %p687 = pneg %p210
        %p688 = pneg %p234
        %p689 = pneg %p231
        %p690 = pneg %p255
        %p691 = pneg %p252
        %p692 = pneg %p276
        %p693 = pneg %p273
        %p694 = pneg %p297
        %p695 = pneg %p294
        %p696 = pneg %p318
        %p697 = pneg %p315
        %p698 = pneg %p344
        %p699 = pneg %p341
        %s700 = sand.u32 %s331, 1
        %s701 = scalar_lea.sflag [#allocation4], %s700
        %s702 = sand.u32 %s331, 1
        %s703 = smul.addr %s702, 64
        %s704 = scalar_lea.vmem [#allocation22], %s703
        %s705 = smul.u32 8, %s41
        %s706 = smul.u32 8, %s41
        %s707 = smul.u32 8, %s41
        %s708 = smul.u32 8, %s41
        %s709 = smul.u32 8, %s41
        %s710 = smul.u32 8, %s41
        %s711 = smul.u32 8, %s41
        %v712 = vld [vmem:[%s579] sm:$0xff]
        %v713 = vld [vmem:[%s579 + $0x8] sm:$0xff]
        %v714 = vld [vmem:[%s579 + $0x10] sm:$0xff]
        %v715 = vld [vmem:[%s579 + $0x18] sm:$0xff]
        %v716 = vld [vmem:[%s579 + $0x20] sm:$0xff]
        %v717 = vld [vmem:[%s579 + $0x28] sm:$0xff]
        %v718 = vld [vmem:[%s579 + $0x30] sm:$0xff]
        %v719 = vld [vmem:[%s579 + $0x38] sm:$0xff]
        %v720 = vld [vmem:[%s588] sm:$0xff]
        %v721 = vld [vmem:[%s588 + $0x8] sm:$0xff]
        %v722 = vld [vmem:[%s588 + $0x10] sm:$0xff]
        %v723 = vld [vmem:[%s588 + $0x18] sm:$0xff]
        %v724 = vld [vmem:[%s588 + $0x20] sm:$0xff]
        %v725 = vld [vmem:[%s588 + $0x28] sm:$0xff]
        %v726 = vld [vmem:[%s588 + $0x30] sm:$0xff]
        %v727 = vld [vmem:[%s588 + $0x38] sm:$0xff]
        %v728 = vld [vmem:[%s597] sm:$0xff]
        %v729 = vld [vmem:[%s597 + $0x8] sm:$0xff]
        %v730 = vld [vmem:[%s597 + $0x10] sm:$0xff]
        %v731 = vld [vmem:[%s597 + $0x18] sm:$0xff]
        %v732 = vld [vmem:[%s597 + $0x20] sm:$0xff]
        %v733 = vld [vmem:[%s597 + $0x28] sm:$0xff]
        %v734 = vld [vmem:[%s597 + $0x30] sm:$0xff]
        %v735 = vld [vmem:[%s597 + $0x38] sm:$0xff]
        %v736 = vld [vmem:[%s606] sm:$0xff]
        %v737 = vld [vmem:[%s606 + $0x8] sm:$0xff]
        %v738 = vld [vmem:[%s606 + $0x10] sm:$0xff]
        %v739 = vld [vmem:[%s606 + $0x18] sm:$0xff]
        %v740 = vld [vmem:[%s606 + $0x20] sm:$0xff]
        %v741 = vld [vmem:[%s606 + $0x28] sm:$0xff]
        %v742 = vld [vmem:[%s606 + $0x30] sm:$0xff]
        %v743 = vld [vmem:[%s606 + $0x38] sm:$0xff]
        %v744 = vld [vmem:[%s615] sm:$0xff]
        %v745 = vld [vmem:[%s615 + $0x8] sm:$0xff]
        %v746 = vld [vmem:[%s615 + $0x10] sm:$0xff]
        %v747 = vld [vmem:[%s615 + $0x18] sm:$0xff]
        %v748 = vld [vmem:[%s615 + $0x20] sm:$0xff]
        %v749 = vld [vmem:[%s615 + $0x28] sm:$0xff]
        %v750 = vld [vmem:[%s615 + $0x30] sm:$0xff]
        %v751 = vld [vmem:[%s615 + $0x38] sm:$0xff]
        %v752 = vmul.f32 %v712, %v712
        %v753 = vmul.f32 %v713, %v713
        %v754 = vmul.f32 %v714, %v714
        %v755 = vmul.f32 %v715, %v715
        %v756 = vmul.f32 %v716, %v716
        %v757 = vmul.f32 %v717, %v717
        %v758 = vmul.f32 %v718, %v718
        %v759 = vmul.f32 %v719, %v719
        %vm760 = vcmask 261120
        %v761 = vsel %vm760, %v752, 0.0
        %762 = vadd.xlane.f32.xlu0 %v761
        %v763 = vpop.xlane.xlu0 %762
        %v764 = vsel %vm760, %v753, 0.0
        %765 = vadd.xlane.f32.xlu0 %v764
        %v766 = vpop.xlane.xlu0 %765
        %v767 = vsel %vm760, %v754, 0.0
        %768 = vadd.xlane.f32.xlu0 %v767
        %v769 = vpop.xlane.xlu0 %768
        %v770 = vsel %vm760, %v755, 0.0
        %771 = vadd.xlane.f32.xlu0 %v770
        %v772 = vpop.xlane.xlu0 %771
        %v773 = vsel %vm760, %v756, 0.0
        %774 = vadd.xlane.f32.xlu0 %v773
        %v775 = vpop.xlane.xlu0 %774
        %v776 = vsel %vm760, %v757, 0.0
        %777 = vadd.xlane.f32.xlu0 %v776
        %v778 = vpop.xlane.xlu0 %777
        %v779 = vsel %vm760, %v758, 0.0
        %780 = vadd.xlane.f32.xlu0 %v779
        %v781 = vpop.xlane.xlu0 %780
        %v782 = vsel %vm760, %v759, 0.0
        %783 = vadd.xlane.f32.xlu0 %v782
        %v784 = vpop.xlane.xlu0 %783
        %v785 = vmul.f32 %v712, %v720
        %v786 = vmul.f32 %v713, %v721
        %v787 = vmul.f32 %v714, %v722
        %v788 = vmul.f32 %v715, %v723
        %v789 = vmul.f32 %v716, %v724
        %v790 = vmul.f32 %v717, %v725
        %v791 = vmul.f32 %v718, %v726
        %v792 = vmul.f32 %v719, %v727
        %v793 = vsel %vm760, %v785, 0.0
        %794 = vadd.xlane.f32.xlu0 %v793
        %v795 = vpop.xlane.xlu0 %794
        %v796 = vsel %vm760, %v786, 0.0
        %797 = vadd.xlane.f32.xlu0 %v796
        %v798 = vpop.xlane.xlu0 %797
        %v799 = vsel %vm760, %v787, 0.0
        %800 = vadd.xlane.f32.xlu0 %v799
        %v801 = vpop.xlane.xlu0 %800
        %v802 = vsel %vm760, %v788, 0.0
        %803 = vadd.xlane.f32.xlu0 %v802
        %v804 = vpop.xlane.xlu0 %803
        %v805 = vsel %vm760, %v789, 0.0
        %806 = vadd.xlane.f32.xlu0 %v805
        %v807 = vpop.xlane.xlu0 %806
        %v808 = vsel %vm760, %v790, 0.0
        %809 = vadd.xlane.f32.xlu0 %v808
        %v810 = vpop.xlane.xlu0 %809
        %v811 = vsel %vm760, %v791, 0.0
        %812 = vadd.xlane.f32.xlu0 %v811
        %v813 = vpop.xlane.xlu0 %812
        %v814 = vsel %vm760, %v792, 0.0
        %815 = vadd.xlane.f32.xlu0 %v814
        %v816 = vpop.xlane.xlu0 %815
        %v817 = vmul.f32 %v712, %v728
        %v818 = vmul.f32 %v713, %v729
        %v819 = vmul.f32 %v714, %v730
        %v820 = vmul.f32 %v715, %v731
        %v821 = vmul.f32 %v716, %v732
        %v822 = vmul.f32 %v717, %v733
        %v823 = vmul.f32 %v718, %v734
        %v824 = vmul.f32 %v719, %v735
        %v825 = vsel %vm760, %v817, 0.0
        %826 = vadd.xlane.f32.xlu0 %v825
        %v827 = vpop.xlane.xlu0 %826
        %v828 = vsel %vm760, %v818, 0.0
        %829 = vadd.xlane.f32.xlu0 %v828
        %v830 = vpop.xlane.xlu0 %829
        %v831 = vsel %vm760, %v819, 0.0
        %832 = vadd.xlane.f32.xlu0 %v831
        %v833 = vpop.xlane.xlu0 %832
        %v834 = vsel %vm760, %v820, 0.0
        %835 = vadd.xlane.f32.xlu0 %v834
        %v836 = vpop.xlane.xlu0 %835
        %v837 = vsel %vm760, %v821, 0.0
        %838 = vadd.xlane.f32.xlu0 %v837
        %v839 = vpop.xlane.xlu0 %838
        %v840 = vsel %vm760, %v822, 0.0
        %841 = vadd.xlane.f32.xlu0 %v840
        %v842 = vpop.xlane.xlu0 %841
        %v843 = vsel %vm760, %v823, 0.0
        %844 = vadd.xlane.f32.xlu0 %v843
        %v845 = vpop.xlane.xlu0 %844
        %v846 = vsel %vm760, %v824, 0.0
        %847 = vadd.xlane.f32.xlu0 %v846
        %v848 = vpop.xlane.xlu0 %847
        %v849 = vmul.f32 %v712, %v736
        %v850 = vmul.f32 %v713, %v737
        %v851 = vmul.f32 %v714, %v738
        %v852 = vmul.f32 %v715, %v739
        %v853 = vmul.f32 %v716, %v740
        %v854 = vmul.f32 %v717, %v741
        %v855 = vmul.f32 %v718, %v742
        %v856 = vmul.f32 %v719, %v743
        %v857 = vsel %vm760, %v849, 0.0
        %858 = vadd.xlane.f32.xlu0 %v857
        %v859 = vpop.xlane.xlu0 %858
        %v860 = vsel %vm760, %v850, 0.0
        %861 = vadd.xlane.f32.xlu0 %v860
        %v862 = vpop.xlane.xlu0 %861
        %v863 = vsel %vm760, %v851, 0.0
        %864 = vadd.xlane.f32.xlu0 %v863
        %v865 = vpop.xlane.xlu0 %864
        %v866 = vsel %vm760, %v852, 0.0
        %867 = vadd.xlane.f32.xlu0 %v866
        %v868 = vpop.xlane.xlu0 %867
        %v869 = vsel %vm760, %v853, 0.0
        %870 = vadd.xlane.f32.xlu0 %v869
        %v871 = vpop.xlane.xlu0 %870
        %v872 = vsel %vm760, %v854, 0.0
        %873 = vadd.xlane.f32.xlu0 %v872
        %v874 = vpop.xlane.xlu0 %873
        %v875 = vsel %vm760, %v855, 0.0
        %876 = vadd.xlane.f32.xlu0 %v875
        %v877 = vpop.xlane.xlu0 %876
        %v878 = vsel %vm760, %v856, 0.0
        %879 = vadd.xlane.f32.xlu0 %v878
        %v880 = vpop.xlane.xlu0 %879
        %v881 = vmul.f32 %v712, %v744
        %v882 = vmul.f32 %v713, %v745
        %v883 = vmul.f32 %v714, %v746
        %v884 = vmul.f32 %v715, %v747
        %v885 = vmul.f32 %v716, %v748
        %v886 = vmul.f32 %v717, %v749
        %v887 = vmul.f32 %v718, %v750
        %v888 = vmul.f32 %v719, %v751
        %v889 = vsel %vm760, %v881, 0.0
        %890 = vadd.xlane.f32.xlu0 %v889
        %v891 = vpop.xlane.xlu0 %890
        %v892 = vsel %vm760, %v882, 0.0
        %893 = vadd.xlane.f32.xlu0 %v892
        %v894 = vpop.xlane.xlu0 %893
        %v895 = vsel %vm760, %v883, 0.0
        %896 = vadd.xlane.f32.xlu0 %v895
        %v897 = vpop.xlane.xlu0 %896
        %v898 = vsel %vm760, %v884, 0.0
        %899 = vadd.xlane.f32.xlu0 %v898
        %v900 = vpop.xlane.xlu0 %899
        %v901 = vsel %vm760, %v885, 0.0
        %902 = vadd.xlane.f32.xlu0 %v901
        %v903 = vpop.xlane.xlu0 %902
        %v904 = vsel %vm760, %v886, 0.0
        %905 = vadd.xlane.f32.xlu0 %v904
        %v906 = vpop.xlane.xlu0 %905
        %v907 = vsel %vm760, %v887, 0.0
        %908 = vadd.xlane.f32.xlu0 %v907
        %v909 = vpop.xlane.xlu0 %908
        %v910 = vsel %vm760, %v888, 0.0
        %911 = vadd.xlane.f32.xlu0 %v910
        %v912 = vpop.xlane.xlu0 %911
        %v913 = vmax.f32 %v763, %v795
        %v914 = vmax.f32 %v766, %v798
        %v915 = vmax.f32 %v769, %v801
        %v916 = vmax.f32 %v772, %v804
        %v917 = vmax.f32 %v775, %v807
        %v918 = vmax.f32 %v778, %v810
        %v919 = vmax.f32 %v781, %v813
        %v920 = vmax.f32 %v784, %v816
        %v921 = vmax.f32 %v913, %v827
        %v922 = vmax.f32 %v914, %v830
        %v923 = vmax.f32 %v915, %v833
        %v924 = vmax.f32 %v916, %v836
        %v925 = vmax.f32 %v917, %v839
        %v926 = vmax.f32 %v918, %v842
        %v927 = vmax.f32 %v919, %v845
        %v928 = vmax.f32 %v920, %v848
        %v929 = vmax.f32 %v921, %v859
        %v930 = vmax.f32 %v922, %v862
        %v931 = vmax.f32 %v923, %v865
        %v932 = vmax.f32 %v924, %v868
        %v933 = vmax.f32 %v925, %v871
        %v934 = vmax.f32 %v926, %v874
        %v935 = vmax.f32 %v927, %v877
        %v936 = vmax.f32 %v928, %v880
        %v937 = vmax.f32 %v929, %v891
        %v938 = vmax.f32 %v930, %v894
        %v939 = vmax.f32 %v931, %v897
        %v940 = vmax.f32 %v932, %v900
        %v941 = vmax.f32 %v933, %v903
        %v942 = vmax.f32 %v934, %v906
        %v943 = vmax.f32 %v935, %v909
        %v944 = vmax.f32 %v936, %v912
        %v945 = vsub.f32 %v763, %v937
        %v946 = vsub.f32 %v766, %v938
        %v947 = vsub.f32 %v769, %v939
        %v948 = vsub.f32 %v772, %v940
        %v949 = vsub.f32 %v775, %v941
        %v950 = vsub.f32 %v778, %v942
        %v951 = vsub.f32 %v781, %v943
        %v952 = vsub.f32 %v784, %v944
        %v953 = vmul.f32 %v945, 1.442695
        %v954 = vpow.pop %v953
        %v955 = vmul.f32 %v946, 1.442695
        %v956 = vpow.pop %v955
        %v957 = vmul.f32 %v947, 1.442695
        %v958 = vpow.pop %v957
        %v959 = vmul.f32 %v948, 1.442695
        %v960 = vpow.pop %v959
        %v961 = vmul.f32 %v949, 1.442695
        %v962 = vpow.pop %v961
        %v963 = vmul.f32 %v950, 1.442695
        %v964 = vpow.pop %v963
        %v965 = vmul.f32 %v951, 1.442695
        %v966 = vpow.pop %v965
        %v967 = vmul.f32 %v952, 1.442695
        %v968 = vpow.pop %v967
        %v969 = vsub.f32 %v795, %v937
        %v970 = vsub.f32 %v798, %v938
        %v971 = vsub.f32 %v801, %v939
        %v972 = vsub.f32 %v804, %v940
        %v973 = vsub.f32 %v807, %v941
        %v974 = vsub.f32 %v810, %v942
        %v975 = vsub.f32 %v813, %v943
        %v976 = vsub.f32 %v816, %v944
        %v977 = vmul.f32 %v969, 1.442695
        %v978 = vpow.pop %v977
        %v979 = vmul.f32 %v970, 1.442695
        %v980 = vpow.pop %v979
        %v981 = vmul.f32 %v971, 1.442695
        %v982 = vpow.pop %v981
        %v983 = vmul.f32 %v972, 1.442695
        %v984 = vpow.pop %v983
        %v985 = vmul.f32 %v973, 1.442695
        %v986 = vpow.pop %v985
        %v987 = vmul.f32 %v974, 1.442695
        %v988 = vpow.pop %v987
        %v989 = vmul.f32 %v975, 1.442695
        %v990 = vpow.pop %v989
        %v991 = vmul.f32 %v976, 1.442695
        %v992 = vpow.pop %v991
        %v993 = vsub.f32 %v827, %v937
        %v994 = vsub.f32 %v830, %v938
        %v995 = vsub.f32 %v833, %v939
        %v996 = vsub.f32 %v836, %v940
        %v997 = vsub.f32 %v839, %v941
        %v998 = vsub.f32 %v842, %v942
        %v999 = vsub.f32 %v845, %v943
        %v1000 = vsub.f32 %v848, %v944
        %v1001 = vmul.f32 %v993, 1.442695
        %v1002 = vpow.pop %v1001
        %v1003 = vmul.f32 %v994, 1.442695
        %v1004 = vpow.pop %v1003
        %v1005 = vmul.f32 %v995, 1.442695
        %v1006 = vpow.pop %v1005
        %v1007 = vmul.f32 %v996, 1.442695
        %v1008 = vpow.pop %v1007
        %v1009 = vmul.f32 %v997, 1.442695
        %v1010 = vpow.pop %v1009
        %v1011 = vmul.f32 %v998, 1.442695
        %v1012 = vpow.pop %v1011
        %v1013 = vmul.f32 %v999, 1.442695
        %v1014 = vpow.pop %v1013
        %v1015 = vmul.f32 %v1000, 1.442695
        %v1016 = vpow.pop %v1015
        %v1017 = vsub.f32 %v859, %v937
        %v1018 = vsub.f32 %v862, %v938
        %v1019 = vsub.f32 %v865, %v939
        %v1020 = vsub.f32 %v868, %v940
        %v1021 = vsub.f32 %v871, %v941
        %v1022 = vsub.f32 %v874, %v942
        %v1023 = vsub.f32 %v877, %v943
        %v1024 = vsub.f32 %v880, %v944
        %v1025 = vmul.f32 %v1017, 1.442695
        %v1026 = vpow.pop %v1025
        %v1027 = vmul.f32 %v1018, 1.442695
        %v1028 = vpow.pop %v1027
        %v1029 = vmul.f32 %v1019, 1.442695
        %v1030 = vpow.pop %v1029
        %v1031 = vmul.f32 %v1020, 1.442695
        %v1032 = vpow.pop %v1031
        %v1033 = vmul.f32 %v1021, 1.442695
        %v1034 = vpow.pop %v1033
        %v1035 = vmul.f32 %v1022, 1.442695
        %v1036 = vpow.pop %v1035
        %v1037 = vmul.f32 %v1023, 1.442695
        %v1038 = vpow.pop %v1037
        %v1039 = vmul.f32 %v1024, 1.442695
        %v1040 = vpow.pop %v1039
        %v1041 = vsub.f32 %v891, %v937
        %v1042 = vsub.f32 %v894, %v938
        %v1043 = vsub.f32 %v897, %v939
        %v1044 = vsub.f32 %v900, %v940
        %v1045 = vsub.f32 %v903, %v941
        %v1046 = vsub.f32 %v906, %v942
        %v1047 = vsub.f32 %v909, %v943
        %v1048 = vsub.f32 %v912, %v944
        %v1049 = vmul.f32 %v1041, 1.442695
        %v1050 = vpow.pop %v1049
        %v1051 = vmul.f32 %v1042, 1.442695
        %v1052 = vpow.pop %v1051
        %v1053 = vmul.f32 %v1043, 1.442695
        %v1054 = vpow.pop %v1053
        %v1055 = vmul.f32 %v1044, 1.442695
        %v1056 = vpow.pop %v1055
        %v1057 = vmul.f32 %v1045, 1.442695
        %v1058 = vpow.pop %v1057
        %v1059 = vmul.f32 %v1046, 1.442695
        %v1060 = vpow.pop %v1059
        %v1061 = vmul.f32 %v1047, 1.442695
        %v1062 = vpow.pop %v1061
        %v1063 = vmul.f32 %v1048, 1.442695
        %v1064 = vpow.pop %v1063
        %v1065 = vadd.f32 %v954, %v978
        %v1066 = vadd.f32 %v956, %v980
        %v1067 = vadd.f32 %v958, %v982
        %v1068 = vadd.f32 %v960, %v984
        %v1069 = vadd.f32 %v962, %v986
        %v1070 = vadd.f32 %v964, %v988
        %v1071 = vadd.f32 %v966, %v990
        %v1072 = vadd.f32 %v968, %v992
        %v1073 = vadd.f32 %v1065, %v1002
        %v1074 = vadd.f32 %v1066, %v1004
        %v1075 = vadd.f32 %v1067, %v1006
        %v1076 = vadd.f32 %v1068, %v1008
        %v1077 = vadd.f32 %v1069, %v1010
        %v1078 = vadd.f32 %v1070, %v1012
        %v1079 = vadd.f32 %v1071, %v1014
        %v1080 = vadd.f32 %v1072, %v1016
        %v1081 = vadd.f32 %v1073, %v1026
        %v1082 = vadd.f32 %v1074, %v1028
        %v1083 = vadd.f32 %v1075, %v1030
        %v1084 = vadd.f32 %v1076, %v1032
        %v1085 = vadd.f32 %v1077, %v1034
        %v1086 = vadd.f32 %v1078, %v1036
        %v1087 = vadd.f32 %v1079, %v1038
        %v1088 = vadd.f32 %v1080, %v1040
        %v1089 = vadd.f32 %v1081, %v1050
        %v1090 = vadd.f32 %v1082, %v1052
        %v1091 = vadd.f32 %v1083, %v1054
        %v1092 = vadd.f32 %v1084, %v1056
        %v1093 = vadd.f32 %v1085, %v1058
        %v1094 = vadd.f32 %v1086, %v1060
        %v1095 = vadd.f32 %v1087, %v1062
        %v1096 = vadd.f32 %v1088, %v1064
        %v1097 = vrcp.pop %v1089
        %v1098 = vmul.f32 1.0, %v1097
        %v1099 = vrcp.pop %v1090
        %v1100 = vmul.f32 1.0, %v1099
        %v1101 = vrcp.pop %v1091
        %v1102 = vmul.f32 1.0, %v1101
        %v1103 = vrcp.pop %v1092
        %v1104 = vmul.f32 1.0, %v1103
        %v1105 = vrcp.pop %v1093
        %v1106 = vmul.f32 1.0, %v1105
        %v1107 = vrcp.pop %v1094
        %v1108 = vmul.f32 1.0, %v1107
        %v1109 = vrcp.pop %v1095
        %v1110 = vmul.f32 1.0, %v1109
        %v1111 = vrcp.pop %v1096
        %v1112 = vmul.f32 1.0, %v1111
        %v1113 = vld [vmem:[%s570] sm:$0xff]
        %v1114 = vld [vmem:[%s570 + $0x8] sm:$0xff]
        %v1115 = vld [vmem:[%s570 + $0x10] sm:$0xff]
        %v1116 = vld [vmem:[%s570 + $0x18] sm:$0xff]
        %v1117 = vld [vmem:[%s570 + $0x20] sm:$0xff]
        %v1118 = vld [vmem:[%s570 + $0x28] sm:$0xff]
        %v1119 = vld [vmem:[%s570 + $0x30] sm:$0xff]
        %v1120 = vld [vmem:[%s570 + $0x38] sm:$0xff]
        %v1121 = vmul.f32 %v954, %v1098
        %v1122 = vmul.f32 %v956, %v1100
        %v1123 = vmul.f32 %v958, %v1102
        %v1124 = vmul.f32 %v960, %v1104
        %v1125 = vmul.f32 %v962, %v1106
        %v1126 = vmul.f32 %v964, %v1108
        %v1127 = vmul.f32 %v966, %v1110
        %v1128 = vmul.f32 %v968, %v1112
        %v1129 = vmul.f32 %v1121, %v712
        %v1130 = vmul.f32 %v1122, %v713
        %v1131 = vmul.f32 %v1123, %v714
        %v1132 = vmul.f32 %v1124, %v715
        %v1133 = vmul.f32 %v1125, %v716
        %v1134 = vmul.f32 %v1126, %v717
        %v1135 = vmul.f32 %v1127, %v718
        %v1136 = vmul.f32 %v1128, %v719
        %v1137 = vadd.f32 %v1113, %v1129
        %v1138 = vadd.f32 %v1114, %v1130
        %v1139 = vadd.f32 %v1115, %v1131
        %v1140 = vadd.f32 %v1116, %v1132
        %v1141 = vadd.f32 %v1117, %v1133
        %v1142 = vadd.f32 %v1118, %v1134
        %v1143 = vadd.f32 %v1119, %v1135
        %v1144 = vadd.f32 %v1120, %v1136
        %v1145 = vmul.f32 %v978, %v1098
        %v1146 = vmul.f32 %v980, %v1100
        %v1147 = vmul.f32 %v982, %v1102
        %v1148 = vmul.f32 %v984, %v1104
        %v1149 = vmul.f32 %v986, %v1106
        %v1150 = vmul.f32 %v988, %v1108
        %v1151 = vmul.f32 %v990, %v1110
        %v1152 = vmul.f32 %v992, %v1112
        %v1153 = vmul.f32 %v1145, %v720
        %v1154 = vmul.f32 %v1146, %v721
        %v1155 = vmul.f32 %v1147, %v722
        %v1156 = vmul.f32 %v1148, %v723
        %v1157 = vmul.f32 %v1149, %v724
        %v1158 = vmul.f32 %v1150, %v725
        %v1159 = vmul.f32 %v1151, %v726
        %v1160 = vmul.f32 %v1152, %v727
        %v1161 = vadd.f32 %v1137, %v1153
        %v1162 = vadd.f32 %v1138, %v1154
        %v1163 = vadd.f32 %v1139, %v1155
        %v1164 = vadd.f32 %v1140, %v1156
        %v1165 = vadd.f32 %v1141, %v1157
        %v1166 = vadd.f32 %v1142, %v1158
        %v1167 = vadd.f32 %v1143, %v1159
        %v1168 = vadd.f32 %v1144, %v1160
        %v1169 = vmul.f32 %v1002, %v1098
        %v1170 = vmul.f32 %v1004, %v1100
        %v1171 = vmul.f32 %v1006, %v1102
        %v1172 = vmul.f32 %v1008, %v1104
        %v1173 = vmul.f32 %v1010, %v1106
        %v1174 = vmul.f32 %v1012, %v1108
        %v1175 = vmul.f32 %v1014, %v1110
        %v1176 = vmul.f32 %v1016, %v1112
        %v1177 = vmul.f32 %v1169, %v728
        %v1178 = vmul.f32 %v1170, %v729
        %v1179 = vmul.f32 %v1171, %v730
        %v1180 = vmul.f32 %v1172, %v731
        %v1181 = vmul.f32 %v1173, %v732
        %v1182 = vmul.f32 %v1174, %v733
        %v1183 = vmul.f32 %v1175, %v734
        %v1184 = vmul.f32 %v1176, %v735
        %v1185 = vadd.f32 %v1161, %v1177
        %v1186 = vadd.f32 %v1162, %v1178
        %v1187 = vadd.f32 %v1163, %v1179
        %v1188 = vadd.f32 %v1164, %v1180
        %v1189 = vadd.f32 %v1165, %v1181
        %v1190 = vadd.f32 %v1166, %v1182
        %v1191 = vadd.f32 %v1167, %v1183
        %v1192 = vadd.f32 %v1168, %v1184
        %v1193 = vmul.f32 %v1026, %v1098
        %v1194 = vmul.f32 %v1028, %v1100
        %v1195 = vmul.f32 %v1030, %v1102
        %v1196 = vmul.f32 %v1032, %v1104
        %v1197 = vmul.f32 %v1034, %v1106
        %v1198 = vmul.f32 %v1036, %v1108
        %v1199 = vmul.f32 %v1038, %v1110
        %v1200 = vmul.f32 %v1040, %v1112
        %v1201 = vmul.f32 %v1193, %v736
        %v1202 = vmul.f32 %v1194, %v737
        %v1203 = vmul.f32 %v1195, %v738
        %v1204 = vmul.f32 %v1196, %v739
        %v1205 = vmul.f32 %v1197, %v740
        %v1206 = vmul.f32 %v1198, %v741
        %v1207 = vmul.f32 %v1199, %v742
        %v1208 = vmul.f32 %v1200, %v743
        %v1209 = vadd.f32 %v1185, %v1201
        %v1210 = vadd.f32 %v1186, %v1202
        %v1211 = vadd.f32 %v1187, %v1203
        %v1212 = vadd.f32 %v1188, %v1204
        %v1213 = vadd.f32 %v1189, %v1205
        %v1214 = vadd.f32 %v1190, %v1206
        %v1215 = vadd.f32 %v1191, %v1207
        %v1216 = vadd.f32 %v1192, %v1208
        %v1217 = vmul.f32 %v1050, %v1098
        %v1218 = vmul.f32 %v1052, %v1100
        %v1219 = vmul.f32 %v1054, %v1102
        %v1220 = vmul.f32 %v1056, %v1104
        %v1221 = vmul.f32 %v1058, %v1106
        %v1222 = vmul.f32 %v1060, %v1108
        %v1223 = vmul.f32 %v1062, %v1110
        %v1224 = vmul.f32 %v1064, %v1112
        %v1225 = vmul.f32 %v1217, %v744
        %v1226 = vmul.f32 %v1218, %v745
        %v1227 = vmul.f32 %v1219, %v746
        %v1228 = vmul.f32 %v1220, %v747
        %v1229 = vmul.f32 %v1221, %v748
        %v1230 = vmul.f32 %v1222, %v749
        %v1231 = vmul.f32 %v1223, %v750
        %v1232 = vmul.f32 %v1224, %v751
        %v1233 = vadd.f32 %v1209, %v1225
        %v1234 = vadd.f32 %v1210, %v1226
        %v1235 = vadd.f32 %v1211, %v1227
        %v1236 = vadd.f32 %v1212, %v1228
        %v1237 = vadd.f32 %v1213, %v1229
        %v1238 = vadd.f32 %v1214, %v1230
        %v1239 = vadd.f32 %v1215, %v1231
        %v1240 = vadd.f32 %v1216, %v1232
        %v1241 = vsel %vm760, %v1233, 0.0
        %1242 = vadd.xlane.f32.xlu0 %v1241
        %v1243 = vpop.xlane.xlu0 %1242
        %v1244 = vsel %vm760, %v1234, 0.0
        %1245 = vadd.xlane.f32.xlu0 %v1244
        %v1246 = vpop.xlane.xlu0 %1245
        %v1247 = vsel %vm760, %v1235, 0.0
        %1248 = vadd.xlane.f32.xlu0 %v1247
        %v1249 = vpop.xlane.xlu0 %1248
        %v1250 = vsel %vm760, %v1236, 0.0
        %1251 = vadd.xlane.f32.xlu0 %v1250
        %v1252 = vpop.xlane.xlu0 %1251
        %v1253 = vsel %vm760, %v1237, 0.0
        %1254 = vadd.xlane.f32.xlu0 %v1253
        %v1255 = vpop.xlane.xlu0 %1254
        %v1256 = vsel %vm760, %v1238, 0.0
        %1257 = vadd.xlane.f32.xlu0 %v1256
        %v1258 = vpop.xlane.xlu0 %1257
        %v1259 = vsel %vm760, %v1239, 0.0
        %1260 = vadd.xlane.f32.xlu0 %v1259
        %v1261 = vpop.xlane.xlu0 %1260
        %v1262 = vsel %vm760, %v1240, 0.0
        %1263 = vadd.xlane.f32.xlu0 %v1262
        %v1264 = vpop.xlane.xlu0 %1263
        %v1265 = vrcp.pop 32.0
        %v1266 = vmul.f32 %v1243, %v1265
        %v1267 = vmul.f32 %v1246, %v1265
        %v1268 = vmul.f32 %v1249, %v1265
        %v1269 = vmul.f32 %v1252, %v1265
        %v1270 = vmul.f32 %v1255, %v1265
        %v1271 = vmul.f32 %v1258, %v1265
        %v1272 = vmul.f32 %v1261, %v1265
        %v1273 = vmul.f32 %v1264, %v1265
        %v1274 = vsub.f32 %v1233, %v1266
        %v1275 = vsub.f32 %v1234, %v1267
        %v1276 = vsub.f32 %v1235, %v1268
        %v1277 = vsub.f32 %v1236, %v1269
        %v1278 = vsub.f32 %v1237, %v1270
        %v1279 = vsub.f32 %v1238, %v1271
        %v1280 = vsub.f32 %v1239, %v1272
        %v1281 = vsub.f32 %v1240, %v1273
        %v1282 = vmul.f32 %v1274, %v1274
        %v1283 = vmul.f32 %v1275, %v1275
        %v1284 = vmul.f32 %v1276, %v1276
        %v1285 = vmul.f32 %v1277, %v1277
        %v1286 = vmul.f32 %v1278, %v1278
        %v1287 = vmul.f32 %v1279, %v1279
        %v1288 = vmul.f32 %v1280, %v1280
        %v1289 = vmul.f32 %v1281, %v1281
        %v1290 = vsel %vm760, %v1282, 0.0
        %1291 = vadd.xlane.f32.xlu0 %v1290
        %v1292 = vpop.xlane.xlu0 %1291
        %v1293 = vsel %vm760, %v1283, 0.0
        %1294 = vadd.xlane.f32.xlu0 %v1293
        %v1295 = vpop.xlane.xlu0 %1294
        %v1296 = vsel %vm760, %v1284, 0.0
        %1297 = vadd.xlane.f32.xlu0 %v1296
        %v1298 = vpop.xlane.xlu0 %1297
        %v1299 = vsel %vm760, %v1285, 0.0
        %1300 = vadd.xlane.f32.xlu0 %v1299
        %v1301 = vpop.xlane.xlu0 %1300
        %v1302 = vsel %vm760, %v1286, 0.0
        %1303 = vadd.xlane.f32.xlu0 %v1302
        %v1304 = vpop.xlane.xlu0 %1303
        %v1305 = vsel %vm760, %v1287, 0.0
        %1306 = vadd.xlane.f32.xlu0 %v1305
        %v1307 = vpop.xlane.xlu0 %1306
        %v1308 = vsel %vm760, %v1288, 0.0
        %1309 = vadd.xlane.f32.xlu0 %v1308
        %v1310 = vpop.xlane.xlu0 %1309
        %v1311 = vsel %vm760, %v1289, 0.0
        %1312 = vadd.xlane.f32.xlu0 %v1311
        %v1313 = vpop.xlane.xlu0 %1312
        %v1314 = vmul.f32 %v1292, %v1265
        %v1315 = vmul.f32 %v1295, %v1265
        %v1316 = vmul.f32 %v1298, %v1265
        %v1317 = vmul.f32 %v1301, %v1265
        %v1318 = vmul.f32 %v1304, %v1265
        %v1319 = vmul.f32 %v1307, %v1265
        %v1320 = vmul.f32 %v1310, %v1265
        %v1321 = vmul.f32 %v1313, %v1265
        %v1322 = vadd.f32 %v1314, 1e-05
        %v1323 = vadd.f32 %v1315, 1e-05
        %v1324 = vadd.f32 %v1316, 1e-05
        %v1325 = vadd.f32 %v1317, 1e-05
        %v1326 = vadd.f32 %v1318, 1e-05
        %v1327 = vadd.f32 %v1319, 1e-05
        %v1328 = vadd.f32 %v1320, 1e-05
        %v1329 = vadd.f32 %v1321, 1e-05
        %v1330 = vrsqrt.pop %v1322
        %v1331 = vrsqrt.pop %v1323
        %v1332 = vrsqrt.pop %v1324
        %v1333 = vrsqrt.pop %v1325
        %v1334 = vrsqrt.pop %v1326
        %v1335 = vrsqrt.pop %v1327
        %v1336 = vrsqrt.pop %v1328
        %v1337 = vrsqrt.pop %v1329
        %v1338 = vmul.f32 %v1274, %v1330
        %v1339 = vmul.f32 %v1275, %v1331
        %v1340 = vmul.f32 %v1276, %v1332
        %v1341 = vmul.f32 %v1277, %v1333
        %v1342 = vmul.f32 %v1278, %v1334
        %v1343 = vmul.f32 %v1279, %v1335
        %v1344 = vmul.f32 %v1280, %v1336
        %v1345 = vmul.f32 %v1281, %v1337
        %v1346 = vld [vmem:[#allocation13] sm:$0x1]
        %v1348 = vlaneseq
        %v1349 = vshrl.u32 %v1348, 7
        %v1350 = vsub.s32 0, %v1349
        %v1351 = vrot.slane %v1346, %v1350
        %v1353 = vmul.f32 %v1338, %v1351
        %v1354 = vmul.f32 %v1339, %v1351
        %v1355 = vmul.f32 %v1340, %v1351
        %v1356 = vmul.f32 %v1341, %v1351
        %v1357 = vmul.f32 %v1342, %v1351
        %v1358 = vmul.f32 %v1343, %v1351
        %v1359 = vmul.f32 %v1344, %v1351
        %v1360 = vmul.f32 %v1345, %v1351
        %v1361 = vld [vmem:[#allocation14] sm:$0x1]
        %v1363 = vlaneseq
        %v1364 = vshrl.u32 %v1363, 7
        %v1365 = vsub.s32 0, %v1364
        %v1366 = vrot.slane %v1361, %v1365
        %v1368 = vadd.f32 %v1353, %v1366
        %v1369 = vadd.f32 %v1354, %v1366
        %v1370 = vadd.f32 %v1355, %v1366
        %v1371 = vadd.f32 %v1356, %v1366
        %v1372 = vadd.f32 %v1357, %v1366
        %v1373 = vadd.f32 %v1358, %v1366
        %v1374 = vadd.f32 %v1359, %v1366
        %v1375 = vadd.f32 %v1360, %v1366
        %v1376 = vld [vmem:[#allocation16] sm:$0xff]
        %v1377 = vld [vmem:[#allocation16 + $0x8] sm:$0xff]
        %v1378 = vld [vmem:[#allocation16 + $0x10] sm:$0xff]
        %v1379 = vld [vmem:[#allocation16 + $0x18] sm:$0xff]
        %v1380 = vld [vmem:[#allocation17] sm:$0x1]
        %v1382 = vlaneseq
        %v1383 = vshrl.u32 %v1382, 7
        %v1384 = vsub.s32 0, %v1383
        %v1385 = vrot.slane %v1380, %v1384
        %v1388 = vsel %vm760, %v1368, 0
        %v1391 = vsel %vm760, %v1369, 0
        %v1394 = vsel %vm760, %v1370, 0
        %v1397 = vsel %vm760, %v1371, 0
        %v1400 = vsel %vm760, %v1372, 0
        %v1403 = vsel %vm760, %v1373, 0
        %v1406 = vsel %vm760, %v1374, 0
        %v1409 = vsel %vm760, %v1375, 0
        %1411 = vmatprep.subr.mxu0 0.0
        %1412 = vmatpush1.msra.mxu0 %v1376
        %1413 = vmatprep.subr.mxu0 0.0
        %1414 = vmatpush1.msra.mxu0 %v1377
        %1415 = vmatprep.subr.mxu0 0.0
        %1416 = vmatpush1.msra.mxu0 %v1378
        %1417 = vmatprep.subr.mxu0 0.0
        %1418 = vmatpush1.msra.mxu0 %v1379
        %1419 = vmatprep.subr.mxu0 0.0
        %1420 = vmatpush1.msra.mxu0 0.0
        %1421 = vmatprep.subr.mxu0 0.0
        %1422 = vmatpush1.msra.mxu0 0.0
        %1423 = vmatprep.subr.mxu0 0.0
        %1424 = vmatpush1.msra.mxu0 0.0
        %1425 = vmatprep.subr.mxu0 0.0
        %1426 = vmatpush1.msra.mxu0 0.0
        %1427 = vmatprep.subr.mxu0 0.0
        %1428 = vmatpush1.msra.mxu0 0.0
        %1429 = vmatprep.subr.mxu0 0.0
        %1430 = vmatpush1.msra.mxu0 0.0
        %1431 = vmatprep.subr.mxu0 0.0
        %1432 = vmatpush1.msra.mxu0 0.0
        %1433 = vmatprep.subr.mxu0 0.0
        %1434 = vmatpush1.msra.mxu0 0.0
        %1435 = vmatprep.subr.mxu0 0.0
        %1436 = vmatpush1.msra.mxu0 0.0
        %1437 = vmatprep.subr.mxu0 0.0
        %1438 = vmatpush1.msra.mxu0 0.0
        %1439 = vmatprep.subr.mxu0 0.0
        %1440 = vmatpush1.msra.mxu0 0.0
        %1441 = vmatprep.subr.mxu0 0.0
        %1442 = vmatpush1.msra.mxu0 0.0
        %1443 = vmatprep.subr.mxu0 0.0
        %1444 = vmatpush1.msra.mxu0 0.0
        %1445 = vmatprep.subr.mxu0 0.0
        %1446 = vmatpush1.msra.mxu0 0.0
        %1447 = vmatprep.subr.mxu0 0.0
        %1448 = vmatpush1.msra.mxu0 0.0
        %1449 = vmatprep.subr.mxu0 0.0
        %1450 = vmatpush1.msra.mxu0 0.0
        %1451 = vmatprep.subr.mxu0 0.0
        %1452 = vmatpush1.msra.mxu0 0.0
        %1453 = vmatprep.subr.mxu0 0.0
        %1454 = vmatpush1.msra.mxu0 0.0
        %1455 = vmatprep.subr.mxu0 0.0
        %1456 = vmatpush1.msra.mxu0 0.0
        %1457 = vmatprep.subr.mxu0 0.0
        %1458 = vmatpush1.msra.mxu0 0.0
        %1459 = vmatprep.subr.mxu0 0.0
        %1460 = vmatpush1.msra.mxu0 0.0
        %1461 = vmatprep.subr.mxu0 0.0
        %1462 = vmatpush1.msra.mxu0 0.0
        %1463 = vmatprep.subr.mxu0 0.0
        %1464 = vmatpush1.msra.mxu0 0.0
        %1465 = vmatprep.subr.mxu0 0.0
        %1466 = vmatpush1.msra.mxu0 0.0
        %1467 = vmatprep.subr.mxu0 0.0
        %1468 = vmatpush1.msra.mxu0 0.0
        %1469 = vmatprep.subr.mxu0 0.0
        %1470 = vmatpush1.msra.mxu0 0.0
        %1471 = vmatprep.subr.mxu0 0.0
        %1472 = vmatpush1.msra.mxu0 0.0
        %1473 = vmatprep.subr.mxu0 0.0
        %1474 = vmatpush1.msra.mxu0 0.0
        %1475 = vmatprep.mubr.f32.mxu0 0.0
        %1476 = vmatmul.mubr.f32.gmra.mrb[0].mxu0 %v1388
        %v1477 = vpop.f32.mrb[0].mxu0
        %v1478 = vadd.f32 %v1385, %v1477
        %v1479 = vpop.f32.mrb[0].mxu0
        %1480 = vmatprep.mubr.f32.mxu0 0.0
        %1481 = vmatmul.mubr.f32.gmra.mrb[0].mxu0 %v1391
        %v1482 = vpop.f32.mrb[0].mxu0
        %v1483 = vadd.f32 %v1385, %v1482
        %v1484 = vpop.f32.mrb[0].mxu0
        %1485 = vmatprep.mubr.f32.mxu0 0.0
        %1486 = vmatmul.mubr.f32.gmra.mrb[0].mxu0 %v1394
        %v1487 = vpop.f32.mrb[0].mxu0
        %v1488 = vadd.f32 %v1385, %v1487
        %v1489 = vpop.f32.mrb[0].mxu0
        %1490 = vmatprep.mubr.f32.mxu0 0.0
        %1491 = vmatmul.mubr.f32.gmra.mrb[0].mxu0 %v1397
        %v1492 = vpop.f32.mrb[0].mxu0
        %v1493 = vadd.f32 %v1385, %v1492
        %v1494 = vpop.f32.mrb[0].mxu0
        %1495 = vmatprep.mubr.f32.mxu0 0.0
        %1496 = vmatmul.mubr.f32.gmra.mrb[0].mxu0 %v1400
        %v1497 = vpop.f32.mrb[0].mxu0
        %v1498 = vadd.f32 %v1385, %v1497
        %v1499 = vpop.f32.mrb[0].mxu0
        %1500 = vmatprep.mubr.f32.mxu0 0.0
        %1501 = vmatmul.mubr.f32.gmra.mrb[0].mxu0 %v1403
        %v1502 = vpop.f32.mrb[0].mxu0
        %v1503 = vadd.f32 %v1385, %v1502
        %v1504 = vpop.f32.mrb[0].mxu0
        %1505 = vmatprep.mubr.f32.mxu0 0.0
        %1506 = vmatmul.mubr.f32.gmra.mrb[0].mxu0 %v1406
        %v1507 = vpop.f32.mrb[0].mxu0
        %v1508 = vadd.f32 %v1385, %v1507
        %v1509 = vpop.f32.mrb[0].mxu0
        %1510 = vmatprep.mubr.f32.mxu0 0.0
        %1511 = vmatmul.mubr.f32.gmra.mrb[0].mxu0 %v1409
        %v1512 = vpop.f32.mrb[0].mxu0
        %v1513 = vadd.f32 %v1385, %v1512
        %v1514 = vpop.f32.mrb[0].mxu0
        %1515 = vdwg.mxu0
        %v1516 = vmul.f32 %v1478, %v1478
        %v1517 = vmul.f32 %v1483, %v1483
        %v1518 = vmul.f32 %v1488, %v1488
        %v1519 = vmul.f32 %v1493, %v1493
        %v1520 = vmul.f32 %v1498, %v1498
        %v1521 = vmul.f32 %v1503, %v1503
        %v1522 = vmul.f32 %v1508, %v1508
        %v1523 = vmul.f32 %v1513, %v1513
        %v1524 = vmul.f32 %v1478, %v1516
        %v1525 = vmul.f32 %v1483, %v1517
        %v1526 = vmul.f32 %v1488, %v1518
        %v1527 = vmul.f32 %v1493, %v1519
        %v1528 = vmul.f32 %v1498, %v1520
        %v1529 = vmul.f32 %v1503, %v1521
        %v1530 = vmul.f32 %v1508, %v1522
        %v1531 = vmul.f32 %v1513, %v1523
        %v1532 = vmul.f32 %v1524, 0.044715
        %v1533 = vmul.f32 %v1525, 0.044715
        %v1534 = vmul.f32 %v1526, 0.044715
        %v1535 = vmul.f32 %v1527, 0.044715
        %v1536 = vmul.f32 %v1528, 0.044715
        %v1537 = vmul.f32 %v1529, 0.044715
        %v1538 = vmul.f32 %v1530, 0.044715
        %v1539 = vmul.f32 %v1531, 0.044715
        %v1540 = vadd.f32 %v1478, %v1532
        %v1541 = vadd.f32 %v1483, %v1533
        %v1542 = vadd.f32 %v1488, %v1534
        %v1543 = vadd.f32 %v1493, %v1535
        %v1544 = vadd.f32 %v1498, %v1536
        %v1545 = vadd.f32 %v1503, %v1537
        %v1546 = vadd.f32 %v1508, %v1538
        %v1547 = vadd.f32 %v1513, %v1539
        %v1548 = vmul.f32 %v1540, 0.7978846
        %v1549 = vmul.f32 %v1541, 0.7978846
        %v1550 = vmul.f32 %v1542, 0.7978846
        %v1551 = vmul.f32 %v1543, 0.7978846
        %v1552 = vmul.f32 %v1544, 0.7978846
        %v1553 = vmul.f32 %v1545, 0.7978846
        %v1554 = vmul.f32 %v1546, 0.7978846
        %v1555 = vmul.f32 %v1547, 0.7978846
        %v1556 = vtanh.pop %v1548
        %v1557 = vtanh.pop %v1549
        %v1558 = vtanh.pop %v1550
        %v1559 = vtanh.pop %v1551
        %v1560 = vtanh.pop %v1552
        %v1561 = vtanh.pop %v1553
        %v1562 = vtanh.pop %v1554
        %v1563 = vtanh.pop %v1555
        %v1564 = vadd.f32 %v1556, 1.0
        %v1565 = vadd.f32 %v1557, 1.0
        %v1566 = vadd.f32 %v1558, 1.0
        %v1567 = vadd.f32 %v1559, 1.0
        %v1568 = vadd.f32 %v1560, 1.0
        %v1569 = vadd.f32 %v1561, 1.0
        %v1570 = vadd.f32 %v1562, 1.0
        %v1571 = vadd.f32 %v1563, 1.0
        %v1572 = vmul.f32 %v1564, 0.5
        %v1573 = vmul.f32 %v1565, 0.5
        %v1574 = vmul.f32 %v1566, 0.5
        %v1575 = vmul.f32 %v1567, 0.5
        %v1576 = vmul.f32 %v1568, 0.5
        %v1577 = vmul.f32 %v1569, 0.5
        %v1578 = vmul.f32 %v1570, 0.5
        %v1579 = vmul.f32 %v1571, 0.5
        %v1580 = vmul.f32 %v1478, %v1572
        %v1581 = vmul.f32 %v1483, %v1573
        %v1582 = vmul.f32 %v1488, %v1574
        %v1583 = vmul.f32 %v1493, %v1575
        %v1584 = vmul.f32 %v1498, %v1576
        %v1585 = vmul.f32 %v1503, %v1577
        %v1586 = vmul.f32 %v1508, %v1578
        %v1587 = vmul.f32 %v1513, %v1579
        %v1588 = vld [vmem:[#allocation19] sm:$0xff]
        %v1589 = vld [vmem:[#allocation19 + $0x8] sm:$0xff]
        %v1590 = vld [vmem:[#allocation19 + $0x10] sm:$0xff]
        %v1591 = vld [vmem:[#allocation19 + $0x18] sm:$0xff]
        %v1592 = vld [vmem:[#allocation19 + $0x20] sm:$0xff]
        %v1593 = vld [vmem:[#allocation19 + $0x28] sm:$0xff]
        %v1594 = vld [vmem:[#allocation19 + $0x30] sm:$0xff]
        %v1595 = vld [vmem:[#allocation19 + $0x38] sm:$0xff]
        %v1596 = vld [vmem:[#allocation19 + $0x40] sm:$0xff]
        %v1597 = vld [vmem:[#allocation19 + $0x48] sm:$0xff]
        %v1598 = vld [vmem:[#allocation19 + $0x50] sm:$0xff]
        %v1599 = vld [vmem:[#allocation19 + $0x58] sm:$0xff]
        %v1600 = vld [vmem:[#allocation19 + $0x60] sm:$0xff]
        %v1601 = vld [vmem:[#allocation19 + $0x68] sm:$0xff]
        %v1602 = vld [vmem:[#allocation19 + $0x70] sm:$0xff]
        %v1603 = vld [vmem:[#allocation19 + $0x78] sm:$0xff]
        %v1604 = vld [vmem:[#allocation20] sm:$0x1]
        %v1606 = vlaneseq
        %v1607 = vshrl.u32 %v1606, 7
        %v1608 = vsub.s32 0, %v1607
        %v1609 = vrot.slane %v1604, %v1608
        %1611 = vmatprep.subr.mxu0 0.0
        %1612 = vmatpush1.msra.mxu0 %v1588
        %1613 = vmatprep.subr.mxu0 0.0
        %1614 = vmatpush1.msra.mxu0 %v1589
        %1615 = vmatprep.subr.mxu0 0.0
        %1616 = vmatpush1.msra.mxu0 %v1590
        %1617 = vmatprep.subr.mxu0 0.0
        %1618 = vmatpush1.msra.mxu0 %v1591
        %1619 = vmatprep.subr.mxu0 0.0
        %1620 = vmatpush1.msra.mxu0 %v1592
        %1621 = vmatprep.subr.mxu0 0.0
        %1622 = vmatpush1.msra.mxu0 %v1593
        %1623 = vmatprep.subr.mxu0 0.0
        %1624 = vmatpush1.msra.mxu0 %v1594
        %1625 = vmatprep.subr.mxu0 0.0
        %1626 = vmatpush1.msra.mxu0 %v1595
        %1627 = vmatprep.subr.mxu0 0.0
        %1628 = vmatpush1.msra.mxu0 %v1596
        %1629 = vmatprep.subr.mxu0 0.0
        %1630 = vmatpush1.msra.mxu0 %v1597
        %1631 = vmatprep.subr.mxu0 0.0
        %1632 = vmatpush1.msra.mxu0 %v1598
        %1633 = vmatprep.subr.mxu0 0.0
        %1634 = vmatpush1.msra.mxu0 %v1599
        %1635 = vmatprep.subr.mxu0 0.0
        %1636 = vmatpush1.msra.mxu0 %v1600
        %1637 = vmatprep.subr.mxu0 0.0
        %1638 = vmatpush1.msra.mxu0 %v1601
        %1639 = vmatprep.subr.mxu0 0.0
        %1640 = vmatpush1.msra.mxu0 %v1602
        %1641 = vmatprep.subr.mxu0 0.0
        %1642 = vmatpush1.msra.mxu0 %v1603
        %1643 = vmatprep.subr.mxu0 0.0
        %1644 = vmatpush1.msra.mxu0 0.0
        %1645 = vmatprep.subr.mxu0 0.0
        %1646 = vmatpush1.msra.mxu0 0.0
        %1647 = vmatprep.subr.mxu0 0.0
        %1648 = vmatpush1.msra.mxu0 0.0
        %1649 = vmatprep.subr.mxu0 0.0
        %1650 = vmatpush1.msra.mxu0 0.0
        %1651 = vmatprep.subr.mxu0 0.0
        %1652 = vmatpush1.msra.mxu0 0.0
        %1653 = vmatprep.subr.mxu0 0.0
        %1654 = vmatpush1.msra.mxu0 0.0
        %1655 = vmatprep.subr.mxu0 0.0
        %1656 = vmatpush1.msra.mxu0 0.0
        %1657 = vmatprep.subr.mxu0 0.0
        %1658 = vmatpush1.msra.mxu0 0.0
        %1659 = vmatprep.subr.mxu0 0.0
        %1660 = vmatpush1.msra.mxu0 0.0
        %1661 = vmatprep.subr.mxu0 0.0
        %1662 = vmatpush1.msra.mxu0 0.0
        %1663 = vmatprep.subr.mxu0 0.0
        %1664 = vmatpush1.msra.mxu0 0.0
        %1665 = vmatprep.subr.mxu0 0.0
        %1666 = vmatpush1.msra.mxu0 0.0
        %1667 = vmatprep.subr.mxu0 0.0
        %1668 = vmatpush1.msra.mxu0 0.0
        %1669 = vmatprep.subr.mxu0 0.0
        %1670 = vmatpush1.msra.mxu0 0.0
        %1671 = vmatprep.subr.mxu0 0.0
        %1672 = vmatpush1.msra.mxu0 0.0
        %1673 = vmatprep.subr.mxu0 0.0
        %1674 = vmatpush1.msra.mxu0 0.0
        %1675 = vmatprep.mubr.f32.mxu0 0.0
        %1676 = vmatmul.mubr.f32.gmra.mrb[0].mxu0 %v1580
        %v1677 = vpop.f32.mrb[0].mxu0
        %v1678 = vadd.f32 %v1609, %v1677
        %v1679 = vpop.f32.mrb[0].mxu0
        %1680 = vmatprep.mubr.f32.mxu0 0.0
        %1681 = vmatmul.mubr.f32.gmra.mrb[0].mxu0 %v1581
        %v1682 = vpop.f32.mrb[0].mxu0
        %v1683 = vadd.f32 %v1609, %v1682
        %v1684 = vpop.f32.mrb[0].mxu0
        %1685 = vmatprep.mubr.f32.mxu0 0.0
        %1686 = vmatmul.mubr.f32.gmra.mrb[0].mxu0 %v1582
        %v1687 = vpop.f32.mrb[0].mxu0
        %v1688 = vadd.f32 %v1609, %v1687
        %v1689 = vpop.f32.mrb[0].mxu0
        %1690 = vmatprep.mubr.f32.mxu0 0.0
        %1691 = vmatmul.mubr.f32.gmra.mrb[0].mxu0 %v1583
        %v1692 = vpop.f32.mrb[0].mxu0
        %v1693 = vadd.f32 %v1609, %v1692
        %v1694 = vpop.f32.mrb[0].mxu0
        %1695 = vmatprep.mubr.f32.mxu0 0.0
        %1696 = vmatmul.mubr.f32.gmra.mrb[0].mxu0 %v1584
        %v1697 = vpop.f32.mrb[0].mxu0
        %v1698 = vadd.f32 %v1609, %v1697
        %v1699 = vpop.f32.mrb[0].mxu0
        %1700 = vmatprep.mubr.f32.mxu0 0.0
        %1701 = vmatmul.mubr.f32.gmra.mrb[0].mxu0 %v1585
        %v1702 = vpop.f32.mrb[0].mxu0
        %v1703 = vadd.f32 %v1609, %v1702
        %v1704 = vpop.f32.mrb[0].mxu0
        %1705 = vmatprep.mubr.f32.mxu0 0.0
        %1706 = vmatmul.mubr.f32.gmra.mrb[0].mxu0 %v1586
        %v1707 = vpop.f32.mrb[0].mxu0
        %v1708 = vadd.f32 %v1609, %v1707
        %v1709 = vpop.f32.mrb[0].mxu0
        %1710 = vmatprep.mubr.f32.mxu0 0.0
        %1711 = vmatmul.mubr.f32.gmra.mrb[0].mxu0 %v1587
        %v1712 = vpop.f32.mrb[0].mxu0
        %v1713 = vadd.f32 %v1609, %v1712
        %v1714 = vpop.f32.mrb[0].mxu0
        %1715 = vdwg.mxu0
        %v1716 = vadd.f32 %v1233, %v1678
        %v1717 = vadd.f32 %v1234, %v1683
        %v1718 = vadd.f32 %v1235, %v1688
        %v1719 = vadd.f32 %v1236, %v1693
        %v1720 = vadd.f32 %v1237, %v1698
        %v1721 = vadd.f32 %v1238, %v1703
        %v1722 = vadd.f32 %v1239, %v1708
        %v1723 = vadd.f32 %v1240, %v1713
        %1724 = vst.msk [vmem:[%s704] sm:$0xff] %vm760, %v1716
        %1725 = vst.msk [vmem:[%s704 + $0x8] sm:$0xff] %vm760, %v1717
        %1726 = vst.msk [vmem:[%s704 + $0x10] sm:$0xff] %vm760, %v1718
        %1727 = vst.msk [vmem:[%s704 + $0x18] sm:$0xff] %vm760, %v1719
        %1728 = vst.msk [vmem:[%s704 + $0x20] sm:$0xff] %vm760, %v1720
        %1729 = vst.msk [vmem:[%s704 + $0x28] sm:$0xff] %vm760, %v1721
        %1730 = vst.msk [vmem:[%s704 + $0x30] sm:$0xff] %vm760, %v1722
        %1731 = vst.msk [vmem:[%s704 + $0x38] sm:$0xff] %vm760, %v1723
        %s1732 = sand.u32 %s331, 1
        %s1733 = scalar_lea.sflag [#allocation4], %s1732
        %s1734 = sand.u32 %s331, 1
        %s1735 = smul.addr %s1734, 64
        %s1736 = scalar_lea.vmem [#allocation22], %s1735
        // Predicated region
        $region117: #{_lambda_.9} parent=67 // pred_check
          %p1737 = pneg %p341
        $region118: #{_lambda_.9} parent=67 // pred_check_branch
          %1739 = sbr.rel (%p1737) target = $region120
        $region119: #{_lambda_.9} parent=67 // pred_region
          %s1740 = smul.u32 8, %s41
          %s1742 = ssub.s32 1024, 1024
          %1743 = vsyncadd %s1733, %s1742
          %s1744 = smul.addr %s1740, 128
          %s1745 = scalar_lea.hbm %s12, %s1744
          %s1746 = sshll.u32 %s1736, 4
          %s1747 = int_to_ptr.vmem [resolvable:$true] %s1746
          %1752 = dma.vmem_to_hbm [thread:$0]  %s1747, 1024, %s1745, %s1733, 128, 128, 8
        $region120: #{_lambda_.9} parent=67 // pred_fallthru
          _
      $region68: #{_lambda_.9} parent=5 // pred_fallthru
        _
      %p1753 = scmp.le.s32.totalorder 2, %s36
      // Predicated region
      $region121: #{_lambda_.9} parent=5 // pred_check
        %p1754 = pneg %p1753
      $region122: #{_lambda_.9} parent=5 // pred_check_branch
        %1756 = sbr.rel (%p1754) target = $region124
      $region123: #{_lambda_.9} parent=5 // pred_region
        %s1757 = ssub.s32 %s36, 2
        // Predicated region
        $region125: #{_lambda_.9} parent=123 // pred_check
          %p1758 = pneg %p347
        $region126: #{_lambda_.9} parent=123 // pred_check_branch
          %1760 = sbr.rel (%p1758) target = $region128
        $region127: #{_lambda_.9} parent=123 // pred_region
          %s1761 = sand.u32 %s332, 1
          %s1762 = scalar_lea.sflag [#allocation4], %s1761
          %s1763 = sand.u32 %s332, 1
          %s1764 = smul.addr %s1763, 64
          %s1765 = scalar_lea.vmem [#allocation22], %s1764
          %1766 = dma.done %s1762, 1024
        $region128: #{_lambda_.9} parent=123 // pred_fallthru
          _
      $region124: #{_lambda_.9} parent=5 // pred_fallthru
        _
    $region6: #{_lambda_.9} parent=1 // loop_footer
      %s40 = sadd.s32 1, %s36
    $region7: #{_lambda_.9} parent=1 // loop_footer_branch
      %35 = sbr.rel target = $region3
    $region8: #{_lambda_.9} parent=1 // loop_exit
      _
    %1767 = vsyncpa [#allocation3], 1
    %s1768 = scalar_lea.sflag [#allocation3], 1
    %1769 = vsyncpa %s1768, 1
    %1770 = vsyncpa [#allocation6], 1
    %s1771 = scalar_lea.sflag [#allocation6], 1
    %1772 = vsyncpa %s1771, 1
    %1773 = vsyncpa [#allocation9], 1
    %s1774 = scalar_lea.sflag [#allocation9], 1
    %1775 = vsyncpa %s1774, 1
    %1776 = vsyncpa [#allocation12], 1
    %s1777 = scalar_lea.sflag [#allocation12], 1
    %1778 = vsyncpa %s1777, 1
    %1779 = vsyncpa [#allocation15], 1
    %1780 = vsyncpa [#allocation18], 1
    %1781 = vsyncpa [#allocation21], 1
    %1782 = vsyncpa [#allocation4], 1
    %s1783 = scalar_lea.sflag [#allocation4], 1
    %1784 = vsyncpa %s1783, 1

// kernel: _lambda_.7
$region0: #{_lambda_.7}
  #allocation0 [shape = 'u32[]', space=smem, size = 0x4, offset = 0x4, fixed_abs, tag = 'smem constant byte address 0x4 - core index']
  #allocation1 [shape = 'u32[144,128]{1,0:T(1,128)}', space=vmem, size = 0x12000, scoped, tag = 'internal scratch']
  #allocation2 [shape = 'f32[64,32]{1,0:T(8,128)}', space=vmem, size = 0x8000, scoped, tag = 'scratch operand']
  %s0 = inlined_call_operand.hbm [shape: f32[8,16,32], index: 0, kind: input, shape index: {}]
  %s1 = inlined_call_operand.hbm [shape: f32[4,32,8], index: 1, kind: input, shape index: {}]
  %s2 = inlined_call_operand.hbm [shape: f32[4,32,8], index: 2, kind: input, shape index: {}]
  %s3 = inlined_call_operand.hbm [shape: f32[4,32,8], index: 3, kind: input, shape index: {}]
  %s4 = inlined_call_operand.hbm [shape: f32[4,1,8], index: 4, kind: input, shape index: {}, may-alias: {4,5,6}]
  %s5 = inlined_call_operand.hbm [shape: f32[4,1,8], index: 5, kind: input, shape index: {}, may-alias: {4,5,6}]
  %s6 = inlined_call_operand.hbm [shape: f32[4,1,8], index: 6, kind: input, shape index: {}, may-alias: {4,5,6}]
  %s7 = inlined_call_operand.hbm [shape: f32[4,8,32], index: 7, kind: input, shape index: {}]
  %s8 = inlined_call_operand.hbm [shape: f32[1,32], index: 8, kind: input, shape index: {}]
  %s9 = inlined_call_operand.hbm [shape: f32[8,16,32], index: 9, kind: output, shape index: {}]
  %s10 = sld [smem:[#allocation0]]
  $region113: #{_lambda_.7} parent=0
    _
  %s12 = ssub.s32 1, %s10
  %s13 = scalar_select 0, %s12, %s10
  $region1: #{_lambda_.7} parent=0
    #allocation3 [shape = 'u8[65536]{0}', space=vmem, size = 0x10000, scoped, tag = 'input window, operand 0']
    #allocation4 [shape = 's32[2]{0}', space=sflag, size = 0x8, scoped, tag = 'scoped memory for _lambda_.7']
    #allocation5 [shape = 's32[2]{0}', space=sflag, size = 0x8, scoped, tag = 'scoped memory for _lambda_.7']
    #allocation6 [shape = 'u8[32768]{0}', space=vmem, size = 0x8000, scoped, tag = 'input window, operand 1']
    #allocation7 [shape = 's32[2]{0}', space=sflag, size = 0x8, scoped, tag = 'scoped memory for _lambda_.7']
    #allocation8 [shape = 'u8[32768]{0}', space=vmem, size = 0x8000, scoped, tag = 'input window, operand 2']
    #allocation9 [shape = 'u8[32768]{0}', space=vmem, size = 0x8000, scoped, tag = 'input window, operand 3']
    #allocation10 [shape = 's32[2]{0}', space=sflag, size = 0x8, scoped, tag = 'scoped memory for _lambda_.7']
    #allocation11 [shape = 'u8[1024]{0}', space=vmem, size = 0x400, scoped, tag = 'input window, operand 4']
    #allocation12 [shape = 'u8[1024]{0}', space=vmem, size = 0x400, scoped, tag = 'input window, operand 5']
    #allocation13 [shape = 's32[2]{0}', space=sflag, size = 0x8, scoped, tag = 'scoped memory for _lambda_.7']
    #allocation14 [shape = 'u8[1024]{0}', space=vmem, size = 0x400, scoped, tag = 'input window, operand 6']
    #allocation15 [shape = 'u8[8192]{0}', space=vmem, size = 0x2000, scoped, tag = 'input window, operand 7']
    #allocation16 [shape = 's32[2]{0}', space=sflag, size = 0x8, scoped, tag = 'scoped memory for _lambda_.7']
    #allocation17 [shape = 'u8[512]{0}', space=vmem, size = 0x400, scoped, tag = 'input window, operand 8, single buffered']
    #allocation18 [shape = 'u8[65536]{0}', space=vmem, size = 0x10000, scoped, tag = 'output window, operand 0']
    %14 = vsyncpa [#allocation4], 0
    %s15 = scalar_lea.sflag [#allocation4], 1
    %16 = vsyncpa %s15, 0
    %17 = vsyncpa [#allocation7], 0
    %s18 = scalar_lea.sflag [#allocation7], 1
    %19 = vsyncpa %s18, 0
    %20 = vsyncpa [#allocation10], 0
    %s21 = scalar_lea.sflag [#allocation10], 1
    %22 = vsyncpa %s21, 0
    %23 = vsyncpa [#allocation13], 0
    %s24 = scalar_lea.sflag [#allocation13], 1
    %25 = vsyncpa %s24, 0
    %26 = vsyncpa [#allocation16], 0
    %s27 = scalar_lea.sflag [#allocation16], 1
    %28 = vsyncpa %s27, 0
    %29 = vsyncpa [#allocation5], 0
    %s30 = scalar_lea.sflag [#allocation5], 1
    %31 = vsyncpa %s30, 0
    loop: start=0, step=1, limit=10
    $region2: #{_lambda_.7} parent=1 // loop_pre_header
      _
    $region3: #{_lambda_.7} parent=1 // loop_header
      %s33 = sphi 0, %s37
      %p34 = scmp.ge.s32.totalorder %s33, 10
      %s40 = sphi 0, %s52
      %s41 = sphi 0, %s48
      %s42 = sphi 0, %s40
      %s43 = sphi 0, %s41
      %s44 = sphi 0, %s42
      %s45 = sphi 0, %s43
      %s55 = sphi 0, %s57
      %s58 = sphi 0, %s55
      %s59 = sphi 0, %s58
      %s75 = sphi 0, %s59
      %s81 = sphi 0, %s83
      %s84 = sphi 0, %s81
      %s85 = sphi 0, %s84
      %s101 = sphi 0, %s85
      %s107 = sphi 0, %s109
      %s110 = sphi 0, %s107
      %s111 = sphi 0, %s110
      %s127 = sphi 0, %s111
      %s133 = sphi 0, %s135
      %s136 = sphi 0, %s133
      %s137 = sphi 0, %s136
      %s153 = sphi 0, %s137
      %s159 = sphi 0, %s161
      %s162 = sphi 0, %s159
      %s163 = sphi 0, %s162
      %s179 = sphi 0, %s163
      %s185 = sphi 0, %s187
      %s188 = sphi 0, %s185
      %s189 = sphi 0, %s188
      %s205 = sphi 0, %s189
      %s211 = sphi 0, %s213
      %s214 = sphi 0, %s211
      %s215 = sphi 0, %s214
      %s231 = sphi 0, %s215
      %s237 = sphi 0, %s239
      %s240 = sphi 0, %s237
      %s241 = sphi 0, %s240
      %s257 = sphi 0, %s241
      %s261 = sphi 0, %s261
      %s263 = sphi 0, %s261
      %s264 = sphi 0, %s263
      %s278 = sphi 0, %s264
      %s284 = sphi 0, %s286
      %s287 = sphi 0, %s284
      %s288 = sphi 0, %s287
      %s304 = sphi 0, %s288
    $region4: #{_lambda_.7} parent=1 // loop_header_branch
      %36 = sbr.rel (%p34) target = $region8
    $region5: #{_lambda_.7} parent=1 // loop_body
      %s38 = ssub.s32 %s33, 1
      %s39 = ssub.s32 %s33, 2
      %s46 = sadd.s32 1, %s41
      %p47 = scmp.ge.s32.totalorder %s46, 4
      %s48 = scalar_select %p47, 0, %s46
      %s49 = sadd.s32 1, %s40
      %s50 = scalar_select %p47, %s49, %s40
      %p51 = scmp.ge.s32.totalorder %s50, 2
      %s52 = scalar_select %p51, 0, %s50
      %s53 = ssub.s32 %s40, %s52
      %p54 = scmp.eq.s32.totalorder %s53, 0
      %s56 = sadd.s32 %s55, 1
      %s57 = scalar_select %p54, %s55, %s56
      %p60 = pneg %p54
      %p61 = scmp.eq.s32.totalorder %s33, 7
      %p62 = por %p60, %p61
      %p63 = scmp.ne.s32.totalorder %s55, %s58
      %p64 = scmp.eq.s32.totalorder %s33, 0
      %p65 = por %p63, %p64
      %p66 = scmp.ne.s32.totalorder %s55, %s58
      %p67 = scmp.eq.s32.totalorder %s38, 7
      %p68 = por %p66, %p67
      %p69 = scmp.ne.s32.totalorder %s58, %s59
      %p70 = scmp.eq.s32.totalorder %s38, 0
      %p71 = por %p69, %p70
      %p72 = scmp.ne.s32.totalorder %s58, %s59
      %p73 = scmp.eq.s32.totalorder %s39, 7
      %p74 = por %p72, %p73
      %p76 = scmp.ne.s32.totalorder %s59, %s75
      %p77 = scmp.eq.s32.totalorder %s39, 0
      %p78 = por %p76, %p77
      %s79 = ssub.s32 %s41, %s48
      %p80 = scmp.eq.s32.totalorder %s79, 0
      %s82 = sadd.s32 %s81, 1
      %s83 = scalar_select %p80, %s81, %s82
      %p86 = pneg %p80
      %p87 = scmp.eq.s32.totalorder %s33, 7
      %p88 = por %p86, %p87
      %p89 = scmp.ne.s32.totalorder %s81, %s84
      %p90 = scmp.eq.s32.totalorder %s33, 0
      %p91 = por %p89, %p90
      %p92 = scmp.ne.s32.totalorder %s81, %s84
      %p93 = scmp.eq.s32.totalorder %s38, 7
      %p94 = por %p92, %p93
      %p95 = scmp.ne.s32.totalorder %s84, %s85
      %p96 = scmp.eq.s32.totalorder %s38, 0
      %p97 = por %p95, %p96
      %p98 = scmp.ne.s32.totalorder %s84, %s85
      %p99 = scmp.eq.s32.totalorder %s39, 7
      %p100 = por %p98, %p99
      %p102 = scmp.ne.s32.totalorder %s85, %s101
      %p103 = scmp.eq.s32.totalorder %s39, 0
      %p104 = por %p102, %p103
      %s105 = ssub.s32 %s41, %s48
      %p106 = scmp.eq.s32.totalorder %s105, 0
      %s108 = sadd.s32 %s107, 1
      %s109 = scalar_select %p106, %s107, %s108
      %p112 = pneg %p106
      %p113 = scmp.eq.s32.totalorder %s33, 7
      %p114 = por %p112, %p113
      %p115 = scmp.ne.s32.totalorder %s107, %s110
      %p116 = scmp.eq.s32.totalorder %s33, 0
      %p117 = por %p115, %p116
      %p118 = scmp.ne.s32.totalorder %s107, %s110
      %p119 = scmp.eq.s32.totalorder %s38, 7
      %p120 = por %p118, %p119
      %p121 = scmp.ne.s32.totalorder %s110, %s111
      %p122 = scmp.eq.s32.totalorder %s38, 0
      %p123 = por %p121, %p122
      %p124 = scmp.ne.s32.totalorder %s110, %s111
      %p125 = scmp.eq.s32.totalorder %s39, 7
      %p126 = por %p124, %p125
      %p128 = scmp.ne.s32.totalorder %s111, %s127
      %p129 = scmp.eq.s32.totalorder %s39, 0
      %p130 = por %p128, %p129
      %s131 = ssub.s32 %s41, %s48
      %p132 = scmp.eq.s32.totalorder %s131, 0
      %s134 = sadd.s32 %s133, 1
      %s135 = scalar_select %p132, %s133, %s134
      %p138 = pneg %p132
      %p139 = scmp.eq.s32.totalorder %s33, 7
      %p140 = por %p138, %p139
      %p141 = scmp.ne.s32.totalorder %s133, %s136
      %p142 = scmp.eq.s32.totalorder %s33, 0
      %p143 = por %p141, %p142
      %p144 = scmp.ne.s32.totalorder %s133, %s136
      %p145 = scmp.eq.s32.totalorder %s38, 7
      %p146 = por %p144, %p145
      %p147 = scmp.ne.s32.totalorder %s136, %s137
      %p148 = scmp.eq.s32.totalorder %s38, 0
      %p149 = por %p147, %p148
      %p150 = scmp.ne.s32.totalorder %s136, %s137
      %p151 = scmp.eq.s32.totalorder %s39, 7
      %p152 = por %p150, %p151
      %p154 = scmp.ne.s32.totalorder %s137, %s153
      %p155 = scmp.eq.s32.totalorder %s39, 0
      %p156 = por %p154, %p155
      %s157 = ssub.s32 %s41, %s48
      %p158 = scmp.eq.s32.totalorder %s157, 0
      %s160 = sadd.s32 %s159, 1
      %s161 = scalar_select %p158, %s159, %s160
      %p164 = pneg %p158
      %p165 = scmp.eq.s32.totalorder %s33, 7
      %p166 = por %p164, %p165
      %p167 = scmp.ne.s32.totalorder %s159, %s162
      %p168 = scmp.eq.s32.totalorder %s33, 0
      %p169 = por %p167, %p168
      %p170 = scmp.ne.s32.totalorder %s159, %s162
      %p171 = scmp.eq.s32.totalorder %s38, 7
      %p172 = por %p170, %p171
      %p173 = scmp.ne.s32.totalorder %s162, %s163
      %p174 = scmp.eq.s32.totalorder %s38, 0
      %p175 = por %p173, %p174
      %p176 = scmp.ne.s32.totalorder %s162, %s163
      %p177 = scmp.eq.s32.totalorder %s39, 7
      %p178 = por %p176, %p177
      %p180 = scmp.ne.s32.totalorder %s163, %s179
      %p181 = scmp.eq.s32.totalorder %s39, 0
      %p182 = por %p180, %p181
      %s183 = ssub.s32 %s41, %s48
      %p184 = scmp.eq.s32.totalorder %s183, 0
      %s186 = sadd.s32 %s185, 1
      %s187 = scalar_select %p184, %s185, %s186
      %p190 = pneg %p184
      %p191 = scmp.eq.s32.totalorder %s33, 7
      %p192 = por %p190, %p191
      %p193 = scmp.ne.s32.totalorder %s185, %s188
      %p194 = scmp.eq.s32.totalorder %s33, 0
      %p195 = por %p193, %p194
      %p196 = scmp.ne.s32.totalorder %s185, %s188
      %p197 = scmp.eq.s32.totalorder %s38, 7
      %p198 = por %p196, %p197
      %p199 = scmp.ne.s32.totalorder %s188, %s189
      %p200 = scmp.eq.s32.totalorder %s38, 0
      %p201 = por %p199, %p200
      %p202 = scmp.ne.s32.totalorder %s188, %s189
      %p203 = scmp.eq.s32.totalorder %s39, 7
      %p204 = por %p202, %p203
      %p206 = scmp.ne.s32.totalorder %s189, %s205
      %p207 = scmp.eq.s32.totalorder %s39, 0
      %p208 = por %p206, %p207
      %s209 = ssub.s32 %s41, %s48
      %p210 = scmp.eq.s32.totalorder %s209, 0
      %s212 = sadd.s32 %s211, 1
      %s213 = scalar_select %p210, %s211, %s212
      %p216 = pneg %p210
      %p217 = scmp.eq.s32.totalorder %s33, 7
      %p218 = por %p216, %p217
      %p219 = scmp.ne.s32.totalorder %s211, %s214
      %p220 = scmp.eq.s32.totalorder %s33, 0
      %p221 = por %p219, %p220
      %p222 = scmp.ne.s32.totalorder %s211, %s214
      %p223 = scmp.eq.s32.totalorder %s38, 7
      %p224 = por %p222, %p223
      %p225 = scmp.ne.s32.totalorder %s214, %s215
      %p226 = scmp.eq.s32.totalorder %s38, 0
      %p227 = por %p225, %p226
      %p228 = scmp.ne.s32.totalorder %s214, %s215
      %p229 = scmp.eq.s32.totalorder %s39, 7
      %p230 = por %p228, %p229
      %p232 = scmp.ne.s32.totalorder %s215, %s231
      %p233 = scmp.eq.s32.totalorder %s39, 0
      %p234 = por %p232, %p233
      %s235 = ssub.s32 %s41, %s48
      %p236 = scmp.eq.s32.totalorder %s235, 0
      %s238 = sadd.s32 %s237, 1
      %s239 = scalar_select %p236, %s237, %s238
      %p242 = pneg %p236
      %p243 = scmp.eq.s32.totalorder %s33, 7
      %p244 = por %p242, %p243
      %p245 = scmp.ne.s32.totalorder %s237, %s240
      %p246 = scmp.eq.s32.totalorder %s33, 0
      %p247 = por %p245, %p246
      %p248 = scmp.ne.s32.totalorder %s237, %s240
      %p249 = scmp.eq.s32.totalorder %s38, 7
      %p250 = por %p248, %p249
      %p251 = scmp.ne.s32.totalorder %s240, %s241
      %p252 = scmp.eq.s32.totalorder %s38, 0
      %p253 = por %p251, %p252
      %p254 = scmp.ne.s32.totalorder %s240, %s241
      %p255 = scmp.eq.s32.totalorder %s39, 7
      %p256 = por %p254, %p255
      %p258 = scmp.ne.s32.totalorder %s241, %s257
      %p259 = scmp.eq.s32.totalorder %s39, 0
      %p260 = por %p258, %p259
      %s262 = sadd.s32 %s261, 1
      %p265 = scmp.eq.s32.totalorder %s33, 7
      %p266 = scmp.ne.s32.totalorder %s261, %s263
      %p267 = scmp.eq.s32.totalorder %s33, 0
      %p268 = por %p266, %p267
      %p269 = scmp.ne.s32.totalorder %s261, %s263
      %p270 = scmp.eq.s32.totalorder %s38, 7
      %p271 = por %p269, %p270
      %p272 = scmp.ne.s32.totalorder %s263, %s264
      %p273 = scmp.eq.s32.totalorder %s38, 0
      %p274 = por %p272, %p273
      %p275 = scmp.ne.s32.totalorder %s263, %s264
      %p276 = scmp.eq.s32.totalorder %s39, 7
      %p277 = por %p275, %p276
      %p279 = scmp.ne.s32.totalorder %s264, %s278
      %p280 = scmp.eq.s32.totalorder %s39, 0
      %p281 = por %p279, %p280
      %s282 = ssub.s32 %s40, %s52
      %p283 = scmp.eq.s32.totalorder %s282, 0
      %s285 = sadd.s32 %s284, 1
      %s286 = scalar_select %p283, %s284, %s285
      %p289 = pneg %p283
      %p290 = scmp.eq.s32.totalorder %s33, 7
      %p291 = por %p289, %p290
      %p292 = scmp.ne.s32.totalorder %s284, %s287
      %p293 = scmp.eq.s32.totalorder %s33, 0
      %p294 = por %p292, %p293
      %p295 = scmp.ne.s32.totalorder %s284, %s287
      %p296 = scmp.eq.s32.totalorder %s38, 7
      %p297 = por %p295, %p296
      %p298 = scmp.ne.s32.totalorder %s287, %s288
      %p299 = scmp.eq.s32.totalorder %s38, 0
      %p300 = por %p298, %p299
      %p301 = scmp.ne.s32.totalorder %s287, %s288
      %p302 = scmp.eq.s32.totalorder %s39, 7
      %p303 = por %p301, %p302
      %p305 = scmp.ne.s32.totalorder %s288, %s304
      %p306 = scmp.eq.s32.totalorder %s39, 0
      %p307 = por %p305, %p306
      %p308 = scmp.le.s32.totalorder 1, %s33
      %p309 = scmp.lt.s32.totalorder %s33, 9
      %p310 = pnand %p308, %p309
      %p311 = pneg %p310
      // Predicated region
      $region9: #{_lambda_.7} parent=5 // pred_check
        _
      $region10: #{_lambda_.7} parent=5 // pred_check_branch
        %313 = sbr.rel (%p310) target = $region12
      $region11: #{_lambda_.7} parent=5 // pred_region
        %s314 = ssub.s32 %s33, 1
        // Predicated region
        $region13: #{_lambda_.7} parent=11 // pred_check
          %p315 = pneg %p274
        $region14: #{_lambda_.7} parent=11 // pred_check_branch
          %317 = sbr.rel (%p315) target = $region16
        $region15: #{_lambda_.7} parent=11 // pred_region
          %s319 = ssub.s32 16, 16
          %320 = vsyncadd [#allocation16], %s319
          %s322 = sshll.u32 [#allocation17], 4
          %s323 = int_to_ptr.vmem [resolvable:$true] %s322
          %325 = dma.hbm_to_vmem [thread:$0]  %s8, 16, %s323, [#allocation16]
        $region16: #{_lambda_.7} parent=11 // pred_fallthru
          _
      $region12: #{_lambda_.7} parent=5 // pred_fallthru
        _
      %p326 = scmp.lt.s32.totalorder %s33, 8
      // Predicated region
      $region17: #{_lambda_.7} parent=5 // pred_check
        %p327 = pneg %p326
      $region18: #{_lambda_.7} parent=5 // pred_check_branch
        %329 = sbr.rel (%p327) target = $region20
      $region19: #{_lambda_.7} parent=5 // pred_region
        // Predicated region
        $region21: #{_lambda_.7} parent=19 // pred_check
          %p330 = pneg %p65
        $region22: #{_lambda_.7} parent=19 // pred_check_branch
          %332 = sbr.rel (%p330) target = $region24
        $region23: #{_lambda_.7} parent=19 // pred_region
          %s333 = sand.u32 %s55, 1
          %s334 = scalar_lea.sflag [#allocation4], %s333
          %s335 = sand.u32 %s55, 1
          %s336 = smul.addr %s335, 64
          %s337 = scalar_lea.vmem [#allocation3], %s336
          %s338 = smul.u32 4, %s40
          %s340 = ssub.s32 1024, 1024
          %341 = vsyncadd %s334, %s340
          %s342 = smul.addr %s338, 2
          %s343 = smul.addr %s342, 128
          %s344 = scalar_lea.hbm %s0, %s343
          %s345 = sshll.u32 %s337, 4
          %s346 = int_to_ptr.vmem [resolvable:$true] %s345
          %351 = dma.hbm_to_vmem [thread:$0]  %s344, 1024, %s346, %s334, 128, 128, 8
        $region24: #{_lambda_.7} parent=19 // pred_fallthru
          _
        // Predicated region
        $region25: #{_lambda_.7} parent=19 // pred_check
          %p352 = pneg %p91
        $region26: #{_lambda_.7} parent=19 // pred_check_branch
          %354 = sbr.rel (%p352) target = $region28
        $region27: #{_lambda_.7} parent=19 // pred_region
          %s355 = sand.u32 %s33, 1
          %s356 = scalar_lea.sflag [#allocation7], %s355
          %s357 = sand.u32 %s81, 1
          %s358 = smul.addr %s357, 32
          %s359 = scalar_lea.vmem [#allocation6], %s358
          %s361 = ssub.s32 512, 512
          %362 = vsyncadd %s356, %s361
          %s363 = smul.addr %s41, 4
          %s364 = smul.addr %s363, 128
          %s365 = scalar_lea.hbm %s1, %s364
          %s366 = sshll.u32 %s359, 4
          %s367 = int_to_ptr.vmem [resolvable:$true] %s366
          %372 = dma.hbm_to_vmem [thread:$0]  %s365, 512, %s367, %s356, 128, 128, 8
        $region28: #{_lambda_.7} parent=19 // pred_fallthru
          _
        // Predicated region
        $region29: #{_lambda_.7} parent=19 // pred_check
          %p373 = pneg %p117
        $region30: #{_lambda_.7} parent=19 // pred_check_branch
          %375 = sbr.rel (%p373) target = $region32
        $region31: #{_lambda_.7} parent=19 // pred_region
          %s376 = sand.u32 %s33, 1
          %s377 = scalar_lea.sflag [#allocation7], %s376
          %s378 = sand.u32 %s107, 1
          %s379 = smul.addr %s378, 32
          %s380 = scalar_lea.vmem [#allocation8], %s379
          %s382 = ssub.s32 512, 512
          %383 = vsyncadd %s377, %s382
          %s384 = smul.addr %s41, 4
          %s385 = smul.addr %s384, 128
          %s386 = scalar_lea.hbm %s2, %s385
          %s387 = sshll.u32 %s380, 4
          %s388 = int_to_ptr.vmem [resolvable:$true] %s387
          %393 = dma.hbm_to_vmem [thread:$0]  %s386, 512, %s388, %s377, 128, 128, 8
        $region32: #{_lambda_.7} parent=19 // pred_fallthru
          _
        // Predicated region
        $region33: #{_lambda_.7} parent=19 // pred_check
          %p394 = pneg %p143
        $region34: #{_lambda_.7} parent=19 // pred_check_branch
          %396 = sbr.rel (%p394) target = $region36
        $region35: #{_lambda_.7} parent=19 // pred_region
          %s397 = sand.u32 %s33, 1
          %s398 = scalar_lea.sflag [#allocation10], %s397
          %s399 = sand.u32 %s133, 1
          %s400 = smul.addr %s399, 32
          %s401 = scalar_lea.vmem [#allocation9], %s400
          %s403 = ssub.s32 512, 512
          %404 = vsyncadd %s398, %s403
          %s405 = smul.addr %s41, 4
          %s406 = smul.addr %s405, 128
          %s407 = scalar_lea.hbm %s3, %s406
          %s408 = sshll.u32 %s401, 4
          %s409 = int_to_ptr.vmem [resolvable:$true] %s408
          %414 = dma.hbm_to_vmem [thread:$0]  %s407, 512, %s409, %s398, 128, 128, 8
        $region36: #{_lambda_.7} parent=19 // pred_fallthru
          _
        // Predicated region
        $region37: #{_lambda_.7} parent=19 // pred_check
          %p415 = pneg %p169
        $region38: #{_lambda_.7} parent=19 // pred_check_branch
          %417 = sbr.rel (%p415) target = $region40
        $region39: #{_lambda_.7} parent=19 // pred_region
          %s418 = sand.u32 %s33, 1
          %s419 = scalar_lea.sflag [#allocation10], %s418
          %s420 = sand.u32 %s159, 1
          %s421 = scalar_lea.vmem [#allocation11], %s420
          %s423 = ssub.s32 16, 16
          %424 = vsyncadd %s419, %s423
          %s425 = smul.addr %s41, 16
          %s426 = scalar_lea.hbm %s4, %s425
          %s428 = sshll.u32 %s421, 4
          %s429 = int_to_ptr.vmem [resolvable:$true] %s428
          %431 = dma.hbm_to_vmem [thread:$0]  %s426, 16, %s429, %s419
        $region40: #{_lambda_.7} parent=19 // pred_fallthru
          _
        // Predicated region
        $region41: #{_lambda_.7} parent=19 // pred_check
          %p432 = pneg %p195
        $region42: #{_lambda_.7} parent=19 // pred_check_branch
          %434 = sbr.rel (%p432) target = $region44
        $region43: #{_lambda_.7} parent=19 // pred_region
          %s435 = sand.u32 %s33, 1
          %s436 = scalar_lea.sflag [#allocation13], %s435
          %s437 = sand.u32 %s185, 1
          %s438 = scalar_lea.vmem [#allocation12], %s437
          %s440 = ssub.s32 16, 16
          %441 = vsyncadd %s436, %s440
          %s442 = smul.addr %s41, 16
          %s443 = scalar_lea.hbm %s5, %s442
          %s445 = sshll.u32 %s438, 4
          %s446 = int_to_ptr.vmem [resolvable:$true] %s445
          %448 = dma.hbm_to_vmem [thread:$0]  %s443, 16, %s446, %s436
        $region44: #{_lambda_.7} parent=19 // pred_fallthru
          _
        // Predicated region
        $region45: #{_lambda_.7} parent=19 // pred_check
          %p449 = pneg %p221
        $region46: #{_lambda_.7} parent=19 // pred_check_branch
          %451 = sbr.rel (%p449) target = $region48
        $region47: #{_lambda_.7} parent=19 // pred_region
          %s452 = sand.u32 %s33, 1
          %s453 = scalar_lea.sflag [#allocation13], %s452
          %s454 = sand.u32 %s211, 1
          %s455 = scalar_lea.vmem [#allocation14], %s454
          %s457 = ssub.s32 16, 16
          %458 = vsyncadd %s453, %s457
          %s459 = smul.addr %s41, 16
          %s460 = scalar_lea.hbm %s6, %s459
          %s462 = sshll.u32 %s455, 4
          %s463 = int_to_ptr.vmem [resolvable:$true] %s462
          %465 = dma.hbm_to_vmem [thread:$0]  %s460, 16, %s463, %s453
        $region48: #{_lambda_.7} parent=19 // pred_fallthru
          _
        // Predicated region
        $region49: #{_lambda_.7} parent=19 // pred_check
          %p466 = pneg %p247
        $region50: #{_lambda_.7} parent=19 // pred_check_branch
          %468 = sbr.rel (%p466) target = $region52
        $region51: #{_lambda_.7} parent=19 // pred_region
          %s469 = sand.u32 %s33, 1
          %s470 = scalar_lea.sflag [#allocation16], %s469
          %s471 = sand.u32 %s237, 1
          %s472 = smul.addr %s471, 8
          %s473 = scalar_lea.vmem [#allocation15], %s472
          %s475 = ssub.s32 128, 128
          %476 = vsyncadd %s470, %s475
          %s477 = smul.addr %s41, 128
          %s478 = scalar_lea.hbm %s7, %s477
          %s480 = sshll.u32 %s473, 4
          %s481 = int_to_ptr.vmem [resolvable:$true] %s480
          %483 = dma.hbm_to_vmem [thread:$0]  %s478, 128, %s481, %s470
        $region52: #{_lambda_.7} parent=19 // pred_fallthru
          _
      $region20: #{_lambda_.7} parent=5 // pred_fallthru
        _
      %p484 = scmp.le.s32.totalorder 1, %s33
      %p485 = scmp.lt.s32.totalorder %s33, 9
      %p486 = pnand %p484, %p485
      %p487 = pneg %p486
      // Predicated region
      $region53: #{_lambda_.7} parent=5 // pred_check
        _
      $region54: #{_lambda_.7} parent=5 // pred_check_branch
        %489 = sbr.rel (%p486) target = $region56
      $region55: #{_lambda_.7} parent=5 // pred_region
        %s490 = ssub.s32 %s33, 1
        %s491 = sand.u32 %s58, 1
        %s492 = scalar_lea.sflag [#allocation4], %s491
        %s493 = sand.u32 %s58, 1
        %s494 = smul.addr %s493, 64
        %s495 = scalar_lea.vmem [#allocation3], %s494
        // Predicated region
        $region57: #{_lambda_.7} parent=55 // pred_check
          %p496 = pneg %p71
        $region58: #{_lambda_.7} parent=55 // pred_check_branch
          %498 = sbr.rel (%p496) target = $region60
        $region59: #{_lambda_.7} parent=55 // pred_region
          %499 = dma.done %s492, 1024
        $region60: #{_lambda_.7} parent=55 // pred_fallthru
          _
        %s500 = sand.u32 %s38, 1
        %s501 = scalar_lea.sflag [#allocation7], %s500
        %s502 = sand.u32 %s84, 1
        %s503 = smul.addr %s502, 32
        %s504 = scalar_lea.vmem [#allocation6], %s503
        // Predicated region
        $region61: #{_lambda_.7} parent=55 // pred_check
          %p505 = pneg %p97
        $region62: #{_lambda_.7} parent=55 // pred_check_branch
          %507 = sbr.rel (%p505) target = $region64
        $region63: #{_lambda_.7} parent=55 // pred_region
          %508 = dma.done %s501, 512
        $region64: #{_lambda_.7} parent=55 // pred_fallthru
          _
        %s509 = sand.u32 %s38, 1
        %s510 = scalar_lea.sflag [#allocation7], %s509
        %s511 = sand.u32 %s110, 1
        %s512 = smul.addr %s511, 32
        %s513 = scalar_lea.vmem [#allocation8], %s512
        // Predicated region
        $region65: #{_lambda_.7} parent=55 // pred_check
          %p514 = pneg %p123
        $region66: #{_lambda_.7} parent=55 // pred_check_branch
          %516 = sbr.rel (%p514) target = $region68
        $region67: #{_lambda_.7} parent=55 // pred_region
          %517 = dma.done %s510, 512
        $region68: #{_lambda_.7} parent=55 // pred_fallthru
          _
        %s518 = sand.u32 %s38, 1
        %s519 = scalar_lea.sflag [#allocation10], %s518
        %s520 = sand.u32 %s136, 1
        %s521 = smul.addr %s520, 32
        %s522 = scalar_lea.vmem [#allocation9], %s521
        // Predicated region
        $region69: #{_lambda_.7} parent=55 // pred_check
          %p523 = pneg %p149
        $region70: #{_lambda_.7} parent=55 // pred_check_branch
          %525 = sbr.rel (%p523) target = $region72
        $region71: #{_lambda_.7} parent=55 // pred_region
          %526 = dma.done %s519, 512
        $region72: #{_lambda_.7} parent=55 // pred_fallthru
          _
        %s527 = sand.u32 %s38, 1
        %s528 = scalar_lea.sflag [#allocation10], %s527
        %s529 = sand.u32 %s162, 1
        %s530 = scalar_lea.vmem [#allocation11], %s529
        // Predicated region
        $region73: #{_lambda_.7} parent=55 // pred_check
          %p531 = pneg %p175
        $region74: #{_lambda_.7} parent=55 // pred_check_branch
          %533 = sbr.rel (%p531) target = $region76
        $region75: #{_lambda_.7} parent=55 // pred_region
          %534 = dma.done %s528, 16
        $region76: #{_lambda_.7} parent=55 // pred_fallthru
          _
        %s535 = sand.u32 %s38, 1
        %s536 = scalar_lea.sflag [#allocation13], %s535
        %s537 = sand.u32 %s188, 1
        %s538 = scalar_lea.vmem [#allocation12], %s537
        // Predicated region
        $region77: #{_lambda_.7} parent=55 // pred_check
          %p539 = pneg %p201
        $region78: #{_lambda_.7} parent=55 // pred_check_branch
          %541 = sbr.rel (%p539) target = $region80
        $region79: #{_lambda_.7} parent=55 // pred_region
          %542 = dma.done %s536, 16
        $region80: #{_lambda_.7} parent=55 // pred_fallthru
          _
        %s543 = sand.u32 %s38, 1
        %s544 = scalar_lea.sflag [#allocation13], %s543
        %s545 = sand.u32 %s214, 1
        %s546 = scalar_lea.vmem [#allocation14], %s545
        // Predicated region
        $region81: #{_lambda_.7} parent=55 // pred_check
          %p547 = pneg %p227
        $region82: #{_lambda_.7} parent=55 // pred_check_branch
          %549 = sbr.rel (%p547) target = $region84
        $region83: #{_lambda_.7} parent=55 // pred_region
          %550 = dma.done %s544, 16
        $region84: #{_lambda_.7} parent=55 // pred_fallthru
          _
        %s551 = sand.u32 %s38, 1
        %s552 = scalar_lea.sflag [#allocation16], %s551
        %s553 = sand.u32 %s240, 1
        %s554 = smul.addr %s553, 8
        %s555 = scalar_lea.vmem [#allocation15], %s554
        // Predicated region
        $region85: #{_lambda_.7} parent=55 // pred_check
          %p556 = pneg %p253
        $region86: #{_lambda_.7} parent=55 // pred_check_branch
          %558 = sbr.rel (%p556) target = $region88
        $region87: #{_lambda_.7} parent=55 // pred_region
          %559 = dma.done %s552, 128
        $region88: #{_lambda_.7} parent=55 // pred_fallthru
          _
        // Predicated region
        $region89: #{_lambda_.7} parent=55 // pred_check
          %p560 = pneg %p274
        $region90: #{_lambda_.7} parent=55 // pred_check_branch
          %562 = sbr.rel (%p560) target = $region92
        $region91: #{_lambda_.7} parent=55 // pred_region
          %563 = dma.done [#allocation16], 16
        $region92: #{_lambda_.7} parent=55 // pred_fallthru
          _
        %s564 = sand.u32 %s58, 1
        %s565 = scalar_lea.sflag [#allocation4], %s564
        %s566 = sand.u32 %s58, 1
        %s567 = smul.addr %s566, 64
        %s568 = scalar_lea.vmem [#allocation3], %s567
        %p569 = pneg %p71
        %p570 = pneg %p68
        %s571 = sand.u32 %s38, 1
        %s572 = scalar_lea.sflag [#allocation7], %s571
        %s573 = sand.u32 %s84, 1
        %s574 = smul.addr %s573, 32
        %s575 = scalar_lea.vmem [#allocation6], %s574
        %p576 = pneg %p97
        %p577 = pneg %p94
        %s578 = sand.u32 %s38, 1
        %s579 = scalar_lea.sflag [#allocation7], %s578
        %s580 = sand.u32 %s110, 1
        %s581 = smul.addr %s580, 32
        %s582 = scalar_lea.vmem [#allocation8], %s581
        %p583 = pneg %p123
        %p584 = pneg %p120
        %s585 = sand.u32 %s38, 1
        %s586 = scalar_lea.sflag [#allocation10], %s585
        %s587 = sand.u32 %s136, 1
        %s588 = smul.addr %s587, 32
        %s589 = scalar_lea.vmem [#allocation9], %s588
        %p590 = pneg %p149
        %p591 = pneg %p146
        %s592 = sand.u32 %s38, 1
        %s593 = scalar_lea.sflag [#allocation10], %s592
        %s594 = sand.u32 %s162, 1
        %s595 = scalar_lea.vmem [#allocation11], %s594
        %p596 = pneg %p175
        %p597 = pneg %p172
        %s598 = sand.u32 %s38, 1
        %s599 = scalar_lea.sflag [#allocation13], %s598
        %s600 = sand.u32 %s188, 1
        %s601 = scalar_lea.vmem [#allocation12], %s600
        %p602 = pneg %p201
        %p603 = pneg %p198
        %s604 = sand.u32 %s38, 1
        %s605 = scalar_lea.sflag [#allocation13], %s604
        %s606 = sand.u32 %s214, 1
        %s607 = scalar_lea.vmem [#allocation14], %s606
        %p608 = pneg %p227
        %p609 = pneg %p224
        %s610 = sand.u32 %s38, 1
        %s611 = scalar_lea.sflag [#allocation16], %s610
        %s612 = sand.u32 %s240, 1
        %s613 = smul.addr %s612, 8
        %s614 = scalar_lea.vmem [#allocation15], %s613
        %p615 = pneg %p253
        %p616 = pneg %p250
        %p617 = pneg %p274
        %p618 = pneg %p271
        %p619 = pneg %p300
        %p620 = pneg %p297
        %s621 = sand.u32 %s287, 1
        %s622 = scalar_lea.sflag [#allocation5], %s621
        %s623 = sand.u32 %s287, 1
        %s624 = smul.addr %s623, 64
        %s625 = scalar_lea.vmem [#allocation18], %s624
        %s626 = smul.u32 4, %s42
        %s627 = smul.u32 4, %s42
        %v628 = vld [vmem:[%s495] sm:$0xff]
        %v629 = vld [vmem:[%s495 + $0x8] sm:$0xff]
        %v630 = vld [vmem:[%s495 + $0x10] sm:$0xff]
        %v631 = vld [vmem:[%s495 + $0x18] sm:$0xff]
        %v632 = vld [vmem:[%s495 + $0x20] sm:$0xff]
        %v633 = vld [vmem:[%s495 + $0x28] sm:$0xff]
        %v634 = vld [vmem:[%s495 + $0x30] sm:$0xff]
        %v635 = vld [vmem:[%s495 + $0x38] sm:$0xff]
        %v636 = vld [vmem:[%s504] sm:$0xff]
        %v637 = vld [vmem:[%s504 + $0x8] sm:$0xff]
        %v638 = vld [vmem:[%s504 + $0x10] sm:$0xff]
        %v639 = vld [vmem:[%s504 + $0x18] sm:$0xff]
        %v640 = vld [vmem:[%s530] sm:$0x1]
        %v642 = vlaneseq
        %v643 = vshrl.u32 %v642, 7
        %v644 = vsub.s32 0, %v643
        %v645 = vrot.slane %v640, %v644
        %vm647 = vcmask 261120
        %v649 = vsel %vm647, %v628, 0
        %v652 = vsel %vm647, %v629, 0
        %v655 = vsel %vm647, %v630, 0
        %v658 = vsel %vm647, %v631, 0
        %v661 = vsel %vm647, %v632, 0
        %v664 = vsel %vm647, %v633, 0
        %v667 = vsel %vm647, %v634, 0
        %v670 = vsel %vm647, %v635, 0
        %672 = vmatprep.subr.mxu0 0.0
        %673 = vmatpush1.msra.mxu0 %v636
        %674 = vmatprep.subr.mxu0 0.0
        %675 = vmatpush1.msra.mxu0 %v637
        %676 = vmatprep.subr.mxu0 0.0
        %677 = vmatpush1.msra.mxu0 %v638
        %678 = vmatprep.subr.mxu0 0.0
        %679 = vmatpush1.msra.mxu0 %v639
        %680 = vmatprep.subr.mxu0 0.0
        %681 = vmatpush1.msra.mxu0 0.0
        %682 = vmatprep.subr.mxu0 0.0
        %683 = vmatpush1.msra.mxu0 0.0
        %684 = vmatprep.subr.mxu0 0.0
        %685 = vmatpush1.msra.mxu0 0.0
        %686 = vmatprep.subr.mxu0 0.0
        %687 = vmatpush1.msra.mxu0 0.0
        %688 = vmatprep.subr.mxu0 0.0
        %689 = vmatpush1.msra.mxu0 0.0
        %690 = vmatprep.subr.mxu0 0.0
        %691 = vmatpush1.msra.mxu0 0.0
        %692 = vmatprep.subr.mxu0 0.0
        %693 = vmatpush1.msra.mxu0 0.0
        %694 = vmatprep.subr.mxu0 0.0
        %695 = vmatpush1.msra.mxu0 0.0
        %696 = vmatprep.subr.mxu0 0.0
        %697 = vmatpush1.msra.mxu0 0.0
        %698 = vmatprep.subr.mxu0 0.0
        %699 = vmatpush1.msra.mxu0 0.0
        %700 = vmatprep.subr.mxu0 0.0
        %701 = vmatpush1.msra.mxu0 0.0
        %702 = vmatprep.subr.mxu0 0.0
        %703 = vmatpush1.msra.mxu0 0.0
        %704 = vmatprep.subr.mxu0 0.0
        %705 = vmatpush1.msra.mxu0 0.0
        %706 = vmatprep.subr.mxu0 0.0
        %707 = vmatpush1.msra.mxu0 0.0
        %708 = vmatprep.subr.mxu0 0.0
        %709 = vmatpush1.msra.mxu0 0.0
        %710 = vmatprep.subr.mxu0 0.0
        %711 = vmatpush1.msra.mxu0 0.0
        %712 = vmatprep.subr.mxu0 0.0
        %713 = vmatpush1.msra.mxu0 0.0
        %714 = vmatprep.subr.mxu0 0.0
        %715 = vmatpush1.msra.mxu0 0.0
        %716 = vmatprep.subr.mxu0 0.0
        %717 = vmatpush1.msra.mxu0 0.0
        %718 = vmatprep.subr.mxu0 0.0
        %719 = vmatpush1.msra.mxu0 0.0
        %720 = vmatprep.subr.mxu0 0.0
        %721 = vmatpush1.msra.mxu0 0.0
        %722 = vmatprep.subr.mxu0 0.0
        %723 = vmatpush1.msra.mxu0 0.0
        %724 = vmatprep.subr.mxu0 0.0
        %725 = vmatpush1.msra.mxu0 0.0
        %726 = vmatprep.subr.mxu0 0.0
        %727 = vmatpush1.msra.mxu0 0.0
        %728 = vmatprep.subr.mxu0 0.0
        %729 = vmatpush1.msra.mxu0 0.0
        %730 = vmatprep.subr.mxu0 0.0
        %731 = vmatpush1.msra.mxu0 0.0
        %732 = vmatprep.subr.mxu0 0.0
        %733 = vmatpush1.msra.mxu0 0.0
        %734 = vmatprep.subr.mxu0 0.0
        %735 = vmatpush1.msra.mxu0 0.0
        %736 = vmatprep.mubr.f32.mxu0 0.0
        %737 = vmatmul.mubr.f32.gmra.mrb[0].mxu0 %v649
        %v738 = vpop.f32.mrb[0].mxu0
        %v739 = vadd.f32 %v645, %v738
        %v740 = vpop.f32.mrb[0].mxu0
        %741 = vmatprep.mubr.f32.mxu0 0.0
        %742 = vmatmul.mubr.f32.gmra.mrb[0].mxu0 %v652
        %v743 = vpop.f32.mrb[0].mxu0
        %v744 = vadd.f32 %v645, %v743
        %v745 = vpop.f32.mrb[0].mxu0
        %746 = vmatprep.mubr.f32.mxu0 0.0
        %747 = vmatmul.mubr.f32.gmra.mrb[0].mxu0 %v655
        %v748 = vpop.f32.mrb[0].mxu0
        %v749 = vadd.f32 %v645, %v748
        %v750 = vpop.f32.mrb[0].mxu0
        %751 = vmatprep.mubr.f32.mxu0 0.0
        %752 = vmatmul.mubr.f32.gmra.mrb[0].mxu0 %v658
        %v753 = vpop.f32.mrb[0].mxu0
        %v754 = vadd.f32 %v645, %v753
        %v755 = vpop.f32.mrb[0].mxu0
        %756 = vmatprep.mubr.f32.mxu0 0.0
        %757 = vmatmul.mubr.f32.gmra.mrb[0].mxu0 %v661
        %v758 = vpop.f32.mrb[0].mxu0
        %v759 = vadd.f32 %v645, %v758
        %v760 = vpop.f32.mrb[0].mxu0
        %761 = vmatprep.mubr.f32.mxu0 0.0
        %762 = vmatmul.mubr.f32.gmra.mrb[0].mxu0 %v664
        %v763 = vpop.f32.mrb[0].mxu0
        %v764 = vadd.f32 %v645, %v763
        %v765 = vpop.f32.mrb[0].mxu0
        %766 = vmatprep.mubr.f32.mxu0 0.0
        %767 = vmatmul.mubr.f32.gmra.mrb[0].mxu0 %v667
        %v768 = vpop.f32.mrb[0].mxu0
        %v769 = vadd.f32 %v645, %v768
        %v770 = vpop.f32.mrb[0].mxu0
        %771 = vmatprep.mubr.f32.mxu0 0.0
        %772 = vmatmul.mubr.f32.gmra.mrb[0].mxu0 %v670
        %v773 = vpop.f32.mrb[0].mxu0
        %v774 = vadd.f32 %v645, %v773
        %v775 = vpop.f32.mrb[0].mxu0
        %776 = vdwg.mxu0
        %v777 = vld [vmem:[%s513] sm:$0xff]
        %v778 = vld [vmem:[%s513 + $0x8] sm:$0xff]
        %v779 = vld [vmem:[%s513 + $0x10] sm:$0xff]
        %v780 = vld [vmem:[%s513 + $0x18] sm:$0xff]
        %v781 = vld [vmem:[%s538] sm:$0x1]
        %v783 = vlaneseq
        %v784 = vshrl.u32 %v783, 7
        %v785 = vsub.s32 0, %v784
        %v786 = vrot.slane %v781, %v785
        %788 = vmatprep.subr.mxu0 0.0
        %789 = vmatpush1.msra.mxu0 %v777
        %790 = vmatprep.subr.mxu0 0.0
        %791 = vmatpush1.msra.mxu0 %v778
        %792 = vmatprep.subr.mxu0 0.0
        %793 = vmatpush1.msra.mxu0 %v779
        %794 = vmatprep.subr.mxu0 0.0
        %795 = vmatpush1.msra.mxu0 %v780
        %796 = vmatprep.subr.mxu0 0.0
        %797 = vmatpush1.msra.mxu0 0.0
        %798 = vmatprep.subr.mxu0 0.0
        %799 = vmatpush1.msra.mxu0 0.0
        %800 = vmatprep.subr.mxu0 0.0
        %801 = vmatpush1.msra.mxu0 0.0
        %802 = vmatprep.subr.mxu0 0.0
        %803 = vmatpush1.msra.mxu0 0.0
        %804 = vmatprep.subr.mxu0 0.0
        %805 = vmatpush1.msra.mxu0 0.0
        %806 = vmatprep.subr.mxu0 0.0
        %807 = vmatpush1.msra.mxu0 0.0
        %808 = vmatprep.subr.mxu0 0.0
        %809 = vmatpush1.msra.mxu0 0.0
        %810 = vmatprep.subr.mxu0 0.0
        %811 = vmatpush1.msra.mxu0 0.0
        %812 = vmatprep.subr.mxu0 0.0
        %813 = vmatpush1.msra.mxu0 0.0
        %814 = vmatprep.subr.mxu0 0.0
        %815 = vmatpush1.msra.mxu0 0.0
        %816 = vmatprep.subr.mxu0 0.0
        %817 = vmatpush1.msra.mxu0 0.0
        %818 = vmatprep.subr.mxu0 0.0
        %819 = vmatpush1.msra.mxu0 0.0
        %820 = vmatprep.subr.mxu0 0.0
        %821 = vmatpush1.msra.mxu0 0.0
        %822 = vmatprep.subr.mxu0 0.0
        %823 = vmatpush1.msra.mxu0 0.0
        %824 = vmatprep.subr.mxu0 0.0
        %825 = vmatpush1.msra.mxu0 0.0
        %826 = vmatprep.subr.mxu0 0.0
        %827 = vmatpush1.msra.mxu0 0.0
        %828 = vmatprep.subr.mxu0 0.0
        %829 = vmatpush1.msra.mxu0 0.0
        %830 = vmatprep.subr.mxu0 0.0
        %831 = vmatpush1.msra.mxu0 0.0
        %832 = vmatprep.subr.mxu0 0.0
        %833 = vmatpush1.msra.mxu0 0.0
        %834 = vmatprep.subr.mxu0 0.0
        %835 = vmatpush1.msra.mxu0 0.0
        %836 = vmatprep.subr.mxu0 0.0
        %837 = vmatpush1.msra.mxu0 0.0
        %838 = vmatprep.subr.mxu0 0.0
        %839 = vmatpush1.msra.mxu0 0.0
        %840 = vmatprep.subr.mxu0 0.0
        %841 = vmatpush1.msra.mxu0 0.0
        %842 = vmatprep.subr.mxu0 0.0
        %843 = vmatpush1.msra.mxu0 0.0
        %844 = vmatprep.subr.mxu0 0.0
        %845 = vmatpush1.msra.mxu0 0.0
        %846 = vmatprep.subr.mxu0 0.0
        %847 = vmatpush1.msra.mxu0 0.0
        %848 = vmatprep.subr.mxu0 0.0
        %849 = vmatpush1.msra.mxu0 0.0
        %850 = vmatprep.subr.mxu0 0.0
        %851 = vmatpush1.msra.mxu0 0.0
        %852 = vmatprep.mubr.f32.mxu0 0.0
        %853 = vmatmul.mubr.f32.gmra.mrb[0].mxu0 %v649
        %v854 = vpop.f32.mrb[0].mxu0
        %v855 = vadd.f32 %v786, %v854
        %v856 = vpop.f32.mrb[0].mxu0
        %857 = vmatprep.mubr.f32.mxu0 0.0
        %858 = vmatmul.mubr.f32.gmra.mrb[0].mxu0 %v652
        %v859 = vpop.f32.mrb[0].mxu0
        %v860 = vadd.f32 %v786, %v859
        %v861 = vpop.f32.mrb[0].mxu0
        %862 = vmatprep.mubr.f32.mxu0 0.0
        %863 = vmatmul.mubr.f32.gmra.mrb[0].mxu0 %v655
        %v864 = vpop.f32.mrb[0].mxu0
        %v865 = vadd.f32 %v786, %v864
        %v866 = vpop.f32.mrb[0].mxu0
        %867 = vmatprep.mubr.f32.mxu0 0.0
        %868 = vmatmul.mubr.f32.gmra.mrb[0].mxu0 %v658
        %v869 = vpop.f32.mrb[0].mxu0
        %v870 = vadd.f32 %v786, %v869
        %v871 = vpop.f32.mrb[0].mxu0
        %872 = vmatprep.mubr.f32.mxu0 0.0
        %873 = vmatmul.mubr.f32.gmra.mrb[0].mxu0 %v661
        %v874 = vpop.f32.mrb[0].mxu0
        %v875 = vadd.f32 %v786, %v874
        %v876 = vpop.f32.mrb[0].mxu0
        %877 = vmatprep.mubr.f32.mxu0 0.0
        %878 = vmatmul.mubr.f32.gmra.mrb[0].mxu0 %v664
        %v879 = vpop.f32.mrb[0].mxu0
        %v880 = vadd.f32 %v786, %v879
        %v881 = vpop.f32.mrb[0].mxu0
        %882 = vmatprep.mubr.f32.mxu0 0.0
        %883 = vmatmul.mubr.f32.gmra.mrb[0].mxu0 %v667
        %v884 = vpop.f32.mrb[0].mxu0
        %v885 = vadd.f32 %v786, %v884
        %v886 = vpop.f32.mrb[0].mxu0
        %887 = vmatprep.mubr.f32.mxu0 0.0
        %888 = vmatmul.mubr.f32.gmra.mrb[0].mxu0 %v670
        %v889 = vpop.f32.mrb[0].mxu0
        %v890 = vadd.f32 %v786, %v889
        %v891 = vpop.f32.mrb[0].mxu0
        %892 = vdwg.mxu0
        %v893 = vld [vmem:[%s522] sm:$0xff]
        %v894 = vld [vmem:[%s522 + $0x8] sm:$0xff]
        %v895 = vld [vmem:[%s522 + $0x10] sm:$0xff]
        %v896 = vld [vmem:[%s522 + $0x18] sm:$0xff]
        %v897 = vld [vmem:[%s546] sm:$0x1]
        %v899 = vlaneseq
        %v900 = vshrl.u32 %v899, 7
        %v901 = vsub.s32 0, %v900
        %v902 = vrot.slane %v897, %v901
        %904 = vmatprep.subr.mxu0 0.0
        %905 = vmatpush1.msra.mxu0 %v893
        %906 = vmatprep.subr.mxu0 0.0
        %907 = vmatpush1.msra.mxu0 %v894
        %908 = vmatprep.subr.mxu0 0.0
        %909 = vmatpush1.msra.mxu0 %v895
        %910 = vmatprep.subr.mxu0 0.0
        %911 = vmatpush1.msra.mxu0 %v896
        %912 = vmatprep.subr.mxu0 0.0
        %913 = vmatpush1.msra.mxu0 0.0
        %914 = vmatprep.subr.mxu0 0.0
        %915 = vmatpush1.msra.mxu0 0.0
        %916 = vmatprep.subr.mxu0 0.0
        %917 = vmatpush1.msra.mxu0 0.0
        %918 = vmatprep.subr.mxu0 0.0
        %919 = vmatpush1.msra.mxu0 0.0
        %920 = vmatprep.subr.mxu0 0.0
        %921 = vmatpush1.msra.mxu0 0.0
        %922 = vmatprep.subr.mxu0 0.0
        %923 = vmatpush1.msra.mxu0 0.0
        %924 = vmatprep.subr.mxu0 0.0
        %925 = vmatpush1.msra.mxu0 0.0
        %926 = vmatprep.subr.mxu0 0.0
        %927 = vmatpush1.msra.mxu0 0.0
        %928 = vmatprep.subr.mxu0 0.0
        %929 = vmatpush1.msra.mxu0 0.0
        %930 = vmatprep.subr.mxu0 0.0
        %931 = vmatpush1.msra.mxu0 0.0
        %932 = vmatprep.subr.mxu0 0.0
        %933 = vmatpush1.msra.mxu0 0.0
        %934 = vmatprep.subr.mxu0 0.0
        %935 = vmatpush1.msra.mxu0 0.0
        %936 = vmatprep.subr.mxu0 0.0
        %937 = vmatpush1.msra.mxu0 0.0
        %938 = vmatprep.subr.mxu0 0.0
        %939 = vmatpush1.msra.mxu0 0.0
        %940 = vmatprep.subr.mxu0 0.0
        %941 = vmatpush1.msra.mxu0 0.0
        %942 = vmatprep.subr.mxu0 0.0
        %943 = vmatpush1.msra.mxu0 0.0
        %944 = vmatprep.subr.mxu0 0.0
        %945 = vmatpush1.msra.mxu0 0.0
        %946 = vmatprep.subr.mxu0 0.0
        %947 = vmatpush1.msra.mxu0 0.0
        %948 = vmatprep.subr.mxu0 0.0
        %949 = vmatpush1.msra.mxu0 0.0
        %950 = vmatprep.subr.mxu0 0.0
        %951 = vmatpush1.msra.mxu0 0.0
        %952 = vmatprep.subr.mxu0 0.0
        %953 = vmatpush1.msra.mxu0 0.0
        %954 = vmatprep.subr.mxu0 0.0
        %955 = vmatpush1.msra.mxu0 0.0
        %956 = vmatprep.subr.mxu0 0.0
        %957 = vmatpush1.msra.mxu0 0.0
        %958 = vmatprep.subr.mxu0 0.0
        %959 = vmatpush1.msra.mxu0 0.0
        %960 = vmatprep.subr.mxu0 0.0
        %961 = vmatpush1.msra.mxu0 0.0
        %962 = vmatprep.subr.mxu0 0.0
        %963 = vmatpush1.msra.mxu0 0.0
        %964 = vmatprep.subr.mxu0 0.0
        %965 = vmatpush1.msra.mxu0 0.0
        %966 = vmatprep.subr.mxu0 0.0
        %967 = vmatpush1.msra.mxu0 0.0
        %968 = vmatprep.mubr.f32.mxu0 0.0
        %969 = vmatmul.mubr.f32.gmra.mrb[0].mxu0 %v649
        %v970 = vpop.f32.mrb[0].mxu0
        %v971 = vadd.f32 %v902, %v970
        %v972 = vpop.f32.mrb[0].mxu0
        %973 = vmatprep.mubr.f32.mxu0 0.0
        %974 = vmatmul.mubr.f32.gmra.mrb[0].mxu0 %v652
        %v975 = vpop.f32.mrb[0].mxu0
        %v976 = vadd.f32 %v902, %v975
        %v977 = vpop.f32.mrb[0].mxu0
        %978 = vmatprep.mubr.f32.mxu0 0.0
        %979 = vmatmul.mubr.f32.gmra.mrb[0].mxu0 %v655
        %v980 = vpop.f32.mrb[0].mxu0
        %v981 = vadd.f32 %v902, %v980
        %v982 = vpop.f32.mrb[0].mxu0
        %983 = vmatprep.mubr.f32.mxu0 0.0
        %984 = vmatmul.mubr.f32.gmra.mrb[0].mxu0 %v658
        %v985 = vpop.f32.mrb[0].mxu0
        %v986 = vadd.f32 %v902, %v985
        %v987 = vpop.f32.mrb[0].mxu0
        %988 = vmatprep.mubr.f32.mxu0 0.0
        %989 = vmatmul.mubr.f32.gmra.mrb[0].mxu0 %v661
        %v990 = vpop.f32.mrb[0].mxu0
        %v991 = vadd.f32 %v902, %v990
        %v992 = vpop.f32.mrb[0].mxu0
        %993 = vmatprep.mubr.f32.mxu0 0.0
        %994 = vmatmul.mubr.f32.gmra.mrb[0].mxu0 %v664
        %v995 = vpop.f32.mrb[0].mxu0
        %v996 = vadd.f32 %v902, %v995
        %v997 = vpop.f32.mrb[0].mxu0
        %998 = vmatprep.mubr.f32.mxu0 0.0
        %999 = vmatmul.mubr.f32.gmra.mrb[0].mxu0 %v667
        %v1000 = vpop.f32.mrb[0].mxu0
        %v1001 = vadd.f32 %v902, %v1000
        %v1002 = vpop.f32.mrb[0].mxu0
        %1003 = vmatprep.mubr.f32.mxu0 0.0
        %1004 = vmatmul.mubr.f32.gmra.mrb[0].mxu0 %v670
        %v1005 = vpop.f32.mrb[0].mxu0
        %v1006 = vadd.f32 %v902, %v1005
        %v1007 = vpop.f32.mrb[0].mxu0
        %1008 = vdwg.mxu0
        %v1009 = vmul.f32 %v739, 0.35355338
        %v1010 = vmul.f32 %v744, 0.35355338
        %v1011 = vmul.f32 %v749, 0.35355338
        %v1012 = vmul.f32 %v754, 0.35355338
        %v1013 = vmul.f32 %v759, 0.35355338
        %v1014 = vmul.f32 %v764, 0.35355338
        %v1015 = vmul.f32 %v769, 0.35355338
        %v1016 = vmul.f32 %v774, 0.35355338
        %vm1017 = vcmask 64512
        %v1019 = vsel %vm1017, %v1009, 0
        %v1022 = vsel %vm1017, %v1010, 0
        %v1025 = vsel %vm1017, %v855, 0
        %v1028 = vsel %vm1017, %v860, 0
        %1030 = vmatprep.subr.mxu0 0.0
        %1031 = vmatpush1.xpose.msra.mxu0 %v1025
        %1032 = vmatprep.subr.mxu0 0.0
        %1033 = vmatpush1.xpose.msra.mxu0 %v1028
        %1034 = vmatprep.subr.mxu0 0.0
        %1035 = vmatpush1.xpose.msra.mxu0 0.0
        %1036 = vmatprep.subr.mxu0 0.0
        %1037 = vmatpush1.xpose.msra.mxu0 0.0
        %1038 = vmatprep.subr.mxu0 0.0
        %1039 = vmatpush1.xpose.msra.mxu0 0.0
        %1040 = vmatprep.subr.mxu0 0.0
        %1041 = vmatpush1.xpose.msra.mxu0 0.0
        %1042 = vmatprep.subr.mxu0 0.0
        %1043 = vmatpush1.xpose.msra.mxu0 0.0
        %1044 = vmatprep.subr.mxu0 0.0
        %1045 = vmatpush1.xpose.msra.mxu0 0.0
        %1046 = vmatprep.subr.mxu0 0.0
        %1047 = vmatpush1.xpose.msra.mxu0 0.0
        %1048 = vmatprep.subr.mxu0 0.0
        %1049 = vmatpush1.xpose.msra.mxu0 0.0
        %1050 = vmatprep.subr.mxu0 0.0
        %1051 = vmatpush1.xpose.msra.mxu0 0.0
        %1052 = vmatprep.subr.mxu0 0.0
        %1053 = vmatpush1.xpose.msra.mxu0 0.0
        %1054 = vmatprep.subr.mxu0 0.0
        %1055 = vmatpush1.xpose.msra.mxu0 0.0
        %1056 = vmatprep.subr.mxu0 0.0
        %1057 = vmatpush1.xpose.msra.mxu0 0.0
        %1058 = vmatprep.subr.mxu0 0.0
        %1059 = vmatpush1.xpose.msra.mxu0 0.0
        %1060 = vmatprep.subr.mxu0 0.0
        %1061 = vmatpush1.xpose.msra.mxu0 0.0
        %1062 = vmatprep.subr.mxu0 0.0
        %1063 = vmatpush1.xpose.msra.mxu0 0.0
        %1064 = vmatprep.subr.mxu0 0.0
        %1065 = vmatpush1.xpose.msra.mxu0 0.0
        %1066 = vmatprep.subr.mxu0 0.0
        %1067 = vmatpush1.xpose.msra.mxu0 0.0
        %1068 = vmatprep.subr.mxu0 0.0
        %1069 = vmatpush1.xpose.msra.mxu0 0.0
        %1070 = vmatprep.subr.mxu0 0.0
        %1071 = vmatpush1.xpose.msra.mxu0 0.0
        %1072 = vmatprep.subr.mxu0 0.0
        %1073 = vmatpush1.xpose.msra.mxu0 0.0
        %1074 = vmatprep.subr.mxu0 0.0
        %1075 = vmatpush1.xpose.msra.mxu0 0.0
        %1076 = vmatprep.subr.mxu0 0.0
        %1077 = vmatpush1.xpose.msra.mxu0 0.0
        %1078 = vmatprep.subr.mxu0 0.0
        %1079 = vmatpush1.xpose.msra.mxu0 0.0
        %1080 = vmatprep.subr.mxu0 0.0
        %1081 = vmatpush1.xpose.msra.mxu0 0.0
        %1082 = vmatprep.subr.mxu0 0.0
        %1083 = vmatpush1.xpose.msra.mxu0 0.0
        %1084 = vmatprep.subr.mxu0 0.0
        %1085 = vmatpush1.xpose.msra.mxu0 0.0
        %1086 = vmatprep.subr.mxu0 0.0
        %1087 = vmatpush1.xpose.msra.mxu0 0.0
        %1088 = vmatprep.subr.mxu0 0.0
        %1089 = vmatpush1.xpose.msra.mxu0 0.0
        %1090 = vmatprep.subr.mxu0 0.0
        %1091 = vmatpush1.xpose.msra.mxu0 0.0
        %1092 = vmatprep.subr.mxu0 0.0
        %1093 = vmatpush1.xpose.msra.mxu0 0.0
        %1094 = vmatprep.mubr.f32.mxu0 0.0
        %1095 = vmatmul.mubr.f32.gmra.mrb[0].mxu0 %v1019
        %v1096 = vpop.f32.mrb[0].mxu0
        %v1097 = vadd.f32 0.0, %v1096
        %v1098 = vpop.f32.mrb[0].mxu0
        %1099 = vmatprep.mubr.f32.mxu0 0.0
        %1100 = vmatmul.mubr.f32.gmra.mrb[0].mxu0 %v1022
        %v1101 = vpop.f32.mrb[0].mxu0
        %v1102 = vadd.f32 0.0, %v1101
        %v1103 = vpop.f32.mrb[0].mxu0
        %1104 = vdwg.mxu0
        %v1106 = vsel %vm1017, %v1011, 0
        %v1109 = vsel %vm1017, %v1012, 0
        %v1112 = vsel %vm1017, %v865, 0
        %v1115 = vsel %vm1017, %v870, 0
        %1117 = vmatprep.subr.mxu0 0.0
        %1118 = vmatpush1.xpose.msra.mxu0 %v1112
        %1119 = vmatprep.subr.mxu0 0.0
        %1120 = vmatpush1.xpose.msra.mxu0 %v1115
        %1121 = vmatprep.subr.mxu0 0.0
        %1122 = vmatpush1.xpose.msra.mxu0 0.0
        %1123 = vmatprep.subr.mxu0 0.0
        %1124 = vmatpush1.xpose.msra.mxu0 0.0
        %1125 = vmatprep.subr.mxu0 0.0
        %1126 = vmatpush1.xpose.msra.mxu0 0.0
        %1127 = vmatprep.subr.mxu0 0.0
        %1128 = vmatpush1.xpose.msra.mxu0 0.0
        %1129 = vmatprep.subr.mxu0 0.0
        %1130 = vmatpush1.xpose.msra.mxu0 0.0
        %1131 = vmatprep.subr.mxu0 0.0
        %1132 = vmatpush1.xpose.msra.mxu0 0.0
        %1133 = vmatprep.subr.mxu0 0.0
        %1134 = vmatpush1.xpose.msra.mxu0 0.0
        %1135 = vmatprep.subr.mxu0 0.0
        %1136 = vmatpush1.xpose.msra.mxu0 0.0
        %1137 = vmatprep.subr.mxu0 0.0
        %1138 = vmatpush1.xpose.msra.mxu0 0.0
        %1139 = vmatprep.subr.mxu0 0.0
        %1140 = vmatpush1.xpose.msra.mxu0 0.0
        %1141 = vmatprep.subr.mxu0 0.0
        %1142 = vmatpush1.xpose.msra.mxu0 0.0
        %1143 = vmatprep.subr.mxu0 0.0
        %1144 = vmatpush1.xpose.msra.mxu0 0.0
        %1145 = vmatprep.subr.mxu0 0.0
        %1146 = vmatpush1.xpose.msra.mxu0 0.0
        %1147 = vmatprep.subr.mxu0 0.0
        %1148 = vmatpush1.xpose.msra.mxu0 0.0
        %1149 = vmatprep.subr.mxu0 0.0
        %1150 = vmatpush1.xpose.msra.mxu0 0.0
        %1151 = vmatprep.subr.mxu0 0.0
        %1152 = vmatpush1.xpose.msra.mxu0 0.0
        %1153 = vmatprep.subr.mxu0 0.0
        %1154 = vmatpush1.xpose.msra.mxu0 0.0
        %1155 = vmatprep.subr.mxu0 0.0
        %1156 = vmatpush1.xpose.msra.mxu0 0.0
        %1157 = vmatprep.subr.mxu0 0.0
        %1158 = vmatpush1.xpose.msra.mxu0 0.0
        %1159 = vmatprep.subr.mxu0 0.0
        %1160 = vmatpush1.xpose.msra.mxu0 0.0
        %1161 = vmatprep.subr.mxu0 0.0
        %1162 = vmatpush1.xpose.msra.mxu0 0.0
        %1163 = vmatprep.subr.mxu0 0.0
        %1164 = vmatpush1.xpose.msra.mxu0 0.0
        %1165 = vmatprep.subr.mxu0 0.0
        %1166 = vmatpush1.xpose.msra.mxu0 0.0
        %1167 = vmatprep.subr.mxu0 0.0
        %1168 = vmatpush1.xpose.msra.mxu0 0.0
        %1169 = vmatprep.subr.mxu0 0.0
        %1170 = vmatpush1.xpose.msra.mxu0 0.0
        %1171 = vmatprep.subr.mxu0 0.0
        %1172 = vmatpush1.xpose.msra.mxu0 0.0
        %1173 = vmatprep.subr.mxu0 0.0
        %1174 = vmatpush1.xpose.msra.mxu0 0.0
        %1175 = vmatprep.subr.mxu0 0.0
        %1176 = vmatpush1.xpose.msra.mxu0 0.0
        %1177 = vmatprep.subr.mxu0 0.0
        %1178 = vmatpush1.xpose.msra.mxu0 0.0
        %1179 = vmatprep.subr.mxu0 0.0
        %1180 = vmatpush1.xpose.msra.mxu0 0.0
        %1181 = vmatprep.mubr.f32.mxu0 0.0
        %1182 = vmatmul.mubr.f32.gmra.mrb[0].mxu0 %v1106
        %v1183 = vpop.f32.mrb[0].mxu0
        %v1184 = vadd.f32 0.0, %v1183
        %v1185 = vpop.f32.mrb[0].mxu0
        %1186 = vmatprep.mubr.f32.mxu0 0.0
        %1187 = vmatmul.mubr.f32.gmra.mrb[0].mxu0 %v1109
        %v1188 = vpop.f32.mrb[0].mxu0
        %v1189 = vadd.f32 0.0, %v1188
        %v1190 = vpop.f32.mrb[0].mxu0
        %1191 = vdwg.mxu0
        %v1193 = vsel %vm1017, %v1013, 0
        %v1196 = vsel %vm1017, %v1014, 0
        %v1199 = vsel %vm1017, %v875, 0
        %v1202 = vsel %vm1017, %v880, 0
        %1204 = vmatprep.subr.mxu0 0.0
        %1205 = vmatpush1.xpose.msra.mxu0 %v1199
        %1206 = vmatprep.subr.mxu0 0.0
        %1207 = vmatpush1.xpose.msra.mxu0 %v1202
        %1208 = vmatprep.subr.mxu0 0.0
        %1209 = vmatpush1.xpose.msra.mxu0 0.0
        %1210 = vmatprep.subr.mxu0 0.0
        %1211 = vmatpush1.xpose.msra.mxu0 0.0
        %1212 = vmatprep.subr.mxu0 0.0
        %1213 = vmatpush1.xpose.msra.mxu0 0.0
        %1214 = vmatprep.subr.mxu0 0.0
        %1215 = vmatpush1.xpose.msra.mxu0 0.0
        %1216 = vmatprep.subr.mxu0 0.0
        %1217 = vmatpush1.xpose.msra.mxu0 0.0
        %1218 = vmatprep.subr.mxu0 0.0
        %1219 = vmatpush1.xpose.msra.mxu0 0.0
        %1220 = vmatprep.subr.mxu0 0.0
        %1221 = vmatpush1.xpose.msra.mxu0 0.0
        %1222 = vmatprep.subr.mxu0 0.0
        %1223 = vmatpush1.xpose.msra.mxu0 0.0
        %1224 = vmatprep.subr.mxu0 0.0
        %1225 = vmatpush1.xpose.msra.mxu0 0.0
        %1226 = vmatprep.subr.mxu0 0.0
        %1227 = vmatpush1.xpose.msra.mxu0 0.0
        %1228 = vmatprep.subr.mxu0 0.0
        %1229 = vmatpush1.xpose.msra.mxu0 0.0
        %1230 = vmatprep.subr.mxu0 0.0
        %1231 = vmatpush1.xpose.msra.mxu0 0.0
        %1232 = vmatprep.subr.mxu0 0.0
        %1233 = vmatpush1.xpose.msra.mxu0 0.0
        %1234 = vmatprep.subr.mxu0 0.0
        %1235 = vmatpush1.xpose.msra.mxu0 0.0
        %1236 = vmatprep.subr.mxu0 0.0
        %1237 = vmatpush1.xpose.msra.mxu0 0.0
        %1238 = vmatprep.subr.mxu0 0.0
        %1239 = vmatpush1.xpose.msra.mxu0 0.0
        %1240 = vmatprep.subr.mxu0 0.0
        %1241 = vmatpush1.xpose.msra.mxu0 0.0
        %1242 = vmatprep.subr.mxu0 0.0
        %1243 = vmatpush1.xpose.msra.mxu0 0.0
        %1244 = vmatprep.subr.mxu0 0.0
        %1245 = vmatpush1.xpose.msra.mxu0 0.0
        %1246 = vmatprep.subr.mxu0 0.0
        %1247 = vmatpush1.xpose.msra.mxu0 0.0
        %1248 = vmatprep.subr.mxu0 0.0
        %1249 = vmatpush1.xpose.msra.mxu0 0.0
        %1250 = vmatprep.subr.mxu0 0.0
        %1251 = vmatpush1.xpose.msra.mxu0 0.0
        %1252 = vmatprep.subr.mxu0 0.0
        %1253 = vmatpush1.xpose.msra.mxu0 0.0
        %1254 = vmatprep.subr.mxu0 0.0
        %1255 = vmatpush1.xpose.msra.mxu0 0.0
        %1256 = vmatprep.subr.mxu0 0.0
        %1257 = vmatpush1.xpose.msra.mxu0 0.0
        %1258 = vmatprep.subr.mxu0 0.0
        %1259 = vmatpush1.xpose.msra.mxu0 0.0
        %1260 = vmatprep.subr.mxu0 0.0
        %1261 = vmatpush1.xpose.msra.mxu0 0.0
        %1262 = vmatprep.subr.mxu0 0.0
        %1263 = vmatpush1.xpose.msra.mxu0 0.0
        %1264 = vmatprep.subr.mxu0 0.0
        %1265 = vmatpush1.xpose.msra.mxu0 0.0
        %1266 = vmatprep.subr.mxu0 0.0
        %1267 = vmatpush1.xpose.msra.mxu0 0.0
        %1268 = vmatprep.mubr.f32.mxu0 0.0
        %1269 = vmatmul.mubr.f32.gmra.mrb[0].mxu0 %v1193
        %v1270 = vpop.f32.mrb[0].mxu0
        %v1271 = vadd.f32 0.0, %v1270
        %v1272 = vpop.f32.mrb[0].mxu0
        %1273 = vmatprep.mubr.f32.mxu0 0.0
        %1274 = vmatmul.mubr.f32.gmra.mrb[0].mxu0 %v1196
        %v1275 = vpop.f32.mrb[0].mxu0
        %v1276 = vadd.f32 0.0, %v1275
        %v1277 = vpop.f32.mrb[0].mxu0
        %1278 = vdwg.mxu0
        %v1280 = vsel %vm1017, %v1015, 0
        %v1283 = vsel %vm1017, %v1016, 0
        %v1286 = vsel %vm1017, %v885, 0
        %v1289 = vsel %vm1017, %v890, 0
        %1291 = vmatprep.subr.mxu0 0.0
        %1292 = vmatpush1.xpose.msra.mxu0 %v1286
        %1293 = vmatprep.subr.mxu0 0.0
        %1294 = vmatpush1.xpose.msra.mxu0 %v1289
        %1295 = vmatprep.subr.mxu0 0.0
        %1296 = vmatpush1.xpose.msra.mxu0 0.0
        %1297 = vmatprep.subr.mxu0 0.0
        %1298 = vmatpush1.xpose.msra.mxu0 0.0
        %1299 = vmatprep.subr.mxu0 0.0
        %1300 = vmatpush1.xpose.msra.mxu0 0.0
        %1301 = vmatprep.subr.mxu0 0.0
        %1302 = vmatpush1.xpose.msra.mxu0 0.0
        %1303 = vmatprep.subr.mxu0 0.0
        %1304 = vmatpush1.xpose.msra.mxu0 0.0
        %1305 = vmatprep.subr.mxu0 0.0
        %1306 = vmatpush1.xpose.msra.mxu0 0.0
        %1307 = vmatprep.subr.mxu0 0.0
        %1308 = vmatpush1.xpose.msra.mxu0 0.0
        %1309 = vmatprep.subr.mxu0 0.0
        %1310 = vmatpush1.xpose.msra.mxu0 0.0
        %1311 = vmatprep.subr.mxu0 0.0
        %1312 = vmatpush1.xpose.msra.mxu0 0.0
        %1313 = vmatprep.subr.mxu0 0.0
        %1314 = vmatpush1.xpose.msra.mxu0 0.0
        %1315 = vmatprep.subr.mxu0 0.0
        %1316 = vmatpush1.xpose.msra.mxu0 0.0
        %1317 = vmatprep.subr.mxu0 0.0
        %1318 = vmatpush1.xpose.msra.mxu0 0.0
        %1319 = vmatprep.subr.mxu0 0.0
        %1320 = vmatpush1.xpose.msra.mxu0 0.0
        %1321 = vmatprep.subr.mxu0 0.0
        %1322 = vmatpush1.xpose.msra.mxu0 0.0
        %1323 = vmatprep.subr.mxu0 0.0
        %1324 = vmatpush1.xpose.msra.mxu0 0.0
        %1325 = vmatprep.subr.mxu0 0.0
        %1326 = vmatpush1.xpose.msra.mxu0 0.0
        %1327 = vmatprep.subr.mxu0 0.0
        %1328 = vmatpush1.xpose.msra.mxu0 0.0
        %1329 = vmatprep.subr.mxu0 0.0
        %1330 = vmatpush1.xpose.msra.mxu0 0.0
        %1331 = vmatprep.subr.mxu0 0.0
        %1332 = vmatpush1.xpose.msra.mxu0 0.0
        %1333 = vmatprep.subr.mxu0 0.0
        %1334 = vmatpush1.xpose.msra.mxu0 0.0
        %1335 = vmatprep.subr.mxu0 0.0
        %1336 = vmatpush1.xpose.msra.mxu0 0.0
        %1337 = vmatprep.subr.mxu0 0.0
        %1338 = vmatpush1.xpose.msra.mxu0 0.0
        %1339 = vmatprep.subr.mxu0 0.0
        %1340 = vmatpush1.xpose.msra.mxu0 0.0
        %1341 = vmatprep.subr.mxu0 0.0
        %1342 = vmatpush1.xpose.msra.mxu0 0.0
        %1343 = vmatprep.subr.mxu0 0.0
        %1344 = vmatpush1.xpose.msra.mxu0 0.0
        %1345 = vmatprep.subr.mxu0 0.0
        %1346 = vmatpush1.xpose.msra.mxu0 0.0
        %1347 = vmatprep.subr.mxu0 0.0
        %1348 = vmatpush1.xpose.msra.mxu0 0.0
        %1349 = vmatprep.subr.mxu0 0.0
        %1350 = vmatpush1.xpose.msra.mxu0 0.0
        %1351 = vmatprep.subr.mxu0 0.0
        %1352 = vmatpush1.xpose.msra.mxu0 0.0
        %1353 = vmatprep.subr.mxu0 0.0
        %1354 = vmatpush1.xpose.msra.mxu0 0.0
        %1355 = vmatprep.mubr.f32.mxu0 0.0
        %1356 = vmatmul.mubr.f32.gmra.mrb[0].mxu0 %v1280
        %v1357 = vpop.f32.mrb[0].mxu0
        %v1358 = vadd.f32 0.0, %v1357
        %v1359 = vpop.f32.mrb[0].mxu0
        %1360 = vmatprep.mubr.f32.mxu0 0.0
        %1361 = vmatmul.mubr.f32.gmra.mrb[0].mxu0 %v1283
        %v1362 = vpop.f32.mrb[0].mxu0
        %v1363 = vadd.f32 0.0, %v1362
        %v1364 = vpop.f32.mrb[0].mxu0
        %1365 = vdwg.mxu0
        %vm1366 = vcmask 130048
        %v1367 = vsel %vm1366, %v1097, -inf
        %1368 = vmax.xlane.f32.xlu0 %v1367
        %v1369 = vpop.xlane.xlu0 %1368
        %v1370 = vsel %vm1366, %v1102, -inf
        %1371 = vmax.xlane.f32.xlu0 %v1370
        %v1372 = vpop.xlane.xlu0 %1371
        %v1373 = vsel %vm1366, %v1184, -inf
        %1374 = vmax.xlane.f32.xlu0 %v1373
        %v1375 = vpop.xlane.xlu0 %1374
        %v1376 = vsel %vm1366, %v1189, -inf
        %1377 = vmax.xlane.f32.xlu0 %v1376
        %v1378 = vpop.xlane.xlu0 %1377
        %v1379 = vsel %vm1366, %v1271, -inf
        %1380 = vmax.xlane.f32.xlu0 %v1379
        %v1381 = vpop.xlane.xlu0 %1380
        %v1382 = vsel %vm1366, %v1276, -inf
        %1383 = vmax.xlane.f32.xlu0 %v1382
        %v1384 = vpop.xlane.xlu0 %1383
        %v1385 = vsel %vm1366, %v1358, -inf
        %1386 = vmax.xlane.f32.xlu0 %v1385
        %v1387 = vpop.xlane.xlu0 %1386
        %v1388 = vsel %vm1366, %v1363, -inf
        %1389 = vmax.xlane.f32.xlu0 %v1388
        %v1390 = vpop.xlane.xlu0 %1389
        %v1391 = vsub.f32 %v1097, %v1369
        %v1392 = vsub.f32 %v1102, %v1372
        %v1393 = vsub.f32 %v1184, %v1375
        %v1394 = vsub.f32 %v1189, %v1378
        %v1395 = vsub.f32 %v1271, %v1381
        %v1396 = vsub.f32 %v1276, %v1384
        %v1397 = vsub.f32 %v1358, %v1387
        %v1398 = vsub.f32 %v1363, %v1390
        %v1399 = vmul.f32 %v1391, 1.442695
        %v1400 = vpow.pop %v1399
        %v1401 = vmul.f32 %v1392, 1.442695
        %v1402 = vpow.pop %v1401
        %v1403 = vmul.f32 %v1393, 1.442695
        %v1404 = vpow.pop %v1403
        %v1405 = vmul.f32 %v1394, 1.442695
        %v1406 = vpow.pop %v1405
        %v1407 = vmul.f32 %v1395, 1.442695
        %v1408 = vpow.pop %v1407
        %v1409 = vmul.f32 %v1396, 1.442695
        %v1410 = vpow.pop %v1409
        %v1411 = vmul.f32 %v1397, 1.442695
        %v1412 = vpow.pop %v1411
        %v1413 = vmul.f32 %v1398, 1.442695
        %v1414 = vpow.pop %v1413
        %v1415 = vsel %vm1366, %v1400, 0.0
        %1416 = vadd.xlane.f32.xlu0 %v1415
        %v1417 = vpop.xlane.xlu0 %1416
        %v1418 = vsel %vm1366, %v1402, 0.0
        %1419 = vadd.xlane.f32.xlu0 %v1418
        %v1420 = vpop.xlane.xlu0 %1419
        %v1421 = vsel %vm1366, %v1404, 0.0
        %1422 = vadd.xlane.f32.xlu0 %v1421
        %v1423 = vpop.xlane.xlu0 %1422
        %v1424 = vsel %vm1366, %v1406, 0.0
        %1425 = vadd.xlane.f32.xlu0 %v1424
        %v1426 = vpop.xlane.xlu0 %1425
        %v1427 = vsel %vm1366, %v1408, 0.0
        %1428 = vadd.xlane.f32.xlu0 %v1427
        %v1429 = vpop.xlane.xlu0 %1428
        %v1430 = vsel %vm1366, %v1410, 0.0
        %1431 = vadd.xlane.f32.xlu0 %v1430
        %v1432 = vpop.xlane.xlu0 %1431
        %v1433 = vsel %vm1366, %v1412, 0.0
        %1434 = vadd.xlane.f32.xlu0 %v1433
        %v1435 = vpop.xlane.xlu0 %1434
        %v1436 = vsel %vm1366, %v1414, 0.0
        %1437 = vadd.xlane.f32.xlu0 %v1436
        %v1438 = vpop.xlane.xlu0 %1437
        %v1439 = vrcp.pop %v1417
        %v1440 = vrcp.pop %v1420
        %v1441 = vrcp.pop %v1423
        %v1442 = vrcp.pop %v1426
        %v1443 = vrcp.pop %v1429
        %v1444 = vrcp.pop %v1432
        %v1445 = vrcp.pop %v1435
        %v1446 = vrcp.pop %v1438
        %v1447 = vmul.f32 %v1400, %v1439
        %v1448 = vmul.f32 %v1402, %v1440
        %v1449 = vmul.f32 %v1404, %v1441
        %v1450 = vmul.f32 %v1406, %v1442
        %v1451 = vmul.f32 %v1408, %v1443
        %v1452 = vmul.f32 %v1410, %v1444
        %v1453 = vmul.f32 %v1412, %v1445
        %v1454 = vmul.f32 %v1414, %v1446
        %v1456 = vsel %vm1366, %v1447, 0
        %v1459 = vsel %vm1366, %v1448, 0
        %1461 = vmatprep.subr.mxu0 0.0
        %1462 = vmatpush1.msra.mxu0 %v971
        %1463 = vmatprep.subr.mxu0 0.0
        %1464 = vmatpush1.msra.mxu0 %v976
        %1465 = vmatprep.subr.mxu0 0.0
        %1466 = vmatpush1.msra.mxu0 0.0
        %1467 = vmatprep.subr.mxu0 0.0
        %1468 = vmatpush1.msra.mxu0 0.0
        %1469 = vmatprep.subr.mxu0 0.0
        %1470 = vmatpush1.msra.mxu0 0.0
        %1471 = vmatprep.subr.mxu0 0.0
        %1472 = vmatpush1.msra.mxu0 0.0
        %1473 = vmatprep.subr.mxu0 0.0
        %1474 = vmatpush1.msra.mxu0 0.0
        %1475 = vmatprep.subr.mxu0 0.0
        %1476 = vmatpush1.msra.mxu0 0.0
        %1477 = vmatprep.subr.mxu0 0.0
        %1478 = vmatpush1.msra.mxu0 0.0
        %1479 = vmatprep.subr.mxu0 0.0
        %1480 = vmatpush1.msra.mxu0 0.0
        %1481 = vmatprep.subr.mxu0 0.0
        %1482 = vmatpush1.msra.mxu0 0.0
        %1483 = vmatprep.subr.mxu0 0.0
        %1484 = vmatpush1.msra.mxu0 0.0
        %1485 = vmatprep.subr.mxu0 0.0
        %1486 = vmatpush1.msra.mxu0 0.0
        %1487 = vmatprep.subr.mxu0 0.0
        %1488 = vmatpush1.msra.mxu0 0.0
        %1489 = vmatprep.subr.mxu0 0.0
        %1490 = vmatpush1.msra.mxu0 0.0
        %1491 = vmatprep.subr.mxu0 0.0
        %1492 = vmatpush1.msra.mxu0 0.0
        %1493 = vmatprep.subr.mxu0 0.0
        %1494 = vmatpush1.msra.mxu0 0.0
        %1495 = vmatprep.subr.mxu0 0.0
        %1496 = vmatpush1.msra.mxu0 0.0
        %1497 = vmatprep.subr.mxu0 0.0
        %1498 = vmatpush1.msra.mxu0 0.0
        %1499 = vmatprep.subr.mxu0 0.0
        %1500 = vmatpush1.msra.mxu0 0.0
        %1501 = vmatprep.subr.mxu0 0.0
        %1502 = vmatpush1.msra.mxu0 0.0
        %1503 = vmatprep.subr.mxu0 0.0
        %1504 = vmatpush1.msra.mxu0 0.0
        %1505 = vmatprep.subr.mxu0 0.0
        %1506 = vmatpush1.msra.mxu0 0.0
        %1507 = vmatprep.subr.mxu0 0.0
        %1508 = vmatpush1.msra.mxu0 0.0
        %1509 = vmatprep.subr.mxu0 0.0
        %1510 = vmatpush1.msra.mxu0 0.0
        %1511 = vmatprep.subr.mxu0 0.0
        %1512 = vmatpush1.msra.mxu0 0.0
        %1513 = vmatprep.subr.mxu0 0.0
        %1514 = vmatpush1.msra.mxu0 0.0
        %1515 = vmatprep.subr.mxu0 0.0
        %1516 = vmatpush1.msra.mxu0 0.0
        %1517 = vmatprep.subr.mxu0 0.0
        %1518 = vmatpush1.msra.mxu0 0.0
        %1519 = vmatprep.subr.mxu0 0.0
        %1520 = vmatpush1.msra.mxu0 0.0
        %1521 = vmatprep.subr.mxu0 0.0
        %1522 = vmatpush1.msra.mxu0 0.0
        %1523 = vmatprep.subr.mxu0 0.0
        %1524 = vmatpush1.msra.mxu0 0.0
        %1525 = vmatprep.mubr.f32.mxu0 0.0
        %1526 = vmatmul.mubr.f32.gmra.mrb[0].mxu0 %v1456
        %v1527 = vpop.f32.mrb[0].mxu0
        %v1528 = vadd.f32 0.0, %v1527
        %v1529 = vpop.f32.mrb[0].mxu0
        %1530 = vmatprep.mubr.f32.mxu0 0.0
        %1531 = vmatmul.mubr.f32.gmra.mrb[0].mxu0 %v1459
        %v1532 = vpop.f32.mrb[0].mxu0
        %v1533 = vadd.f32 0.0, %v1532
        %v1534 = vpop.f32.mrb[0].mxu0
        %1535 = vdwg.mxu0
        %v1537 = vsel %vm1366, %v1449, 0
        %v1540 = vsel %vm1366, %v1450, 0
        %1542 = vmatprep.subr.mxu0 0.0
        %1543 = vmatpush1.msra.mxu0 %v981
        %1544 = vmatprep.subr.mxu0 0.0
        %1545 = vmatpush1.msra.mxu0 %v986
        %1546 = vmatprep.subr.mxu0 0.0
        %1547 = vmatpush1.msra.mxu0 0.0
        %1548 = vmatprep.subr.mxu0 0.0
        %1549 = vmatpush1.msra.mxu0 0.0
        %1550 = vmatprep.subr.mxu0 0.0
        %1551 = vmatpush1.msra.mxu0 0.0
        %1552 = vmatprep.subr.mxu0 0.0
        %1553 = vmatpush1.msra.mxu0 0.0
        %1554 = vmatprep.subr.mxu0 0.0
        %1555 = vmatpush1.msra.mxu0 0.0
        %1556 = vmatprep.subr.mxu0 0.0
        %1557 = vmatpush1.msra.mxu0 0.0
        %1558 = vmatprep.subr.mxu0 0.0
        %1559 = vmatpush1.msra.mxu0 0.0
        %1560 = vmatprep.subr.mxu0 0.0
        %1561 = vmatpush1.msra.mxu0 0.0
        %1562 = vmatprep.subr.mxu0 0.0
        %1563 = vmatpush1.msra.mxu0 0.0
        %1564 = vmatprep.subr.mxu0 0.0
        %1565 = vmatpush1.msra.mxu0 0.0
        %1566 = vmatprep.subr.mxu0 0.0
        %1567 = vmatpush1.msra.mxu0 0.0
        %1568 = vmatprep.subr.mxu0 0.0
        %1569 = vmatpush1.msra.mxu0 0.0
        %1570 = vmatprep.subr.mxu0 0.0
        %1571 = vmatpush1.msra.mxu0 0.0
        %1572 = vmatprep.subr.mxu0 0.0
        %1573 = vmatpush1.msra.mxu0 0.0
        %1574 = vmatprep.subr.mxu0 0.0
        %1575 = vmatpush1.msra.mxu0 0.0
        %1576 = vmatprep.subr.mxu0 0.0
        %1577 = vmatpush1.msra.mxu0 0.0
        %1578 = vmatprep.subr.mxu0 0.0
        %1579 = vmatpush1.msra.mxu0 0.0
        %1580 = vmatprep.subr.mxu0 0.0
        %1581 = vmatpush1.msra.mxu0 0.0
        %1582 = vmatprep.subr.mxu0 0.0
        %1583 = vmatpush1.msra.mxu0 0.0
        %1584 = vmatprep.subr.mxu0 0.0
        %1585 = vmatpush1.msra.mxu0 0.0
        %1586 = vmatprep.subr.mxu0 0.0
        %1587 = vmatpush1.msra.mxu0 0.0
        %1588 = vmatprep.subr.mxu0 0.0
        %1589 = vmatpush1.msra.mxu0 0.0
        %1590 = vmatprep.subr.mxu0 0.0
        %1591 = vmatpush1.msra.mxu0 0.0
        %1592 = vmatprep.subr.mxu0 0.0
        %1593 = vmatpush1.msra.mxu0 0.0
        %1594 = vmatprep.subr.mxu0 0.0
        %1595 = vmatpush1.msra.mxu0 0.0
        %1596 = vmatprep.subr.mxu0 0.0
        %1597 = vmatpush1.msra.mxu0 0.0
        %1598 = vmatprep.subr.mxu0 0.0
        %1599 = vmatpush1.msra.mxu0 0.0
        %1600 = vmatprep.subr.mxu0 0.0
        %1601 = vmatpush1.msra.mxu0 0.0
        %1602 = vmatprep.subr.mxu0 0.0
        %1603 = vmatpush1.msra.mxu0 0.0
        %1604 = vmatprep.subr.mxu0 0.0
        %1605 = vmatpush1.msra.mxu0 0.0
        %1606 = vmatprep.mubr.f32.mxu0 0.0
        %1607 = vmatmul.mubr.f32.gmra.mrb[0].mxu0 %v1537
        %v1608 = vpop.f32.mrb[0].mxu0
        %v1609 = vadd.f32 0.0, %v1608
        %v1610 = vpop.f32.mrb[0].mxu0
        %1611 = vmatprep.mubr.f32.mxu0 0.0
        %1612 = vmatmul.mubr.f32.gmra.mrb[0].mxu0 %v1540
        %v1613 = vpop.f32.mrb[0].mxu0
        %v1614 = vadd.f32 0.0, %v1613
        %v1615 = vpop.f32.mrb[0].mxu0
        %1616 = vdwg.mxu0
        %v1618 = vsel %vm1366, %v1451, 0
        %v1621 = vsel %vm1366, %v1452, 0
        %1623 = vmatprep.subr.mxu0 0.0
        %1624 = vmatpush1.msra.mxu0 %v991
        %1625 = vmatprep.subr.mxu0 0.0
        %1626 = vmatpush1.msra.mxu0 %v996
        %1627 = vmatprep.subr.mxu0 0.0
        %1628 = vmatpush1.msra.mxu0 0.0
        %1629 = vmatprep.subr.mxu0 0.0
        %1630 = vmatpush1.msra.mxu0 0.0
        %1631 = vmatprep.subr.mxu0 0.0
        %1632 = vmatpush1.msra.mxu0 0.0
        %1633 = vmatprep.subr.mxu0 0.0
        %1634 = vmatpush1.msra.mxu0 0.0
        %1635 = vmatprep.subr.mxu0 0.0
        %1636 = vmatpush1.msra.mxu0 0.0
        %1637 = vmatprep.subr.mxu0 0.0
        %1638 = vmatpush1.msra.mxu0 0.0
        %1639 = vmatprep.subr.mxu0 0.0
        %1640 = vmatpush1.msra.mxu0 0.0
        %1641 = vmatprep.subr.mxu0 0.0
        %1642 = vmatpush1.msra.mxu0 0.0
        %1643 = vmatprep.subr.mxu0 0.0
        %1644 = vmatpush1.msra.mxu0 0.0
        %1645 = vmatprep.subr.mxu0 0.0
        %1646 = vmatpush1.msra.mxu0 0.0
        %1647 = vmatprep.subr.mxu0 0.0
        %1648 = vmatpush1.msra.mxu0 0.0
        %1649 = vmatprep.subr.mxu0 0.0
        %1650 = vmatpush1.msra.mxu0 0.0
        %1651 = vmatprep.subr.mxu0 0.0
        %1652 = vmatpush1.msra.mxu0 0.0
        %1653 = vmatprep.subr.mxu0 0.0
        %1654 = vmatpush1.msra.mxu0 0.0
        %1655 = vmatprep.subr.mxu0 0.0
        %1656 = vmatpush1.msra.mxu0 0.0
        %1657 = vmatprep.subr.mxu0 0.0
        %1658 = vmatpush1.msra.mxu0 0.0
        %1659 = vmatprep.subr.mxu0 0.0
        %1660 = vmatpush1.msra.mxu0 0.0
        %1661 = vmatprep.subr.mxu0 0.0
        %1662 = vmatpush1.msra.mxu0 0.0
        %1663 = vmatprep.subr.mxu0 0.0
        %1664 = vmatpush1.msra.mxu0 0.0
        %1665 = vmatprep.subr.mxu0 0.0
        %1666 = vmatpush1.msra.mxu0 0.0
        %1667 = vmatprep.subr.mxu0 0.0
        %1668 = vmatpush1.msra.mxu0 0.0
        %1669 = vmatprep.subr.mxu0 0.0
        %1670 = vmatpush1.msra.mxu0 0.0
        %1671 = vmatprep.subr.mxu0 0.0
        %1672 = vmatpush1.msra.mxu0 0.0
        %1673 = vmatprep.subr.mxu0 0.0
        %1674 = vmatpush1.msra.mxu0 0.0
        %1675 = vmatprep.subr.mxu0 0.0
        %1676 = vmatpush1.msra.mxu0 0.0
        %1677 = vmatprep.subr.mxu0 0.0
        %1678 = vmatpush1.msra.mxu0 0.0
        %1679 = vmatprep.subr.mxu0 0.0
        %1680 = vmatpush1.msra.mxu0 0.0
        %1681 = vmatprep.subr.mxu0 0.0
        %1682 = vmatpush1.msra.mxu0 0.0
        %1683 = vmatprep.subr.mxu0 0.0
        %1684 = vmatpush1.msra.mxu0 0.0
        %1685 = vmatprep.subr.mxu0 0.0
        %1686 = vmatpush1.msra.mxu0 0.0
        %1687 = vmatprep.mubr.f32.mxu0 0.0
        %1688 = vmatmul.mubr.f32.gmra.mrb[0].mxu0 %v1618
        %v1689 = vpop.f32.mrb[0].mxu0
        %v1690 = vadd.f32 0.0, %v1689
        %v1691 = vpop.f32.mrb[0].mxu0
        %1692 = vmatprep.mubr.f32.mxu0 0.0
        %1693 = vmatmul.mubr.f32.gmra.mrb[0].mxu0 %v1621
        %v1694 = vpop.f32.mrb[0].mxu0
        %v1695 = vadd.f32 0.0, %v1694
        %v1696 = vpop.f32.mrb[0].mxu0
        %1697 = vdwg.mxu0
        %v1699 = vsel %vm1366, %v1453, 0
        %v1702 = vsel %vm1366, %v1454, 0
        %1704 = vmatprep.subr.mxu0 0.0
        %1705 = vmatpush1.msra.mxu0 %v1001
        %1706 = vmatprep.subr.mxu0 0.0
        %1707 = vmatpush1.msra.mxu0 %v1006
        %1708 = vmatprep.subr.mxu0 0.0
        %1709 = vmatpush1.msra.mxu0 0.0
        %1710 = vmatprep.subr.mxu0 0.0
        %1711 = vmatpush1.msra.mxu0 0.0
        %1712 = vmatprep.subr.mxu0 0.0
        %1713 = vmatpush1.msra.mxu0 0.0
        %1714 = vmatprep.subr.mxu0 0.0
        %1715 = vmatpush1.msra.mxu0 0.0
        %1716 = vmatprep.subr.mxu0 0.0
        %1717 = vmatpush1.msra.mxu0 0.0
        %1718 = vmatprep.subr.mxu0 0.0
        %1719 = vmatpush1.msra.mxu0 0.0
        %1720 = vmatprep.subr.mxu0 0.0
        %1721 = vmatpush1.msra.mxu0 0.0
        %1722 = vmatprep.subr.mxu0 0.0
        %1723 = vmatpush1.msra.mxu0 0.0
        %1724 = vmatprep.subr.mxu0 0.0
        %1725 = vmatpush1.msra.mxu0 0.0
        %1726 = vmatprep.subr.mxu0 0.0
        %1727 = vmatpush1.msra.mxu0 0.0
        %1728 = vmatprep.subr.mxu0 0.0
        %1729 = vmatpush1.msra.mxu0 0.0
        %1730 = vmatprep.subr.mxu0 0.0
        %1731 = vmatpush1.msra.mxu0 0.0
        %1732 = vmatprep.subr.mxu0 0.0
        %1733 = vmatpush1.msra.mxu0 0.0
        %1734 = vmatprep.subr.mxu0 0.0
        %1735 = vmatpush1.msra.mxu0 0.0
        %1736 = vmatprep.subr.mxu0 0.0
        %1737 = vmatpush1.msra.mxu0 0.0
        %1738 = vmatprep.subr.mxu0 0.0
        %1739 = vmatpush1.msra.mxu0 0.0
        %1740 = vmatprep.subr.mxu0 0.0
        %1741 = vmatpush1.msra.mxu0 0.0
        %1742 = vmatprep.subr.mxu0 0.0
        %1743 = vmatpush1.msra.mxu0 0.0
        %1744 = vmatprep.subr.mxu0 0.0
        %1745 = vmatpush1.msra.mxu0 0.0
        %1746 = vmatprep.subr.mxu0 0.0
        %1747 = vmatpush1.msra.mxu0 0.0
        %1748 = vmatprep.subr.mxu0 0.0
        %1749 = vmatpush1.msra.mxu0 0.0
        %1750 = vmatprep.subr.mxu0 0.0
        %1751 = vmatpush1.msra.mxu0 0.0
        %1752 = vmatprep.subr.mxu0 0.0
        %1753 = vmatpush1.msra.mxu0 0.0
        %1754 = vmatprep.subr.mxu0 0.0
        %1755 = vmatpush1.msra.mxu0 0.0
        %1756 = vmatprep.subr.mxu0 0.0
        %1757 = vmatpush1.msra.mxu0 0.0
        %1758 = vmatprep.subr.mxu0 0.0
        %1759 = vmatpush1.msra.mxu0 0.0
        %1760 = vmatprep.subr.mxu0 0.0
        %1761 = vmatpush1.msra.mxu0 0.0
        %1762 = vmatprep.subr.mxu0 0.0
        %1763 = vmatpush1.msra.mxu0 0.0
        %1764 = vmatprep.subr.mxu0 0.0
        %1765 = vmatpush1.msra.mxu0 0.0
        %1766 = vmatprep.subr.mxu0 0.0
        %1767 = vmatpush1.msra.mxu0 0.0
        %1768 = vmatprep.mubr.f32.mxu0 0.0
        %1769 = vmatmul.mubr.f32.gmra.mrb[0].mxu0 %v1699
        %v1770 = vpop.f32.mrb[0].mxu0
        %v1771 = vadd.f32 0.0, %v1770
        %v1772 = vpop.f32.mrb[0].mxu0
        %1773 = vmatprep.mubr.f32.mxu0 0.0
        %1774 = vmatmul.mubr.f32.gmra.mrb[0].mxu0 %v1702
        %v1775 = vpop.f32.mrb[0].mxu0
        %v1776 = vadd.f32 0.0, %v1775
        %v1777 = vpop.f32.mrb[0].mxu0
        %1778 = vdwg.mxu0
        %v1779 = vld [vmem:[%s555] sm:$0xff]
        %v1781 = vsel %vm1017, %v1528, 0
        %v1784 = vsel %vm1017, %v1533, 0
        %v1787 = vsel %vm1017, %v1609, 0
        %v1790 = vsel %vm1017, %v1614, 0
        %v1793 = vsel %vm1017, %v1690, 0
        %v1796 = vsel %vm1017, %v1695, 0
        %v1799 = vsel %vm1017, %v1771, 0
        %v1802 = vsel %vm1017, %v1776, 0
        %1804 = vmatprep.subr.mxu0 0.0
        %1805 = vmatpush1.msra.mxu0 %v1779
        %1806 = vmatprep.subr.mxu0 0.0
        %1807 = vmatpush1.msra.mxu0 0.0
        %1808 = vmatprep.subr.mxu0 0.0
        %1809 = vmatpush1.msra.mxu0 0.0
        %1810 = vmatprep.subr.mxu0 0.0
        %1811 = vmatpush1.msra.mxu0 0.0
        %1812 = vmatprep.subr.mxu0 0.0
        %1813 = vmatpush1.msra.mxu0 0.0
        %1814 = vmatprep.subr.mxu0 0.0
        %1815 = vmatpush1.msra.mxu0 0.0
        %1816 = vmatprep.subr.mxu0 0.0
        %1817 = vmatpush1.msra.mxu0 0.0
        %1818 = vmatprep.subr.mxu0 0.0
        %1819 = vmatpush1.msra.mxu0 0.0
        %1820 = vmatprep.subr.mxu0 0.0
        %1821 = vmatpush1.msra.mxu0 0.0
        %1822 = vmatprep.subr.mxu0 0.0
        %1823 = vmatpush1.msra.mxu0 0.0
        %1824 = vmatprep.subr.mxu0 0.0
        %1825 = vmatpush1.msra.mxu0 0.0
        %1826 = vmatprep.subr.mxu0 0.0
        %1827 = vmatpush1.msra.mxu0 0.0
        %1828 = vmatprep.subr.mxu0 0.0
        %1829 = vmatpush1.msra.mxu0 0.0
        %1830 = vmatprep.subr.mxu0 0.0
        %1831 = vmatpush1.msra.mxu0 0.0
        %1832 = vmatprep.subr.mxu0 0.0
        %1833 = vmatpush1.msra.mxu0 0.0
        %1834 = vmatprep.subr.mxu0 0.0
        %1835 = vmatpush1.msra.mxu0 0.0
        %1836 = vmatprep.subr.mxu0 0.0
        %1837 = vmatpush1.msra.mxu0 0.0
        %1838 = vmatprep.subr.mxu0 0.0
        %1839 = vmatpush1.msra.mxu0 0.0
        %1840 = vmatprep.subr.mxu0 0.0
        %1841 = vmatpush1.msra.mxu0 0.0
        %1842 = vmatprep.subr.mxu0 0.0
        %1843 = vmatpush1.msra.mxu0 0.0
        %1844 = vmatprep.subr.mxu0 0.0
        %1845 = vmatpush1.msra.mxu0 0.0
        %1846 = vmatprep.subr.mxu0 0.0
        %1847 = vmatpush1.msra.mxu0 0.0
        %1848 = vmatprep.subr.mxu0 0.0
        %1849 = vmatpush1.msra.mxu0 0.0
        %1850 = vmatprep.subr.mxu0 0.0
        %1851 = vmatpush1.msra.mxu0 0.0
        %1852 = vmatprep.subr.mxu0 0.0
        %1853 = vmatpush1.msra.mxu0 0.0
        %1854 = vmatprep.subr.mxu0 0.0
        %1855 = vmatpush1.msra.mxu0 0.0
        %1856 = vmatprep.subr.mxu0 0.0
        %1857 = vmatpush1.msra.mxu0 0.0
        %1858 = vmatprep.subr.mxu0 0.0
        %1859 = vmatpush1.msra.mxu0 0.0
        %1860 = vmatprep.subr.mxu0 0.0
        %1861 = vmatpush1.msra.mxu0 0.0
        %1862 = vmatprep.subr.mxu0 0.0
        %1863 = vmatpush1.msra.mxu0 0.0
        %1864 = vmatprep.subr.mxu0 0.0
        %1865 = vmatpush1.msra.mxu0 0.0
        %1866 = vmatprep.subr.mxu0 0.0
        %1867 = vmatpush1.msra.mxu0 0.0
        %1868 = vmatprep.mubr.f32.mxu0 0.0
        %1869 = vmatmul.mubr.f32.gmra.mrb[0].mxu0 %v1781
        %v1870 = vpop.f32.mrb[0].mxu0
        %v1871 = vadd.f32 0.0, %v1870
        %v1872 = vpop.f32.mrb[0].mxu0
        %1873 = vmatprep.mubr.f32.mxu0 0.0
        %1874 = vmatmul.mubr.f32.gmra.mrb[0].mxu0 %v1784
        %v1875 = vpop.f32.mrb[0].mxu0
        %v1876 = vadd.f32 0.0, %v1875
        %v1877 = vpop.f32.mrb[0].mxu0
        %1878 = vmatprep.mubr.f32.mxu0 0.0
        %1879 = vmatmul.mubr.f32.gmra.mrb[0].mxu0 %v1787
        %v1880 = vpop.f32.mrb[0].mxu0
        %v1881 = vadd.f32 0.0, %v1880
        %v1882 = vpop.f32.mrb[0].mxu0
        %1883 = vmatprep.mubr.f32.mxu0 0.0
        %1884 = vmatmul.mubr.f32.gmra.mrb[0].mxu0 %v1790
        %v1885 = vpop.f32.mrb[0].mxu0
        %v1886 = vadd.f32 0.0, %v1885
        %v1887 = vpop.f32.mrb[0].mxu0
        %1888 = vmatprep.mubr.f32.mxu0 0.0
        %1889 = vmatmul.mubr.f32.gmra.mrb[0].mxu0 %v1793
        %v1890 = vpop.f32.mrb[0].mxu0
        %v1891 = vadd.f32 0.0, %v1890
        %v1892 = vpop.f32.mrb[0].mxu0
        %1893 = vmatprep.mubr.f32.mxu0 0.0
        %1894 = vmatmul.mubr.f32.gmra.mrb[0].mxu0 %v1796
        %v1895 = vpop.f32.mrb[0].mxu0
        %v1896 = vadd.f32 0.0, %v1895
        %v1897 = vpop.f32.mrb[0].mxu0
        %1898 = vmatprep.mubr.f32.mxu0 0.0
        %1899 = vmatmul.mubr.f32.gmra.mrb[0].mxu0 %v1799
        %v1900 = vpop.f32.mrb[0].mxu0
        %v1901 = vadd.f32 0.0, %v1900
        %v1902 = vpop.f32.mrb[0].mxu0
        %1903 = vmatprep.mubr.f32.mxu0 0.0
        %1904 = vmatmul.mubr.f32.gmra.mrb[0].mxu0 %v1802
        %v1905 = vpop.f32.mrb[0].mxu0
        %v1906 = vadd.f32 0.0, %v1905
        %v1907 = vpop.f32.mrb[0].mxu0
        %1908 = vdwg.mxu0
        %p1909 = scmp.eq.s32.totalorder %s43, 0
        // Predicated region
        $region93: #{_lambda_.7} parent=55 // pred_check
          %p1910 = pneg %p1909
        $region94: #{_lambda_.7} parent=55 // pred_check_branch
          %1912 = sbr.rel (%p1910) target = $region96
        $region95: #{_lambda_.7} parent=55 // pred_region
          %1913 = vst.msk [vmem:[#allocation2] sm:$0xff] %vm647, 0.0
          %1914 = vst.msk [vmem:[#allocation2 + $0x8] sm:$0xff] %vm647, 0.0
          %1915 = vst.msk [vmem:[#allocation2 + $0x10] sm:$0xff] %vm647, 0.0
          %1916 = vst.msk [vmem:[#allocation2 + $0x18] sm:$0xff] %vm647, 0.0
          %1917 = vst.msk [vmem:[#allocation2 + $0x20] sm:$0xff] %vm647, 0.0
          %1918 = vst.msk [vmem:[#allocation2 + $0x28] sm:$0xff] %vm647, 0.0
          %1919 = vst.msk [vmem:[#allocation2 + $0x30] sm:$0xff] %vm647, 0.0
          %1920 = vst.msk [vmem:[#allocation2 + $0x38] sm:$0xff] %vm647, 0.0
        $region96: #{_lambda_.7} parent=55 // pred_fallthru
          _
        %v1921 = vld [vmem:[#allocation2] sm:$0xff]
        %v1922 = vld [vmem:[#allocation2 + $0x8] sm:$0xff]
        %v1923 = vld [vmem:[#allocation2 + $0x10] sm:$0xff]
        %v1924 = vld [vmem:[#allocation2 + $0x18] sm:$0xff]
        %v1925 = vld [vmem:[#allocation2 + $0x20] sm:$0xff]
        %v1926 = vld [vmem:[#allocation2 + $0x28] sm:$0xff]
        %v1927 = vld [vmem:[#allocation2 + $0x30] sm:$0xff]
        %v1928 = vld [vmem:[#allocation2 + $0x38] sm:$0xff]
        %v1929 = vadd.f32 %v1921, %v1871
        %v1930 = vadd.f32 %v1922, %v1876
        %v1931 = vadd.f32 %v1923, %v1881
        %v1932 = vadd.f32 %v1924, %v1886
        %v1933 = vadd.f32 %v1925, %v1891
        %v1934 = vadd.f32 %v1926, %v1896
        %v1935 = vadd.f32 %v1927, %v1901
        %v1936 = vadd.f32 %v1928, %v1906
        %1937 = vst.msk [vmem:[#allocation2] sm:$0xff] %vm647, %v1929
        %1938 = vst.msk [vmem:[#allocation2 + $0x8] sm:$0xff] %vm647, %v1930
        %1939 = vst.msk [vmem:[#allocation2 + $0x10] sm:$0xff] %vm647, %v1931
        %1940 = vst.msk [vmem:[#allocation2 + $0x18] sm:$0xff] %vm647, %v1932
        %1941 = vst.msk [vmem:[#allocation2 + $0x20] sm:$0xff] %vm647, %v1933
        %1942 = vst.msk [vmem:[#allocation2 + $0x28] sm:$0xff] %vm647, %v1934
        %1943 = vst.msk [vmem:[#allocation2 + $0x30] sm:$0xff] %vm647, %v1935
        %1944 = vst.msk [vmem:[#allocation2 + $0x38] sm:$0xff] %vm647, %v1936
        %p1945 = scmp.eq.s32.totalorder %s43, 3
        // Predicated region
        $region97: #{_lambda_.7} parent=55 // pred_check
          %p1946 = pneg %p1945
        $region98: #{_lambda_.7} parent=55 // pred_check_branch
          %1948 = sbr.rel (%p1946) target = $region100
        $region99: #{_lambda_.7} parent=55 // pred_region
          %v1949 = vld [vmem:[#allocation2] sm:$0xff]
          %v1950 = vld [vmem:[#allocation2 + $0x8] sm:$0xff]
          %v1951 = vld [vmem:[#allocation2 + $0x10] sm:$0xff]
          %v1952 = vld [vmem:[#allocation2 + $0x18] sm:$0xff]
          %v1953 = vld [vmem:[#allocation2 + $0x20] sm:$0xff]
          %v1954 = vld [vmem:[#allocation2 + $0x28] sm:$0xff]
          %v1955 = vld [vmem:[#allocation2 + $0x30] sm:$0xff]
          %v1956 = vld [vmem:[#allocation2 + $0x38] sm:$0xff]
          %v1957 = vld [vmem:[#allocation17] sm:$0x1]
          %v1959 = vlaneseq
          %v1960 = vshrl.u32 %v1959, 7
          %v1961 = vsub.s32 0, %v1960
          %v1962 = vrot.slane %v1957, %v1961
          %v1964 = vadd.f32 %v1949, %v1962
          %v1965 = vadd.f32 %v1950, %v1962
          %v1966 = vadd.f32 %v1951, %v1962
          %v1967 = vadd.f32 %v1952, %v1962
          %v1968 = vadd.f32 %v1953, %v1962
          %v1969 = vadd.f32 %v1954, %v1962
          %v1970 = vadd.f32 %v1955, %v1962
          %v1971 = vadd.f32 %v1956, %v1962
          %1972 = vst.msk [vmem:[%s625] sm:$0xff] %vm647, %v1964
          %1973 = vst.msk [vmem:[%s625 + $0x8] sm:$0xff] %vm647, %v1965
          %1974 = vst.msk [vmem:[%s625 + $0x10] sm:$0xff] %vm647, %v1966
          %1975 = vst.msk [vmem:[%s625 + $0x18] sm:$0xff] %vm647, %v1967
          %1976 = vst.msk [vmem:[%s625 + $0x20] sm:$0xff] %vm647, %v1968
          %1977 = vst.msk [vmem:[%s625 + $0x28] sm:$0xff] %vm647, %v1969
          %1978 = vst.msk [vmem:[%s625 + $0x30] sm:$0xff] %vm647, %v1970
          %1979 = vst.msk [vmem:[%s625 + $0x38] sm:$0xff] %vm647, %v1971
        $region100: #{_lambda_.7} parent=55 // pred_fallthru
          _
        %s1980 = sand.u32 %s287, 1
        %s1981 = scalar_lea.sflag [#allocation5], %s1980
        %s1982 = sand.u32 %s287, 1
        %s1983 = smul.addr %s1982, 64
        %s1984 = scalar_lea.vmem [#allocation18], %s1983
        // Predicated region
        $region101: #{_lambda_.7} parent=55 // pred_check
          %p1985 = pneg %p297
        $region102: #{_lambda_.7} parent=55 // pred_check_branch
          %1987 = sbr.rel (%p1985) target = $region104
        $region103: #{_lambda_.7} parent=55 // pred_region
          %s1988 = smul.u32 4, %s42
          %s1990 = ssub.s32 1024, 1024
          %1991 = vsyncadd %s1981, %s1990
          %s1992 = smul.addr %s1988, 2
          %s1993 = smul.addr %s1992, 128
          %s1994 = scalar_lea.hbm %s9, %s1993
          %s1995 = sshll.u32 %s1984, 4
          %s1996 = int_to_ptr.vmem [resolvable:$true] %s1995
          %2001 = dma.vmem_to_hbm [thread:$0]  %s1996, 1024, %s1994, %s1981, 128, 128, 8
        $region104: #{_lambda_.7} parent=55 // pred_fallthru
          _
      $region56: #{_lambda_.7} parent=5 // pred_fallthru
        _
      %p2002 = scmp.le.s32.totalorder 2, %s33
      // Predicated region
      $region105: #{_lambda_.7} parent=5 // pred_check
        %p2003 = pneg %p2002
      $region106: #{_lambda_.7} parent=5 // pred_check_branch
        %2005 = sbr.rel (%p2003) target = $region108
      $region107: #{_lambda_.7} parent=5 // pred_region
        %s2006 = ssub.s32 %s33, 2
        // Predicated region
        $region109: #{_lambda_.7} parent=107 // pred_check
          %p2007 = pneg %p303
        $region110: #{_lambda_.7} parent=107 // pred_check_branch
          %2009 = sbr.rel (%p2007) target = $region112
        $region111: #{_lambda_.7} parent=107 // pred_region
          %s2010 = sand.u32 %s288, 1
          %s2011 = scalar_lea.sflag [#allocation5], %s2010
          %s2012 = sand.u32 %s288, 1
          %s2013 = smul.addr %s2012, 64
          %s2014 = scalar_lea.vmem [#allocation18], %s2013
          %2015 = dma.done %s2011, 1024
        $region112: #{_lambda_.7} parent=107 // pred_fallthru
          _
      $region108: #{_lambda_.7} parent=5 // pred_fallthru
        _
    $region6: #{_lambda_.7} parent=1 // loop_footer
      %s37 = sadd.s32 1, %s33
    $region7: #{_lambda_.7} parent=1 // loop_footer_branch
      %32 = sbr.rel target = $region3
    $region8: #{_lambda_.7} parent=1 // loop_exit
      _
    %2016 = vsyncpa [#allocation4], 1
    %s2017 = scalar_lea.sflag [#allocation4], 1
    %2018 = vsyncpa %s2017, 1
    %2019 = vsyncpa [#allocation7], 1
    %s2020 = scalar_lea.sflag [#allocation7], 1
    %2021 = vsyncpa %s2020, 1
    %2022 = vsyncpa [#allocation10], 1
    %s2023 = scalar_lea.sflag [#allocation10], 1
    %2024 = vsyncpa %s2023, 1
    %2025 = vsyncpa [#allocation13], 1
    %s2026 = scalar_lea.sflag [#allocation13], 1
    %2027 = vsyncpa %s2026, 1
    %2028 = vsyncpa [#allocation16], 1
    %s2029 = scalar_lea.sflag [#allocation16], 1
    %2030 = vsyncpa %s2029, 1
    %2031 = vsyncpa [#allocation5], 1
    %s2032 = scalar_lea.sflag [#allocation5], 1
    %2033 = vsyncpa %s2032, 1

// kernel: _lambda_.8
$region0: #{_lambda_.8}
  #allocation0 [shape = 'u32[]', space=smem, size = 0x4, offset = 0x4, fixed_abs, tag = 'smem constant byte address 0x4 - core index']
  #allocation1 [shape = 'u32[144,128]{1,0:T(1,128)}', space=vmem, size = 0x12000, scoped, tag = 'internal scratch']
  #allocation2 [shape = 'f32[64,32]{1,0:T(8,128)}', space=vmem, size = 0x8000, scoped, tag = 'scratch operand']
  %s0 = inlined_call_operand.hbm [shape: f32[8,16,32], index: 0, kind: input, shape index: {}]
  %s1 = inlined_call_operand.hbm [shape: f32[4,32,8], index: 1, kind: input, shape index: {}]
  %s2 = inlined_call_operand.hbm [shape: f32[4,32,8], index: 2, kind: input, shape index: {}]
  %s3 = inlined_call_operand.hbm [shape: f32[4,32,8], index: 3, kind: input, shape index: {}]
  %s4 = inlined_call_operand.hbm [shape: f32[4,1,8], index: 4, kind: input, shape index: {}, may-alias: {4,5,6}]
  %s5 = inlined_call_operand.hbm [shape: f32[4,1,8], index: 5, kind: input, shape index: {}, may-alias: {4,5,6}]
  %s6 = inlined_call_operand.hbm [shape: f32[4,1,8], index: 6, kind: input, shape index: {}, may-alias: {4,5,6}]
  %s7 = inlined_call_operand.hbm [shape: f32[4,8,32], index: 7, kind: input, shape index: {}]
  %s8 = inlined_call_operand.hbm [shape: f32[1,32], index: 8, kind: input, shape index: {}]
  %s9 = inlined_call_operand.hbm [shape: bf16[4,16,16], index: 9, kind: input, shape index: {}]
  %s10 = inlined_call_operand.hbm [shape: f32[8,16,32], index: 10, kind: output, shape index: {}]
  %s11 = sld [smem:[#allocation0]]
  $region121: #{_lambda_.8} parent=0
    _
  %s13 = ssub.s32 1, %s11
  %s14 = scalar_select 0, %s13, %s11
  $region1: #{_lambda_.8} parent=0
    #allocation3 [shape = 'u8[65536]{0}', space=vmem, size = 0x10000, scoped, tag = 'input window, operand 0']
    #allocation4 [shape = 's32[2]{0}', space=sflag, size = 0x8, scoped, tag = 'scoped memory for _lambda_.8']
    #allocation5 [shape = 's32[2]{0}', space=sflag, size = 0x8, scoped, tag = 'scoped memory for _lambda_.8']
    #allocation6 [shape = 'u8[32768]{0}', space=vmem, size = 0x8000, scoped, tag = 'input window, operand 1']
    #allocation7 [shape = 's32[2]{0}', space=sflag, size = 0x8, scoped, tag = 'scoped memory for _lambda_.8']
    #allocation8 [shape = 'u8[32768]{0}', space=vmem, size = 0x8000, scoped, tag = 'input window, operand 2']
    #allocation9 [shape = 'u8[32768]{0}', space=vmem, size = 0x8000, scoped, tag = 'input window, operand 3']
    #allocation10 [shape = 's32[2]{0}', space=sflag, size = 0x8, scoped, tag = 'scoped memory for _lambda_.8']
    #allocation11 [shape = 'u8[1024]{0}', space=vmem, size = 0x400, scoped, tag = 'input window, operand 4']
    #allocation12 [shape = 'u8[1024]{0}', space=vmem, size = 0x400, scoped, tag = 'input window, operand 5']
    #allocation13 [shape = 's32[2]{0}', space=sflag, size = 0x8, scoped, tag = 'scoped memory for _lambda_.8']
    #allocation14 [shape = 'u8[1024]{0}', space=vmem, size = 0x400, scoped, tag = 'input window, operand 6']
    #allocation15 [shape = 'u8[8192]{0}', space=vmem, size = 0x2000, scoped, tag = 'input window, operand 7']
    #allocation16 [shape = 's32[2]{0}', space=sflag, size = 0x8, scoped, tag = 'scoped memory for _lambda_.8']
    #allocation17 [shape = 'u8[512]{0}', space=vmem, size = 0x400, scoped, tag = 'input window, operand 8, single buffered']
    #allocation18 [shape = 'u8[8192]{0}', space=vmem, size = 0x2000, scoped, tag = 'input window, operand 9']
    #allocation19 [shape = 's32[2]{0}', space=sflag, size = 0x8, scoped, tag = 'scoped memory for _lambda_.8']
    #allocation20 [shape = 'u8[65536]{0}', space=vmem, size = 0x10000, scoped, tag = 'output window, operand 0']
    %15 = vsyncpa [#allocation4], 0
    %s16 = scalar_lea.sflag [#allocation4], 1
    %17 = vsyncpa %s16, 0
    %18 = vsyncpa [#allocation7], 0
    %s19 = scalar_lea.sflag [#allocation7], 1
    %20 = vsyncpa %s19, 0
    %21 = vsyncpa [#allocation10], 0
    %s22 = scalar_lea.sflag [#allocation10], 1
    %23 = vsyncpa %s22, 0
    %24 = vsyncpa [#allocation13], 0
    %s25 = scalar_lea.sflag [#allocation13], 1
    %26 = vsyncpa %s25, 0
    %27 = vsyncpa [#allocation16], 0
    %s28 = scalar_lea.sflag [#allocation16], 1
    %29 = vsyncpa %s28, 0
    %30 = vsyncpa [#allocation19], 0
    %s31 = scalar_lea.sflag [#allocation19], 1
    %32 = vsyncpa %s31, 0
    %33 = vsyncpa [#allocation5], 0
    %s34 = scalar_lea.sflag [#allocation5], 1
    %35 = vsyncpa %s34, 0
    loop: start=0, step=1, limit=10
    $region2: #{_lambda_.8} parent=1 // loop_pre_header
      _
    $region3: #{_lambda_.8} parent=1 // loop_header
      %s37 = sphi 0, %s41
      %p38 = scmp.ge.s32.totalorder %s37, 10
      %s44 = sphi 0, %s56
      %s45 = sphi 0, %s52
      %s46 = sphi 0, %s44
      %s47 = sphi 0, %s45
      %s48 = sphi 0, %s46
      %s49 = sphi 0, %s47
      %s59 = sphi 0, %s61
      %s62 = sphi 0, %s59
      %s63 = sphi 0, %s62
      %s79 = sphi 0, %s63
      %s85 = sphi 0, %s87
      %s88 = sphi 0, %s85
      %s89 = sphi 0, %s88
      %s105 = sphi 0, %s89
      %s111 = sphi 0, %s113
      %s114 = sphi 0, %s111
      %s115 = sphi 0, %s114
      %s131 = sphi 0, %s115
      %s137 = sphi 0, %s139
      %s140 = sphi 0, %s137
      %s141 = sphi 0, %s140
      %s157 = sphi 0, %s141
      %s163 = sphi 0, %s165
      %s166 = sphi 0, %s163
      %s167 = sphi 0, %s166
      %s183 = sphi 0, %s167
      %s189 = sphi 0, %s191
      %s192 = sphi 0, %s189
      %s193 = sphi 0, %s192
      %s209 = sphi 0, %s193
      %s215 = sphi 0, %s217
      %s218 = sphi 0, %s215
      %s219 = sphi 0, %s218
      %s235 = sphi 0, %s219
      %s241 = sphi 0, %s243
      %s244 = sphi 0, %s241
      %s245 = sphi 0, %s244
      %s261 = sphi 0, %s245
      %s265 = sphi 0, %s265
      %s267 = sphi 0, %s265
      %s268 = sphi 0, %s267
      %s282 = sphi 0, %s268
      %s288 = sphi 0, %s290
      %s291 = sphi 0, %s288
      %s292 = sphi 0, %s291
      %s308 = sphi 0, %s292
      %s314 = sphi 0, %s316
      %s317 = sphi 0, %s314
      %s318 = sphi 0, %s317
      %s334 = sphi 0, %s318
    $region4: #{_lambda_.8} parent=1 // loop_header_branch
      %40 = sbr.rel (%p38) target = $region8
    $region5: #{_lambda_.8} parent=1 // loop_body
      %s42 = ssub.s32 %s37, 1
      %s43 = ssub.s32 %s37, 2
      %s50 = sadd.s32 1, %s45
      %p51 = scmp.ge.s32.totalorder %s50, 4
      %s52 = scalar_select %p51, 0, %s50
      %s53 = sadd.s32 1, %s44
      %s54 = scalar_select %p51, %s53, %s44
      %p55 = scmp.ge.s32.totalorder %s54, 2
      %s56 = scalar_select %p55, 0, %s54
      %s57 = ssub.s32 %s44, %s56
      %p58 = scmp.eq.s32.totalorder %s57, 0
      %s60 = sadd.s32 %s59, 1
      %s61 = scalar_select %p58, %s59, %s60
      %p64 = pneg %p58
      %p65 = scmp.eq.s32.totalorder %s37, 7
      %p66 = por %p64, %p65
      %p67 = scmp.ne.s32.totalorder %s59, %s62
      %p68 = scmp.eq.s32.totalorder %s37, 0
      %p69 = por %p67, %p68
      %p70 = scmp.ne.s32.totalorder %s59, %s62
      %p71 = scmp.eq.s32.totalorder %s42, 7
      %p72 = por %p70, %p71
      %p73 = scmp.ne.s32.totalorder %s62, %s63
      %p74 = scmp.eq.s32.totalorder %s42, 0
      %p75 = por %p73, %p74
      %p76 = scmp.ne.s32.totalorder %s62, %s63
      %p77 = scmp.eq.s32.totalorder %s43, 7
      %p78 = por %p76, %p77
      %p80 = scmp.ne.s32.totalorder %s63, %s79
      %p81 = scmp.eq.s32.totalorder %s43, 0
      %p82 = por %p80, %p81
      %s83 = ssub.s32 %s45, %s52
      %p84 = scmp.eq.s32.totalorder %s83, 0
      %s86 = sadd.s32 %s85, 1
      %s87 = scalar_select %p84, %s85, %s86
      %p90 = pneg %p84
      %p91 = scmp.eq.s32.totalorder %s37, 7
      %p92 = por %p90, %p91
      %p93 = scmp.ne.s32.totalorder %s85, %s88
      %p94 = scmp.eq.s32.totalorder %s37, 0
      %p95 = por %p93, %p94
      %p96 = scmp.ne.s32.totalorder %s85, %s88
      %p97 = scmp.eq.s32.totalorder %s42, 7
      %p98 = por %p96, %p97
      %p99 = scmp.ne.s32.totalorder %s88, %s89
      %p100 = scmp.eq.s32.totalorder %s42, 0
      %p101 = por %p99, %p100
      %p102 = scmp.ne.s32.totalorder %s88, %s89
      %p103 = scmp.eq.s32.totalorder %s43, 7
      %p104 = por %p102, %p103
      %p106 = scmp.ne.s32.totalorder %s89, %s105
      %p107 = scmp.eq.s32.totalorder %s43, 0
      %p108 = por %p106, %p107
      %s109 = ssub.s32 %s45, %s52
      %p110 = scmp.eq.s32.totalorder %s109, 0
      %s112 = sadd.s32 %s111, 1
      %s113 = scalar_select %p110, %s111, %s112
      %p116 = pneg %p110
      %p117 = scmp.eq.s32.totalorder %s37, 7
      %p118 = por %p116, %p117
      %p119 = scmp.ne.s32.totalorder %s111, %s114
      %p120 = scmp.eq.s32.totalorder %s37, 0
      %p121 = por %p119, %p120
      %p122 = scmp.ne.s32.totalorder %s111, %s114
      %p123 = scmp.eq.s32.totalorder %s42, 7
      %p124 = por %p122, %p123
      %p125 = scmp.ne.s32.totalorder %s114, %s115
      %p126 = scmp.eq.s32.totalorder %s42, 0
      %p127 = por %p125, %p126
      %p128 = scmp.ne.s32.totalorder %s114, %s115
      %p129 = scmp.eq.s32.totalorder %s43, 7
      %p130 = por %p128, %p129
      %p132 = scmp.ne.s32.totalorder %s115, %s131
      %p133 = scmp.eq.s32.totalorder %s43, 0
      %p134 = por %p132, %p133
      %s135 = ssub.s32 %s45, %s52
      %p136 = scmp.eq.s32.totalorder %s135, 0
      %s138 = sadd.s32 %s137, 1
      %s139 = scalar_select %p136, %s137, %s138
      %p142 = pneg %p136
      %p143 = scmp.eq.s32.totalorder %s37, 7
      %p144 = por %p142, %p143
      %p145 = scmp.ne.s32.totalorder %s137, %s140
      %p146 = scmp.eq.s32.totalorder %s37, 0
      %p147 = por %p145, %p146
      %p148 = scmp.ne.s32.totalorder %s137, %s140
      %p149 = scmp.eq.s32.totalorder %s42, 7
      %p150 = por %p148, %p149
      %p151 = scmp.ne.s32.totalorder %s140, %s141
      %p152 = scmp.eq.s32.totalorder %s42, 0
      %p153 = por %p151, %p152
      %p154 = scmp.ne.s32.totalorder %s140, %s141
      %p155 = scmp.eq.s32.totalorder %s43, 7
      %p156 = por %p154, %p155
      %p158 = scmp.ne.s32.totalorder %s141, %s157
      %p159 = scmp.eq.s32.totalorder %s43, 0
      %p160 = por %p158, %p159
      %s161 = ssub.s32 %s45, %s52
      %p162 = scmp.eq.s32.totalorder %s161, 0
      %s164 = sadd.s32 %s163, 1
      %s165 = scalar_select %p162, %s163, %s164
      %p168 = pneg %p162
      %p169 = scmp.eq.s32.totalorder %s37, 7
      %p170 = por %p168, %p169
      %p171 = scmp.ne.s32.totalorder %s163, %s166
      %p172 = scmp.eq.s32.totalorder %s37, 0
      %p173 = por %p171, %p172
      %p174 = scmp.ne.s32.totalorder %s163, %s166
      %p175 = scmp.eq.s32.totalorder %s42, 7
      %p176 = por %p174, %p175
      %p177 = scmp.ne.s32.totalorder %s166, %s167
      %p178 = scmp.eq.s32.totalorder %s42, 0
      %p179 = por %p177, %p178
      %p180 = scmp.ne.s32.totalorder %s166, %s167
      %p181 = scmp.eq.s32.totalorder %s43, 7
      %p182 = por %p180, %p181
      %p184 = scmp.ne.s32.totalorder %s167, %s183
      %p185 = scmp.eq.s32.totalorder %s43, 0
      %p186 = por %p184, %p185
      %s187 = ssub.s32 %s45, %s52
      %p188 = scmp.eq.s32.totalorder %s187, 0
      %s190 = sadd.s32 %s189, 1
      %s191 = scalar_select %p188, %s189, %s190
      %p194 = pneg %p188
      %p195 = scmp.eq.s32.totalorder %s37, 7
      %p196 = por %p194, %p195
      %p197 = scmp.ne.s32.totalorder %s189, %s192
      %p198 = scmp.eq.s32.totalorder %s37, 0
      %p199 = por %p197, %p198
      %p200 = scmp.ne.s32.totalorder %s189, %s192
      %p201 = scmp.eq.s32.totalorder %s42, 7
      %p202 = por %p200, %p201
      %p203 = scmp.ne.s32.totalorder %s192, %s193
      %p204 = scmp.eq.s32.totalorder %s42, 0
      %p205 = por %p203, %p204
      %p206 = scmp.ne.s32.totalorder %s192, %s193
      %p207 = scmp.eq.s32.totalorder %s43, 7
      %p208 = por %p206, %p207
      %p210 = scmp.ne.s32.totalorder %s193, %s209
      %p211 = scmp.eq.s32.totalorder %s43, 0
      %p212 = por %p210, %p211
      %s213 = ssub.s32 %s45, %s52
      %p214 = scmp.eq.s32.totalorder %s213, 0
      %s216 = sadd.s32 %s215, 1
      %s217 = scalar_select %p214, %s215, %s216
      %p220 = pneg %p214
      %p221 = scmp.eq.s32.totalorder %s37, 7
      %p222 = por %p220, %p221
      %p223 = scmp.ne.s32.totalorder %s215, %s218
      %p224 = scmp.eq.s32.totalorder %s37, 0
      %p225 = por %p223, %p224
      %p226 = scmp.ne.s32.totalorder %s215, %s218
      %p227 = scmp.eq.s32.totalorder %s42, 7
      %p228 = por %p226, %p227
      %p229 = scmp.ne.s32.totalorder %s218, %s219
      %p230 = scmp.eq.s32.totalorder %s42, 0
      %p231 = por %p229, %p230
      %p232 = scmp.ne.s32.totalorder %s218, %s219
      %p233 = scmp.eq.s32.totalorder %s43, 7
      %p234 = por %p232, %p233
      %p236 = scmp.ne.s32.totalorder %s219, %s235
      %p237 = scmp.eq.s32.totalorder %s43, 0
      %p238 = por %p236, %p237
      %s239 = ssub.s32 %s45, %s52
      %p240 = scmp.eq.s32.totalorder %s239, 0
      %s242 = sadd.s32 %s241, 1
      %s243 = scalar_select %p240, %s241, %s242
      %p246 = pneg %p240
      %p247 = scmp.eq.s32.totalorder %s37, 7
      %p248 = por %p246, %p247
      %p249 = scmp.ne.s32.totalorder %s241, %s244
      %p250 = scmp.eq.s32.totalorder %s37, 0
      %p251 = por %p249, %p250
      %p252 = scmp.ne.s32.totalorder %s241, %s244
      %p253 = scmp.eq.s32.totalorder %s42, 7
      %p254 = por %p252, %p253
      %p255 = scmp.ne.s32.totalorder %s244, %s245
      %p256 = scmp.eq.s32.totalorder %s42, 0
      %p257 = por %p255, %p256
      %p258 = scmp.ne.s32.totalorder %s244, %s245
      %p259 = scmp.eq.s32.totalorder %s43, 7
      %p260 = por %p258, %p259
      %p262 = scmp.ne.s32.totalorder %s245, %s261
      %p263 = scmp.eq.s32.totalorder %s43, 0
      %p264 = por %p262, %p263
      %s266 = sadd.s32 %s265, 1
      %p269 = scmp.eq.s32.totalorder %s37, 7
      %p270 = scmp.ne.s32.totalorder %s265, %s267
      %p271 = scmp.eq.s32.totalorder %s37, 0
      %p272 = por %p270, %p271
      %p273 = scmp.ne.s32.totalorder %s265, %s267
      %p274 = scmp.eq.s32.totalorder %s42, 7
      %p275 = por %p273, %p274
      %p276 = scmp.ne.s32.totalorder %s267, %s268
      %p277 = scmp.eq.s32.totalorder %s42, 0
      %p278 = por %p276, %p277
      %p279 = scmp.ne.s32.totalorder %s267, %s268
      %p280 = scmp.eq.s32.totalorder %s43, 7
      %p281 = por %p279, %p280
      %p283 = scmp.ne.s32.totalorder %s268, %s282
      %p284 = scmp.eq.s32.totalorder %s43, 0
      %p285 = por %p283, %p284
      %s286 = ssub.s32 %s45, %s52
      %p287 = scmp.eq.s32.totalorder %s286, 0
      %s289 = sadd.s32 %s288, 1
      %s290 = scalar_select %p287, %s288, %s289
      %p293 = pneg %p287
      %p294 = scmp.eq.s32.totalorder %s37, 7
      %p295 = por %p293, %p294
      %p296 = scmp.ne.s32.totalorder %s288, %s291
      %p297 = scmp.eq.s32.totalorder %s37, 0
      %p298 = por %p296, %p297
      %p299 = scmp.ne.s32.totalorder %s288, %s291
      %p300 = scmp.eq.s32.totalorder %s42, 7
      %p301 = por %p299, %p300
      %p302 = scmp.ne.s32.totalorder %s291, %s292
      %p303 = scmp.eq.s32.totalorder %s42, 0
      %p304 = por %p302, %p303
      %p305 = scmp.ne.s32.totalorder %s291, %s292
      %p306 = scmp.eq.s32.totalorder %s43, 7
      %p307 = por %p305, %p306
      %p309 = scmp.ne.s32.totalorder %s292, %s308
      %p310 = scmp.eq.s32.totalorder %s43, 0
      %p311 = por %p309, %p310
      %s312 = ssub.s32 %s44, %s56
      %p313 = scmp.eq.s32.totalorder %s312, 0
      %s315 = sadd.s32 %s314, 1
      %s316 = scalar_select %p313, %s314, %s315
      %p319 = pneg %p313
      %p320 = scmp.eq.s32.totalorder %s37, 7
      %p321 = por %p319, %p320
      %p322 = scmp.ne.s32.totalorder %s314, %s317
      %p323 = scmp.eq.s32.totalorder %s37, 0
      %p324 = por %p322, %p323
      %p325 = scmp.ne.s32.totalorder %s314, %s317
      %p326 = scmp.eq.s32.totalorder %s42, 7
      %p327 = por %p325, %p326
      %p328 = scmp.ne.s32.totalorder %s317, %s318
      %p329 = scmp.eq.s32.totalorder %s42, 0
      %p330 = por %p328, %p329
      %p331 = scmp.ne.s32.totalorder %s317, %s318
      %p332 = scmp.eq.s32.totalorder %s43, 7
      %p333 = por %p331, %p332
      %p335 = scmp.ne.s32.totalorder %s318, %s334
      %p336 = scmp.eq.s32.totalorder %s43, 0
      %p337 = por %p335, %p336
      %p338 = scmp.le.s32.totalorder 1, %s37
      %p339 = scmp.lt.s32.totalorder %s37, 9
      %p340 = pnand %p338, %p339
      %p341 = pneg %p340
      // Predicated region
      $region9: #{_lambda_.8} parent=5 // pred_check
        _
      $region10: #{_lambda_.8} parent=5 // pred_check_branch
        %343 = sbr.rel (%p340) target = $region12
      $region11: #{_lambda_.8} parent=5 // pred_region
        %s344 = ssub.s32 %s37, 1
        // Predicated region
        $region13: #{_lambda_.8} parent=11 // pred_check
          %p345 = pneg %p278
        $region14: #{_lambda_.8} parent=11 // pred_check_branch
          %347 = sbr.rel (%p345) target = $region16
        $region15: #{_lambda_.8} parent=11 // pred_region
          %s349 = ssub.s32 16, 16
          %350 = vsyncadd [#allocation16], %s349
          %s352 = sshll.u32 [#allocation17], 4
          %s353 = int_to_ptr.vmem [resolvable:$true] %s352
          %355 = dma.hbm_to_vmem [thread:$0]  %s8, 16, %s353, [#allocation16]
        $region16: #{_lambda_.8} parent=11 // pred_fallthru
          _
      $region12: #{_lambda_.8} parent=5 // pred_fallthru
        _
      %p356 = scmp.lt.s32.totalorder %s37, 8
      // Predicated region
      $region17: #{_lambda_.8} parent=5 // pred_check
        %p357 = pneg %p356
      $region18: #{_lambda_.8} parent=5 // pred_check_branch
        %359 = sbr.rel (%p357) target = $region20
      $region19: #{_lambda_.8} parent=5 // pred_region
        // Predicated region
        $region21: #{_lambda_.8} parent=19 // pred_check
          %p360 = pneg %p69
        $region22: #{_lambda_.8} parent=19 // pred_check_branch
          %362 = sbr.rel (%p360) target = $region24
        $region23: #{_lambda_.8} parent=19 // pred_region
          %s363 = sand.u32 %s59, 1
          %s364 = scalar_lea.sflag [#allocation4], %s363
          %s365 = sand.u32 %s59, 1
          %s366 = smul.addr %s365, 64
          %s367 = scalar_lea.vmem [#allocation3], %s366
          %s368 = smul.u32 4, %s44
          %s370 = ssub.s32 1024, 1024
          %371 = vsyncadd %s364, %s370
          %s372 = smul.addr %s368, 2
          %s373 = smul.addr %s372, 128
          %s374 = scalar_lea.hbm %s0, %s373
          %s375 = sshll.u32 %s367, 4
          %s376 = int_to_ptr.vmem [resolvable:$true] %s375
          %381 = dma.hbm_to_vmem [thread:$0]  %s374, 1024, %s376, %s364, 128, 128, 8
        $region24: #{_lambda_.8} parent=19 // pred_fallthru
          _
        // Predicated region
        $region25: #{_lambda_.8} parent=19 // pred_check
          %p382 = pneg %p95
        $region26: #{_lambda_.8} parent=19 // pred_check_branch
          %384 = sbr.rel (%p382) target = $region28
        $region27: #{_lambda_.8} parent=19 // pred_region
          %s385 = sand.u32 %s37, 1
          %s386 = scalar_lea.sflag [#allocation7], %s385
          %s387 = sand.u32 %s85, 1
          %s388 = smul.addr %s387, 32
          %s389 = scalar_lea.vmem [#allocation6], %s388
          %s391 = ssub.s32 512, 512
          %392 = vsyncadd %s386, %s391
          %s393 = smul.addr %s45, 4
          %s394 = smul.addr %s393, 128
          %s395 = scalar_lea.hbm %s1, %s394
          %s396 = sshll.u32 %s389, 4
          %s397 = int_to_ptr.vmem [resolvable:$true] %s396
          %402 = dma.hbm_to_vmem [thread:$0]  %s395, 512, %s397, %s386, 128, 128, 8
        $region28: #{_lambda_.8} parent=19 // pred_fallthru
          _
        // Predicated region
        $region29: #{_lambda_.8} parent=19 // pred_check
          %p403 = pneg %p121
        $region30: #{_lambda_.8} parent=19 // pred_check_branch
          %405 = sbr.rel (%p403) target = $region32
        $region31: #{_lambda_.8} parent=19 // pred_region
          %s406 = sand.u32 %s37, 1
          %s407 = scalar_lea.sflag [#allocation7], %s406
          %s408 = sand.u32 %s111, 1
          %s409 = smul.addr %s408, 32
          %s410 = scalar_lea.vmem [#allocation8], %s409
          %s412 = ssub.s32 512, 512
          %413 = vsyncadd %s407, %s412
          %s414 = smul.addr %s45, 4
          %s415 = smul.addr %s414, 128
          %s416 = scalar_lea.hbm %s2, %s415
          %s417 = sshll.u32 %s410, 4
          %s418 = int_to_ptr.vmem [resolvable:$true] %s417
          %423 = dma.hbm_to_vmem [thread:$0]  %s416, 512, %s418, %s407, 128, 128, 8
        $region32: #{_lambda_.8} parent=19 // pred_fallthru
          _
        // Predicated region
        $region33: #{_lambda_.8} parent=19 // pred_check
          %p424 = pneg %p147
        $region34: #{_lambda_.8} parent=19 // pred_check_branch
          %426 = sbr.rel (%p424) target = $region36
        $region35: #{_lambda_.8} parent=19 // pred_region
          %s427 = sand.u32 %s37, 1
          %s428 = scalar_lea.sflag [#allocation10], %s427
          %s429 = sand.u32 %s137, 1
          %s430 = smul.addr %s429, 32
          %s431 = scalar_lea.vmem [#allocation9], %s430
          %s433 = ssub.s32 512, 512
          %434 = vsyncadd %s428, %s433
          %s435 = smul.addr %s45, 4
          %s436 = smul.addr %s435, 128
          %s437 = scalar_lea.hbm %s3, %s436
          %s438 = sshll.u32 %s431, 4
          %s439 = int_to_ptr.vmem [resolvable:$true] %s438
          %444 = dma.hbm_to_vmem [thread:$0]  %s437, 512, %s439, %s428, 128, 128, 8
        $region36: #{_lambda_.8} parent=19 // pred_fallthru
          _
        // Predicated region
        $region37: #{_lambda_.8} parent=19 // pred_check
          %p445 = pneg %p173
        $region38: #{_lambda_.8} parent=19 // pred_check_branch
          %447 = sbr.rel (%p445) target = $region40
        $region39: #{_lambda_.8} parent=19 // pred_region
          %s448 = sand.u32 %s37, 1
          %s449 = scalar_lea.sflag [#allocation10], %s448
          %s450 = sand.u32 %s163, 1
          %s451 = scalar_lea.vmem [#allocation11], %s450
          %s453 = ssub.s32 16, 16
          %454 = vsyncadd %s449, %s453
          %s455 = smul.addr %s45, 16
          %s456 = scalar_lea.hbm %s4, %s455
          %s458 = sshll.u32 %s451, 4
          %s459 = int_to_ptr.vmem [resolvable:$true] %s458
          %461 = dma.hbm_to_vmem [thread:$0]  %s456, 16, %s459, %s449
        $region40: #{_lambda_.8} parent=19 // pred_fallthru
          _
        // Predicated region
        $region41: #{_lambda_.8} parent=19 // pred_check
          %p462 = pneg %p199
        $region42: #{_lambda_.8} parent=19 // pred_check_branch
          %464 = sbr.rel (%p462) target = $region44
        $region43: #{_lambda_.8} parent=19 // pred_region
          %s465 = sand.u32 %s37, 1
          %s466 = scalar_lea.sflag [#allocation13], %s465
          %s467 = sand.u32 %s189, 1
          %s468 = scalar_lea.vmem [#allocation12], %s467
          %s470 = ssub.s32 16, 16
          %471 = vsyncadd %s466, %s470
          %s472 = smul.addr %s45, 16
          %s473 = scalar_lea.hbm %s5, %s472
          %s475 = sshll.u32 %s468, 4
          %s476 = int_to_ptr.vmem [resolvable:$true] %s475
          %478 = dma.hbm_to_vmem [thread:$0]  %s473, 16, %s476, %s466
        $region44: #{_lambda_.8} parent=19 // pred_fallthru
          _
        // Predicated region
        $region45: #{_lambda_.8} parent=19 // pred_check
          %p479 = pneg %p225
        $region46: #{_lambda_.8} parent=19 // pred_check_branch
          %481 = sbr.rel (%p479) target = $region48
        $region47: #{_lambda_.8} parent=19 // pred_region
          %s482 = sand.u32 %s37, 1
          %s483 = scalar_lea.sflag [#allocation13], %s482
          %s484 = sand.u32 %s215, 1
          %s485 = scalar_lea.vmem [#allocation14], %s484
          %s487 = ssub.s32 16, 16
          %488 = vsyncadd %s483, %s487
          %s489 = smul.addr %s45, 16
          %s490 = scalar_lea.hbm %s6, %s489
          %s492 = sshll.u32 %s485, 4
          %s493 = int_to_ptr.vmem [resolvable:$true] %s492
          %495 = dma.hbm_to_vmem [thread:$0]  %s490, 16, %s493, %s483
        $region48: #{_lambda_.8} parent=19 // pred_fallthru
          _
        // Predicated region
        $region49: #{_lambda_.8} parent=19 // pred_check
          %p496 = pneg %p251
        $region50: #{_lambda_.8} parent=19 // pred_check_branch
          %498 = sbr.rel (%p496) target = $region52
        $region51: #{_lambda_.8} parent=19 // pred_region
          %s499 = sand.u32 %s37, 1
          %s500 = scalar_lea.sflag [#allocation16], %s499
          %s501 = sand.u32 %s241, 1
          %s502 = smul.addr %s501, 8
          %s503 = scalar_lea.vmem [#allocation15], %s502
          %s505 = ssub.s32 128, 128
          %506 = vsyncadd %s500, %s505
          %s507 = smul.addr %s45, 128
          %s508 = scalar_lea.hbm %s7, %s507
          %s510 = sshll.u32 %s503, 4
          %s511 = int_to_ptr.vmem [resolvable:$true] %s510
          %513 = dma.hbm_to_vmem [thread:$0]  %s508, 128, %s511, %s500
        $region52: #{_lambda_.8} parent=19 // pred_fallthru
          _
        // Predicated region
        $region53: #{_lambda_.8} parent=19 // pred_check
          %p514 = pneg %p298
        $region54: #{_lambda_.8} parent=19 // pred_check_branch
          %516 = sbr.rel (%p514) target = $region56
        $region55: #{_lambda_.8} parent=19 // pred_region
          %s517 = sand.u32 %s288, 1
          %s518 = scalar_lea.sflag [#allocation19], %s517
          %s519 = sand.u32 %s288, 1
          %s520 = smul.addr %s519, 8
          %s521 = scalar_lea.vmem [#allocation18], %s520
          %s523 = ssub.s32 128, 128
          %524 = vsyncadd %s518, %s523
          %s525 = smul.addr %s45, 2
          %s526 = smul.addr %s525, 64
          %s527 = scalar_lea.hbm %s9, %s526
          %s528 = sshll.u32 %s521, 4
          %s529 = int_to_ptr.vmem [resolvable:$true] %s528
          %534 = dma.hbm_to_vmem [thread:$0]  %s527, 128, %s529, %s518, 64, 64, 4
        $region56: #{_lambda_.8} parent=19 // pred_fallthru
          _
      $region20: #{_lambda_.8} parent=5 // pred_fallthru
        _
      %p535 = scmp.le.s32.totalorder 1, %s37
      %p536 = scmp.lt.s32.totalorder %s37, 9
      %p537 = pnand %p535, %p536
      %p538 = pneg %p537
      // Predicated region
      $region57: #{_lambda_.8} parent=5 // pred_check
        _
      $region58: #{_lambda_.8} parent=5 // pred_check_branch
        %540 = sbr.rel (%p537) target = $region60
      $region59: #{_lambda_.8} parent=5 // pred_region
        %s541 = ssub.s32 %s37, 1
        %s542 = sand.u32 %s62, 1
        %s543 = scalar_lea.sflag [#allocation4], %s542
        %s544 = sand.u32 %s62, 1
        %s545 = smul.addr %s544, 64
        %s546 = scalar_lea.vmem [#allocation3], %s545
        // Predicated region
        $region61: #{_lambda_.8} parent=59 // pred_check
          %p547 = pneg %p75
        $region62: #{_lambda_.8} parent=59 // pred_check_branch
          %549 = sbr.rel (%p547) target = $region64
        $region63: #{_lambda_.8} parent=59 // pred_region
          %550 = dma.done %s543, 1024
        $region64: #{_lambda_.8} parent=59 // pred_fallthru
          _
        %s551 = sand.u32 %s42, 1
        %s552 = scalar_lea.sflag [#allocation7], %s551
        %s553 = sand.u32 %s88, 1
        %s554 = smul.addr %s553, 32
        %s555 = scalar_lea.vmem [#allocation6], %s554
        // Predicated region
        $region65: #{_lambda_.8} parent=59 // pred_check
          %p556 = pneg %p101
        $region66: #{_lambda_.8} parent=59 // pred_check_branch
          %558 = sbr.rel (%p556) target = $region68
        $region67: #{_lambda_.8} parent=59 // pred_region
          %559 = dma.done %s552, 512
        $region68: #{_lambda_.8} parent=59 // pred_fallthru
          _
        %s560 = sand.u32 %s42, 1
        %s561 = scalar_lea.sflag [#allocation7], %s560
        %s562 = sand.u32 %s114, 1
        %s563 = smul.addr %s562, 32
        %s564 = scalar_lea.vmem [#allocation8], %s563
        // Predicated region
        $region69: #{_lambda_.8} parent=59 // pred_check
          %p565 = pneg %p127
        $region70: #{_lambda_.8} parent=59 // pred_check_branch
          %567 = sbr.rel (%p565) target = $region72
        $region71: #{_lambda_.8} parent=59 // pred_region
          %568 = dma.done %s561, 512
        $region72: #{_lambda_.8} parent=59 // pred_fallthru
          _
        %s569 = sand.u32 %s42, 1
        %s570 = scalar_lea.sflag [#allocation10], %s569
        %s571 = sand.u32 %s140, 1
        %s572 = smul.addr %s571, 32
        %s573 = scalar_lea.vmem [#allocation9], %s572
        // Predicated region
        $region73: #{_lambda_.8} parent=59 // pred_check
          %p574 = pneg %p153
        $region74: #{_lambda_.8} parent=59 // pred_check_branch
          %576 = sbr.rel (%p574) target = $region76
        $region75: #{_lambda_.8} parent=59 // pred_region
          %577 = dma.done %s570, 512
        $region76: #{_lambda_.8} parent=59 // pred_fallthru
          _
        %s578 = sand.u32 %s42, 1
        %s579 = scalar_lea.sflag [#allocation10], %s578
        %s580 = sand.u32 %s166, 1
        %s581 = scalar_lea.vmem [#allocation11], %s580
        // Predicated region
        $region77: #{_lambda_.8} parent=59 // pred_check
          %p582 = pneg %p179
        $region78: #{_lambda_.8} parent=59 // pred_check_branch
          %584 = sbr.rel (%p582) target = $region80
        $region79: #{_lambda_.8} parent=59 // pred_region
          %585 = dma.done %s579, 16
        $region80: #{_lambda_.8} parent=59 // pred_fallthru
          _
        %s586 = sand.u32 %s42, 1
        %s587 = scalar_lea.sflag [#allocation13], %s586
        %s588 = sand.u32 %s192, 1
        %s589 = scalar_lea.vmem [#allocation12], %s588
        // Predicated region
        $region81: #{_lambda_.8} parent=59 // pred_check
          %p590 = pneg %p205
        $region82: #{_lambda_.8} parent=59 // pred_check_branch
          %592 = sbr.rel (%p590) target = $region84
        $region83: #{_lambda_.8} parent=59 // pred_region
          %593 = dma.done %s587, 16
        $region84: #{_lambda_.8} parent=59 // pred_fallthru
          _
        %s594 = sand.u32 %s42, 1
        %s595 = scalar_lea.sflag [#allocation13], %s594
        %s596 = sand.u32 %s218, 1
        %s597 = scalar_lea.vmem [#allocation14], %s596
        // Predicated region
        $region85: #{_lambda_.8} parent=59 // pred_check
          %p598 = pneg %p231
        $region86: #{_lambda_.8} parent=59 // pred_check_branch
          %600 = sbr.rel (%p598) target = $region88
        $region87: #{_lambda_.8} parent=59 // pred_region
          %601 = dma.done %s595, 16
        $region88: #{_lambda_.8} parent=59 // pred_fallthru
          _
        %s602 = sand.u32 %s42, 1
        %s603 = scalar_lea.sflag [#allocation16], %s602
        %s604 = sand.u32 %s244, 1
        %s605 = smul.addr %s604, 8
        %s606 = scalar_lea.vmem [#allocation15], %s605
        // Predicated region
        $region89: #{_lambda_.8} parent=59 // pred_check
          %p607 = pneg %p257
        $region90: #{_lambda_.8} parent=59 // pred_check_branch
          %609 = sbr.rel (%p607) target = $region92
        $region91: #{_lambda_.8} parent=59 // pred_region
          %610 = dma.done %s603, 128
        $region92: #{_lambda_.8} parent=59 // pred_fallthru
          _
        // Predicated region
        $region93: #{_lambda_.8} parent=59 // pred_check
          %p611 = pneg %p278
        $region94: #{_lambda_.8} parent=59 // pred_check_branch
          %613 = sbr.rel (%p611) target = $region96
        $region95: #{_lambda_.8} parent=59 // pred_region
          %614 = dma.done [#allocation16], 16
        $region96: #{_lambda_.8} parent=59 // pred_fallthru
          _
        %s615 = sand.u32 %s291, 1
        %s616 = scalar_lea.sflag [#allocation19], %s615
        %s617 = sand.u32 %s291, 1
        %s618 = smul.addr %s617, 8
        %s619 = scalar_lea.vmem [#allocation18], %s618
        // Predicated region
        $region97: #{_lambda_.8} parent=59 // pred_check
          %p620 = pneg %p304
        $region98: #{_lambda_.8} parent=59 // pred_check_branch
          %622 = sbr.rel (%p620) target = $region100
        $region99: #{_lambda_.8} parent=59 // pred_region
          %623 = dma.done %s616, 128
        $region100: #{_lambda_.8} parent=59 // pred_fallthru
          _
        %s624 = sand.u32 %s62, 1
        %s625 = scalar_lea.sflag [#allocation4], %s624
        %s626 = sand.u32 %s62, 1
        %s627 = smul.addr %s626, 64
        %s628 = scalar_lea.vmem [#allocation3], %s627
        %p629 = pneg %p75
        %p630 = pneg %p72
        %s631 = sand.u32 %s42, 1
        %s632 = scalar_lea.sflag [#allocation7], %s631
        %s633 = sand.u32 %s88, 1
        %s634 = smul.addr %s633, 32
        %s635 = scalar_lea.vmem [#allocation6], %s634
        %p636 = pneg %p101
        %p637 = pneg %p98
        %s638 = sand.u32 %s42, 1
        %s639 = scalar_lea.sflag [#allocation7], %s638
        %s640 = sand.u32 %s114, 1
        %s641 = smul.addr %s640, 32
        %s642 = scalar_lea.vmem [#allocation8], %s641
        %p643 = pneg %p127
        %p644 = pneg %p124
        %s645 = sand.u32 %s42, 1
        %s646 = scalar_lea.sflag [#allocation10], %s645
        %s647 = sand.u32 %s140, 1
        %s648 = smul.addr %s647, 32
        %s649 = scalar_lea.vmem [#allocation9], %s648
        %p650 = pneg %p153
        %p651 = pneg %p150
        %s652 = sand.u32 %s42, 1
        %s653 = scalar_lea.sflag [#allocation10], %s652
        %s654 = sand.u32 %s166, 1
        %s655 = scalar_lea.vmem [#allocation11], %s654
        %p656 = pneg %p179
        %p657 = pneg %p176
        %s658 = sand.u32 %s42, 1
        %s659 = scalar_lea.sflag [#allocation13], %s658
        %s660 = sand.u32 %s192, 1
        %s661 = scalar_lea.vmem [#allocation12], %s660
        %p662 = pneg %p205
        %p663 = pneg %p202
        %s664 = sand.u32 %s42, 1
        %s665 = scalar_lea.sflag [#allocation13], %s664
        %s666 = sand.u32 %s218, 1
        %s667 = scalar_lea.vmem [#allocation14], %s666
        %p668 = pneg %p231
        %p669 = pneg %p228
        %s670 = sand.u32 %s42, 1
        %s671 = scalar_lea.sflag [#allocation16], %s670
        %s672 = sand.u32 %s244, 1
        %s673 = smul.addr %s672, 8
        %s674 = scalar_lea.vmem [#allocation15], %s673
        %p675 = pneg %p257
        %p676 = pneg %p254
        %p677 = pneg %p278
        %p678 = pneg %p275
        %s679 = sand.u32 %s291, 1
        %s680 = scalar_lea.sflag [#allocation19], %s679
        %s681 = sand.u32 %s291, 1
        %s682 = smul.addr %s681, 8
        %s683 = scalar_lea.vmem [#allocation18], %s682
        %p684 = pneg %p304
        %p685 = pneg %p301
        %p686 = pneg %p330
        %p687 = pneg %p327
        %s688 = sand.u32 %s317, 1
        %s689 = scalar_lea.sflag [#allocation5], %s688
        %s690 = sand.u32 %s317, 1
        %s691 = smul.addr %s690, 64
        %s692 = scalar_lea.vmem [#allocation20], %s691
        %s693 = smul.u32 4, %s46
        %s694 = smul.u32 4, %s46
        %v695 = vld [vmem:[%s546] sm:$0xff]
        %v696 = vld [vmem:[%s546 + $0x8] sm:$0xff]
        %v697 = vld [vmem:[%s546 + $0x10] sm:$0xff]
        %v698 = vld [vmem:[%s546 + $0x18] sm:$0xff]
        %v699 = vld [vmem:[%s546 + $0x20] sm:$0xff]
        %v700 = vld [vmem:[%s546 + $0x28] sm:$0xff]
        %v701 = vld [vmem:[%s546 + $0x30] sm:$0xff]
        %v702 = vld [vmem:[%s546 + $0x38] sm:$0xff]
        %v703 = vld [vmem:[%s555] sm:$0xff]
        %v704 = vld [vmem:[%s555 + $0x8] sm:$0xff]
        %v705 = vld [vmem:[%s555 + $0x10] sm:$0xff]
        %v706 = vld [vmem:[%s555 + $0x18] sm:$0xff]
        %v707 = vld [vmem:[%s581] sm:$0x1]
        %v709 = vlaneseq
        %v710 = vshrl.u32 %v709, 7
        %v711 = vsub.s32 0, %v710
        %v712 = vrot.slane %v707, %v711
        %vm714 = vcmask 261120
        %v716 = vsel %vm714, %v695, 0
        %v719 = vsel %vm714, %v696, 0
        %v722 = vsel %vm714, %v697, 0
        %v725 = vsel %vm714, %v698, 0
        %v728 = vsel %vm714, %v699, 0
        %v731 = vsel %vm714, %v700, 0
        %v734 = vsel %vm714, %v701, 0
        %v737 = vsel %vm714, %v702, 0
        %739 = vmatprep.subr.mxu0 0.0
        %740 = vmatpush1.msra.mxu0 %v703
        %741 = vmatprep.subr.mxu0 0.0
        %742 = vmatpush1.msra.mxu0 %v704
        %743 = vmatprep.subr.mxu0 0.0
        %744 = vmatpush1.msra.mxu0 %v705
        %745 = vmatprep.subr.mxu0 0.0
        %746 = vmatpush1.msra.mxu0 %v706
        %747 = vmatprep.subr.mxu0 0.0
        %748 = vmatpush1.msra.mxu0 0.0
        %749 = vmatprep.subr.mxu0 0.0
        %750 = vmatpush1.msra.mxu0 0.0
        %751 = vmatprep.subr.mxu0 0.0
        %752 = vmatpush1.msra.mxu0 0.0
        %753 = vmatprep.subr.mxu0 0.0
        %754 = vmatpush1.msra.mxu0 0.0
        %755 = vmatprep.subr.mxu0 0.0
        %756 = vmatpush1.msra.mxu0 0.0
        %757 = vmatprep.subr.mxu0 0.0
        %758 = vmatpush1.msra.mxu0 0.0
        %759 = vmatprep.subr.mxu0 0.0
        %760 = vmatpush1.msra.mxu0 0.0
        %761 = vmatprep.subr.mxu0 0.0
        %762 = vmatpush1.msra.mxu0 0.0
        %763 = vmatprep.subr.mxu0 0.0
        %764 = vmatpush1.msra.mxu0 0.0
        %765 = vmatprep.subr.mxu0 0.0
        %766 = vmatpush1.msra.mxu0 0.0
        %767 = vmatprep.subr.mxu0 0.0
        %768 = vmatpush1.msra.mxu0 0.0
        %769 = vmatprep.subr.mxu0 0.0
        %770 = vmatpush1.msra.mxu0 0.0
        %771 = vmatprep.subr.mxu0 0.0
        %772 = vmatpush1.msra.mxu0 0.0
        %773 = vmatprep.subr.mxu0 0.0
        %774 = vmatpush1.msra.mxu0 0.0
        %775 = vmatprep.subr.mxu0 0.0
        %776 = vmatpush1.msra.mxu0 0.0
        %777 = vmatprep.subr.mxu0 0.0
        %778 = vmatpush1.msra.mxu0 0.0
        %779 = vmatprep.subr.mxu0 0.0
        %780 = vmatpush1.msra.mxu0 0.0
        %781 = vmatprep.subr.mxu0 0.0
        %782 = vmatpush1.msra.mxu0 0.0
        %783 = vmatprep.subr.mxu0 0.0
        %784 = vmatpush1.msra.mxu0 0.0
        %785 = vmatprep.subr.mxu0 0.0
        %786 = vmatpush1.msra.mxu0 0.0
        %787 = vmatprep.subr.mxu0 0.0
        %788 = vmatpush1.msra.mxu0 0.0
        %789 = vmatprep.subr.mxu0 0.0
        %790 = vmatpush1.msra.mxu0 0.0
        %791 = vmatprep.subr.mxu0 0.0
        %792 = vmatpush1.msra.mxu0 0.0
        %793 = vmatprep.subr.mxu0 0.0
        %794 = vmatpush1.msra.mxu0 0.0
        %795 = vmatprep.subr.mxu0 0.0
        %796 = vmatpush1.msra.mxu0 0.0
        %797 = vmatprep.subr.mxu0 0.0
        %798 = vmatpush1.msra.mxu0 0.0
        %799 = vmatprep.subr.mxu0 0.0
        %800 = vmatpush1.msra.mxu0 0.0
        %801 = vmatprep.subr.mxu0 0.0
        %802 = vmatpush1.msra.mxu0 0.0
        %803 = vmatprep.mubr.f32.mxu0 0.0
        %804 = vmatmul.mubr.f32.gmra.mrb[0].mxu0 %v716
        %v805 = vpop.f32.mrb[0].mxu0
        %v806 = vadd.f32 %v712, %v805
        %v807 = vpop.f32.mrb[0].mxu0
        %808 = vmatprep.mubr.f32.mxu0 0.0
        %809 = vmatmul.mubr.f32.gmra.mrb[0].mxu0 %v719
        %v810 = vpop.f32.mrb[0].mxu0
        %v811 = vadd.f32 %v712, %v810
        %v812 = vpop.f32.mrb[0].mxu0
        %813 = vmatprep.mubr.f32.mxu0 0.0
        %814 = vmatmul.mubr.f32.gmra.mrb[0].mxu0 %v722
        %v815 = vpop.f32.mrb[0].mxu0
        %v816 = vadd.f32 %v712, %v815
        %v817 = vpop.f32.mrb[0].mxu0
        %818 = vmatprep.mubr.f32.mxu0 0.0
        %819 = vmatmul.mubr.f32.gmra.mrb[0].mxu0 %v725
        %v820 = vpop.f32.mrb[0].mxu0
        %v821 = vadd.f32 %v712, %v820
        %v822 = vpop.f32.mrb[0].mxu0
        %823 = vmatprep.mubr.f32.mxu0 0.0
        %824 = vmatmul.mubr.f32.gmra.mrb[0].mxu0 %v728
        %v825 = vpop.f32.mrb[0].mxu0
        %v826 = vadd.f32 %v712, %v825
        %v827 = vpop.f32.mrb[0].mxu0
        %828 = vmatprep.mubr.f32.mxu0 0.0
        %829 = vmatmul.mubr.f32.gmra.mrb[0].mxu0 %v731
        %v830 = vpop.f32.mrb[0].mxu0
        %v831 = vadd.f32 %v712, %v830
        %v832 = vpop.f32.mrb[0].mxu0
        %833 = vmatprep.mubr.f32.mxu0 0.0
        %834 = vmatmul.mubr.f32.gmra.mrb[0].mxu0 %v734
        %v835 = vpop.f32.mrb[0].mxu0
        %v836 = vadd.f32 %v712, %v835
        %v837 = vpop.f32.mrb[0].mxu0
        %838 = vmatprep.mubr.f32.mxu0 0.0
        %839 = vmatmul.mubr.f32.gmra.mrb[0].mxu0 %v737
        %v840 = vpop.f32.mrb[0].mxu0
        %v841 = vadd.f32 %v712, %v840
        %v842 = vpop.f32.mrb[0].mxu0
        %843 = vdwg.mxu0
        %v844 = vld [vmem:[%s564] sm:$0xff]
        %v845 = vld [vmem:[%s564 + $0x8] sm:$0xff]
        %v846 = vld [vmem:[%s564 + $0x10] sm:$0xff]
        %v847 = vld [vmem:[%s564 + $0x18] sm:$0xff]
        %v848 = vld [vmem:[%s589] sm:$0x1]
        %v850 = vlaneseq
        %v851 = vshrl.u32 %v850, 7
        %v852 = vsub.s32 0, %v851
        %v853 = vrot.slane %v848, %v852
        %855 = vmatprep.subr.mxu0 0.0
        %856 = vmatpush1.msra.mxu0 %v844
        %857 = vmatprep.subr.mxu0 0.0
        %858 = vmatpush1.msra.mxu0 %v845
        %859 = vmatprep.subr.mxu0 0.0
        %860 = vmatpush1.msra.mxu0 %v846
        %861 = vmatprep.subr.mxu0 0.0
        %862 = vmatpush1.msra.mxu0 %v847
        %863 = vmatprep.subr.mxu0 0.0
        %864 = vmatpush1.msra.mxu0 0.0
        %865 = vmatprep.subr.mxu0 0.0
        %866 = vmatpush1.msra.mxu0 0.0
        %867 = vmatprep.subr.mxu0 0.0
        %868 = vmatpush1.msra.mxu0 0.0
        %869 = vmatprep.subr.mxu0 0.0
        %870 = vmatpush1.msra.mxu0 0.0
        %871 = vmatprep.subr.mxu0 0.0
        %872 = vmatpush1.msra.mxu0 0.0
        %873 = vmatprep.subr.mxu0 0.0
        %874 = vmatpush1.msra.mxu0 0.0
        %875 = vmatprep.subr.mxu0 0.0
        %876 = vmatpush1.msra.mxu0 0.0
        %877 = vmatprep.subr.mxu0 0.0
        %878 = vmatpush1.msra.mxu0 0.0
        %879 = vmatprep.subr.mxu0 0.0
        %880 = vmatpush1.msra.mxu0 0.0
        %881 = vmatprep.subr.mxu0 0.0
        %882 = vmatpush1.msra.mxu0 0.0
        %883 = vmatprep.subr.mxu0 0.0
        %884 = vmatpush1.msra.mxu0 0.0
        %885 = vmatprep.subr.mxu0 0.0
        %886 = vmatpush1.msra.mxu0 0.0
        %887 = vmatprep.subr.mxu0 0.0
        %888 = vmatpush1.msra.mxu0 0.0
        %889 = vmatprep.subr.mxu0 0.0
        %890 = vmatpush1.msra.mxu0 0.0
        %891 = vmatprep.subr.mxu0 0.0
        %892 = vmatpush1.msra.mxu0 0.0
        %893 = vmatprep.subr.mxu0 0.0
        %894 = vmatpush1.msra.mxu0 0.0
        %895 = vmatprep.subr.mxu0 0.0
        %896 = vmatpush1.msra.mxu0 0.0
        %897 = vmatprep.subr.mxu0 0.0
        %898 = vmatpush1.msra.mxu0 0.0
        %899 = vmatprep.subr.mxu0 0.0
        %900 = vmatpush1.msra.mxu0 0.0
        %901 = vmatprep.subr.mxu0 0.0
        %902 = vmatpush1.msra.mxu0 0.0
        %903 = vmatprep.subr.mxu0 0.0
        %904 = vmatpush1.msra.mxu0 0.0
        %905 = vmatprep.subr.mxu0 0.0
        %906 = vmatpush1.msra.mxu0 0.0
        %907 = vmatprep.subr.mxu0 0.0
        %908 = vmatpush1.msra.mxu0 0.0
        %909 = vmatprep.subr.mxu0 0.0
        %910 = vmatpush1.msra.mxu0 0.0
        %911 = vmatprep.subr.mxu0 0.0
        %912 = vmatpush1.msra.mxu0 0.0
        %913 = vmatprep.subr.mxu0 0.0
        %914 = vmatpush1.msra.mxu0 0.0
        %915 = vmatprep.subr.mxu0 0.0
        %916 = vmatpush1.msra.mxu0 0.0
        %917 = vmatprep.subr.mxu0 0.0
        %918 = vmatpush1.msra.mxu0 0.0
        %919 = vmatprep.mubr.f32.mxu0 0.0
        %920 = vmatmul.mubr.f32.gmra.mrb[0].mxu0 %v716
        %v921 = vpop.f32.mrb[0].mxu0
        %v922 = vadd.f32 %v853, %v921
        %v923 = vpop.f32.mrb[0].mxu0
        %924 = vmatprep.mubr.f32.mxu0 0.0
        %925 = vmatmul.mubr.f32.gmra.mrb[0].mxu0 %v719
        %v926 = vpop.f32.mrb[0].mxu0
        %v927 = vadd.f32 %v853, %v926
        %v928 = vpop.f32.mrb[0].mxu0
        %929 = vmatprep.mubr.f32.mxu0 0.0
        %930 = vmatmul.mubr.f32.gmra.mrb[0].mxu0 %v722
        %v931 = vpop.f32.mrb[0].mxu0
        %v932 = vadd.f32 %v853, %v931
        %v933 = vpop.f32.mrb[0].mxu0
        %934 = vmatprep.mubr.f32.mxu0 0.0
        %935 = vmatmul.mubr.f32.gmra.mrb[0].mxu0 %v725
        %v936 = vpop.f32.mrb[0].mxu0
        %v937 = vadd.f32 %v853, %v936
        %v938 = vpop.f32.mrb[0].mxu0
        %939 = vmatprep.mubr.f32.mxu0 0.0
        %940 = vmatmul.mubr.f32.gmra.mrb[0].mxu0 %v728
        %v941 = vpop.f32.mrb[0].mxu0
        %v942 = vadd.f32 %v853, %v941
        %v943 = vpop.f32.mrb[0].mxu0
        %944 = vmatprep.mubr.f32.mxu0 0.0
        %945 = vmatmul.mubr.f32.gmra.mrb[0].mxu0 %v731
        %v946 = vpop.f32.mrb[0].mxu0
        %v947 = vadd.f32 %v853, %v946
        %v948 = vpop.f32.mrb[0].mxu0
        %949 = vmatprep.mubr.f32.mxu0 0.0
        %950 = vmatmul.mubr.f32.gmra.mrb[0].mxu0 %v734
        %v951 = vpop.f32.mrb[0].mxu0
        %v952 = vadd.f32 %v853, %v951
        %v953 = vpop.f32.mrb[0].mxu0
        %954 = vmatprep.mubr.f32.mxu0 0.0
        %955 = vmatmul.mubr.f32.gmra.mrb[0].mxu0 %v737
        %v956 = vpop.f32.mrb[0].mxu0
        %v957 = vadd.f32 %v853, %v956
        %v958 = vpop.f32.mrb[0].mxu0
        %959 = vdwg.mxu0
        %v960 = vld [vmem:[%s573] sm:$0xff]
        %v961 = vld [vmem:[%s573 + $0x8] sm:$0xff]
        %v962 = vld [vmem:[%s573 + $0x10] sm:$0xff]
        %v963 = vld [vmem:[%s573 + $0x18] sm:$0xff]
        %v964 = vld [vmem:[%s597] sm:$0x1]
        %v966 = vlaneseq
        %v967 = vshrl.u32 %v966, 7
        %v968 = vsub.s32 0, %v967
        %v969 = vrot.slane %v964, %v968
        %971 = vmatprep.subr.mxu0 0.0
        %972 = vmatpush1.msra.mxu0 %v960
        %973 = vmatprep.subr.mxu0 0.0
        %974 = vmatpush1.msra.mxu0 %v961
        %975 = vmatprep.subr.mxu0 0.0
        %976 = vmatpush1.msra.mxu0 %v962
        %977 = vmatprep.subr.mxu0 0.0
        %978 = vmatpush1.msra.mxu0 %v963
        %979 = vmatprep.subr.mxu0 0.0
        %980 = vmatpush1.msra.mxu0 0.0
        %981 = vmatprep.subr.mxu0 0.0
        %982 = vmatpush1.msra.mxu0 0.0
        %983 = vmatprep.subr.mxu0 0.0
        %984 = vmatpush1.msra.mxu0 0.0
        %985 = vmatprep.subr.mxu0 0.0
        %986 = vmatpush1.msra.mxu0 0.0
        %987 = vmatprep.subr.mxu0 0.0
        %988 = vmatpush1.msra.mxu0 0.0
        %989 = vmatprep.subr.mxu0 0.0
        %990 = vmatpush1.msra.mxu0 0.0
        %991 = vmatprep.subr.mxu0 0.0
        %992 = vmatpush1.msra.mxu0 0.0
        %993 = vmatprep.subr.mxu0 0.0
        %994 = vmatpush1.msra.mxu0 0.0
        %995 = vmatprep.subr.mxu0 0.0
        %996 = vmatpush1.msra.mxu0 0.0
        %997 = vmatprep.subr.mxu0 0.0
        %998 = vmatpush1.msra.mxu0 0.0
        %999 = vmatprep.subr.mxu0 0.0
        %1000 = vmatpush1.msra.mxu0 0.0
        %1001 = vmatprep.subr.mxu0 0.0
        %1002 = vmatpush1.msra.mxu0 0.0
        %1003 = vmatprep.subr.mxu0 0.0
        %1004 = vmatpush1.msra.mxu0 0.0
        %1005 = vmatprep.subr.mxu0 0.0
        %1006 = vmatpush1.msra.mxu0 0.0
        %1007 = vmatprep.subr.mxu0 0.0
        %1008 = vmatpush1.msra.mxu0 0.0
        %1009 = vmatprep.subr.mxu0 0.0
        %1010 = vmatpush1.msra.mxu0 0.0
        %1011 = vmatprep.subr.mxu0 0.0
        %1012 = vmatpush1.msra.mxu0 0.0
        %1013 = vmatprep.subr.mxu0 0.0
        %1014 = vmatpush1.msra.mxu0 0.0
        %1015 = vmatprep.subr.mxu0 0.0
        %1016 = vmatpush1.msra.mxu0 0.0
        %1017 = vmatprep.subr.mxu0 0.0
        %1018 = vmatpush1.msra.mxu0 0.0
        %1019 = vmatprep.subr.mxu0 0.0
        %1020 = vmatpush1.msra.mxu0 0.0
        %1021 = vmatprep.subr.mxu0 0.0
        %1022 = vmatpush1.msra.mxu0 0.0
        %1023 = vmatprep.subr.mxu0 0.0
        %1024 = vmatpush1.msra.mxu0 0.0
        %1025 = vmatprep.subr.mxu0 0.0
        %1026 = vmatpush1.msra.mxu0 0.0
        %1027 = vmatprep.subr.mxu0 0.0
        %1028 = vmatpush1.msra.mxu0 0.0
        %1029 = vmatprep.subr.mxu0 0.0
        %1030 = vmatpush1.msra.mxu0 0.0
        %1031 = vmatprep.subr.mxu0 0.0
        %1032 = vmatpush1.msra.mxu0 0.0
        %1033 = vmatprep.subr.mxu0 0.0
        %1034 = vmatpush1.msra.mxu0 0.0
        %1035 = vmatprep.mubr.f32.mxu0 0.0
        %1036 = vmatmul.mubr.f32.gmra.mrb[0].mxu0 %v716
        %v1037 = vpop.f32.mrb[0].mxu0
        %v1038 = vadd.f32 %v969, %v1037
        %v1039 = vpop.f32.mrb[0].mxu0
        %1040 = vmatprep.mubr.f32.mxu0 0.0
        %1041 = vmatmul.mubr.f32.gmra.mrb[0].mxu0 %v719
        %v1042 = vpop.f32.mrb[0].mxu0
        %v1043 = vadd.f32 %v969, %v1042
        %v1044 = vpop.f32.mrb[0].mxu0
        %1045 = vmatprep.mubr.f32.mxu0 0.0
        %1046 = vmatmul.mubr.f32.gmra.mrb[0].mxu0 %v722
        %v1047 = vpop.f32.mrb[0].mxu0
        %v1048 = vadd.f32 %v969, %v1047
        %v1049 = vpop.f32.mrb[0].mxu0
        %1050 = vmatprep.mubr.f32.mxu0 0.0
        %1051 = vmatmul.mubr.f32.gmra.mrb[0].mxu0 %v725
        %v1052 = vpop.f32.mrb[0].mxu0
        %v1053 = vadd.f32 %v969, %v1052
        %v1054 = vpop.f32.mrb[0].mxu0
        %1055 = vmatprep.mubr.f32.mxu0 0.0
        %1056 = vmatmul.mubr.f32.gmra.mrb[0].mxu0 %v728
        %v1057 = vpop.f32.mrb[0].mxu0
        %v1058 = vadd.f32 %v969, %v1057
        %v1059 = vpop.f32.mrb[0].mxu0
        %1060 = vmatprep.mubr.f32.mxu0 0.0
        %1061 = vmatmul.mubr.f32.gmra.mrb[0].mxu0 %v731
        %v1062 = vpop.f32.mrb[0].mxu0
        %v1063 = vadd.f32 %v969, %v1062
        %v1064 = vpop.f32.mrb[0].mxu0
        %1065 = vmatprep.mubr.f32.mxu0 0.0
        %1066 = vmatmul.mubr.f32.gmra.mrb[0].mxu0 %v734
        %v1067 = vpop.f32.mrb[0].mxu0
        %v1068 = vadd.f32 %v969, %v1067
        %v1069 = vpop.f32.mrb[0].mxu0
        %1070 = vmatprep.mubr.f32.mxu0 0.0
        %1071 = vmatmul.mubr.f32.gmra.mrb[0].mxu0 %v737
        %v1072 = vpop.f32.mrb[0].mxu0
        %v1073 = vadd.f32 %v969, %v1072
        %v1074 = vpop.f32.mrb[0].mxu0
        %1075 = vdwg.mxu0
        %v1076 = vmul.f32 %v806, 0.35355338
        %v1077 = vmul.f32 %v811, 0.35355338
        %v1078 = vmul.f32 %v816, 0.35355338
        %v1079 = vmul.f32 %v821, 0.35355338
        %v1080 = vmul.f32 %v826, 0.35355338
        %v1081 = vmul.f32 %v831, 0.35355338
        %v1082 = vmul.f32 %v836, 0.35355338
        %v1083 = vmul.f32 %v841, 0.35355338
        %v1084 = vld [vmem:[%s619] sm:$0xf]
        %v1085 = vld [vmem:[%s619 + $0x4] sm:$0xf]
        %v1086 = vunpack.c.l.bf16 %v1084
        %v1087 = vunpack.c.l.bf16 %v1085
        %vm1088 = vcmask 64512
        %v1090 = vsel %vm1088, %v1076, 0
        %v1093 = vsel %vm1088, %v1077, 0
        %v1096 = vsel %vm1088, %v922, 0
        %v1099 = vsel %vm1088, %v927, 0
        %1101 = vmatprep.subr.mxu0 0.0
        %1102 = vmatpush1.xpose.msra.mxu0 %v1096
        %1103 = vmatprep.subr.mxu0 0.0
        %1104 = vmatpush1.xpose.msra.mxu0 %v1099
        %1105 = vmatprep.subr.mxu0 0.0
        %1106 = vmatpush1.xpose.msra.mxu0 0.0
        %1107 = vmatprep.subr.mxu0 0.0
        %1108 = vmatpush1.xpose.msra.mxu0 0.0
        %1109 = vmatprep.subr.mxu0 0.0
        %1110 = vmatpush1.xpose.msra.mxu0 0.0
        %1111 = vmatprep.subr.mxu0 0.0
        %1112 = vmatpush1.xpose.msra.mxu0 0.0
        %1113 = vmatprep.subr.mxu0 0.0
        %1114 = vmatpush1.xpose.msra.mxu0 0.0
        %1115 = vmatprep.subr.mxu0 0.0
        %1116 = vmatpush1.xpose.msra.mxu0 0.0
        %1117 = vmatprep.subr.mxu0 0.0
        %1118 = vmatpush1.xpose.msra.mxu0 0.0
        %1119 = vmatprep.subr.mxu0 0.0
        %1120 = vmatpush1.xpose.msra.mxu0 0.0
        %1121 = vmatprep.subr.mxu0 0.0
        %1122 = vmatpush1.xpose.msra.mxu0 0.0
        %1123 = vmatprep.subr.mxu0 0.0
        %1124 = vmatpush1.xpose.msra.mxu0 0.0
        %1125 = vmatprep.subr.mxu0 0.0
        %1126 = vmatpush1.xpose.msra.mxu0 0.0
        %1127 = vmatprep.subr.mxu0 0.0
        %1128 = vmatpush1.xpose.msra.mxu0 0.0
        %1129 = vmatprep.subr.mxu0 0.0
        %1130 = vmatpush1.xpose.msra.mxu0 0.0
        %1131 = vmatprep.subr.mxu0 0.0
        %1132 = vmatpush1.xpose.msra.mxu0 0.0
        %1133 = vmatprep.subr.mxu0 0.0
        %1134 = vmatpush1.xpose.msra.mxu0 0.0
        %1135 = vmatprep.subr.mxu0 0.0
        %1136 = vmatpush1.xpose.msra.mxu0 0.0
        %1137 = vmatprep.subr.mxu0 0.0
        %1138 = vmatpush1.xpose.msra.mxu0 0.0
        %1139 = vmatprep.subr.mxu0 0.0
        %1140 = vmatpush1.xpose.msra.mxu0 0.0
        %1141 = vmatprep.subr.mxu0 0.0
        %1142 = vmatpush1.xpose.msra.mxu0 0.0
        %1143 = vmatprep.subr.mxu0 0.0
        %1144 = vmatpush1.xpose.msra.mxu0 0.0
        %1145 = vmatprep.subr.mxu0 0.0
        %1146 = vmatpush1.xpose.msra.mxu0 0.0
        %1147 = vmatprep.subr.mxu0 0.0
        %1148 = vmatpush1.xpose.msra.mxu0 0.0
        %1149 = vmatprep.subr.mxu0 0.0
        %1150 = vmatpush1.xpose.msra.mxu0 0.0
        %1151 = vmatprep.subr.mxu0 0.0
        %1152 = vmatpush1.xpose.msra.mxu0 0.0
        %1153 = vmatprep.subr.mxu0 0.0
        %1154 = vmatpush1.xpose.msra.mxu0 0.0
        %1155 = vmatprep.subr.mxu0 0.0
        %1156 = vmatpush1.xpose.msra.mxu0 0.0
        %1157 = vmatprep.subr.mxu0 0.0
        %1158 = vmatpush1.xpose.msra.mxu0 0.0
        %1159 = vmatprep.subr.mxu0 0.0
        %1160 = vmatpush1.xpose.msra.mxu0 0.0
        %1161 = vmatprep.subr.mxu0 0.0
        %1162 = vmatpush1.xpose.msra.mxu0 0.0
        %1163 = vmatprep.subr.mxu0 0.0
        %1164 = vmatpush1.xpose.msra.mxu0 0.0
        %1165 = vmatprep.mubr.f32.mxu0 0.0
        %1166 = vmatmul.mubr.f32.gmra.mrb[0].mxu0 %v1090
        %v1167 = vpop.f32.mrb[0].mxu0
        %v1168 = vadd.f32 %v1086, %v1167
        %v1169 = vpop.f32.mrb[0].mxu0
        %1170 = vmatprep.mubr.f32.mxu0 0.0
        %1171 = vmatmul.mubr.f32.gmra.mrb[0].mxu0 %v1093
        %v1172 = vpop.f32.mrb[0].mxu0
        %v1173 = vadd.f32 %v1087, %v1172
        %v1174 = vpop.f32.mrb[0].mxu0
        %1175 = vdwg.mxu0
        %v1177 = vsel %vm1088, %v1078, 0
        %v1180 = vsel %vm1088, %v1079, 0
        %v1183 = vsel %vm1088, %v932, 0
        %v1186 = vsel %vm1088, %v937, 0
        %1188 = vmatprep.subr.mxu0 0.0
        %1189 = vmatpush1.xpose.msra.mxu0 %v1183
        %1190 = vmatprep.subr.mxu0 0.0
        %1191 = vmatpush1.xpose.msra.mxu0 %v1186
        %1192 = vmatprep.subr.mxu0 0.0
        %1193 = vmatpush1.xpose.msra.mxu0 0.0
        %1194 = vmatprep.subr.mxu0 0.0
        %1195 = vmatpush1.xpose.msra.mxu0 0.0
        %1196 = vmatprep.subr.mxu0 0.0
        %1197 = vmatpush1.xpose.msra.mxu0 0.0
        %1198 = vmatprep.subr.mxu0 0.0
        %1199 = vmatpush1.xpose.msra.mxu0 0.0
        %1200 = vmatprep.subr.mxu0 0.0
        %1201 = vmatpush1.xpose.msra.mxu0 0.0
        %1202 = vmatprep.subr.mxu0 0.0
        %1203 = vmatpush1.xpose.msra.mxu0 0.0
        %1204 = vmatprep.subr.mxu0 0.0
        %1205 = vmatpush1.xpose.msra.mxu0 0.0
        %1206 = vmatprep.subr.mxu0 0.0
        %1207 = vmatpush1.xpose.msra.mxu0 0.0
        %1208 = vmatprep.subr.mxu0 0.0
        %1209 = vmatpush1.xpose.msra.mxu0 0.0
        %1210 = vmatprep.subr.mxu0 0.0
        %1211 = vmatpush1.xpose.msra.mxu0 0.0
        %1212 = vmatprep.subr.mxu0 0.0
        %1213 = vmatpush1.xpose.msra.mxu0 0.0
        %1214 = vmatprep.subr.mxu0 0.0
        %1215 = vmatpush1.xpose.msra.mxu0 0.0
        %1216 = vmatprep.subr.mxu0 0.0
        %1217 = vmatpush1.xpose.msra.mxu0 0.0
        %1218 = vmatprep.subr.mxu0 0.0
        %1219 = vmatpush1.xpose.msra.mxu0 0.0
        %1220 = vmatprep.subr.mxu0 0.0
        %1221 = vmatpush1.xpose.msra.mxu0 0.0
        %1222 = vmatprep.subr.mxu0 0.0
        %1223 = vmatpush1.xpose.msra.mxu0 0.0
        %1224 = vmatprep.subr.mxu0 0.0
        %1225 = vmatpush1.xpose.msra.mxu0 0.0
        %1226 = vmatprep.subr.mxu0 0.0
        %1227 = vmatpush1.xpose.msra.mxu0 0.0
        %1228 = vmatprep.subr.mxu0 0.0
        %1229 = vmatpush1.xpose.msra.mxu0 0.0
        %1230 = vmatprep.subr.mxu0 0.0
        %1231 = vmatpush1.xpose.msra.mxu0 0.0
        %1232 = vmatprep.subr.mxu0 0.0
        %1233 = vmatpush1.xpose.msra.mxu0 0.0
        %1234 = vmatprep.subr.mxu0 0.0
        %1235 = vmatpush1.xpose.msra.mxu0 0.0
        %1236 = vmatprep.subr.mxu0 0.0
        %1237 = vmatpush1.xpose.msra.mxu0 0.0
        %1238 = vmatprep.subr.mxu0 0.0
        %1239 = vmatpush1.xpose.msra.mxu0 0.0
        %1240 = vmatprep.subr.mxu0 0.0
        %1241 = vmatpush1.xpose.msra.mxu0 0.0
        %1242 = vmatprep.subr.mxu0 0.0
        %1243 = vmatpush1.xpose.msra.mxu0 0.0
        %1244 = vmatprep.subr.mxu0 0.0
        %1245 = vmatpush1.xpose.msra.mxu0 0.0
        %1246 = vmatprep.subr.mxu0 0.0
        %1247 = vmatpush1.xpose.msra.mxu0 0.0
        %1248 = vmatprep.subr.mxu0 0.0
        %1249 = vmatpush1.xpose.msra.mxu0 0.0
        %1250 = vmatprep.subr.mxu0 0.0
        %1251 = vmatpush1.xpose.msra.mxu0 0.0
        %1252 = vmatprep.mubr.f32.mxu0 0.0
        %1253 = vmatmul.mubr.f32.gmra.mrb[0].mxu0 %v1177
        %v1254 = vpop.f32.mrb[0].mxu0
        %v1255 = vadd.f32 %v1086, %v1254
        %v1256 = vpop.f32.mrb[0].mxu0
        %1257 = vmatprep.mubr.f32.mxu0 0.0
        %1258 = vmatmul.mubr.f32.gmra.mrb[0].mxu0 %v1180
        %v1259 = vpop.f32.mrb[0].mxu0
        %v1260 = vadd.f32 %v1087, %v1259
        %v1261 = vpop.f32.mrb[0].mxu0
        %1262 = vdwg.mxu0
        %v1264 = vsel %vm1088, %v1080, 0
        %v1267 = vsel %vm1088, %v1081, 0
        %v1270 = vsel %vm1088, %v942, 0
        %v1273 = vsel %vm1088, %v947, 0
        %1275 = vmatprep.subr.mxu0 0.0
        %1276 = vmatpush1.xpose.msra.mxu0 %v1270
        %1277 = vmatprep.subr.mxu0 0.0
        %1278 = vmatpush1.xpose.msra.mxu0 %v1273
        %1279 = vmatprep.subr.mxu0 0.0
        %1280 = vmatpush1.xpose.msra.mxu0 0.0
        %1281 = vmatprep.subr.mxu0 0.0
        %1282 = vmatpush1.xpose.msra.mxu0 0.0
        %1283 = vmatprep.subr.mxu0 0.0
        %1284 = vmatpush1.xpose.msra.mxu0 0.0
        %1285 = vmatprep.subr.mxu0 0.0
        %1286 = vmatpush1.xpose.msra.mxu0 0.0
        %1287 = vmatprep.subr.mxu0 0.0
        %1288 = vmatpush1.xpose.msra.mxu0 0.0
        %1289 = vmatprep.subr.mxu0 0.0
        %1290 = vmatpush1.xpose.msra.mxu0 0.0
        %1291 = vmatprep.subr.mxu0 0.0
        %1292 = vmatpush1.xpose.msra.mxu0 0.0
        %1293 = vmatprep.subr.mxu0 0.0
        %1294 = vmatpush1.xpose.msra.mxu0 0.0
        %1295 = vmatprep.subr.mxu0 0.0
        %1296 = vmatpush1.xpose.msra.mxu0 0.0
        %1297 = vmatprep.subr.mxu0 0.0
        %1298 = vmatpush1.xpose.msra.mxu0 0.0
        %1299 = vmatprep.subr.mxu0 0.0
        %1300 = vmatpush1.xpose.msra.mxu0 0.0
        %1301 = vmatprep.subr.mxu0 0.0
        %1302 = vmatpush1.xpose.msra.mxu0 0.0
        %1303 = vmatprep.subr.mxu0 0.0
        %1304 = vmatpush1.xpose.msra.mxu0 0.0
        %1305 = vmatprep.subr.mxu0 0.0
        %1306 = vmatpush1.xpose.msra.mxu0 0.0
        %1307 = vmatprep.subr.mxu0 0.0
        %1308 = vmatpush1.xpose.msra.mxu0 0.0
        %1309 = vmatprep.subr.mxu0 0.0
        %1310 = vmatpush1.xpose.msra.mxu0 0.0
        %1311 = vmatprep.subr.mxu0 0.0
        %1312 = vmatpush1.xpose.msra.mxu0 0.0
        %1313 = vmatprep.subr.mxu0 0.0
        %1314 = vmatpush1.xpose.msra.mxu0 0.0
        %1315 = vmatprep.subr.mxu0 0.0
        %1316 = vmatpush1.xpose.msra.mxu0 0.0
        %1317 = vmatprep.subr.mxu0 0.0
        %1318 = vmatpush1.xpose.msra.mxu0 0.0
        %1319 = vmatprep.subr.mxu0 0.0
        %1320 = vmatpush1.xpose.msra.mxu0 0.0
        %1321 = vmatprep.subr.mxu0 0.0
        %1322 = vmatpush1.xpose.msra.mxu0 0.0
        %1323 = vmatprep.subr.mxu0 0.0
        %1324 = vmatpush1.xpose.msra.mxu0 0.0
        %1325 = vmatprep.subr.mxu0 0.0
        %1326 = vmatpush1.xpose.msra.mxu0 0.0
        %1327 = vmatprep.subr.mxu0 0.0
        %1328 = vmatpush1.xpose.msra.mxu0 0.0
        %1329 = vmatprep.subr.mxu0 0.0
        %1330 = vmatpush1.xpose.msra.mxu0 0.0
        %1331 = vmatprep.subr.mxu0 0.0
        %1332 = vmatpush1.xpose.msra.mxu0 0.0
        %1333 = vmatprep.subr.mxu0 0.0
        %1334 = vmatpush1.xpose.msra.mxu0 0.0
        %1335 = vmatprep.subr.mxu0 0.0
        %1336 = vmatpush1.xpose.msra.mxu0 0.0
        %1337 = vmatprep.subr.mxu0 0.0
        %1338 = vmatpush1.xpose.msra.mxu0 0.0
        %1339 = vmatprep.mubr.f32.mxu0 0.0
        %1340 = vmatmul.mubr.f32.gmra.mrb[0].mxu0 %v1264
        %v1341 = vpop.f32.mrb[0].mxu0
        %v1342 = vadd.f32 %v1086, %v1341
        %v1343 = vpop.f32.mrb[0].mxu0
        %1344 = vmatprep.mubr.f32.mxu0 0.0
        %1345 = vmatmul.mubr.f32.gmra.mrb[0].mxu0 %v1267
        %v1346 = vpop.f32.mrb[0].mxu0
        %v1347 = vadd.f32 %v1087, %v1346
        %v1348 = vpop.f32.mrb[0].mxu0
        %1349 = vdwg.mxu0
        %v1351 = vsel %vm1088, %v1082, 0
        %v1354 = vsel %vm1088, %v1083, 0
        %v1357 = vsel %vm1088, %v952, 0
        %v1360 = vsel %vm1088, %v957, 0
        %1362 = vmatprep.subr.mxu0 0.0
        %1363 = vmatpush1.xpose.msra.mxu0 %v1357
        %1364 = vmatprep.subr.mxu0 0.0
        %1365 = vmatpush1.xpose.msra.mxu0 %v1360
        %1366 = vmatprep.subr.mxu0 0.0
        %1367 = vmatpush1.xpose.msra.mxu0 0.0
        %1368 = vmatprep.subr.mxu0 0.0
        %1369 = vmatpush1.xpose.msra.mxu0 0.0
        %1370 = vmatprep.subr.mxu0 0.0
        %1371 = vmatpush1.xpose.msra.mxu0 0.0
        %1372 = vmatprep.subr.mxu0 0.0
        %1373 = vmatpush1.xpose.msra.mxu0 0.0
        %1374 = vmatprep.subr.mxu0 0.0
        %1375 = vmatpush1.xpose.msra.mxu0 0.0
        %1376 = vmatprep.subr.mxu0 0.0
        %1377 = vmatpush1.xpose.msra.mxu0 0.0
        %1378 = vmatprep.subr.mxu0 0.0
        %1379 = vmatpush1.xpose.msra.mxu0 0.0
        %1380 = vmatprep.subr.mxu0 0.0
        %1381 = vmatpush1.xpose.msra.mxu0 0.0
        %1382 = vmatprep.subr.mxu0 0.0
        %1383 = vmatpush1.xpose.msra.mxu0 0.0
        %1384 = vmatprep.subr.mxu0 0.0
        %1385 = vmatpush1.xpose.msra.mxu0 0.0
        %1386 = vmatprep.subr.mxu0 0.0
        %1387 = vmatpush1.xpose.msra.mxu0 0.0
        %1388 = vmatprep.subr.mxu0 0.0
        %1389 = vmatpush1.xpose.msra.mxu0 0.0
        %1390 = vmatprep.subr.mxu0 0.0
        %1391 = vmatpush1.xpose.msra.mxu0 0.0
        %1392 = vmatprep.subr.mxu0 0.0
        %1393 = vmatpush1.xpose.msra.mxu0 0.0
        %1394 = vmatprep.subr.mxu0 0.0
        %1395 = vmatpush1.xpose.msra.mxu0 0.0
        %1396 = vmatprep.subr.mxu0 0.0
        %1397 = vmatpush1.xpose.msra.mxu0 0.0
        %1398 = vmatprep.subr.mxu0 0.0
        %1399 = vmatpush1.xpose.msra.mxu0 0.0
        %1400 = vmatprep.subr.mxu0 0.0
        %1401 = vmatpush1.xpose.msra.mxu0 0.0
        %1402 = vmatprep.subr.mxu0 0.0
        %1403 = vmatpush1.xpose.msra.mxu0 0.0
        %1404 = vmatprep.subr.mxu0 0.0
        %1405 = vmatpush1.xpose.msra.mxu0 0.0
        %1406 = vmatprep.subr.mxu0 0.0
        %1407 = vmatpush1.xpose.msra.mxu0 0.0
        %1408 = vmatprep.subr.mxu0 0.0
        %1409 = vmatpush1.xpose.msra.mxu0 0.0
        %1410 = vmatprep.subr.mxu0 0.0
        %1411 = vmatpush1.xpose.msra.mxu0 0.0
        %1412 = vmatprep.subr.mxu0 0.0
        %1413 = vmatpush1.xpose.msra.mxu0 0.0
        %1414 = vmatprep.subr.mxu0 0.0
        %1415 = vmatpush1.xpose.msra.mxu0 0.0
        %1416 = vmatprep.subr.mxu0 0.0
        %1417 = vmatpush1.xpose.msra.mxu0 0.0
        %1418 = vmatprep.subr.mxu0 0.0
        %1419 = vmatpush1.xpose.msra.mxu0 0.0
        %1420 = vmatprep.subr.mxu0 0.0
        %1421 = vmatpush1.xpose.msra.mxu0 0.0
        %1422 = vmatprep.subr.mxu0 0.0
        %1423 = vmatpush1.xpose.msra.mxu0 0.0
        %1424 = vmatprep.subr.mxu0 0.0
        %1425 = vmatpush1.xpose.msra.mxu0 0.0
        %1426 = vmatprep.mubr.f32.mxu0 0.0
        %1427 = vmatmul.mubr.f32.gmra.mrb[0].mxu0 %v1351
        %v1428 = vpop.f32.mrb[0].mxu0
        %v1429 = vadd.f32 %v1086, %v1428
        %v1430 = vpop.f32.mrb[0].mxu0
        %1431 = vmatprep.mubr.f32.mxu0 0.0
        %1432 = vmatmul.mubr.f32.gmra.mrb[0].mxu0 %v1354
        %v1433 = vpop.f32.mrb[0].mxu0
        %v1434 = vadd.f32 %v1087, %v1433
        %v1435 = vpop.f32.mrb[0].mxu0
        %1436 = vdwg.mxu0
        %vm1437 = vcmask 130048
        %v1438 = vsel %vm1437, %v1168, -inf
        %1439 = vmax.xlane.f32.xlu0 %v1438
        %v1440 = vpop.xlane.xlu0 %1439
        %v1441 = vsel %vm1437, %v1173, -inf
        %1442 = vmax.xlane.f32.xlu0 %v1441
        %v1443 = vpop.xlane.xlu0 %1442
        %v1444 = vsel %vm1437, %v1255, -inf
        %1445 = vmax.xlane.f32.xlu0 %v1444
        %v1446 = vpop.xlane.xlu0 %1445
        %v1447 = vsel %vm1437, %v1260, -inf
        %1448 = vmax.xlane.f32.xlu0 %v1447
        %v1449 = vpop.xlane.xlu0 %1448
        %v1450 = vsel %vm1437, %v1342, -inf
        %1451 = vmax.xlane.f32.xlu0 %v1450
        %v1452 = vpop.xlane.xlu0 %1451
        %v1453 = vsel %vm1437, %v1347, -inf
        %1454 = vmax.xlane.f32.xlu0 %v1453
        %v1455 = vpop.xlane.xlu0 %1454
        %v1456 = vsel %vm1437, %v1429, -inf
        %1457 = vmax.xlane.f32.xlu0 %v1456
        %v1458 = vpop.xlane.xlu0 %1457
        %v1459 = vsel %vm1437, %v1434, -inf
        %1460 = vmax.xlane.f32.xlu0 %v1459
        %v1461 = vpop.xlane.xlu0 %1460
        %v1462 = vsub.f32 %v1168, %v1440
        %v1463 = vsub.f32 %v1173, %v1443
        %v1464 = vsub.f32 %v1255, %v1446
        %v1465 = vsub.f32 %v1260, %v1449
        %v1466 = vsub.f32 %v1342, %v1452
        %v1467 = vsub.f32 %v1347, %v1455
        %v1468 = vsub.f32 %v1429, %v1458
        %v1469 = vsub.f32 %v1434, %v1461
        %v1470 = vmul.f32 %v1462, 1.442695
        %v1471 = vpow.pop %v1470
        %v1472 = vmul.f32 %v1463, 1.442695
        %v1473 = vpow.pop %v1472
        %v1474 = vmul.f32 %v1464, 1.442695
        %v1475 = vpow.pop %v1474
        %v1476 = vmul.f32 %v1465, 1.442695
        %v1477 = vpow.pop %v1476
        %v1478 = vmul.f32 %v1466, 1.442695
        %v1479 = vpow.pop %v1478
        %v1480 = vmul.f32 %v1467, 1.442695
        %v1481 = vpow.pop %v1480
        %v1482 = vmul.f32 %v1468, 1.442695
        %v1483 = vpow.pop %v1482
        %v1484 = vmul.f32 %v1469, 1.442695
        %v1485 = vpow.pop %v1484
        %v1486 = vsel %vm1437, %v1471, 0.0
        %1487 = vadd.xlane.f32.xlu0 %v1486
        %v1488 = vpop.xlane.xlu0 %1487
        %v1489 = vsel %vm1437, %v1473, 0.0
        %1490 = vadd.xlane.f32.xlu0 %v1489
        %v1491 = vpop.xlane.xlu0 %1490
        %v1492 = vsel %vm1437, %v1475, 0.0
        %1493 = vadd.xlane.f32.xlu0 %v1492
        %v1494 = vpop.xlane.xlu0 %1493
        %v1495 = vsel %vm1437, %v1477, 0.0
        %1496 = vadd.xlane.f32.xlu0 %v1495
        %v1497 = vpop.xlane.xlu0 %1496
        %v1498 = vsel %vm1437, %v1479, 0.0
        %1499 = vadd.xlane.f32.xlu0 %v1498
        %v1500 = vpop.xlane.xlu0 %1499
        %v1501 = vsel %vm1437, %v1481, 0.0
        %1502 = vadd.xlane.f32.xlu0 %v1501
        %v1503 = vpop.xlane.xlu0 %1502
        %v1504 = vsel %vm1437, %v1483, 0.0
        %1505 = vadd.xlane.f32.xlu0 %v1504
        %v1506 = vpop.xlane.xlu0 %1505
        %v1507 = vsel %vm1437, %v1485, 0.0
        %1508 = vadd.xlane.f32.xlu0 %v1507
        %v1509 = vpop.xlane.xlu0 %1508
        %v1510 = vrcp.pop %v1488
        %v1511 = vrcp.pop %v1491
        %v1512 = vrcp.pop %v1494
        %v1513 = vrcp.pop %v1497
        %v1514 = vrcp.pop %v1500
        %v1515 = vrcp.pop %v1503
        %v1516 = vrcp.pop %v1506
        %v1517 = vrcp.pop %v1509
        %v1518 = vmul.f32 %v1471, %v1510
        %v1519 = vmul.f32 %v1473, %v1511
        %v1520 = vmul.f32 %v1475, %v1512
        %v1521 = vmul.f32 %v1477, %v1513
        %v1522 = vmul.f32 %v1479, %v1514
        %v1523 = vmul.f32 %v1481, %v1515
        %v1524 = vmul.f32 %v1483, %v1516
        %v1525 = vmul.f32 %v1485, %v1517
        %v1527 = vsel %vm1437, %v1518, 0
        %v1530 = vsel %vm1437, %v1519, 0
        %1532 = vmatprep.subr.mxu0 0.0
        %1533 = vmatpush1.msra.mxu0 %v1038
        %1534 = vmatprep.subr.mxu0 0.0
        %1535 = vmatpush1.msra.mxu0 %v1043
        %1536 = vmatprep.subr.mxu0 0.0
        %1537 = vmatpush1.msra.mxu0 0.0
        %1538 = vmatprep.subr.mxu0 0.0
        %1539 = vmatpush1.msra.mxu0 0.0
        %1540 = vmatprep.subr.mxu0 0.0
        %1541 = vmatpush1.msra.mxu0 0.0
        %1542 = vmatprep.subr.mxu0 0.0
        %1543 = vmatpush1.msra.mxu0 0.0
        %1544 = vmatprep.subr.mxu0 0.0
        %1545 = vmatpush1.msra.mxu0 0.0
        %1546 = vmatprep.subr.mxu0 0.0
        %1547 = vmatpush1.msra.mxu0 0.0
        %1548 = vmatprep.subr.mxu0 0.0
        %1549 = vmatpush1.msra.mxu0 0.0
        %1550 = vmatprep.subr.mxu0 0.0
        %1551 = vmatpush1.msra.mxu0 0.0
        %1552 = vmatprep.subr.mxu0 0.0
        %1553 = vmatpush1.msra.mxu0 0.0
        %1554 = vmatprep.subr.mxu0 0.0
        %1555 = vmatpush1.msra.mxu0 0.0
        %1556 = vmatprep.subr.mxu0 0.0
        %1557 = vmatpush1.msra.mxu0 0.0
        %1558 = vmatprep.subr.mxu0 0.0
        %1559 = vmatpush1.msra.mxu0 0.0
        %1560 = vmatprep.subr.mxu0 0.0
        %1561 = vmatpush1.msra.mxu0 0.0
        %1562 = vmatprep.subr.mxu0 0.0
        %1563 = vmatpush1.msra.mxu0 0.0
        %1564 = vmatprep.subr.mxu0 0.0
        %1565 = vmatpush1.msra.mxu0 0.0
        %1566 = vmatprep.subr.mxu0 0.0
        %1567 = vmatpush1.msra.mxu0 0.0
        %1568 = vmatprep.subr.mxu0 0.0
        %1569 = vmatpush1.msra.mxu0 0.0
        %1570 = vmatprep.subr.mxu0 0.0
        %1571 = vmatpush1.msra.mxu0 0.0
        %1572 = vmatprep.subr.mxu0 0.0
        %1573 = vmatpush1.msra.mxu0 0.0
        %1574 = vmatprep.subr.mxu0 0.0
        %1575 = vmatpush1.msra.mxu0 0.0
        %1576 = vmatprep.subr.mxu0 0.0
        %1577 = vmatpush1.msra.mxu0 0.0
        %1578 = vmatprep.subr.mxu0 0.0
        %1579 = vmatpush1.msra.mxu0 0.0
        %1580 = vmatprep.subr.mxu0 0.0
        %1581 = vmatpush1.msra.mxu0 0.0
        %1582 = vmatprep.subr.mxu0 0.0
        %1583 = vmatpush1.msra.mxu0 0.0
        %1584 = vmatprep.subr.mxu0 0.0
        %1585 = vmatpush1.msra.mxu0 0.0
        %1586 = vmatprep.subr.mxu0 0.0
        %1587 = vmatpush1.msra.mxu0 0.0
        %1588 = vmatprep.subr.mxu0 0.0
        %1589 = vmatpush1.msra.mxu0 0.0
        %1590 = vmatprep.subr.mxu0 0.0
        %1591 = vmatpush1.msra.mxu0 0.0
        %1592 = vmatprep.subr.mxu0 0.0
        %1593 = vmatpush1.msra.mxu0 0.0
        %1594 = vmatprep.subr.mxu0 0.0
        %1595 = vmatpush1.msra.mxu0 0.0
        %1596 = vmatprep.mubr.f32.mxu0 0.0
        %1597 = vmatmul.mubr.f32.gmra.mrb[0].mxu0 %v1527
        %v1598 = vpop.f32.mrb[0].mxu0
        %v1599 = vadd.f32 0.0, %v1598
        %v1600 = vpop.f32.mrb[0].mxu0
        %1601 = vmatprep.mubr.f32.mxu0 0.0
        %1602 = vmatmul.mubr.f32.gmra.mrb[0].mxu0 %v1530
        %v1603 = vpop.f32.mrb[0].mxu0
        %v1604 = vadd.f32 0.0, %v1603
        %v1605 = vpop.f32.mrb[0].mxu0
        %1606 = vdwg.mxu0
        %v1608 = vsel %vm1437, %v1520, 0
        %v1611 = vsel %vm1437, %v1521, 0
        %1613 = vmatprep.subr.mxu0 0.0
        %1614 = vmatpush1.msra.mxu0 %v1048
        %1615 = vmatprep.subr.mxu0 0.0
        %1616 = vmatpush1.msra.mxu0 %v1053
        %1617 = vmatprep.subr.mxu0 0.0
        %1618 = vmatpush1.msra.mxu0 0.0
        %1619 = vmatprep.subr.mxu0 0.0
        %1620 = vmatpush1.msra.mxu0 0.0
        %1621 = vmatprep.subr.mxu0 0.0
        %1622 = vmatpush1.msra.mxu0 0.0
        %1623 = vmatprep.subr.mxu0 0.0
        %1624 = vmatpush1.msra.mxu0 0.0
        %1625 = vmatprep.subr.mxu0 0.0
        %1626 = vmatpush1.msra.mxu0 0.0
        %1627 = vmatprep.subr.mxu0 0.0
        %1628 = vmatpush1.msra.mxu0 0.0
        %1629 = vmatprep.subr.mxu0 0.0
        %1630 = vmatpush1.msra.mxu0 0.0
        %1631 = vmatprep.subr.mxu0 0.0
        %1632 = vmatpush1.msra.mxu0 0.0
        %1633 = vmatprep.subr.mxu0 0.0
        %1634 = vmatpush1.msra.mxu0 0.0
        %1635 = vmatprep.subr.mxu0 0.0
        %1636 = vmatpush1.msra.mxu0 0.0
        %1637 = vmatprep.subr.mxu0 0.0
        %1638 = vmatpush1.msra.mxu0 0.0
        %1639 = vmatprep.subr.mxu0 0.0
        %1640 = vmatpush1.msra.mxu0 0.0
        %1641 = vmatprep.subr.mxu0 0.0
        %1642 = vmatpush1.msra.mxu0 0.0
        %1643 = vmatprep.subr.mxu0 0.0
        %1644 = vmatpush1.msra.mxu0 0.0
        %1645 = vmatprep.subr.mxu0 0.0
        %1646 = vmatpush1.msra.mxu0 0.0
        %1647 = vmatprep.subr.mxu0 0.0
        %1648 = vmatpush1.msra.mxu0 0.0
        %1649 = vmatprep.subr.mxu0 0.0
        %1650 = vmatpush1.msra.mxu0 0.0
        %1651 = vmatprep.subr.mxu0 0.0
        %1652 = vmatpush1.msra.mxu0 0.0
        %1653 = vmatprep.subr.mxu0 0.0
        %1654 = vmatpush1.msra.mxu0 0.0
        %1655 = vmatprep.subr.mxu0 0.0
        %1656 = vmatpush1.msra.mxu0 0.0
        %1657 = vmatprep.subr.mxu0 0.0
        %1658 = vmatpush1.msra.mxu0 0.0
        %1659 = vmatprep.subr.mxu0 0.0
        %1660 = vmatpush1.msra.mxu0 0.0
        %1661 = vmatprep.subr.mxu0 0.0
        %1662 = vmatpush1.msra.mxu0 0.0
        %1663 = vmatprep.subr.mxu0 0.0
        %1664 = vmatpush1.msra.mxu0 0.0
        %1665 = vmatprep.subr.mxu0 0.0
        %1666 = vmatpush1.msra.mxu0 0.0
        %1667 = vmatprep.subr.mxu0 0.0
        %1668 = vmatpush1.msra.mxu0 0.0
        %1669 = vmatprep.subr.mxu0 0.0
        %1670 = vmatpush1.msra.mxu0 0.0
        %1671 = vmatprep.subr.mxu0 0.0
        %1672 = vmatpush1.msra.mxu0 0.0
        %1673 = vmatprep.subr.mxu0 0.0
        %1674 = vmatpush1.msra.mxu0 0.0
        %1675 = vmatprep.subr.mxu0 0.0
        %1676 = vmatpush1.msra.mxu0 0.0
        %1677 = vmatprep.mubr.f32.mxu0 0.0
        %1678 = vmatmul.mubr.f32.gmra.mrb[0].mxu0 %v1608
        %v1679 = vpop.f32.mrb[0].mxu0
        %v1680 = vadd.f32 0.0, %v1679
        %v1681 = vpop.f32.mrb[0].mxu0
        %1682 = vmatprep.mubr.f32.mxu0 0.0
        %1683 = vmatmul.mubr.f32.gmra.mrb[0].mxu0 %v1611
        %v1684 = vpop.f32.mrb[0].mxu0
        %v1685 = vadd.f32 0.0, %v1684
        %v1686 = vpop.f32.mrb[0].mxu0
        %1687 = vdwg.mxu0
        %v1689 = vsel %vm1437, %v1522, 0
        %v1692 = vsel %vm1437, %v1523, 0
        %1694 = vmatprep.subr.mxu0 0.0
        %1695 = vmatpush1.msra.mxu0 %v1058
        %1696 = vmatprep.subr.mxu0 0.0
        %1697 = vmatpush1.msra.mxu0 %v1063
        %1698 = vmatprep.subr.mxu0 0.0
        %1699 = vmatpush1.msra.mxu0 0.0
        %1700 = vmatprep.subr.mxu0 0.0
        %1701 = vmatpush1.msra.mxu0 0.0
        %1702 = vmatprep.subr.mxu0 0.0
        %1703 = vmatpush1.msra.mxu0 0.0
        %1704 = vmatprep.subr.mxu0 0.0
        %1705 = vmatpush1.msra.mxu0 0.0
        %1706 = vmatprep.subr.mxu0 0.0
        %1707 = vmatpush1.msra.mxu0 0.0
        %1708 = vmatprep.subr.mxu0 0.0
        %1709 = vmatpush1.msra.mxu0 0.0
        %1710 = vmatprep.subr.mxu0 0.0
        %1711 = vmatpush1.msra.mxu0 0.0
        %1712 = vmatprep.subr.mxu0 0.0
        %1713 = vmatpush1.msra.mxu0 0.0
        %1714 = vmatprep.subr.mxu0 0.0
        %1715 = vmatpush1.msra.mxu0 0.0
        %1716 = vmatprep.subr.mxu0 0.0
        %1717 = vmatpush1.msra.mxu0 0.0
        %1718 = vmatprep.subr.mxu0 0.0
        %1719 = vmatpush1.msra.mxu0 0.0
        %1720 = vmatprep.subr.mxu0 0.0
        %1721 = vmatpush1.msra.mxu0 0.0
        %1722 = vmatprep.subr.mxu0 0.0
        %1723 = vmatpush1.msra.mxu0 0.0
        %1724 = vmatprep.subr.mxu0 0.0
        %1725 = vmatpush1.msra.mxu0 0.0
        %1726 = vmatprep.subr.mxu0 0.0
        %1727 = vmatpush1.msra.mxu0 0.0
        %1728 = vmatprep.subr.mxu0 0.0
        %1729 = vmatpush1.msra.mxu0 0.0
        %1730 = vmatprep.subr.mxu0 0.0
        %1731 = vmatpush1.msra.mxu0 0.0
        %1732 = vmatprep.subr.mxu0 0.0
        %1733 = vmatpush1.msra.mxu0 0.0
        %1734 = vmatprep.subr.mxu0 0.0
        %1735 = vmatpush1.msra.mxu0 0.0
        %1736 = vmatprep.subr.mxu0 0.0
        %1737 = vmatpush1.msra.mxu0 0.0
        %1738 = vmatprep.subr.mxu0 0.0
        %1739 = vmatpush1.msra.mxu0 0.0
        %1740 = vmatprep.subr.mxu0 0.0
        %1741 = vmatpush1.msra.mxu0 0.0
        %1742 = vmatprep.subr.mxu0 0.0
        %1743 = vmatpush1.msra.mxu0 0.0
        %1744 = vmatprep.subr.mxu0 0.0
        %1745 = vmatpush1.msra.mxu0 0.0
        %1746 = vmatprep.subr.mxu0 0.0
        %1747 = vmatpush1.msra.mxu0 0.0
        %1748 = vmatprep.subr.mxu0 0.0
        %1749 = vmatpush1.msra.mxu0 0.0
        %1750 = vmatprep.subr.mxu0 0.0
        %1751 = vmatpush1.msra.mxu0 0.0
        %1752 = vmatprep.subr.mxu0 0.0
        %1753 = vmatpush1.msra.mxu0 0.0
        %1754 = vmatprep.subr.mxu0 0.0
        %1755 = vmatpush1.msra.mxu0 0.0
        %1756 = vmatprep.subr.mxu0 0.0
        %1757 = vmatpush1.msra.mxu0 0.0
        %1758 = vmatprep.mubr.f32.mxu0 0.0
        %1759 = vmatmul.mubr.f32.gmra.mrb[0].mxu0 %v1689
        %v1760 = vpop.f32.mrb[0].mxu0
        %v1761 = vadd.f32 0.0, %v1760
        %v1762 = vpop.f32.mrb[0].mxu0
        %1763 = vmatprep.mubr.f32.mxu0 0.0
        %1764 = vmatmul.mubr.f32.gmra.mrb[0].mxu0 %v1692
        %v1765 = vpop.f32.mrb[0].mxu0
        %v1766 = vadd.f32 0.0, %v1765
        %v1767 = vpop.f32.mrb[0].mxu0
        %1768 = vdwg.mxu0
        %v1770 = vsel %vm1437, %v1524, 0
        %v1773 = vsel %vm1437, %v1525, 0
        %1775 = vmatprep.subr.mxu0 0.0
        %1776 = vmatpush1.msra.mxu0 %v1068
        %1777 = vmatprep.subr.mxu0 0.0
        %1778 = vmatpush1.msra.mxu0 %v1073
        %1779 = vmatprep.subr.mxu0 0.0
        %1780 = vmatpush1.msra.mxu0 0.0
        %1781 = vmatprep.subr.mxu0 0.0
        %1782 = vmatpush1.msra.mxu0 0.0
        %1783 = vmatprep.subr.mxu0 0.0
        %1784 = vmatpush1.msra.mxu0 0.0
        %1785 = vmatprep.subr.mxu0 0.0
        %1786 = vmatpush1.msra.mxu0 0.0
        %1787 = vmatprep.subr.mxu0 0.0
        %1788 = vmatpush1.msra.mxu0 0.0
        %1789 = vmatprep.subr.mxu0 0.0
        %1790 = vmatpush1.msra.mxu0 0.0
        %1791 = vmatprep.subr.mxu0 0.0
        %1792 = vmatpush1.msra.mxu0 0.0
        %1793 = vmatprep.subr.mxu0 0.0
        %1794 = vmatpush1.msra.mxu0 0.0
        %1795 = vmatprep.subr.mxu0 0.0
        %1796 = vmatpush1.msra.mxu0 0.0
        %1797 = vmatprep.subr.mxu0 0.0
        %1798 = vmatpush1.msra.mxu0 0.0
        %1799 = vmatprep.subr.mxu0 0.0
        %1800 = vmatpush1.msra.mxu0 0.0
        %1801 = vmatprep.subr.mxu0 0.0
        %1802 = vmatpush1.msra.mxu0 0.0
        %1803 = vmatprep.subr.mxu0 0.0
        %1804 = vmatpush1.msra.mxu0 0.0
        %1805 = vmatprep.subr.mxu0 0.0
        %1806 = vmatpush1.msra.mxu0 0.0
        %1807 = vmatprep.subr.mxu0 0.0
        %1808 = vmatpush1.msra.mxu0 0.0
        %1809 = vmatprep.subr.mxu0 0.0
        %1810 = vmatpush1.msra.mxu0 0.0
        %1811 = vmatprep.subr.mxu0 0.0
        %1812 = vmatpush1.msra.mxu0 0.0
        %1813 = vmatprep.subr.mxu0 0.0
        %1814 = vmatpush1.msra.mxu0 0.0
        %1815 = vmatprep.subr.mxu0 0.0
        %1816 = vmatpush1.msra.mxu0 0.0
        %1817 = vmatprep.subr.mxu0 0.0
        %1818 = vmatpush1.msra.mxu0 0.0
        %1819 = vmatprep.subr.mxu0 0.0
        %1820 = vmatpush1.msra.mxu0 0.0
        %1821 = vmatprep.subr.mxu0 0.0
        %1822 = vmatpush1.msra.mxu0 0.0
        %1823 = vmatprep.subr.mxu0 0.0
        %1824 = vmatpush1.msra.mxu0 0.0
        %1825 = vmatprep.subr.mxu0 0.0
        %1826 = vmatpush1.msra.mxu0 0.0
        %1827 = vmatprep.subr.mxu0 0.0
        %1828 = vmatpush1.msra.mxu0 0.0
        %1829 = vmatprep.subr.mxu0 0.0
        %1830 = vmatpush1.msra.mxu0 0.0
        %1831 = vmatprep.subr.mxu0 0.0
        %1832 = vmatpush1.msra.mxu0 0.0
        %1833 = vmatprep.subr.mxu0 0.0
        %1834 = vmatpush1.msra.mxu0 0.0
        %1835 = vmatprep.subr.mxu0 0.0
        %1836 = vmatpush1.msra.mxu0 0.0
        %1837 = vmatprep.subr.mxu0 0.0
        %1838 = vmatpush1.msra.mxu0 0.0
        %1839 = vmatprep.mubr.f32.mxu0 0.0
        %1840 = vmatmul.mubr.f32.gmra.mrb[0].mxu0 %v1770
        %v1841 = vpop.f32.mrb[0].mxu0
        %v1842 = vadd.f32 0.0, %v1841
        %v1843 = vpop.f32.mrb[0].mxu0
        %1844 = vmatprep.mubr.f32.mxu0 0.0
        %1845 = vmatmul.mubr.f32.gmra.mrb[0].mxu0 %v1773
        %v1846 = vpop.f32.mrb[0].mxu0
        %v1847 = vadd.f32 0.0, %v1846
        %v1848 = vpop.f32.mrb[0].mxu0
        %1849 = vdwg.mxu0
        %v1850 = vld [vmem:[%s606] sm:$0xff]
        %v1852 = vsel %vm1088, %v1599, 0
        %v1855 = vsel %vm1088, %v1604, 0
        %v1858 = vsel %vm1088, %v1680, 0
        %v1861 = vsel %vm1088, %v1685, 0
        %v1864 = vsel %vm1088, %v1761, 0
        %v1867 = vsel %vm1088, %v1766, 0
        %v1870 = vsel %vm1088, %v1842, 0
        %v1873 = vsel %vm1088, %v1847, 0
        %1875 = vmatprep.subr.mxu0 0.0
        %1876 = vmatpush1.msra.mxu0 %v1850
        %1877 = vmatprep.subr.mxu0 0.0
        %1878 = vmatpush1.msra.mxu0 0.0
        %1879 = vmatprep.subr.mxu0 0.0
        %1880 = vmatpush1.msra.mxu0 0.0
        %1881 = vmatprep.subr.mxu0 0.0
        %1882 = vmatpush1.msra.mxu0 0.0
        %1883 = vmatprep.subr.mxu0 0.0
        %1884 = vmatpush1.msra.mxu0 0.0
        %1885 = vmatprep.subr.mxu0 0.0
        %1886 = vmatpush1.msra.mxu0 0.0
        %1887 = vmatprep.subr.mxu0 0.0
        %1888 = vmatpush1.msra.mxu0 0.0
        %1889 = vmatprep.subr.mxu0 0.0
        %1890 = vmatpush1.msra.mxu0 0.0
        %1891 = vmatprep.subr.mxu0 0.0
        %1892 = vmatpush1.msra.mxu0 0.0
        %1893 = vmatprep.subr.mxu0 0.0
        %1894 = vmatpush1.msra.mxu0 0.0
        %1895 = vmatprep.subr.mxu0 0.0
        %1896 = vmatpush1.msra.mxu0 0.0
        %1897 = vmatprep.subr.mxu0 0.0
        %1898 = vmatpush1.msra.mxu0 0.0
        %1899 = vmatprep.subr.mxu0 0.0
        %1900 = vmatpush1.msra.mxu0 0.0
        %1901 = vmatprep.subr.mxu0 0.0
        %1902 = vmatpush1.msra.mxu0 0.0
        %1903 = vmatprep.subr.mxu0 0.0
        %1904 = vmatpush1.msra.mxu0 0.0
        %1905 = vmatprep.subr.mxu0 0.0
        %1906 = vmatpush1.msra.mxu0 0.0
        %1907 = vmatprep.subr.mxu0 0.0
        %1908 = vmatpush1.msra.mxu0 0.0
        %1909 = vmatprep.subr.mxu0 0.0
        %1910 = vmatpush1.msra.mxu0 0.0
        %1911 = vmatprep.subr.mxu0 0.0
        %1912 = vmatpush1.msra.mxu0 0.0
        %1913 = vmatprep.subr.mxu0 0.0
        %1914 = vmatpush1.msra.mxu0 0.0
        %1915 = vmatprep.subr.mxu0 0.0
        %1916 = vmatpush1.msra.mxu0 0.0
        %1917 = vmatprep.subr.mxu0 0.0
        %1918 = vmatpush1.msra.mxu0 0.0
        %1919 = vmatprep.subr.mxu0 0.0
        %1920 = vmatpush1.msra.mxu0 0.0
        %1921 = vmatprep.subr.mxu0 0.0
        %1922 = vmatpush1.msra.mxu0 0.0
        %1923 = vmatprep.subr.mxu0 0.0
        %1924 = vmatpush1.msra.mxu0 0.0
        %1925 = vmatprep.subr.mxu0 0.0
        %1926 = vmatpush1.msra.mxu0 0.0
        %1927 = vmatprep.subr.mxu0 0.0
        %1928 = vmatpush1.msra.mxu0 0.0
        %1929 = vmatprep.subr.mxu0 0.0
        %1930 = vmatpush1.msra.mxu0 0.0
        %1931 = vmatprep.subr.mxu0 0.0
        %1932 = vmatpush1.msra.mxu0 0.0
        %1933 = vmatprep.subr.mxu0 0.0
        %1934 = vmatpush1.msra.mxu0 0.0
        %1935 = vmatprep.subr.mxu0 0.0
        %1936 = vmatpush1.msra.mxu0 0.0
        %1937 = vmatprep.subr.mxu0 0.0
        %1938 = vmatpush1.msra.mxu0 0.0
        %1939 = vmatprep.mubr.f32.mxu0 0.0
        %1940 = vmatmul.mubr.f32.gmra.mrb[0].mxu0 %v1852
        %v1941 = vpop.f32.mrb[0].mxu0
        %v1942 = vadd.f32 0.0, %v1941
        %v1943 = vpop.f32.mrb[0].mxu0
        %1944 = vmatprep.mubr.f32.mxu0 0.0
        %1945 = vmatmul.mubr.f32.gmra.mrb[0].mxu0 %v1855
        %v1946 = vpop.f32.mrb[0].mxu0
        %v1947 = vadd.f32 0.0, %v1946
        %v1948 = vpop.f32.mrb[0].mxu0
        %1949 = vmatprep.mubr.f32.mxu0 0.0
        %1950 = vmatmul.mubr.f32.gmra.mrb[0].mxu0 %v1858
        %v1951 = vpop.f32.mrb[0].mxu0
        %v1952 = vadd.f32 0.0, %v1951
        %v1953 = vpop.f32.mrb[0].mxu0
        %1954 = vmatprep.mubr.f32.mxu0 0.0
        %1955 = vmatmul.mubr.f32.gmra.mrb[0].mxu0 %v1861
        %v1956 = vpop.f32.mrb[0].mxu0
        %v1957 = vadd.f32 0.0, %v1956
        %v1958 = vpop.f32.mrb[0].mxu0
        %1959 = vmatprep.mubr.f32.mxu0 0.0
        %1960 = vmatmul.mubr.f32.gmra.mrb[0].mxu0 %v1864
        %v1961 = vpop.f32.mrb[0].mxu0
        %v1962 = vadd.f32 0.0, %v1961
        %v1963 = vpop.f32.mrb[0].mxu0
        %1964 = vmatprep.mubr.f32.mxu0 0.0
        %1965 = vmatmul.mubr.f32.gmra.mrb[0].mxu0 %v1867
        %v1966 = vpop.f32.mrb[0].mxu0
        %v1967 = vadd.f32 0.0, %v1966
        %v1968 = vpop.f32.mrb[0].mxu0
        %1969 = vmatprep.mubr.f32.mxu0 0.0
        %1970 = vmatmul.mubr.f32.gmra.mrb[0].mxu0 %v1870
        %v1971 = vpop.f32.mrb[0].mxu0
        %v1972 = vadd.f32 0.0, %v1971
        %v1973 = vpop.f32.mrb[0].mxu0
        %1974 = vmatprep.mubr.f32.mxu0 0.0
        %1975 = vmatmul.mubr.f32.gmra.mrb[0].mxu0 %v1873
        %v1976 = vpop.f32.mrb[0].mxu0
        %v1977 = vadd.f32 0.0, %v1976
        %v1978 = vpop.f32.mrb[0].mxu0
        %1979 = vdwg.mxu0
        %p1980 = scmp.eq.s32.totalorder %s47, 0
        // Predicated region
        $region101: #{_lambda_.8} parent=59 // pred_check
          %p1981 = pneg %p1980
        $region102: #{_lambda_.8} parent=59 // pred_check_branch
          %1983 = sbr.rel (%p1981) target = $region104
        $region103: #{_lambda_.8} parent=59 // pred_region
          %1984 = vst.msk [vmem:[#allocation2] sm:$0xff] %vm714, 0.0
          %1985 = vst.msk [vmem:[#allocation2 + $0x8] sm:$0xff] %vm714, 0.0
          %1986 = vst.msk [vmem:[#allocation2 + $0x10] sm:$0xff] %vm714, 0.0
          %1987 = vst.msk [vmem:[#allocation2 + $0x18] sm:$0xff] %vm714, 0.0
          %1988 = vst.msk [vmem:[#allocation2 + $0x20] sm:$0xff] %vm714, 0.0
          %1989 = vst.msk [vmem:[#allocation2 + $0x28] sm:$0xff] %vm714, 0.0
          %1990 = vst.msk [vmem:[#allocation2 + $0x30] sm:$0xff] %vm714, 0.0
          %1991 = vst.msk [vmem:[#allocation2 + $0x38] sm:$0xff] %vm714, 0.0
        $region104: #{_lambda_.8} parent=59 // pred_fallthru
          _
        %v1992 = vld [vmem:[#allocation2] sm:$0xff]
        %v1993 = vld [vmem:[#allocation2 + $0x8] sm:$0xff]
        %v1994 = vld [vmem:[#allocation2 + $0x10] sm:$0xff]
        %v1995 = vld [vmem:[#allocation2 + $0x18] sm:$0xff]
        %v1996 = vld [vmem:[#allocation2 + $0x20] sm:$0xff]
        %v1997 = vld [vmem:[#allocation2 + $0x28] sm:$0xff]
        %v1998 = vld [vmem:[#allocation2 + $0x30] sm:$0xff]
        %v1999 = vld [vmem:[#allocation2 + $0x38] sm:$0xff]
        %v2000 = vadd.f32 %v1992, %v1942
        %v2001 = vadd.f32 %v1993, %v1947
        %v2002 = vadd.f32 %v1994, %v1952
        %v2003 = vadd.f32 %v1995, %v1957
        %v2004 = vadd.f32 %v1996, %v1962
        %v2005 = vadd.f32 %v1997, %v1967
        %v2006 = vadd.f32 %v1998, %v1972
        %v2007 = vadd.f32 %v1999, %v1977
        %2008 = vst.msk [vmem:[#allocation2] sm:$0xff] %vm714, %v2000
        %2009 = vst.msk [vmem:[#allocation2 + $0x8] sm:$0xff] %vm714, %v2001
        %2010 = vst.msk [vmem:[#allocation2 + $0x10] sm:$0xff] %vm714, %v2002
        %2011 = vst.msk [vmem:[#allocation2 + $0x18] sm:$0xff] %vm714, %v2003
        %2012 = vst.msk [vmem:[#allocation2 + $0x20] sm:$0xff] %vm714, %v2004
        %2013 = vst.msk [vmem:[#allocation2 + $0x28] sm:$0xff] %vm714, %v2005
        %2014 = vst.msk [vmem:[#allocation2 + $0x30] sm:$0xff] %vm714, %v2006
        %2015 = vst.msk [vmem:[#allocation2 + $0x38] sm:$0xff] %vm714, %v2007
        %p2016 = scmp.eq.s32.totalorder %s47, 3
        // Predicated region
        $region105: #{_lambda_.8} parent=59 // pred_check
          %p2017 = pneg %p2016
        $region106: #{_lambda_.8} parent=59 // pred_check_branch
          %2019 = sbr.rel (%p2017) target = $region108
        $region107: #{_lambda_.8} parent=59 // pred_region
          %v2020 = vld [vmem:[#allocation2] sm:$0xff]
          %v2021 = vld [vmem:[#allocation2 + $0x8] sm:$0xff]
          %v2022 = vld [vmem:[#allocation2 + $0x10] sm:$0xff]
          %v2023 = vld [vmem:[#allocation2 + $0x18] sm:$0xff]
          %v2024 = vld [vmem:[#allocation2 + $0x20] sm:$0xff]
          %v2025 = vld [vmem:[#allocation2 + $0x28] sm:$0xff]
          %v2026 = vld [vmem:[#allocation2 + $0x30] sm:$0xff]
          %v2027 = vld [vmem:[#allocation2 + $0x38] sm:$0xff]
          %v2028 = vld [vmem:[#allocation17] sm:$0x1]
          %v2030 = vlaneseq
          %v2031 = vshrl.u32 %v2030, 7
          %v2032 = vsub.s32 0, %v2031
          %v2033 = vrot.slane %v2028, %v2032
          %v2035 = vadd.f32 %v2020, %v2033
          %v2036 = vadd.f32 %v2021, %v2033
          %v2037 = vadd.f32 %v2022, %v2033
          %v2038 = vadd.f32 %v2023, %v2033
          %v2039 = vadd.f32 %v2024, %v2033
          %v2040 = vadd.f32 %v2025, %v2033
          %v2041 = vadd.f32 %v2026, %v2033
          %v2042 = vadd.f32 %v2027, %v2033
          %2043 = vst.msk [vmem:[%s692] sm:$0xff] %vm714, %v2035
          %2044 = vst.msk [vmem:[%s692 + $0x8] sm:$0xff] %vm714, %v2036
          %2045 = vst.msk [vmem:[%s692 + $0x10] sm:$0xff] %vm714, %v2037
          %2046 = vst.msk [vmem:[%s692 + $0x18] sm:$0xff] %vm714, %v2038
          %2047 = vst.msk [vmem:[%s692 + $0x20] sm:$0xff] %vm714, %v2039
          %2048 = vst.msk [vmem:[%s692 + $0x28] sm:$0xff] %vm714, %v2040
          %2049 = vst.msk [vmem:[%s692 + $0x30] sm:$0xff] %vm714, %v2041
          %2050 = vst.msk [vmem:[%s692 + $0x38] sm:$0xff] %vm714, %v2042
        $region108: #{_lambda_.8} parent=59 // pred_fallthru
          _
        %s2051 = sand.u32 %s317, 1
        %s2052 = scalar_lea.sflag [#allocation5], %s2051
        %s2053 = sand.u32 %s317, 1
        %s2054 = smul.addr %s2053, 64
        %s2055 = scalar_lea.vmem [#allocation20], %s2054
        // Predicated region
        $region109: #{_lambda_.8} parent=59 // pred_check
          %p2056 = pneg %p327
        $region110: #{_lambda_.8} parent=59 // pred_check_branch
          %2058 = sbr.rel (%p2056) target = $region112
        $region111: #{_lambda_.8} parent=59 // pred_region
          %s2059 = smul.u32 4, %s46
          %s2061 = ssub.s32 1024, 1024
          %2062 = vsyncadd %s2052, %s2061
          %s2063 = smul.addr %s2059, 2
          %s2064 = smul.addr %s2063, 128
          %s2065 = scalar_lea.hbm %s10, %s2064
          %s2066 = sshll.u32 %s2055, 4
          %s2067 = int_to_ptr.vmem [resolvable:$true] %s2066
          %2072 = dma.vmem_to_hbm [thread:$0]  %s2067, 1024, %s2065, %s2052, 128, 128, 8
        $region112: #{_lambda_.8} parent=59 // pred_fallthru
          _
      $region60: #{_lambda_.8} parent=5 // pred_fallthru
        _
      %p2073 = scmp.le.s32.totalorder 2, %s37
      // Predicated region
      $region113: #{_lambda_.8} parent=5 // pred_check
        %p2074 = pneg %p2073
      $region114: #{_lambda_.8} parent=5 // pred_check_branch
        %2076 = sbr.rel (%p2074) target = $region116
      $region115: #{_lambda_.8} parent=5 // pred_region
        %s2077 = ssub.s32 %s37, 2
        // Predicated region
        $region117: #{_lambda_.8} parent=115 // pred_check
          %p2078 = pneg %p333
        $region118: #{_lambda_.8} parent=115 // pred_check_branch
          %2080 = sbr.rel (%p2078) target = $region120
        $region119: #{_lambda_.8} parent=115 // pred_region
          %s2081 = sand.u32 %s318, 1
          %s2082 = scalar_lea.sflag [#allocation5], %s2081
          %s2083 = sand.u32 %s318, 1
          %s2084 = smul.addr %s2083, 64
          %s2085 = scalar_lea.vmem [#allocation20], %s2084
          %2086 = dma.done %s2082, 1024
        $region120: #{_lambda_.8} parent=115 // pred_fallthru
          _
      $region116: #{_lambda_.8} parent=5 // pred_fallthru
        _
    $region6: #{_lambda_.8} parent=1 // loop_footer
      %s41 = sadd.s32 1, %s37
    $region7: #{_lambda_.8} parent=1 // loop_footer_branch
      %36 = sbr.rel target = $region3
    $region8: #{_lambda_.8} parent=1 // loop_exit
      _
    %2087 = vsyncpa [#allocation4], 1
    %s2088 = scalar_lea.sflag [#allocation4], 1
    %2089 = vsyncpa %s2088, 1
    %2090 = vsyncpa [#allocation7], 1
    %s2091 = scalar_lea.sflag [#allocation7], 1
    %2092 = vsyncpa %s2091, 1
    %2093 = vsyncpa [#allocation10], 1
    %s2094 = scalar_lea.sflag [#allocation10], 1
    %2095 = vsyncpa %s2094, 1
    %2096 = vsyncpa [#allocation13], 1
    %s2097 = scalar_lea.sflag [#allocation13], 1
    %2098 = vsyncpa %s2097, 1
    %2099 = vsyncpa [#allocation16], 1
    %s2100 = scalar_lea.sflag [#allocation16], 1
    %2101 = vsyncpa %s2100, 1
    %2102 = vsyncpa [#allocation19], 1
    %s2103 = scalar_lea.sflag [#allocation19], 1
    %2104 = vsyncpa %s2103, 1
    %2105 = vsyncpa [#allocation5], 1
    %s2106 = scalar_lea.sflag [#allocation5], 1
    %2107 = vsyncpa %s2106, 1

</llo_original>
